<compile_context>
chip_gen: v7x
topology: tpu7x:2x2x1
jax: 0.10.0
libtpu: 0.0.40
codegen_flags: <defaults>
</compile_context>

<pallas_src>
import functools

import jax
import jax.numpy as jnp
from jax.experimental import pallas as pl
from jax.experimental.pallas import tpu as pltpu

EPS = 1e-5  # PyTorch InstanceNorm2d default


# ---------------------------------------------------------------------------
# In-kernel helpers
# ---------------------------------------------------------------------------
def _instance_norm(y, inv_hw):
    """Per-channel instance norm over axis 0, centered two-pass stats.

    y: (HW, C) f32.  Returns (y - mean) / sqrt(var + eps).
    """
    mean = jnp.sum(y, axis=0, keepdims=True) * inv_hw
    d = y - mean
    var = jnp.sum(d * d, axis=0, keepdims=True) * inv_hw
    return d * jax.lax.rsqrt(var + EPS)


def _reflect_pad_store(pad_ref, interior, h, w):
    """Write a 1-pixel reflection-padded copy of `interior` (H, W, C) into the
    (H+2, W+2, C) VMEM scratch: interior + 4 border strips (no full-tensor
    concatenates).  Corner semantics match jnp.pad(mode='reflect') /
    nn.ReflectionPad2d(1): cols first, then rows read back from the scratch."""
    pad_ref[1:h + 1, 1:w + 1, :] = interior
    pad_ref[1:h + 1, 0:1, :] = interior[:, 1:2, :]              # left  col <- col 1
    pad_ref[1:h + 1, w + 1:w + 2, :] = interior[:, w - 2:w - 1, :]  # right col <- col W-2
    pad_ref[0:1, :, :] = pad_ref[2:3, :, :]                     # top    row <- row 1 (col-padded)
    pad_ref[h + 1:h + 2, :, :] = pad_ref[h - 1:h, :, :]         # bottom row <- row H-2 (col-padded)


def _conv3x3_im2col(pad_ref, col_ref, w_ref, b_ref, h, w, c):
    """3x3 'valid' conv over the (H+2, W+2, C) padded scratch.

    Builds a single (HW, 9*C) im2col slab in the `col_ref` VMEM scratch
    (column block k = tap dy*3+dx), then does ONE MXU matmul with the
    (9*C, Cout) weight so all K accumulation happens inside the MXU.
    Returns (HW, Cout) f32 with the bias added.
    """
    hw = h * w
    for k in range(9):
        dy, dx = divmod(k, 3)
        col_ref[:, k * c:(k + 1) * c] = (
            pad_ref[dy:dy + h, dx:dx + w, :].reshape(hw, c).astype(col_ref.dtype))
    acc = jnp.dot(col_ref[...], w_ref[...], preferred_element_type=jnp.float32)
    return acc + b_ref[...]


def _residual_kernel(x_ref, w1_ref, b1_ref, w2_ref, b2_ref, o_ref,
                     pad_ref, col_ref, *, h, w, c, cp):
    """Fused residual block for one sample (grid over batch)."""
    hw = h * w
    inv_hw = 1.0 / float(hw)

    x = x_ref[0]                                    # (H, W, C), original dtype

    # ---- stage 1: reflect-pad -> conv3x3 -> IN -> ReLU (all in VMEM) -------
    _reflect_pad_store(pad_ref, x.astype(pad_ref.dtype), h, w)
    y = _conv3x3_im2col(pad_ref, col_ref, w1_ref, b1_ref, h, w, c)   # (HW, C) f32
    y = _instance_norm(y, inv_hw)
    y = jnp.maximum(y, 0.0)

    # ---- stage 2: reflect-pad (reuse scratch) -> conv3x3 -> IN --------------
    _reflect_pad_store(pad_ref, y.astype(pad_ref.dtype).reshape(h, w, c), h, w)
    y2 = _conv3x3_im2col(pad_ref, col_ref, w2_ref, b2_ref, h, w, c)  # (HW, Cp) f32
    y2 = _instance_norm(y2, inv_hw)

    # ---- residual add (original-precision x) + lane-dense store -------------
    res = x.reshape(hw, c).astype(jnp.float32)
    if cp > c:
        res = jnp.concatenate(
            [res, jnp.zeros((hw, cp - c), jnp.float32)], axis=-1)
    o_ref[0] = (y2 + res).astype(o_ref.dtype)


# ---------------------------------------------------------------------------
# Wrapper
# ---------------------------------------------------------------------------
def residual_forward(x_nchw, w1, b1, w2, b2, *, mxu_dtype=jnp.bfloat16):
    """Pallas implementation of Residual.forward.

    x: (N, C, H, W); w*: (C, C, 3, 3) (PyTorch layout); b*: (C,). Returns NCHW.
    `mxu_dtype` is the matmul operand dtype (bf16 fast path by default);
    accumulation / statistics / residual add are always f32.
    """
    n, c, h, w = x_nchw.shape
    hw = h * w
    cp = ((c + 127) // 128) * 128            # lane-dense Cout for the final store

    # NCHW -> NHWC (reflection pad now happens inside the kernel, in VMEM).
    x = jnp.transpose(x_nchw, (0, 2, 3, 1))

    # (Cout, Cin, 3, 3) -> (9*Cin, Cout); row index = (dy*3+dx)*Cin + cin,
    # matching the in-kernel im2col column layout.
    def prep_w(wt, cout_pad):
        m = jnp.transpose(wt, (2, 3, 1, 0)).reshape(9 * c, c)
        if cout_pad > c:
            m = jnp.pad(m, ((0, 0), (0, cout_pad - c)))
        return m.astype(mxu_dtype)

    def prep_b(bt, cout_pad):
        bb = bt.astype(jnp.float32)
        if cout_pad > c:
            bb = jnp.pad(bb, (0, cout_pad - c))
        return bb.reshape(1, cout_pad)

    w1m, b1r = prep_w(w1, c), prep_b(b1, c)        # stage 1 stays at true C
    w2m, b2r = prep_w(w2, cp), prep_b(b2, cp)      # stage 2 -> lane-dense output

    # Per-step VMEM working-set estimate; always set the scoped limit and clamp
    # it to the device's physical VMEM minus headroom (v7x: 64 MiB physical).
    ib = jnp.dtype(x.dtype).itemsize
    mb = jnp.dtype(mxu_dtype).itemsize
    est = (2 * h * w * c * ib                      # input block (double-buffered)
           + 2 * hw * cp * ib                      # output block (double-buffered)
           + 2 * 9 * c * (c + cp) * mb             # weights (worst-case 2x buffered)
           + (h + 2) * (w + 2) * c * 4             # reflection-pad scratch (f32)
           + hw * 9 * c * mb                       # im2col scratch
           + 6 * hw * cp * 4)                      # f32 conv/norm/residual temporaries
    vmem_cap = 64 * 1024 * 1024                    # conservative (v7x) fallback
    try:
        vmem_cap = int(pltpu.get_tpu_info().vmem_capacity_bytes)
    except Exception:
        pass
    vlimit = int(min(max(int(est * 1.5), 32 * 1024 * 1024),
                     vmem_cap - 8 * 1024 * 1024))

    kernel = functools.partial(_residual_kernel, h=h, w=w, c=c, cp=cp)

    def build(single_buffer_weights):
        # Weights/bias map to the same block every grid step; request single
        # buffering so they are not needlessly double-buffered in VMEM.
        wkw = ({"pipeline_mode": pl.Buffered(1)} if single_buffer_weights else {})
        in_specs = [
            pl.BlockSpec((1, h, w, c), lambda i: (i, 0, 0, 0)),
            pl.BlockSpec((9 * c, c), lambda i: (0, 0), **wkw),
            pl.BlockSpec((1, c), lambda i: (0, 0), **wkw),
            pl.BlockSpec((9 * c, cp), lambda i: (0, 0), **wkw),
            pl.BlockSpec((1, cp), lambda i: (0, 0), **wkw),
        ]
        return pl.pallas_call(
            kernel,
            out_shape=jax.ShapeDtypeStruct((n, hw, cp), x.dtype),
            grid=(n,),
            in_specs=in_specs,
            out_specs=pl.BlockSpec((1, hw, cp), lambda i: (i, 0, 0)),
            scratch_shapes=[
                pltpu.VMEM((h + 2, w + 2, c), jnp.float32),    # reflection-pad buffer
                pltpu.VMEM((hw, 9 * c), mxu_dtype),            # im2col slab
            ],
            compiler_params=pltpu.CompilerParams(
                dimension_semantics=("parallel",),
                vmem_limit_bytes=vlimit),
        )

    try:
        out = build(True)(x, w1m, b1r, w2m, b2r)
    except Exception:
        # pipeline_mode=pl.Buffered(1) not supported by this JAX / Mosaic build;
        # fall back to default double-buffered weight specs.
        out = build(False)(x, w1m, b1r, w2m, b2r)

    out = out.reshape(n, h, w, cp)[..., :c]
    return jnp.transpose(out, (0, 3, 1, 2))                   # NHWC -> NCHW


# ---------------------------------------------------------------------------
# Pure-JAX reference (correctness check only)
# ---------------------------------------------------------------------------
def _instance_norm_ref(y):
    mean = jnp.mean(y, axis=(1, 2), keepdims=True)
    var = jnp.mean((y - mean) ** 2, axis=(1, 2), keepdims=True)
    return (y - mean) * jax.lax.rsqrt(var + EPS)


def residual_reference(x_nchw, w1, b1, w2, b2):
    x = jnp.transpose(x_nchw, (0, 2, 3, 1))
    w1h = jnp.transpose(w1, (2, 3, 1, 0))
    w2h = jnp.transpose(w2, (2, 3, 1, 0))
    dn = ("NHWC", "HWIO", "NHWC")

    xp = jnp.pad(x, ((0, 0), (1, 1), (1, 1), (0, 0)), mode="reflect")
    y = jax.lax.conv_general_dilated(xp, w1h, (1, 1), "VALID", dimension_numbers=dn) + b1
    y = jnp.maximum(_instance_norm_ref(y), 0.0)

    yp = jnp.pad(y, ((0, 0), (1, 1), (1, 1), (0, 0)), mode="reflect")
    y = jax.lax.conv_general_dilated(yp, w2h, (1, 1), "VALID", dimension_numbers=dn) + b2
    y = _instance_norm_ref(y)

    return jnp.transpose(x + y, (0, 3, 1, 2))


# ---------------------------------------------------------------------------
if __name__ == "__main__":
    key = jax.random.PRNGKey(0)
    N, C, H, W = 2, 4, 16, 16
    kx, kw1, kb1, kw2, kb2 = jax.random.split(key, 5)

    x = jax.random.normal(kx, (N, C, H, W), jnp.float32)

    # Deterministic init mimicking nn.Conv2d default (uniform(-1/sqrt(fan_in), +)).
    fan_in = C * 3 * 3
    bound = 1.0 / (fan_in ** 0.5)
    w1 = jax.random.uniform(kw1, (C, C, 3, 3), jnp.float32, -bound, bound)
    b1 = jax.random.uniform(kb1, (C,), jnp.float32, -bound, bound)
    w2 = jax.random.uniform(kw2, (C, C, 3, 3), jnp.float32, -bound, bound)
    b2 = jax.random.uniform(kb2, (C,), jnp.float32, -bound, bound)

    ref = jax.block_until_ready(residual_reference(x, w1, b1, w2, b2))

    # 1) Strict semantic check: f32 MXU operands.
    out_f32 = jax.block_until_ready(
        residual_forward(x, w1, b1, w2, b2, mxu_dtype=jnp.float32))
    assert out_f32.shape == (N, C, H, W), out_f32.shape
    err_f32 = float(jnp.max(jnp.abs(out_f32 - ref)))
    assert err_f32 < 2e-4, f"f32 path mismatch vs reference: {err_f32}"

    # 2) Fast path: bf16 MXU operands, f32 accumulation / stats / residual.
    #    Tolerance covers bf16 operand rounding through two convs and two
    #    instance norms on ~unit-variance activations.
    out_bf16 = jax.block_until_ready(residual_forward(x, w1, b1, w2, b2))
    assert out_bf16.shape == (N, C, H, W), out_bf16.shape
    err_bf16 = float(jnp.max(jnp.abs(out_bf16 - ref)))
    assert err_bf16 < 0.15, f"bf16 fast path mismatch vs reference: {err_bf16}"

    print("KERNEL_OK")
</pallas_src>

<mosaic_0001>
module attributes {stable_mosaic.version = 11 : i64} {
  func.func @_residual_kernel(%arg0: i32, %arg1: memref<1x16x16x4xf32, #tpu.memory_space<vmem>>, %arg2: memref<36x4xf32, #tpu.memory_space<vmem>>, %arg3: memref<1x4xf32, #tpu.memory_space<vmem>>, %arg4: memref<36x128xf32, #tpu.memory_space<vmem>>, %arg5: memref<1x128xf32, #tpu.memory_space<vmem>>, %arg6: memref<1x256x128xf32, #tpu.memory_space<vmem>>, %arg7: memref<18x18x4xf32, #tpu.memory_space<vmem>>, %arg8: memref<256x36xf32, #tpu.memory_space<vmem>>) attributes {dimension_semantics = [#tpu.dimension_semantics<parallel>], iteration_bounds = array<i64: 2>, scalar_prefetch = 0 : i64, scratch_operands = 2 : i64, tpu.core_type = #tpu.core_type<tc>, window_params = [{transform_indices = @transform_0, window_bounds = array<i64: 1, 16, 16, 4>}, {pipeline_mode = #tpu.pipeline_mode<synchronous>, transform_indices = @transform_1, window_bounds = array<i64: 36, 4>}, {pipeline_mode = #tpu.pipeline_mode<synchronous>, transform_indices = @transform_2, window_bounds = array<i64: 1, 4>}, {pipeline_mode = #tpu.pipeline_mode<synchronous>, transform_indices = @transform_3, window_bounds = array<i64: 36, 128>}, {pipeline_mode = #tpu.pipeline_mode<synchronous>, transform_indices = @transform_4, window_bounds = array<i64: 1, 128>}, {transform_indices = @transform_5, window_bounds = array<i64: 1, 256, 128>}]} {
    %c0 = arith.constant 0 : index
    %c0_0 = arith.constant 0 : index
    %c0_1 = arith.constant 0 : index
    %c0_2 = arith.constant 0 : index
    %0 = vector.load %arg1[%c0, %c0_0, %c0_1, %c0_2] : memref<1x16x16x4xf32, #tpu.memory_space<vmem>>, vector<1x16x16x4xf32>
    %1 = vector.shape_cast %0 : vector<1x16x16x4xf32> to vector<16x16x4xf32>
    %c1 = arith.constant 1 : index
    %c1_3 = arith.constant 1 : index
    %c0_4 = arith.constant 0 : index
    %2 = vector.load %arg7[%c1, %c1_3, %c0_4] : memref<18x18x4xf32, #tpu.memory_space<vmem>>, vector<16x16x4xf32>
    tpu.vector_store %arg7[%c1, %c1_3, %c0_4], %1 {strides = array<i32>} : memref<18x18x4xf32, #tpu.memory_space<vmem>>, vector<16x16x4xf32>,
    %3 = vector.extract_strided_slice %1 {offsets = [0, 1, 0], sizes = [16, 1, 4], strides = [1, 1, 1]} : vector<16x16x4xf32> to vector<16x1x4xf32>
    %c1_5 = arith.constant 1 : index
    %c0_6 = arith.constant 0 : index
    %c0_7 = arith.constant 0 : index
    %4 = vector.load %arg7[%c1_5, %c0_6, %c0_7] : memref<18x18x4xf32, #tpu.memory_space<vmem>>, vector<16x1x4xf32>
    tpu.vector_store %arg7[%c1_5, %c0_6, %c0_7], %3 {strides = array<i32>} : memref<18x18x4xf32, #tpu.memory_space<vmem>>, vector<16x1x4xf32>,
    %5 = vector.extract_strided_slice %1 {offsets = [0, 14, 0], sizes = [16, 1, 4], strides = [1, 1, 1]} : vector<16x16x4xf32> to vector<16x1x4xf32>
    %c1_8 = arith.constant 1 : index
    %c17 = arith.constant 17 : index
    %c0_9 = arith.constant 0 : index
    %6 = vector.load %arg7[%c1_8, %c17, %c0_9] : memref<18x18x4xf32, #tpu.memory_space<vmem>>, vector<16x1x4xf32>
    tpu.vector_store %arg7[%c1_8, %c17, %c0_9], %5 {strides = array<i32>} : memref<18x18x4xf32, #tpu.memory_space<vmem>>, vector<16x1x4xf32>,
    %c2 = arith.constant 2 : index
    %c0_10 = arith.constant 0 : index
    %c0_11 = arith.constant 0 : index
    %7 = vector.load %arg7[%c2, %c0_10, %c0_11] : memref<18x18x4xf32, #tpu.memory_space<vmem>>, vector<1x18x4xf32>
    %c0_12 = arith.constant 0 : index
    %c0_13 = arith.constant 0 : index
    %c0_14 = arith.constant 0 : index
    %8 = vector.load %arg7[%c0_12, %c0_13, %c0_14] : memref<18x18x4xf32, #tpu.memory_space<vmem>>, vector<1x18x4xf32>
    tpu.vector_store %arg7[%c0_12, %c0_13, %c0_14], %7 {strides = array<i32>} : memref<18x18x4xf32, #tpu.memory_space<vmem>>, vector<1x18x4xf32>,
    %c15 = arith.constant 15 : index
    %c0_15 = arith.constant 0 : index
    %c0_16 = arith.constant 0 : index
    %9 = vector.load %arg7[%c15, %c0_15, %c0_16] : memref<18x18x4xf32, #tpu.memory_space<vmem>>, vector<1x18x4xf32>
    %c17_17 = arith.constant 17 : index
    %c0_18 = arith.constant 0 : index
    %c0_19 = arith.constant 0 : index
    %10 = vector.load %arg7[%c17_17, %c0_18, %c0_19] : memref<18x18x4xf32, #tpu.memory_space<vmem>>, vector<1x18x4xf32>
    tpu.vector_store %arg7[%c17_17, %c0_18, %c0_19], %9 {strides = array<i32>} : memref<18x18x4xf32, #tpu.memory_space<vmem>>, vector<1x18x4xf32>,
    %c0_20 = arith.constant 0 : index
    %c0_21 = arith.constant 0 : index
    %c0_22 = arith.constant 0 : index
    %11 = vector.load %arg7[%c0_20, %c0_21, %c0_22] : memref<18x18x4xf32, #tpu.memory_space<vmem>>, vector<16x16x4xf32>
    %12 = vector.shape_cast %11 : vector<16x16x4xf32> to vector<256x4xf32>
    %c0_23 = arith.constant 0 : index
    %c0_24 = arith.constant 0 : index
    %13 = vector.load %arg8[%c0_23, %c0_24] : memref<256x36xf32, #tpu.memory_space<vmem>>, vector<256x4xf32>
    tpu.vector_store %arg8[%c0_23, %c0_24], %12 {strides = array<i32>} : memref<256x36xf32, #tpu.memory_space<vmem>>, vector<256x4xf32>,
    %c0_25 = arith.constant 0 : index
    %c1_26 = arith.constant 1 : index
    %c0_27 = arith.constant 0 : index
    %14 = vector.load %arg7[%c0_25, %c1_26, %c0_27] : memref<18x18x4xf32, #tpu.memory_space<vmem>>, vector<16x16x4xf32>
    %15 = vector.shape_cast %14 : vector<16x16x4xf32> to vector<256x4xf32>
    %c0_28 = arith.constant 0 : index
    %c4 = arith.constant 4 : index
    %16 = vector.load %arg8[%c0_28, %c4] : memref<256x36xf32, #tpu.memory_space<vmem>>, vector<256x4xf32>
    tpu.vector_store %arg8[%c0_28, %c4], %15 {strides = array<i32>} : memref<256x36xf32, #tpu.memory_space<vmem>>, vector<256x4xf32>,
    %c0_29 = arith.constant 0 : index
    %c2_30 = arith.constant 2 : index
    %c0_31 = arith.constant 0 : index
    %17 = vector.load %arg7[%c0_29, %c2_30, %c0_31] : memref<18x18x4xf32, #tpu.memory_space<vmem>>, vector<16x16x4xf32>
    %18 = vector.shape_cast %17 : vector<16x16x4xf32> to vector<256x4xf32>
    %c0_32 = arith.constant 0 : index
    %c8 = arith.constant 8 : index
    %19 = vector.load %arg8[%c0_32, %c8] : memref<256x36xf32, #tpu.memory_space<vmem>>, vector<256x4xf32>
    tpu.vector_store %arg8[%c0_32, %c8], %18 {strides = array<i32>} : memref<256x36xf32, #tpu.memory_space<vmem>>, vector<256x4xf32>,
    %c1_33 = arith.constant 1 : index
    %c0_34 = arith.constant 0 : index
    %c0_35 = arith.constant 0 : index
    %20 = vector.load %arg7[%c1_33, %c0_34, %c0_35] : memref<18x18x4xf32, #tpu.memory_space<vmem>>, vector<16x16x4xf32>
    %21 = vector.shape_cast %20 : vector<16x16x4xf32> to vector<256x4xf32>
    %c0_36 = arith.constant 0 : index
    %c12 = arith.constant 12 : index
    %22 = vector.load %arg8[%c0_36, %c12] : memref<256x36xf32, #tpu.memory_space<vmem>>, vector<256x4xf32>
    tpu.vector_store %arg8[%c0_36, %c12], %21 {strides = array<i32>} : memref<256x36xf32, #tpu.memory_space<vmem>>, vector<256x4xf32>,
    %c1_37 = arith.constant 1 : index
    %c1_38 = arith.constant 1 : index
    %c0_39 = arith.constant 0 : index
    %23 = vector.load %arg7[%c1_37, %c1_38, %c0_39] : memref<18x18x4xf32, #tpu.memory_space<vmem>>, vector<16x16x4xf32>
    %24 = vector.shape_cast %23 : vector<16x16x4xf32> to vector<256x4xf32>
    %c0_40 = arith.constant 0 : index
    %c16 = arith.constant 16 : index
    %25 = vector.load %arg8[%c0_40, %c16] : memref<256x36xf32, #tpu.memory_space<vmem>>, vector<256x4xf32>
    tpu.vector_store %arg8[%c0_40, %c16], %24 {strides = array<i32>} : memref<256x36xf32, #tpu.memory_space<vmem>>, vector<256x4xf32>,
    %c1_41 = arith.constant 1 : index
    %c2_42 = arith.constant 2 : index
    %c0_43 = arith.constant 0 : index
    %26 = vector.load %arg7[%c1_41, %c2_42, %c0_43] : memref<18x18x4xf32, #tpu.memory_space<vmem>>, vector<16x16x4xf32>
    %27 = vector.shape_cast %26 : vector<16x16x4xf32> to vector<256x4xf32>
    %c0_44 = arith.constant 0 : index
    %c20 = arith.constant 20 : index
    %28 = vector.load %arg8[%c0_44, %c20] : memref<256x36xf32, #tpu.memory_space<vmem>>, vector<256x4xf32>
    tpu.vector_store %arg8[%c0_44, %c20], %27 {strides = array<i32>} : memref<256x36xf32, #tpu.memory_space<vmem>>, vector<256x4xf32>,
    %c2_45 = arith.constant 2 : index
    %c0_46 = arith.constant 0 : index
    %c0_47 = arith.constant 0 : index
    %29 = vector.load %arg7[%c2_45, %c0_46, %c0_47] : memref<18x18x4xf32, #tpu.memory_space<vmem>>, vector<16x16x4xf32>
    %30 = vector.shape_cast %29 : vector<16x16x4xf32> to vector<256x4xf32>
    %c0_48 = arith.constant 0 : index
    %c24 = arith.constant 24 : index
    %31 = vector.load %arg8[%c0_48, %c24] : memref<256x36xf32, #tpu.memory_space<vmem>>, vector<256x4xf32>
    tpu.vector_store %arg8[%c0_48, %c24], %30 {strides = array<i32>} : memref<256x36xf32, #tpu.memory_space<vmem>>, vector<256x4xf32>,
    %c2_49 = arith.constant 2 : index
    %c1_50 = arith.constant 1 : index
    %c0_51 = arith.constant 0 : index
    %32 = vector.load %arg7[%c2_49, %c1_50, %c0_51] : memref<18x18x4xf32, #tpu.memory_space<vmem>>, vector<16x16x4xf32>
    %33 = vector.shape_cast %32 : vector<16x16x4xf32> to vector<256x4xf32>
    %c0_52 = arith.constant 0 : index
    %c28 = arith.constant 28 : index
    %34 = vector.load %arg8[%c0_52, %c28] : memref<256x36xf32, #tpu.memory_space<vmem>>, vector<256x4xf32>
    tpu.vector_store %arg8[%c0_52, %c28], %33 {strides = array<i32>} : memref<256x36xf32, #tpu.memory_space<vmem>>, vector<256x4xf32>,
    %c2_53 = arith.constant 2 : index
    %c2_54 = arith.constant 2 : index
    %c0_55 = arith.constant 0 : index
    %35 = vector.load %arg7[%c2_53, %c2_54, %c0_55] : memref<18x18x4xf32, #tpu.memory_space<vmem>>, vector<16x16x4xf32>
    %36 = vector.shape_cast %35 : vector<16x16x4xf32> to vector<256x4xf32>
    %c0_56 = arith.constant 0 : index
    %c32 = arith.constant 32 : index
    %37 = vector.load %arg8[%c0_56, %c32] : memref<256x36xf32, #tpu.memory_space<vmem>>, vector<256x4xf32>
    tpu.vector_store %arg8[%c0_56, %c32], %36 {strides = array<i32>} : memref<256x36xf32, #tpu.memory_space<vmem>>, vector<256x4xf32>,
    %c0_57 = arith.constant 0 : index
    %c0_58 = arith.constant 0 : index
    %38 = vector.load %arg8[%c0_57, %c0_58] : memref<256x36xf32, #tpu.memory_space<vmem>>, vector<256x36xf32>
    %c0_59 = arith.constant 0 : index
    %c0_60 = arith.constant 0 : index
    %39 = vector.load %arg2[%c0_59, %c0_60] : memref<36x4xf32, #tpu.memory_space<vmem>>, vector<36x4xf32>
    %cst = arith.constant dense<0.000000e+00> : vector<256x4xf32>
    %40 = tpu.matmul %38, %39, %cst {dimension_numbers = #tpu.dot_dimension_numbers<[1], [0], [0], [1], [0, 0, 1, 1], [], []>} : vector<256x36xf32>, vector<36x4xf32>, vector<256x4xf32> -> vector<256x4xf32>
    %c0_61 = arith.constant 0 : index
    %c0_62 = arith.constant 0 : index
    %41 = vector.load %arg3[%c0_61, %c0_62] : memref<1x4xf32, #tpu.memory_space<vmem>>, vector<1x4xf32>
    %42 = vector.broadcast %41 : vector<1x4xf32> to vector<256x4xf32>
    %43 = arith.addf %40, %42 : vector<256x4xf32>
    %cst_63 = arith.constant dense<0.000000e+00> : vector<4xf32>
    %44 = vector.multi_reduction <add>, %43, %cst_63 [0] : vector<256x4xf32> to vector<4xf32>
    %45 = vector.shape_cast %44 : vector<4xf32> to vector<1x4xf32>
    %cst_64 = arith.constant 3.906250e-03 : f32
    %46 = vector.broadcast %cst_64 : f32 to vector<1x4xf32>
    %47 = arith.mulf %45, %46 : vector<1x4xf32>
    %48 = vector.broadcast %47 : vector<1x4xf32> to vector<256x4xf32>
    %49 = arith.subf %43, %48 : vector<256x4xf32>
    %50 = arith.mulf %49, %49 : vector<256x4xf32>
    %cst_65 = arith.constant dense<0.000000e+00> : vector<4xf32>
    %51 = vector.multi_reduction <add>, %50, %cst_65 [0] : vector<256x4xf32> to vector<4xf32>
    %52 = vector.shape_cast %51 : vector<4xf32> to vector<1x4xf32>
    %cst_66 = arith.constant 3.906250e-03 : f32
    %53 = vector.broadcast %cst_66 : f32 to vector<1x4xf32>
    %54 = arith.mulf %52, %53 : vector<1x4xf32>
    %cst_67 = arith.constant 9.99999974E-6 : f32
    %55 = vector.broadcast %cst_67 : f32 to vector<1x4xf32>
    %56 = arith.addf %54, %55 : vector<1x4xf32>
    %57 = math.rsqrt %56 : vector<1x4xf32>
    %58 = vector.broadcast %57 : vector<1x4xf32> to vector<256x4xf32>
    %59 = arith.mulf %49, %58 : vector<256x4xf32>
    %cst_68 = arith.constant 0.000000e+00 : f32
    %60 = vector.broadcast %cst_68 : f32 to vector<256x4xf32>
    %61 = arith.maximumf %59, %60 : vector<256x4xf32>
    %62 = vector.shape_cast %61 : vector<256x4xf32> to vector<16x16x4xf32>
    %c1_69 = arith.constant 1 : index
    %c1_70 = arith.constant 1 : index
    %c0_71 = arith.constant 0 : index
    %63 = vector.load %arg7[%c1_69, %c1_70, %c0_71] : memref<18x18x4xf32, #tpu.memory_space<vmem>>, vector<16x16x4xf32>
    tpu.vector_store %arg7[%c1_69, %c1_70, %c0_71], %62 {strides = array<i32>} : memref<18x18x4xf32, #tpu.memory_space<vmem>>, vector<16x16x4xf32>,
    %64 = vector.extract_strided_slice %62 {offsets = [0, 1, 0], sizes = [16, 1, 4], strides = [1, 1, 1]} : vector<16x16x4xf32> to vector<16x1x4xf32>
    %c1_72 = arith.constant 1 : index
    %c0_73 = arith.constant 0 : index
    %c0_74 = arith.constant 0 : index
    %65 = vector.load %arg7[%c1_72, %c0_73, %c0_74] : memref<18x18x4xf32, #tpu.memory_space<vmem>>, vector<16x1x4xf32>
    tpu.vector_store %arg7[%c1_72, %c0_73, %c0_74], %64 {strides = array<i32>} : memref<18x18x4xf32, #tpu.memory_space<vmem>>, vector<16x1x4xf32>,
    %66 = vector.extract_strided_slice %62 {offsets = [0, 14, 0], sizes = [16, 1, 4], strides = [1, 1, 1]} : vector<16x16x4xf32> to vector<16x1x4xf32>
    %c1_75 = arith.constant 1 : index
    %c17_76 = arith.constant 17 : index
    %c0_77 = arith.constant 0 : index
    %67 = vector.load %arg7[%c1_75, %c17_76, %c0_77] : memref<18x18x4xf32, #tpu.memory_space<vmem>>, vector<16x1x4xf32>
    tpu.vector_store %arg7[%c1_75, %c17_76, %c0_77], %66 {strides = array<i32>} : memref<18x18x4xf32, #tpu.memory_space<vmem>>, vector<16x1x4xf32>,
    %c2_78 = arith.constant 2 : index
    %c0_79 = arith.constant 0 : index
    %c0_80 = arith.constant 0 : index
    %68 = vector.load %arg7[%c2_78, %c0_79, %c0_80] : memref<18x18x4xf32, #tpu.memory_space<vmem>>, vector<1x18x4xf32>
    %c0_81 = arith.constant 0 : index
    %c0_82 = arith.constant 0 : index
    %c0_83 = arith.constant 0 : index
    %69 = vector.load %arg7[%c0_81, %c0_82, %c0_83] : memref<18x18x4xf32, #tpu.memory_space<vmem>>, vector<1x18x4xf32>
    tpu.vector_store %arg7[%c0_81, %c0_82, %c0_83], %68 {strides = array<i32>} : memref<18x18x4xf32, #tpu.memory_space<vmem>>, vector<1x18x4xf32>,
    %c15_84 = arith.constant 15 : index
    %c0_85 = arith.constant 0 : index
    %c0_86 = arith.constant 0 : index
    %70 = vector.load %arg7[%c15_84, %c0_85, %c0_86] : memref<18x18x4xf32, #tpu.memory_space<vmem>>, vector<1x18x4xf32>
    %c17_87 = arith.constant 17 : index
    %c0_88 = arith.constant 0 : index
    %c0_89 = arith.constant 0 : index
    %71 = vector.load %arg7[%c17_87, %c0_88, %c0_89] : memref<18x18x4xf32, #tpu.memory_space<vmem>>, vector<1x18x4xf32>
    tpu.vector_store %arg7[%c17_87, %c0_88, %c0_89], %70 {strides = array<i32>} : memref<18x18x4xf32, #tpu.memory_space<vmem>>, vector<1x18x4xf32>,
    %c0_90 = arith.constant 0 : index
    %c0_91 = arith.constant 0 : index
    %c0_92 = arith.constant 0 : index
    %72 = vector.load %arg7[%c0_90, %c0_91, %c0_92] : memref<18x18x4xf32, #tpu.memory_space<vmem>>, vector<16x16x4xf32>
    %73 = vector.shape_cast %72 : vector<16x16x4xf32> to vector<256x4xf32>
    %c0_93 = arith.constant 0 : index
    %c0_94 = arith.constant 0 : index
    %74 = vector.load %arg8[%c0_93, %c0_94] : memref<256x36xf32, #tpu.memory_space<vmem>>, vector<256x4xf32>
    tpu.vector_store %arg8[%c0_93, %c0_94], %73 {strides = array<i32>} : memref<256x36xf32, #tpu.memory_space<vmem>>, vector<256x4xf32>,
    %c0_95 = arith.constant 0 : index
    %c1_96 = arith.constant 1 : index
    %c0_97 = arith.constant 0 : index
    %75 = vector.load %arg7[%c0_95, %c1_96, %c0_97] : memref<18x18x4xf32, #tpu.memory_space<vmem>>, vector<16x16x4xf32>
    %76 = vector.shape_cast %75 : vector<16x16x4xf32> to vector<256x4xf32>
    %c0_98 = arith.constant 0 : index
    %c4_99 = arith.constant 4 : index
    %77 = vector.load %arg8[%c0_98, %c4_99] : memref<256x36xf32, #tpu.memory_space<vmem>>, vector<256x4xf32>
    tpu.vector_store %arg8[%c0_98, %c4_99], %76 {strides = array<i32>} : memref<256x36xf32, #tpu.memory_space<vmem>>, vector<256x4xf32>,
    %c0_100 = arith.constant 0 : index
    %c2_101 = arith.constant 2 : index
    %c0_102 = arith.constant 0 : index
    %78 = vector.load %arg7[%c0_100, %c2_101, %c0_102] : memref<18x18x4xf32, #tpu.memory_space<vmem>>, vector<16x16x4xf32>
    %79 = vector.shape_cast %78 : vector<16x16x4xf32> to vector<256x4xf32>
    %c0_103 = arith.constant 0 : index
    %c8_104 = arith.constant 8 : index
    %80 = vector.load %arg8[%c0_103, %c8_104] : memref<256x36xf32, #tpu.memory_space<vmem>>, vector<256x4xf32>
    tpu.vector_store %arg8[%c0_103, %c8_104], %79 {strides = array<i32>} : memref<256x36xf32, #tpu.memory_space<vmem>>, vector<256x4xf32>,
    %c1_105 = arith.constant 1 : index
    %c0_106 = arith.constant 0 : index
    %c0_107 = arith.constant 0 : index
    %81 = vector.load %arg7[%c1_105, %c0_106, %c0_107] : memref<18x18x4xf32, #tpu.memory_space<vmem>>, vector<16x16x4xf32>
    %82 = vector.shape_cast %81 : vector<16x16x4xf32> to vector<256x4xf32>
    %c0_108 = arith.constant 0 : index
    %c12_109 = arith.constant 12 : index
    %83 = vector.load %arg8[%c0_108, %c12_109] : memref<256x36xf32, #tpu.memory_space<vmem>>, vector<256x4xf32>
    tpu.vector_store %arg8[%c0_108, %c12_109], %82 {strides = array<i32>} : memref<256x36xf32, #tpu.memory_space<vmem>>, vector<256x4xf32>,
    %c1_110 = arith.constant 1 : index
    %c1_111 = arith.constant 1 : index
    %c0_112 = arith.constant 0 : index
    %84 = vector.load %arg7[%c1_110, %c1_111, %c0_112] : memref<18x18x4xf32, #tpu.memory_space<vmem>>, vector<16x16x4xf32>
    %85 = vector.shape_cast %84 : vector<16x16x4xf32> to vector<256x4xf32>
    %c0_113 = arith.constant 0 : index
    %c16_114 = arith.constant 16 : index
    %86 = vector.load %arg8[%c0_113, %c16_114] : memref<256x36xf32, #tpu.memory_space<vmem>>, vector<256x4xf32>
    tpu.vector_store %arg8[%c0_113, %c16_114], %85 {strides = array<i32>} : memref<256x36xf32, #tpu.memory_space<vmem>>, vector<256x4xf32>,
    %c1_115 = arith.constant 1 : index
    %c2_116 = arith.constant 2 : index
    %c0_117 = arith.constant 0 : index
    %87 = vector.load %arg7[%c1_115, %c2_116, %c0_117] : memref<18x18x4xf32, #tpu.memory_space<vmem>>, vector<16x16x4xf32>
    %88 = vector.shape_cast %87 : vector<16x16x4xf32> to vector<256x4xf32>
    %c0_118 = arith.constant 0 : index
    %c20_119 = arith.constant 20 : index
    %89 = vector.load %arg8[%c0_118, %c20_119] : memref<256x36xf32, #tpu.memory_space<vmem>>, vector<256x4xf32>
    tpu.vector_store %arg8[%c0_118, %c20_119], %88 {strides = array<i32>} : memref<256x36xf32, #tpu.memory_space<vmem>>, vector<256x4xf32>,
    %c2_120 = arith.constant 2 : index
    %c0_121 = arith.constant 0 : index
    %c0_122 = arith.constant 0 : index
    %90 = vector.load %arg7[%c2_120, %c0_121, %c0_122] : memref<18x18x4xf32, #tpu.memory_space<vmem>>, vector<16x16x4xf32>
    %91 = vector.shape_cast %90 : vector<16x16x4xf32> to vector<256x4xf32>
    %c0_123 = arith.constant 0 : index
    %c24_124 = arith.constant 24 : index
    %92 = vector.load %arg8[%c0_123, %c24_124] : memref<256x36xf32, #tpu.memory_space<vmem>>, vector<256x4xf32>
    tpu.vector_store %arg8[%c0_123, %c24_124], %91 {strides = array<i32>} : memref<256x36xf32, #tpu.memory_space<vmem>>, vector<256x4xf32>,
    %c2_125 = arith.constant 2 : index
    %c1_126 = arith.constant 1 : index
    %c0_127 = arith.constant 0 : index
    %93 = vector.load %arg7[%c2_125, %c1_126, %c0_127] : memref<18x18x4xf32, #tpu.memory_space<vmem>>, vector<16x16x4xf32>
    %94 = vector.shape_cast %93 : vector<16x16x4xf32> to vector<256x4xf32>
    %c0_128 = arith.constant 0 : index
    %c28_129 = arith.constant 28 : index
    %95 = vector.load %arg8[%c0_128, %c28_129] : memref<256x36xf32, #tpu.memory_space<vmem>>, vector<256x4xf32>
    tpu.vector_store %arg8[%c0_128, %c28_129], %94 {strides = array<i32>} : memref<256x36xf32, #tpu.memory_space<vmem>>, vector<256x4xf32>,
    %c2_130 = arith.constant 2 : index
    %c2_131 = arith.constant 2 : index
    %c0_132 = arith.constant 0 : index
    %96 = vector.load %arg7[%c2_130, %c2_131, %c0_132] : memref<18x18x4xf32, #tpu.memory_space<vmem>>, vector<16x16x4xf32>
    %97 = vector.shape_cast %96 : vector<16x16x4xf32> to vector<256x4xf32>
    %c0_133 = arith.constant 0 : index
    %c32_134 = arith.constant 32 : index
    %98 = vector.load %arg8[%c0_133, %c32_134] : memref<256x36xf32, #tpu.memory_space<vmem>>, vector<256x4xf32>
    tpu.vector_store %arg8[%c0_133, %c32_134], %97 {strides = array<i32>} : memref<256x36xf32, #tpu.memory_space<vmem>>, vector<256x4xf32>,
    %c0_135 = arith.constant 0 : index
    %c0_136 = arith.constant 0 : index
    %99 = vector.load %arg8[%c0_135, %c0_136] : memref<256x36xf32, #tpu.memory_space<vmem>>, vector<256x36xf32>
    %c0_137 = arith.constant 0 : index
    %c0_138 = arith.constant 0 : index
    %100 = vector.load %arg4[%c0_137, %c0_138] : memref<36x128xf32, #tpu.memory_space<vmem>>, vector<36x128xf32>
    %cst_139 = arith.constant dense<0.000000e+00> : vector<256x128xf32>
    %101 = tpu.matmul %99, %100, %cst_139 {dimension_numbers = #tpu.dot_dimension_numbers<[1], [0], [0], [1], [0, 0, 1, 1], [], []>} : vector<256x36xf32>, vector<36x128xf32>, vector<256x128xf32> -> vector<256x128xf32>
    %c0_140 = arith.constant 0 : index
    %c0_141 = arith.constant 0 : index
    %102 = vector.load %arg5[%c0_140, %c0_141] : memref<1x128xf32, #tpu.memory_space<vmem>>, vector<1x128xf32>
    %103 = vector.broadcast %102 : vector<1x128xf32> to vector<256x128xf32>
    %104 = arith.addf %101, %103 : vector<256x128xf32>
    %cst_142 = arith.constant dense<0.000000e+00> : vector<128xf32>
    %105 = vector.multi_reduction <add>, %104, %cst_142 [0] : vector<256x128xf32> to vector<128xf32>
    %106 = vector.shape_cast %105 : vector<128xf32> to vector<1x128xf32>
    %cst_143 = arith.constant 3.906250e-03 : f32
    %107 = vector.broadcast %cst_143 : f32 to vector<1x128xf32>
    %108 = arith.mulf %106, %107 : vector<1x128xf32>
    %109 = vector.broadcast %108 : vector<1x128xf32> to vector<256x128xf32>
    %110 = arith.subf %104, %109 : vector<256x128xf32>
    %111 = arith.mulf %110, %110 : vector<256x128xf32>
    %cst_144 = arith.constant dense<0.000000e+00> : vector<128xf32>
    %112 = vector.multi_reduction <add>, %111, %cst_144 [0] : vector<256x128xf32> to vector<128xf32>
    %113 = vector.shape_cast %112 : vector<128xf32> to vector<1x128xf32>
    %cst_145 = arith.constant 3.906250e-03 : f32
    %114 = vector.broadcast %cst_145 : f32 to vector<1x128xf32>
    %115 = arith.mulf %113, %114 : vector<1x128xf32>
    %cst_146 = arith.constant 9.99999974E-6 : f32
    %116 = vector.broadcast %cst_146 : f32 to vector<1x128xf32>
    %117 = arith.addf %115, %116 : vector<1x128xf32>
    %118 = math.rsqrt %117 : vector<1x128xf32>
    %119 = vector.broadcast %118 : vector<1x128xf32> to vector<256x128xf32>
    %120 = arith.mulf %110, %119 : vector<256x128xf32>
    %121 = vector.shape_cast %1 : vector<16x16x4xf32> to vector<256x4xf32>
    %cst_147 = arith.constant 0.000000e+00 : f32
    %122 = vector.broadcast %cst_147 : f32 to vector<256x124xf32>
    %123 = tpu.concatenate %121, %122 in 1 : vector<256x4xf32>, vector<256x124xf32> -> vector<256x128xf32>
    %124 = arith.addf %120, %123 : vector<256x128xf32>
    %c0_148 = arith.constant 0 : index
    %c0_149 = arith.constant 0 : index
    %c0_150 = arith.constant 0 : index
    %125 = vector.load %arg6[%c0_148, %c0_149, %c0_150] : memref<1x256x128xf32, #tpu.memory_space<vmem>>, vector<1x256x128xf32>
    %126 = vector.shape_cast %125 : vector<1x256x128xf32> to vector<256x128xf32>
    %127 = vector.shape_cast %124 : vector<256x128xf32> to vector<1x256x128xf32>
    tpu.vector_store %arg6[%c0_148, %c0_149, %c0_150], %127 {strides = array<i32>} : memref<1x256x128xf32, #tpu.memory_space<vmem>>, vector<1x256x128xf32>,
    return
  }
  func.func @transform_0(%arg0: i32) -> (i32, i32, i32, i32) {
    %c0_i32 = arith.constant 0 : i32
    %c0_i32_0 = arith.constant 0 : i32
    %c0_i32_1 = arith.constant 0 : i32
    %c0_i32_2 = arith.constant 0 : i32
    return %arg0, %c0_i32, %c0_i32_0, %c0_i32_1 : i32, i32, i32, i32
  }
  func.func @transform_1(%arg0: i32) -> (i32, i32) {
    %c0_i32 = arith.constant 0 : i32
    %c0_i32_0 = arith.constant 0 : i32
    %c0_i32_1 = arith.constant 0 : i32
    return %c0_i32, %c0_i32_0 : i32, i32
  }
  func.func @transform_2(%arg0: i32) -> (i32, i32) {
    %c0_i32 = arith.constant 0 : i32
    %c0_i32_0 = arith.constant 0 : i32
    %c0_i32_1 = arith.constant 0 : i32
    return %c0_i32, %c0_i32_0 : i32, i32
  }
  func.func @transform_3(%arg0: i32) -> (i32, i32) {
    %c0_i32 = arith.constant 0 : i32
    %c0_i32_0 = arith.constant 0 : i32
    %c0_i32_1 = arith.constant 0 : i32
    return %c0_i32, %c0_i32_0 : i32, i32
  }
  func.func @transform_4(%arg0: i32) -> (i32, i32) {
    %c0_i32 = arith.constant 0 : i32
    %c0_i32_0 = arith.constant 0 : i32
    %c0_i32_1 = arith.constant 0 : i32
    return %c0_i32, %c0_i32_0 : i32, i32
  }
  func.func @transform_5(%arg0: i32) -> (i32, i32, i32) {
    %c0_i32 = arith.constant 0 : i32
    %c0_i32_0 = arith.constant 0 : i32
    %c0_i32_1 = arith.constant 0 : i32
    return %arg0, %c0_i32, %c0_i32_0 : i32, i32, i32
  }
}

module attributes {stable_mosaic.version = 11 : i64} {
  func.func @_residual_kernel(%arg0: i32, %arg1: memref<1x16x16x4xf32, #tpu.memory_space<vmem>>, %arg2: memref<36x4xf32, #tpu.memory_space<vmem>>, %arg3: memref<1x4xf32, #tpu.memory_space<vmem>>, %arg4: memref<36x128xf32, #tpu.memory_space<vmem>>, %arg5: memref<1x128xf32, #tpu.memory_space<vmem>>, %arg6: memref<1x256x128xf32, #tpu.memory_space<vmem>>, %arg7: memref<18x18x4xf32, #tpu.memory_space<vmem>>, %arg8: memref<256x36xf32, #tpu.memory_space<vmem>>) attributes {dimension_semantics = [#tpu.dimension_semantics<parallel>], iteration_bounds = array<i64: 2>, scalar_prefetch = 0 : i64, scratch_operands = 2 : i64, tpu.core_type = #tpu.core_type<tc>, window_params = [{transform_indices = @transform_0, window_bounds = array<i64: 1, 16, 16, 4>}, {pipeline_mode = #tpu.pipeline_mode<synchronous>, transform_indices = @transform_1, window_bounds = array<i64: 36, 4>}, {pipeline_mode = #tpu.pipeline_mode<synchronous>, transform_indices = @transform_2, window_bounds = array<i64: 1, 4>}, {pipeline_mode = #tpu.pipeline_mode<synchronous>, transform_indices = @transform_3, window_bounds = array<i64: 36, 128>}, {pipeline_mode = #tpu.pipeline_mode<synchronous>, transform_indices = @transform_4, window_bounds = array<i64: 1, 128>}, {transform_indices = @transform_5, window_bounds = array<i64: 1, 256, 128>}]} {
    %c0 = arith.constant 0 : index
    %c0_0 = arith.constant 0 : index
    %c0_1 = arith.constant 0 : index
    %c0_2 = arith.constant 0 : index
    %0 = vector.load %arg1[%c0, %c0_0, %c0_1, %c0_2] : memref<1x16x16x4xf32, #tpu.memory_space<vmem>>, vector<1x16x16x4xf32>
    %1 = vector.shape_cast %0 : vector<1x16x16x4xf32> to vector<16x16x4xf32>
    %c1 = arith.constant 1 : index
    %c1_3 = arith.constant 1 : index
    %c0_4 = arith.constant 0 : index
    %2 = vector.load %arg7[%c1, %c1_3, %c0_4] : memref<18x18x4xf32, #tpu.memory_space<vmem>>, vector<16x16x4xf32>
    tpu.vector_store %arg7[%c1, %c1_3, %c0_4], %1 {strides = array<i32>} : memref<18x18x4xf32, #tpu.memory_space<vmem>>, vector<16x16x4xf32>,
    %3 = vector.extract_strided_slice %1 {offsets = [0, 1, 0], sizes = [16, 1, 4], strides = [1, 1, 1]} : vector<16x16x4xf32> to vector<16x1x4xf32>
    %c1_5 = arith.constant 1 : index
    %c0_6 = arith.constant 0 : index
    %c0_7 = arith.constant 0 : index
    %4 = vector.load %arg7[%c1_5, %c0_6, %c0_7] : memref<18x18x4xf32, #tpu.memory_space<vmem>>, vector<16x1x4xf32>
    tpu.vector_store %arg7[%c1_5, %c0_6, %c0_7], %3 {strides = array<i32>} : memref<18x18x4xf32, #tpu.memory_space<vmem>>, vector<16x1x4xf32>,
    %5 = vector.extract_strided_slice %1 {offsets = [0, 14, 0], sizes = [16, 1, 4], strides = [1, 1, 1]} : vector<16x16x4xf32> to vector<16x1x4xf32>
    %c1_8 = arith.constant 1 : index
    %c17 = arith.constant 17 : index
    %c0_9 = arith.constant 0 : index
    %6 = vector.load %arg7[%c1_8, %c17, %c0_9] : memref<18x18x4xf32, #tpu.memory_space<vmem>>, vector<16x1x4xf32>
    tpu.vector_store %arg7[%c1_8, %c17, %c0_9], %5 {strides = array<i32>} : memref<18x18x4xf32, #tpu.memory_space<vmem>>, vector<16x1x4xf32>,
    %c2 = arith.constant 2 : index
    %c0_10 = arith.constant 0 : index
    %c0_11 = arith.constant 0 : index
    %7 = vector.load %arg7[%c2, %c0_10, %c0_11] : memref<18x18x4xf32, #tpu.memory_space<vmem>>, vector<1x18x4xf32>
    %c0_12 = arith.constant 0 : index
    %c0_13 = arith.constant 0 : index
    %c0_14 = arith.constant 0 : index
    %8 = vector.load %arg7[%c0_12, %c0_13, %c0_14] : memref<18x18x4xf32, #tpu.memory_space<vmem>>, vector<1x18x4xf32>
    tpu.vector_store %arg7[%c0_12, %c0_13, %c0_14], %7 {strides = array<i32>} : memref<18x18x4xf32, #tpu.memory_space<vmem>>, vector<1x18x4xf32>,
    %c15 = arith.constant 15 : index
    %c0_15 = arith.constant 0 : index
    %c0_16 = arith.constant 0 : index
    %9 = vector.load %arg7[%c15, %c0_15, %c0_16] : memref<18x18x4xf32, #tpu.memory_space<vmem>>, vector<1x18x4xf32>
    %c17_17 = arith.constant 17 : index
    %c0_18 = arith.constant 0 : index
    %c0_19 = arith.constant 0 : index
    %10 = vector.load %arg7[%c17_17, %c0_18, %c0_19] : memref<18x18x4xf32, #tpu.memory_space<vmem>>, vector<1x18x4xf32>
    tpu.vector_store %arg7[%c17_17, %c0_18, %c0_19], %9 {strides = array<i32>} : memref<18x18x4xf32, #tpu.memory_space<vmem>>, vector<1x18x4xf32>,
    %c0_20 = arith.constant 0 : index
    %c0_21 = arith.constant 0 : index
    %c0_22 = arith.constant 0 : index
    %11 = vector.load %arg7[%c0_20, %c0_21, %c0_22] : memref<18x18x4xf32, #tpu.memory_space<vmem>>, vector<16x16x4xf32>
    %12 = vector.shape_cast %11 : vector<16x16x4xf32> to vector<256x4xf32>
    %c0_23 = arith.constant 0 : index
    %c0_24 = arith.constant 0 : index
    %13 = vector.load %arg8[%c0_23, %c0_24] : memref<256x36xf32, #tpu.memory_space<vmem>>, vector<256x4xf32>
    tpu.vector_store %arg8[%c0_23, %c0_24], %12 {strides = array<i32>} : memref<256x36xf32, #tpu.memory_space<vmem>>, vector<256x4xf32>,
    %c0_25 = arith.constant 0 : index
    %c1_26 = arith.constant 1 : index
    %c0_27 = arith.constant 0 : index
    %14 = vector.load %arg7[%c0_25, %c1_26, %c0_27] : memref<18x18x4xf32, #tpu.memory_space<vmem>>, vector<16x16x4xf32>
    %15 = vector.shape_cast %14 : vector<16x16x4xf32> to vector<256x4xf32>
    %c0_28 = arith.constant 0 : index
    %c4 = arith.constant 4 : index
    %16 = vector.load %arg8[%c0_28, %c4] : memref<256x36xf32, #tpu.memory_space<vmem>>, vector<256x4xf32>
    tpu.vector_store %arg8[%c0_28, %c4], %15 {strides = array<i32>} : memref<256x36xf32, #tpu.memory_space<vmem>>, vector<256x4xf32>,
    %c0_29 = arith.constant 0 : index
    %c2_30 = arith.constant 2 : index
    %c0_31 = arith.constant 0 : index
    %17 = vector.load %arg7[%c0_29, %c2_30, %c0_31] : memref<18x18x4xf32, #tpu.memory_space<vmem>>, vector<16x16x4xf32>
    %18 = vector.shape_cast %17 : vector<16x16x4xf32> to vector<256x4xf32>
    %c0_32 = arith.constant 0 : index
    %c8 = arith.constant 8 : index
    %19 = vector.load %arg8[%c0_32, %c8] : memref<256x36xf32, #tpu.memory_space<vmem>>, vector<256x4xf32>
    tpu.vector_store %arg8[%c0_32, %c8], %18 {strides = array<i32>} : memref<256x36xf32, #tpu.memory_space<vmem>>, vector<256x4xf32>,
    %c1_33 = arith.constant 1 : index
    %c0_34 = arith.constant 0 : index
    %c0_35 = arith.constant 0 : index
    %20 = vector.load %arg7[%c1_33, %c0_34, %c0_35] : memref<18x18x4xf32, #tpu.memory_space<vmem>>, vector<16x16x4xf32>
    %21 = vector.shape_cast %20 : vector<16x16x4xf32> to vector<256x4xf32>
    %c0_36 = arith.constant 0 : index
    %c12 = arith.constant 12 : index
    %22 = vector.load %arg8[%c0_36, %c12] : memref<256x36xf32, #tpu.memory_space<vmem>>, vector<256x4xf32>
    tpu.vector_store %arg8[%c0_36, %c12], %21 {strides = array<i32>} : memref<256x36xf32, #tpu.memory_space<vmem>>, vector<256x4xf32>,
    %c1_37 = arith.constant 1 : index
    %c1_38 = arith.constant 1 : index
    %c0_39 = arith.constant 0 : index
    %23 = vector.load %arg7[%c1_37, %c1_38, %c0_39] : memref<18x18x4xf32, #tpu.memory_space<vmem>>, vector<16x16x4xf32>
    %24 = vector.shape_cast %23 : vector<16x16x4xf32> to vector<256x4xf32>
    %c0_40 = arith.constant 0 : index
    %c16 = arith.constant 16 : index
    %25 = vector.load %arg8[%c0_40, %c16] : memref<256x36xf32, #tpu.memory_space<vmem>>, vector<256x4xf32>
    tpu.vector_store %arg8[%c0_40, %c16], %24 {strides = array<i32>} : memref<256x36xf32, #tpu.memory_space<vmem>>, vector<256x4xf32>,
    %c1_41 = arith.constant 1 : index
    %c2_42 = arith.constant 2 : index
    %c0_43 = arith.constant 0 : index
    %26 = vector.load %arg7[%c1_41, %c2_42, %c0_43] : memref<18x18x4xf32, #tpu.memory_space<vmem>>, vector<16x16x4xf32>
    %27 = vector.shape_cast %26 : vector<16x16x4xf32> to vector<256x4xf32>
    %c0_44 = arith.constant 0 : index
    %c20 = arith.constant 20 : index
    %28 = vector.load %arg8[%c0_44, %c20] : memref<256x36xf32, #tpu.memory_space<vmem>>, vector<256x4xf32>
    tpu.vector_store %arg8[%c0_44, %c20], %27 {strides = array<i32>} : memref<256x36xf32, #tpu.memory_space<vmem>>, vector<256x4xf32>,
    %c2_45 = arith.constant 2 : index
    %c0_46 = arith.constant 0 : index
    %c0_47 = arith.constant 0 : index
    %29 = vector.load %arg7[%c2_45, %c0_46, %c0_47] : memref<18x18x4xf32, #tpu.memory_space<vmem>>, vector<16x16x4xf32>
    %30 = vector.shape_cast %29 : vector<16x16x4xf32> to vector<256x4xf32>
    %c0_48 = arith.constant 0 : index
    %c24 = arith.constant 24 : index
    %31 = vector.load %arg8[%c0_48, %c24] : memref<256x36xf32, #tpu.memory_space<vmem>>, vector<256x4xf32>
    tpu.vector_store %arg8[%c0_48, %c24], %30 {strides = array<i32>} : memref<256x36xf32, #tpu.memory_space<vmem>>, vector<256x4xf32>,
    %c2_49 = arith.constant 2 : index
    %c1_50 = arith.constant 1 : index
    %c0_51 = arith.constant 0 : index
    %32 = vector.load %arg7[%c2_49, %c1_50, %c0_51] : memref<18x18x4xf32, #tpu.memory_space<vmem>>, vector<16x16x4xf32>
    %33 = vector.shape_cast %32 : vector<16x16x4xf32> to vector<256x4xf32>
    %c0_52 = arith.constant 0 : index
    %c28 = arith.constant 28 : index
    %34 = vector.load %arg8[%c0_52, %c28] : memref<256x36xf32, #tpu.memory_space<vmem>>, vector<256x4xf32>
    tpu.vector_store %arg8[%c0_52, %c28], %33 {strides = array<i32>} : memref<256x36xf32, #tpu.memory_space<vmem>>, vector<256x4xf32>,
    %c2_53 = arith.constant 2 : index
    %c2_54 = arith.constant 2 : index
    %c0_55 = arith.constant 0 : index
    %35 = vector.load %arg7[%c2_53, %c2_54, %c0_55] : memref<18x18x4xf32, #tpu.memory_space<vmem>>, vector<16x16x4xf32>
    %36 = vector.shape_cast %35 : vector<16x16x4xf32> to vector<256x4xf32>
    %c0_56 = arith.constant 0 : index
    %c32 = arith.constant 32 : index
    %37 = vector.load %arg8[%c0_56, %c32] : memref<256x36xf32, #tpu.memory_space<vmem>>, vector<256x4xf32>
    tpu.vector_store %arg8[%c0_56, %c32], %36 {strides = array<i32>} : memref<256x36xf32, #tpu.memory_space<vmem>>, vector<256x4xf32>,
    %c0_57 = arith.constant 0 : index
    %c0_58 = arith.constant 0 : index
    %38 = vector.load %arg8[%c0_57, %c0_58] : memref<256x36xf32, #tpu.memory_space<vmem>>, vector<256x36xf32>
    %c0_59 = arith.constant 0 : index
    %c0_60 = arith.constant 0 : index
    %39 = vector.load %arg2[%c0_59, %c0_60] : memref<36x4xf32, #tpu.memory_space<vmem>>, vector<36x4xf32>
    %cst = arith.constant dense<0.000000e+00> : vector<256x4xf32>
    %40 = tpu.matmul %38, %39, %cst {dimension_numbers = #tpu.dot_dimension_numbers<[1], [0], [0], [1], [0, 0, 1, 1], [], []>} : vector<256x36xf32>, vector<36x4xf32>, vector<256x4xf32> -> vector<256x4xf32>
    %c0_61 = arith.constant 0 : index
    %c0_62 = arith.constant 0 : index
    %41 = vector.load %arg3[%c0_61, %c0_62] : memref<1x4xf32, #tpu.memory_space<vmem>>, vector<1x4xf32>
    %42 = vector.broadcast %41 : vector<1x4xf32> to vector<256x4xf32>
    %43 = arith.addf %40, %42 : vector<256x4xf32>
    %cst_63 = arith.constant dense<0.000000e+00> : vector<4xf32>
    %44 = vector.multi_reduction <add>, %43, %cst_63 [0] : vector<256x4xf32> to vector<4xf32>
    %45 = vector.shape_cast %44 : vector<4xf32> to vector<1x4xf32>
    %cst_64 = arith.constant 3.906250e-03 : f32
    %46 = vector.broadcast %cst_64 : f32 to vector<1x4xf32>
    %47 = arith.mulf %45, %46 : vector<1x4xf32>
    %48 = vector.broadcast %47 : vector<1x4xf32> to vector<256x4xf32>
    %49 = arith.subf %43, %48 : vector<256x4xf32>
    %50 = arith.mulf %49, %49 : vector<256x4xf32>
    %cst_65 = arith.constant dense<0.000000e+00> : vector<4xf32>
    %51 = vector.multi_reduction <add>, %50, %cst_65 [0] : vector<256x4xf32> to vector<4xf32>
    %52 = vector.shape_cast %51 : vector<4xf32> to vector<1x4xf32>
    %cst_66 = arith.constant 3.906250e-03 : f32
    %53 = vector.broadcast %cst_66 : f32 to vector<1x4xf32>
    %54 = arith.mulf %52, %53 : vector<1x4xf32>
    %cst_67 = arith.constant 9.99999974E-6 : f32
    %55 = vector.broadcast %cst_67 : f32 to vector<1x4xf32>
    %56 = arith.addf %54, %55 : vector<1x4xf32>
    %57 = math.rsqrt %56 : vector<1x4xf32>
    %58 = vector.broadcast %57 : vector<1x4xf32> to vector<256x4xf32>
    %59 = arith.mulf %49, %58 : vector<256x4xf32>
    %cst_68 = arith.constant 0.000000e+00 : f32
    %60 = vector.broadcast %cst_68 : f32 to vector<256x4xf32>
    %61 = arith.maximumf %59, %60 : vector<256x4xf32>
    %62 = vector.shape_cast %61 : vector<256x4xf32> to vector<16x16x4xf32>
    %c1_69 = arith.constant 1 : index
    %c1_70 = arith.constant 1 : index
    %c0_71 = arith.constant 0 : index
    %63 = vector.load %arg7[%c1_69, %c1_70, %c0_71] : memref<18x18x4xf32, #tpu.memory_space<vmem>>, vector<16x16x4xf32>
    tpu.vector_store %arg7[%c1_69, %c1_70, %c0_71], %62 {strides = array<i32>} : memref<18x18x4xf32, #tpu.memory_space<vmem>>, vector<16x16x4xf32>,
    %64 = vector.extract_strided_slice %62 {offsets = [0, 1, 0], sizes = [16, 1, 4], strides = [1, 1, 1]} : vector<16x16x4xf32> to vector<16x1x4xf32>
    %c1_72 = arith.constant 1 : index
    %c0_73 = arith.constant 0 : index
    %c0_74 = arith.constant 0 : index
    %65 = vector.load %arg7[%c1_72, %c0_73, %c0_74] : memref<18x18x4xf32, #tpu.memory_space<vmem>>, vector<16x1x4xf32>
    tpu.vector_store %arg7[%c1_72, %c0_73, %c0_74], %64 {strides = array<i32>} : memref<18x18x4xf32, #tpu.memory_space<vmem>>, vector<16x1x4xf32>,
    %66 = vector.extract_strided_slice %62 {offsets = [0, 14, 0], sizes = [16, 1, 4], strides = [1, 1, 1]} : vector<16x16x4xf32> to vector<16x1x4xf32>
    %c1_75 = arith.constant 1 : index
    %c17_76 = arith.constant 17 : index
    %c0_77 = arith.constant 0 : index
    %67 = vector.load %arg7[%c1_75, %c17_76, %c0_77] : memref<18x18x4xf32, #tpu.memory_space<vmem>>, vector<16x1x4xf32>
    tpu.vector_store %arg7[%c1_75, %c17_76, %c0_77], %66 {strides = array<i32>} : memref<18x18x4xf32, #tpu.memory_space<vmem>>, vector<16x1x4xf32>,
    %c2_78 = arith.constant 2 : index
    %c0_79 = arith.constant 0 : index
    %c0_80 = arith.constant 0 : index
    %68 = vector.load %arg7[%c2_78, %c0_79, %c0_80] : memref<18x18x4xf32, #tpu.memory_space<vmem>>, vector<1x18x4xf32>
    %c0_81 = arith.constant 0 : index
    %c0_82 = arith.constant 0 : index
    %c0_83 = arith.constant 0 : index
    %69 = vector.load %arg7[%c0_81, %c0_82, %c0_83] : memref<18x18x4xf32, #tpu.memory_space<vmem>>, vector<1x18x4xf32>
    tpu.vector_store %arg7[%c0_81, %c0_82, %c0_83], %68 {strides = array<i32>} : memref<18x18x4xf32, #tpu.memory_space<vmem>>, vector<1x18x4xf32>,
    %c15_84 = arith.constant 15 : index
    %c0_85 = arith.constant 0 : index
    %c0_86 = arith.constant 0 : index
    %70 = vector.load %arg7[%c15_84, %c0_85, %c0_86] : memref<18x18x4xf32, #tpu.memory_space<vmem>>, vector<1x18x4xf32>
    %c17_87 = arith.constant 17 : index
    %c0_88 = arith.constant 0 : index
    %c0_89 = arith.constant 0 : index
    %71 = vector.load %arg7[%c17_87, %c0_88, %c0_89] : memref<18x18x4xf32, #tpu.memory_space<vmem>>, vector<1x18x4xf32>
    tpu.vector_store %arg7[%c17_87, %c0_88, %c0_89], %70 {strides = array<i32>} : memref<18x18x4xf32, #tpu.memory_space<vmem>>, vector<1x18x4xf32>,
    %c0_90 = arith.constant 0 : index
    %c0_91 = arith.constant 0 : index
    %c0_92 = arith.constant 0 : index
    %72 = vector.load %arg7[%c0_90, %c0_91, %c0_92] : memref<18x18x4xf32, #tpu.memory_space<vmem>>, vector<16x16x4xf32>
    %73 = vector.shape_cast %72 : vector<16x16x4xf32> to vector<256x4xf32>
    %c0_93 = arith.constant 0 : index
    %c0_94 = arith.constant 0 : index
    %74 = vector.load %arg8[%c0_93, %c0_94] : memref<256x36xf32, #tpu.memory_space<vmem>>, vector<256x4xf32>
    tpu.vector_store %arg8[%c0_93, %c0_94], %73 {strides = array<i32>} : memref<256x36xf32, #tpu.memory_space<vmem>>, vector<256x4xf32>,
    %c0_95 = arith.constant 0 : index
    %c1_96 = arith.constant 1 : index
    %c0_97 = arith.constant 0 : index
    %75 = vector.load %arg7[%c0_95, %c1_96, %c0_97] : memref<18x18x4xf32, #tpu.memory_space<vmem>>, vector<16x16x4xf32>
    %76 = vector.shape_cast %75 : vector<16x16x4xf32> to vector<256x4xf32>
    %c0_98 = arith.constant 0 : index
    %c4_99 = arith.constant 4 : index
    %77 = vector.load %arg8[%c0_98, %c4_99] : memref<256x36xf32, #tpu.memory_space<vmem>>, vector<256x4xf32>
    tpu.vector_store %arg8[%c0_98, %c4_99], %76 {strides = array<i32>} : memref<256x36xf32, #tpu.memory_space<vmem>>, vector<256x4xf32>,
    %c0_100 = arith.constant 0 : index
    %c2_101 = arith.constant 2 : index
    %c0_102 = arith.constant 0 : index
    %78 = vector.load %arg7[%c0_100, %c2_101, %c0_102] : memref<18x18x4xf32, #tpu.memory_space<vmem>>, vector<16x16x4xf32>
    %79 = vector.shape_cast %78 : vector<16x16x4xf32> to vector<256x4xf32>
    %c0_103 = arith.constant 0 : index
    %c8_104 = arith.constant 8 : index
    %80 = vector.load %arg8[%c0_103, %c8_104] : memref<256x36xf32, #tpu.memory_space<vmem>>, vector<256x4xf32>
    tpu.vector_store %arg8[%c0_103, %c8_104], %79 {strides = array<i32>} : memref<256x36xf32, #tpu.memory_space<vmem>>, vector<256x4xf32>,
    %c1_105 = arith.constant 1 : index
    %c0_106 = arith.constant 0 : index
    %c0_107 = arith.constant 0 : index
    %81 = vector.load %arg7[%c1_105, %c0_106, %c0_107] : memref<18x18x4xf32, #tpu.memory_space<vmem>>, vector<16x16x4xf32>
    %82 = vector.shape_cast %81 : vector<16x16x4xf32> to vector<256x4xf32>
    %c0_108 = arith.constant 0 : index
    %c12_109 = arith.constant 12 : index
    %83 = vector.load %arg8[%c0_108, %c12_109] : memref<256x36xf32, #tpu.memory_space<vmem>>, vector<256x4xf32>
    tpu.vector_store %arg8[%c0_108, %c12_109], %82 {strides = array<i32>} : memref<256x36xf32, #tpu.memory_space<vmem>>, vector<256x4xf32>,
    %c1_110 = arith.constant 1 : index
    %c1_111 = arith.constant 1 : index
    %c0_112 = arith.constant 0 : index
    %84 = vector.load %arg7[%c1_110, %c1_111, %c0_112] : memref<18x18x4xf32, #tpu.memory_space<vmem>>, vector<16x16x4xf32>
    %85 = vector.shape_cast %84 : vector<16x16x4xf32> to vector<256x4xf32>
    %c0_113 = arith.constant 0 : index
    %c16_114 = arith.constant 16 : index
    %86 = vector.load %arg8[%c0_113, %c16_114] : memref<256x36xf32, #tpu.memory_space<vmem>>, vector<256x4xf32>
    tpu.vector_store %arg8[%c0_113, %c16_114], %85 {strides = array<i32>} : memref<256x36xf32, #tpu.memory_space<vmem>>, vector<256x4xf32>,
    %c1_115 = arith.constant 1 : index
    %c2_116 = arith.constant 2 : index
    %c0_117 = arith.constant 0 : index
    %87 = vector.load %arg7[%c1_115, %c2_116, %c0_117] : memref<18x18x4xf32, #tpu.memory_space<vmem>>, vector<16x16x4xf32>
    %88 = vector.shape_cast %87 : vector<16x16x4xf32> to vector<256x4xf32>
    %c0_118 = arith.constant 0 : index
    %c20_119 = arith.constant 20 : index
    %89 = vector.load %arg8[%c0_118, %c20_119] : memref<256x36xf32, #tpu.memory_space<vmem>>, vector<256x4xf32>
    tpu.vector_store %arg8[%c0_118, %c20_119], %88 {strides = array<i32>} : memref<256x36xf32, #tpu.memory_space<vmem>>, vector<256x4xf32>,
    %c2_120 = arith.constant 2 : index
    %c0_121 = arith.constant 0 : index
    %c0_122 = arith.constant 0 : index
    %90 = vector.load %arg7[%c2_120, %c0_121, %c0_122] : memref<18x18x4xf32, #tpu.memory_space<vmem>>, vector<16x16x4xf32>
    %91 = vector.shape_cast %90 : vector<16x16x4xf32> to vector<256x4xf32>
    %c0_123 = arith.constant 0 : index
    %c24_124 = arith.constant 24 : index
    %92 = vector.load %arg8[%c0_123, %c24_124] : memref<256x36xf32, #tpu.memory_space<vmem>>, vector<256x4xf32>
    tpu.vector_store %arg8[%c0_123, %c24_124], %91 {strides = array<i32>} : memref<256x36xf32, #tpu.memory_space<vmem>>, vector<256x4xf32>,
    %c2_125 = arith.constant 2 : index
    %c1_126 = arith.constant 1 : index
    %c0_127 = arith.constant 0 : index
    %93 = vector.load %arg7[%c2_125, %c1_126, %c0_127] : memref<18x18x4xf32, #tpu.memory_space<vmem>>, vector<16x16x4xf32>
    %94 = vector.shape_cast %93 : vector<16x16x4xf32> to vector<256x4xf32>
    %c0_128 = arith.constant 0 : index
    %c28_129 = arith.constant 28 : index
    %95 = vector.load %arg8[%c0_128, %c28_129] : memref<256x36xf32, #tpu.memory_space<vmem>>, vector<256x4xf32>
    tpu.vector_store %arg8[%c0_128, %c28_129], %94 {strides = array<i32>} : memref<256x36xf32, #tpu.memory_space<vmem>>, vector<256x4xf32>,
    %c2_130 = arith.constant 2 : index
    %c2_131 = arith.constant 2 : index
    %c0_132 = arith.constant 0 : index
    %96 = vector.load %arg7[%c2_130, %c2_131, %c0_132] : memref<18x18x4xf32, #tpu.memory_space<vmem>>, vector<16x16x4xf32>
    %97 = vector.shape_cast %96 : vector<16x16x4xf32> to vector<256x4xf32>
    %c0_133 = arith.constant 0 : index
    %c32_134 = arith.constant 32 : index
    %98 = vector.load %arg8[%c0_133, %c32_134] : memref<256x36xf32, #tpu.memory_space<vmem>>, vector<256x4xf32>
    tpu.vector_store %arg8[%c0_133, %c32_134], %97 {strides = array<i32>} : memref<256x36xf32, #tpu.memory_space<vmem>>, vector<256x4xf32>,
    %c0_135 = arith.constant 0 : index
    %c0_136 = arith.constant 0 : index
    %99 = vector.load %arg8[%c0_135, %c0_136] : memref<256x36xf32, #tpu.memory_space<vmem>>, vector<256x36xf32>
    %c0_137 = arith.constant 0 : index
    %c0_138 = arith.constant 0 : index
    %100 = vector.load %arg4[%c0_137, %c0_138] : memref<36x128xf32, #tpu.memory_space<vmem>>, vector<36x128xf32>
    %cst_139 = arith.constant dense<0.000000e+00> : vector<256x128xf32>
    %101 = tpu.matmul %99, %100, %cst_139 {dimension_numbers = #tpu.dot_dimension_numbers<[1], [0], [0], [1], [0, 0, 1, 1], [], []>} : vector<256x36xf32>, vector<36x128xf32>, vector<256x128xf32> -> vector<256x128xf32>
    %c0_140 = arith.constant 0 : index
    %c0_141 = arith.constant 0 : index
    %102 = vector.load %arg5[%c0_140, %c0_141] : memref<1x128xf32, #tpu.memory_space<vmem>>, vector<1x128xf32>
    %103 = vector.broadcast %102 : vector<1x128xf32> to vector<256x128xf32>
    %104 = arith.addf %101, %103 : vector<256x128xf32>
    %cst_142 = arith.constant dense<0.000000e+00> : vector<128xf32>
    %105 = vector.multi_reduction <add>, %104, %cst_142 [0] : vector<256x128xf32> to vector<128xf32>
    %106 = vector.shape_cast %105 : vector<128xf32> to vector<1x128xf32>
    %cst_143 = arith.constant 3.906250e-03 : f32
    %107 = vector.broadcast %cst_143 : f32 to vector<1x128xf32>
    %108 = arith.mulf %106, %107 : vector<1x128xf32>
    %109 = vector.broadcast %108 : vector<1x128xf32> to vector<256x128xf32>
    %110 = arith.subf %104, %109 : vector<256x128xf32>
    %111 = arith.mulf %110, %110 : vector<256x128xf32>
    %cst_144 = arith.constant dense<0.000000e+00> : vector<128xf32>
    %112 = vector.multi_reduction <add>, %111, %cst_144 [0] : vector<256x128xf32> to vector<128xf32>
    %113 = vector.shape_cast %112 : vector<128xf32> to vector<1x128xf32>
    %cst_145 = arith.constant 3.906250e-03 : f32
    %114 = vector.broadcast %cst_145 : f32 to vector<1x128xf32>
    %115 = arith.mulf %113, %114 : vector<1x128xf32>
    %cst_146 = arith.constant 9.99999974E-6 : f32
    %116 = vector.broadcast %cst_146 : f32 to vector<1x128xf32>
    %117 = arith.addf %115, %116 : vector<1x128xf32>
    %118 = math.rsqrt %117 : vector<1x128xf32>
    %119 = vector.broadcast %118 : vector<1x128xf32> to vector<256x128xf32>
    %120 = arith.mulf %110, %119 : vector<256x128xf32>
    %121 = vector.shape_cast %1 : vector<16x16x4xf32> to vector<256x4xf32>
    %cst_147 = arith.constant 0.000000e+00 : f32
    %122 = vector.broadcast %cst_147 : f32 to vector<256x124xf32>
    %123 = tpu.concatenate %121, %122 in 1 : vector<256x4xf32>, vector<256x124xf32> -> vector<256x128xf32>
    %124 = arith.addf %120, %123 : vector<256x128xf32>
    %c0_148 = arith.constant 0 : index
    %c0_149 = arith.constant 0 : index
    %c0_150 = arith.constant 0 : index
    %125 = vector.load %arg6[%c0_148, %c0_149, %c0_150] : memref<1x256x128xf32, #tpu.memory_space<vmem>>, vector<1x256x128xf32>
    %126 = vector.shape_cast %125 : vector<1x256x128xf32> to vector<256x128xf32>
    %127 = vector.shape_cast %124 : vector<256x128xf32> to vector<1x256x128xf32>
    tpu.vector_store %arg6[%c0_148, %c0_149, %c0_150], %127 {strides = array<i32>} : memref<1x256x128xf32, #tpu.memory_space<vmem>>, vector<1x256x128xf32>,
    return
  }
  func.func @transform_0(%arg0: i32) -> (i32, i32, i32, i32) {
    %c0_i32 = arith.constant 0 : i32
    %c0_i32_0 = arith.constant 0 : i32
    %c0_i32_1 = arith.constant 0 : i32
    %c0_i32_2 = arith.constant 0 : i32
    return %arg0, %c0_i32, %c0_i32_0, %c0_i32_1 : i32, i32, i32, i32
  }
  func.func @transform_1(%arg0: i32) -> (i32, i32) {
    %c0_i32 = arith.constant 0 : i32
    %c0_i32_0 = arith.constant 0 : i32
    %c0_i32_1 = arith.constant 0 : i32
    return %c0_i32, %c0_i32_0 : i32, i32
  }
  func.func @transform_2(%arg0: i32) -> (i32, i32) {
    %c0_i32 = arith.constant 0 : i32
    %c0_i32_0 = arith.constant 0 : i32
    %c0_i32_1 = arith.constant 0 : i32
    return %c0_i32, %c0_i32_0 : i32, i32
  }
  func.func @transform_3(%arg0: i32) -> (i32, i32) {
    %c0_i32 = arith.constant 0 : i32
    %c0_i32_0 = arith.constant 0 : i32
    %c0_i32_1 = arith.constant 0 : i32
    return %c0_i32, %c0_i32_0 : i32, i32
  }
  func.func @transform_4(%arg0: i32) -> (i32, i32) {
    %c0_i32 = arith.constant 0 : i32
    %c0_i32_0 = arith.constant 0 : i32
    %c0_i32_1 = arith.constant 0 : i32
    return %c0_i32, %c0_i32_0 : i32, i32
  }
  func.func @transform_5(%arg0: i32) -> (i32, i32, i32) {
    %c0_i32 = arith.constant 0 : i32
    %c0_i32_0 = arith.constant 0 : i32
    %c0_i32_1 = arith.constant 0 : i32
    return %arg0, %c0_i32, %c0_i32_0 : i32, i32, i32
  }
}

</mosaic_0001>

<llo_original>
// kernel: tpu_custom_call.1
$region0: #{tpu_custom_call.1}
  #allocation0 [shape = 'u32[]', space=smem, size = 0x4, offset = 0x4, fixed_abs, tag = 'smem constant byte address 0x4 - core index']
  #allocation1 [shape = 'u32[144,128]{1,0:T(1,128)}', space=vmem, size = 0x12000, scoped, tag = 'internal scratch']
  #allocation2 [shape = 'f32[18,18,4]{2,1,0:T(8,128)}', space=vmem, size = 0x36000, scoped, tag = 'scratch operand']
  #allocation3 [shape = 'f32[256,36]{1,0:T(8,128)}', space=vmem, size = 0x20000, scoped, tag = 'scratch operand']
  %s0 = inlined_call_operand.vmem [shape: f32[2,16,16,4], index: 0, kind: input, shape index: {}]
  %s1 = inlined_call_operand.vmem [shape: f32[36,4], index: 1, kind: input, shape index: {}]
  %s2 = inlined_call_operand.vmem [shape: f32[1,4], index: 2, kind: input, shape index: {}]
  %s3 = inlined_call_operand.vmem [shape: f32[36,128], index: 3, kind: input, shape index: {}]
  %s4 = inlined_call_operand.vmem [shape: f32[1,128], index: 4, kind: input, shape index: {}]
  %s5 = inlined_call_operand.hbm [shape: f32[2,256,128], index: 5, kind: output, shape index: {}]
  %s6 = sld [smem:[#allocation0]]
  $region53: #{tpu_custom_call.1} parent=0
    _
  %s8 = ssub.s32 1, %s6
  %s9 = scalar_select 0, %s8, %s6
  $region1: #{tpu_custom_call.1} parent=0
    #allocation4 [shape = 'u8[262144]{0}', space=vmem, size = 0x40000, scoped, tag = 'output window, operand 0']
    #allocation5 [shape = 's32[2]{0}', space=sflag, size = 0x8, scoped, tag = 'scoped memory for tpu_custom_call.1']
    %10 = vsyncpa [#allocation5], 0
    %s11 = scalar_lea.sflag [#allocation5], 1
    %12 = vsyncpa %s11, 0
    loop: start=0, step=1, limit=4
    $region2: #{tpu_custom_call.1} parent=1 // loop_pre_header
      _
    $region3: #{tpu_custom_call.1} parent=1 // loop_header
      %s14 = sphi 0, %s18
      %p15 = scmp.ge.s32.totalorder %s14, 4
      %s24 = sphi 0, %s26
      %s27 = sphi 0, %s24
      %s28 = sphi 0, %s27
      %s44 = sphi 0, %s28
      %s48 = sphi 0, %s48
      %s50 = sphi 0, %s48
      %s51 = sphi 0, %s50
      %s65 = sphi 0, %s51
      %s69 = sphi 0, %s69
      %s71 = sphi 0, %s69
      %s72 = sphi 0, %s71
      %s86 = sphi 0, %s72
      %s90 = sphi 0, %s90
      %s92 = sphi 0, %s90
      %s93 = sphi 0, %s92
      %s107 = sphi 0, %s93
      %s111 = sphi 0, %s111
      %s113 = sphi 0, %s111
      %s114 = sphi 0, %s113
      %s128 = sphi 0, %s114
      %s134 = sphi 0, %s136
      %s137 = sphi 0, %s134
      %s138 = sphi 0, %s137
      %s154 = sphi 0, %s138
    $region4: #{tpu_custom_call.1} parent=1 // loop_header_branch
      %17 = sbr.rel (%p15) target = $region8
    $region5: #{tpu_custom_call.1} parent=1 // loop_body
      %s19 = ssub.s32 %s14, 1
      %s20 = ssub.s32 %s14, 2
      %s21 = sadd.s32 %s14, 1
      %s22 = ssub.s32 %s14, %s21
      %p23 = scmp.eq.s32.totalorder %s22, 0
      %s25 = sadd.s32 %s24, 1
      %s26 = scalar_select %p23, %s24, %s25
      %p29 = pneg %p23
      %p30 = scmp.eq.s32.totalorder %s14, 1
      %p31 = por %p29, %p30
      %p32 = scmp.ne.s32.totalorder %s24, %s27
      %p33 = scmp.eq.s32.totalorder %s14, 0
      %p34 = por %p32, %p33
      %p35 = scmp.ne.s32.totalorder %s24, %s27
      %p36 = scmp.eq.s32.totalorder %s19, 1
      %p37 = por %p35, %p36
      %p38 = scmp.ne.s32.totalorder %s27, %s28
      %p39 = scmp.eq.s32.totalorder %s19, 0
      %p40 = por %p38, %p39
      %p41 = scmp.ne.s32.totalorder %s27, %s28
      %p42 = scmp.eq.s32.totalorder %s20, 1
      %p43 = por %p41, %p42
      %p45 = scmp.ne.s32.totalorder %s28, %s44
      %p46 = scmp.eq.s32.totalorder %s20, 0
      %p47 = por %p45, %p46
      %s49 = sadd.s32 %s48, 1
      %p52 = scmp.eq.s32.totalorder %s14, 1
      %p53 = scmp.ne.s32.totalorder %s48, %s50
      %p54 = scmp.eq.s32.totalorder %s14, 0
      %p55 = por %p53, %p54
      %p56 = scmp.ne.s32.totalorder %s48, %s50
      %p57 = scmp.eq.s32.totalorder %s19, 1
      %p58 = por %p56, %p57
      %p59 = scmp.ne.s32.totalorder %s50, %s51
      %p60 = scmp.eq.s32.totalorder %s19, 0
      %p61 = por %p59, %p60
      %p62 = scmp.ne.s32.totalorder %s50, %s51
      %p63 = scmp.eq.s32.totalorder %s20, 1
      %p64 = por %p62, %p63
      %p66 = scmp.ne.s32.totalorder %s51, %s65
      %p67 = scmp.eq.s32.totalorder %s20, 0
      %p68 = por %p66, %p67
      %s70 = sadd.s32 %s69, 1
      %p73 = scmp.eq.s32.totalorder %s14, 1
      %p74 = scmp.ne.s32.totalorder %s69, %s71
      %p75 = scmp.eq.s32.totalorder %s14, 0
      %p76 = por %p74, %p75
      %p77 = scmp.ne.s32.totalorder %s69, %s71
      %p78 = scmp.eq.s32.totalorder %s19, 1
      %p79 = por %p77, %p78
      %p80 = scmp.ne.s32.totalorder %s71, %s72
      %p81 = scmp.eq.s32.totalorder %s19, 0
      %p82 = por %p80, %p81
      %p83 = scmp.ne.s32.totalorder %s71, %s72
      %p84 = scmp.eq.s32.totalorder %s20, 1
      %p85 = por %p83, %p84
      %p87 = scmp.ne.s32.totalorder %s72, %s86
      %p88 = scmp.eq.s32.totalorder %s20, 0
      %p89 = por %p87, %p88
      %s91 = sadd.s32 %s90, 1
      %p94 = scmp.eq.s32.totalorder %s14, 1
      %p95 = scmp.ne.s32.totalorder %s90, %s92
      %p96 = scmp.eq.s32.totalorder %s14, 0
      %p97 = por %p95, %p96
      %p98 = scmp.ne.s32.totalorder %s90, %s92
      %p99 = scmp.eq.s32.totalorder %s19, 1
      %p100 = por %p98, %p99
      %p101 = scmp.ne.s32.totalorder %s92, %s93
      %p102 = scmp.eq.s32.totalorder %s19, 0
      %p103 = por %p101, %p102
      %p104 = scmp.ne.s32.totalorder %s92, %s93
      %p105 = scmp.eq.s32.totalorder %s20, 1
      %p106 = por %p104, %p105
      %p108 = scmp.ne.s32.totalorder %s93, %s107
      %p109 = scmp.eq.s32.totalorder %s20, 0
      %p110 = por %p108, %p109
      %s112 = sadd.s32 %s111, 1
      %p115 = scmp.eq.s32.totalorder %s14, 1
      %p116 = scmp.ne.s32.totalorder %s111, %s113
      %p117 = scmp.eq.s32.totalorder %s14, 0
      %p118 = por %p116, %p117
      %p119 = scmp.ne.s32.totalorder %s111, %s113
      %p120 = scmp.eq.s32.totalorder %s19, 1
      %p121 = por %p119, %p120
      %p122 = scmp.ne.s32.totalorder %s113, %s114
      %p123 = scmp.eq.s32.totalorder %s19, 0
      %p124 = por %p122, %p123
      %p125 = scmp.ne.s32.totalorder %s113, %s114
      %p126 = scmp.eq.s32.totalorder %s20, 1
      %p127 = por %p125, %p126
      %p129 = scmp.ne.s32.totalorder %s114, %s128
      %p130 = scmp.eq.s32.totalorder %s20, 0
      %p131 = por %p129, %p130
      %s132 = ssub.s32 %s14, %s21
      %p133 = scmp.eq.s32.totalorder %s132, 0
      %s135 = sadd.s32 %s134, 1
      %s136 = scalar_select %p133, %s134, %s135
      %p139 = pneg %p133
      %p140 = scmp.eq.s32.totalorder %s14, 1
      %p141 = por %p139, %p140
      %p142 = scmp.ne.s32.totalorder %s134, %s137
      %p143 = scmp.eq.s32.totalorder %s14, 0
      %p144 = por %p142, %p143
      %p145 = scmp.ne.s32.totalorder %s134, %s137
      %p146 = scmp.eq.s32.totalorder %s19, 1
      %p147 = por %p145, %p146
      %p148 = scmp.ne.s32.totalorder %s137, %s138
      %p149 = scmp.eq.s32.totalorder %s19, 0
      %p150 = por %p148, %p149
      %p151 = scmp.ne.s32.totalorder %s137, %s138
      %p152 = scmp.eq.s32.totalorder %s20, 1
      %p153 = por %p151, %p152
      %p155 = scmp.ne.s32.totalorder %s138, %s154
      %p156 = scmp.eq.s32.totalorder %s20, 0
      %p157 = por %p155, %p156
      %p158 = scmp.le.s32.totalorder 1, %s14
      %p159 = scmp.lt.s32.totalorder %s14, 3
      %p160 = pnand %p158, %p159
      %p161 = pneg %p160
      // Predicated region
      $region9: #{tpu_custom_call.1} parent=5 // pred_check
        _
      $region10: #{tpu_custom_call.1} parent=5 // pred_check_branch
        %163 = sbr.rel (%p160) target = $region12
      $region11: #{tpu_custom_call.1} parent=5 // pred_region
        %s164 = ssub.s32 %s14, 1
        // Predicated region
        $region13: #{tpu_custom_call.1} parent=11 // pred_check
          %p165 = pneg %p61
        $region14: #{tpu_custom_call.1} parent=11 // pred_check_branch
          %167 = sbr.rel (%p165) target = $region16
        $region15: #{tpu_custom_call.1} parent=11 // pred_region
          _
        $region16: #{tpu_custom_call.1} parent=11 // pred_fallthru
          _
        // Predicated region
        $region17: #{tpu_custom_call.1} parent=11 // pred_check
          %p168 = pneg %p82
        $region18: #{tpu_custom_call.1} parent=11 // pred_check_branch
          %170 = sbr.rel (%p168) target = $region20
        $region19: #{tpu_custom_call.1} parent=11 // pred_region
          _
        $region20: #{tpu_custom_call.1} parent=11 // pred_fallthru
          _
        // Predicated region
        $region21: #{tpu_custom_call.1} parent=11 // pred_check
          %p171 = pneg %p103
        $region22: #{tpu_custom_call.1} parent=11 // pred_check_branch
          %173 = sbr.rel (%p171) target = $region24
        $region23: #{tpu_custom_call.1} parent=11 // pred_region
          _
        $region24: #{tpu_custom_call.1} parent=11 // pred_fallthru
          _
        // Predicated region
        $region25: #{tpu_custom_call.1} parent=11 // pred_check
          %p174 = pneg %p124
        $region26: #{tpu_custom_call.1} parent=11 // pred_check_branch
          %176 = sbr.rel (%p174) target = $region28
        $region27: #{tpu_custom_call.1} parent=11 // pred_region
          _
        $region28: #{tpu_custom_call.1} parent=11 // pred_fallthru
          _
      $region12: #{tpu_custom_call.1} parent=5 // pred_fallthru
        _
      %p177 = scmp.lt.s32.totalorder %s14, 2
      // Predicated region
      $region29: #{tpu_custom_call.1} parent=5 // pred_check
        %p178 = pneg %p177
      $region30: #{tpu_custom_call.1} parent=5 // pred_check_branch
        %180 = sbr.rel (%p178) target = $region32
      $region31: #{tpu_custom_call.1} parent=5 // pred_region
        // Predicated region
        $region33: #{tpu_custom_call.1} parent=31 // pred_check
          %p181 = pneg %p34
        $region34: #{tpu_custom_call.1} parent=31 // pred_check_branch
          %183 = sbr.rel (%p181) target = $region36
        $region35: #{tpu_custom_call.1} parent=31 // pred_region
          %p184 = scmp.lt.s32.totalorder %s14, 1
          %s185 = scalar_select %p184, %s14, 1
          %s186 = smul.addr %s185, 32
          %s187 = smul.addr %s186, 8
          %s188 = scalar_lea.vmem %s0, %s187
        $region36: #{tpu_custom_call.1} parent=31 // pred_fallthru
          _
      $region32: #{tpu_custom_call.1} parent=5 // pred_fallthru
        _
      %p189 = scmp.le.s32.totalorder 1, %s14
      %p190 = scmp.lt.s32.totalorder %s14, 3
      %p191 = pnand %p189, %p190
      %p192 = pneg %p191
      // Predicated region
      $region37: #{tpu_custom_call.1} parent=5 // pred_check
        _
      $region38: #{tpu_custom_call.1} parent=5 // pred_check_branch
        %194 = sbr.rel (%p191) target = $region40
      $region39: #{tpu_custom_call.1} parent=5 // pred_region
        %s195 = ssub.s32 %s14, 1
        %p196 = scmp.lt.s32.totalorder %s19, 1
        %s197 = scalar_select %p196, %s19, 1
        %s198 = smul.addr %s197, 32
        %s199 = smul.addr %s198, 8
        %s200 = scalar_lea.vmem %s0, %s199
        %p201 = pneg %p40
        %p202 = pneg %p37
        %p203 = pneg %p61
        %p204 = pneg %p58
        %p205 = pneg %p82
        %p206 = pneg %p79
        %p207 = pneg %p103
        %p208 = pneg %p100
        %p209 = pneg %p124
        %p210 = pneg %p121
        %p211 = pneg %p150
        %p212 = pneg %p147
        %s213 = sand.u32 %s137, 1
        %s214 = scalar_lea.sflag [#allocation5], %s213
        %s215 = sand.u32 %s137, 1
        %s216 = smul.addr %s215, 256
        %s217 = scalar_lea.vmem [#allocation4], %s216
        %p218 = scmp.lt.s32.totalorder %s19, 1
        %s219 = scalar_select %p218, %s19, 1
        %s220 = smul.addr %s219, 32
        %s221 = smul.addr %s220, 8
        %s222 = scalar_lea.vmem %s0, %s221
        %v223 = vld [vmem:[%s222] sm:$0xff]
        %v224 = vld [vmem:[%s222 + $0x8] sm:$0xff]
        %v225 = vld [vmem:[%s222 + $0x10] sm:$0xff]
        %v226 = vld [vmem:[%s222 + $0x18] sm:$0xff]
        %v227 = vld [vmem:[%s222 + $0x20] sm:$0xff]
        %v228 = vld [vmem:[%s222 + $0x28] sm:$0xff]
        %v229 = vld [vmem:[%s222 + $0x30] sm:$0xff]
        %v230 = vld [vmem:[%s222 + $0x38] sm:$0xff]
        %v231 = vld [vmem:[%s222 + $0x40] sm:$0xff]
        %v232 = vld [vmem:[%s222 + $0x48] sm:$0xff]
        %v233 = vld [vmem:[%s222 + $0x50] sm:$0xff]
        %v234 = vld [vmem:[%s222 + $0x58] sm:$0xff]
        %v235 = vld [vmem:[%s222 + $0x60] sm:$0xff]
        %v236 = vld [vmem:[%s222 + $0x68] sm:$0xff]
        %v237 = vld [vmem:[%s222 + $0x70] sm:$0xff]
        %v238 = vld [vmem:[%s222 + $0x78] sm:$0xff]
        %v239 = vld [vmem:[%s222 + $0x80] sm:$0xff]
        %v240 = vld [vmem:[%s222 + $0x88] sm:$0xff]
        %v241 = vld [vmem:[%s222 + $0x90] sm:$0xff]
        %v242 = vld [vmem:[%s222 + $0x98] sm:$0xff]
        %v243 = vld [vmem:[%s222 + $0xa0] sm:$0xff]
        %v244 = vld [vmem:[%s222 + $0xa8] sm:$0xff]
        %v245 = vld [vmem:[%s222 + $0xb0] sm:$0xff]
        %v246 = vld [vmem:[%s222 + $0xb8] sm:$0xff]
        %v247 = vld [vmem:[%s222 + $0xc0] sm:$0xff]
        %v248 = vld [vmem:[%s222 + $0xc8] sm:$0xff]
        %v249 = vld [vmem:[%s222 + $0xd0] sm:$0xff]
        %v250 = vld [vmem:[%s222 + $0xd8] sm:$0xff]
        %v251 = vld [vmem:[%s222 + $0xe0] sm:$0xff]
        %v252 = vld [vmem:[%s222 + $0xe8] sm:$0xff]
        %v253 = vld [vmem:[%s222 + $0xf0] sm:$0xff]
        %v254 = vld [vmem:[%s222 + $0xf8] sm:$0xff]
        %s255 = scalar_lea.vmem [#allocation2], 24
        %vm256 = vcmask 31744
        %257 = vst.msk [vmem:[%s255 + $0x1] sm:$0xff] %vm256, %v223
        %258 = vst.msk [vmem:[%s255 + $0x9] sm:$0xff] %vm256, %v224
        %259 = vst.msk [vmem:[%s255 + $0x19] sm:$0xff] %vm256, %v225
        %260 = vst.msk [vmem:[%s255 + $0x21] sm:$0xff] %vm256, %v226
        %261 = vst.msk [vmem:[%s255 + $0x31] sm:$0xff] %vm256, %v227
        %262 = vst.msk [vmem:[%s255 + $0x39] sm:$0xff] %vm256, %v228
        %263 = vst.msk [vmem:[%s255 + $0x49] sm:$0xff] %vm256, %v229
        %264 = vst.msk [vmem:[%s255 + $0x51] sm:$0xff] %vm256, %v230
        %265 = vst.msk [vmem:[%s255 + $0x61] sm:$0xff] %vm256, %v231
        %266 = vst.msk [vmem:[%s255 + $0x69] sm:$0xff] %vm256, %v232
        %267 = vst.msk [vmem:[%s255 + $0x79] sm:$0xff] %vm256, %v233
        %268 = vst.msk [vmem:[%s255 + $0x81] sm:$0xff] %vm256, %v234
        %269 = vst.msk [vmem:[%s255 + $0x91] sm:$0xff] %vm256, %v235
        %270 = vst.msk [vmem:[%s255 + $0x99] sm:$0xff] %vm256, %v236
        %271 = vst.msk [vmem:[%s255 + $0xa9] sm:$0xff] %vm256, %v237
        %272 = vst.msk [vmem:[%s255 + $0xb1] sm:$0xff] %vm256, %v238
        %273 = vst.msk [vmem:[%s255 + $0xc1] sm:$0xff] %vm256, %v239
        %274 = vst.msk [vmem:[%s255 + $0xc9] sm:$0xff] %vm256, %v240
        %275 = vst.msk [vmem:[%s255 + $0xd9] sm:$0xff] %vm256, %v241
        %276 = vst.msk [vmem:[%s255 + $0xe1] sm:$0xff] %vm256, %v242
        %277 = vst.msk [vmem:[%s255 + $0xf1] sm:$0xff] %vm256, %v243
        %278 = vst.msk [vmem:[%s255 + $0xf9] sm:$0xff] %vm256, %v244
        %279 = vst.msk [vmem:[%s255 + $0x109] sm:$0xff] %vm256, %v245
        %280 = vst.msk [vmem:[%s255 + $0x111] sm:$0xff] %vm256, %v246
        %281 = vst.msk [vmem:[%s255 + $0x121] sm:$0xff] %vm256, %v247
        %282 = vst.msk [vmem:[%s255 + $0x129] sm:$0xff] %vm256, %v248
        %283 = vst.msk [vmem:[%s255 + $0x139] sm:$0xff] %vm256, %v249
        %284 = vst.msk [vmem:[%s255 + $0x141] sm:$0xff] %vm256, %v250
        %285 = vst.msk [vmem:[%s255 + $0x151] sm:$0xff] %vm256, %v251
        %286 = vst.msk [vmem:[%s255 + $0x159] sm:$0xff] %vm256, %v252
        %287 = vst.msk [vmem:[%s255 + $0x169] sm:$0xff] %vm256, %v253
        %288 = vst.msk [vmem:[%s255 + $0x171] sm:$0xff] %vm256, %v254
        %vm289 = vcmask 25601
        %290 = vst.msk [vmem:[%s255 - $0x1] sm:$0x2] %vm289, %v223
        %291 = vst.msk [vmem:[%s255 + $0x17] sm:$0x2] %vm289, %v225
        %292 = vst.msk [vmem:[%s255 + $0x2f] sm:$0x2] %vm289, %v227
        %293 = vst.msk [vmem:[%s255 + $0x47] sm:$0x2] %vm289, %v229
        %294 = vst.msk [vmem:[%s255 + $0x5f] sm:$0x2] %vm289, %v231
        %295 = vst.msk [vmem:[%s255 + $0x77] sm:$0x2] %vm289, %v233
        %296 = vst.msk [vmem:[%s255 + $0x8f] sm:$0x2] %vm289, %v235
        %297 = vst.msk [vmem:[%s255 + $0xa7] sm:$0x2] %vm289, %v237
        %298 = vst.msk [vmem:[%s255 + $0xbf] sm:$0x2] %vm289, %v239
        %299 = vst.msk [vmem:[%s255 + $0xd7] sm:$0x2] %vm289, %v241
        %300 = vst.msk [vmem:[%s255 + $0xef] sm:$0x2] %vm289, %v243
        %301 = vst.msk [vmem:[%s255 + $0x107] sm:$0x2] %vm289, %v245
        %302 = vst.msk [vmem:[%s255 + $0x11f] sm:$0x2] %vm289, %v247
        %303 = vst.msk [vmem:[%s255 + $0x137] sm:$0x2] %vm289, %v249
        %304 = vst.msk [vmem:[%s255 + $0x14f] sm:$0x2] %vm289, %v251
        %305 = vst.msk [vmem:[%s255 + $0x167] sm:$0x2] %vm289, %v253
        %vm306 = vcmask 30726
        %307 = vst.msk [vmem:[%s255 + $0xb] sm:$0x40] %vm306, %v224
        %308 = vst.msk [vmem:[%s255 + $0x23] sm:$0x40] %vm306, %v226
        %309 = vst.msk [vmem:[%s255 + $0x3b] sm:$0x40] %vm306, %v228
        %310 = vst.msk [vmem:[%s255 + $0x53] sm:$0x40] %vm306, %v230
        %311 = vst.msk [vmem:[%s255 + $0x6b] sm:$0x40] %vm306, %v232
        %312 = vst.msk [vmem:[%s255 + $0x83] sm:$0x40] %vm306, %v234
        %313 = vst.msk [vmem:[%s255 + $0x9b] sm:$0x40] %vm306, %v236
        %314 = vst.msk [vmem:[%s255 + $0xb3] sm:$0x40] %vm306, %v238
        %315 = vst.msk [vmem:[%s255 + $0xcb] sm:$0x40] %vm306, %v240
        %316 = vst.msk [vmem:[%s255 + $0xe3] sm:$0x40] %vm306, %v242
        %317 = vst.msk [vmem:[%s255 + $0xfb] sm:$0x40] %vm306, %v244
        %318 = vst.msk [vmem:[%s255 + $0x113] sm:$0x40] %vm306, %v246
        %319 = vst.msk [vmem:[%s255 + $0x12b] sm:$0x40] %vm306, %v248
        %320 = vst.msk [vmem:[%s255 + $0x143] sm:$0x40] %vm306, %v250
        %321 = vst.msk [vmem:[%s255 + $0x15b] sm:$0x40] %vm306, %v252
        %322 = vst.msk [vmem:[%s255 + $0x173] sm:$0x40] %vm306, %v254
        %s323 = scalar_lea.vmem [#allocation2], 48
        %v324 = vld [vmem:[%s323] sm:$0xff]
        %v325 = vld [vmem:[%s323 + $0x8] sm:$0xff]
        %v326 = vld [vmem:[%s323 + $0x10] sm:$0x3]
        %327 = vst.msk [vmem:[#allocation2] sm:$0xff] %vm256, %v324
        %328 = vst.msk [vmem:[#allocation2 + $0x8] sm:$0xff] %vm256, %v325
        %vm329 = vcmask 25600
        %330 = vst.msk [vmem:[#allocation2 + $0x10] sm:$0x3] %vm329, %v326
        %s331 = scalar_lea.vmem [#allocation2], 360
        %v332 = vld [vmem:[%s331] sm:$0xff]
        %v333 = vld [vmem:[%s331 + $0x8] sm:$0xff]
        %v334 = vld [vmem:[%s331 + $0x10] sm:$0x3]
        %s335 = scalar_lea.vmem [#allocation2], 408
        %336 = vst.msk [vmem:[%s335] sm:$0xff] %vm256, %v332
        %337 = vst.msk [vmem:[%s335 + $0x8] sm:$0xff] %vm256, %v333
        %338 = vst.msk [vmem:[%s335 + $0x10] sm:$0x3] %vm329, %v334
        %v339 = vld [vmem:[#allocation2] sm:$0xff]
        %v340 = vld [vmem:[#allocation2 + $0x8] sm:$0xff]
        %v341 = vld [vmem:[#allocation2 + $0x18] sm:$0xff]
        %v342 = vld [vmem:[#allocation2 + $0x20] sm:$0xff]
        %v343 = vld [vmem:[#allocation2 + $0x30] sm:$0xff]
        %v344 = vld [vmem:[#allocation2 + $0x38] sm:$0xff]
        %v345 = vld [vmem:[#allocation2 + $0x48] sm:$0xff]
        %v346 = vld [vmem:[#allocation2 + $0x50] sm:$0xff]
        %v347 = vld [vmem:[#allocation2 + $0x60] sm:$0xff]
        %v348 = vld [vmem:[#allocation2 + $0x68] sm:$0xff]
        %v349 = vld [vmem:[#allocation2 + $0x78] sm:$0xff]
        %v350 = vld [vmem:[#allocation2 + $0x80] sm:$0xff]
        %v351 = vld [vmem:[#allocation2 + $0x90] sm:$0xff]
        %v352 = vld [vmem:[#allocation2 + $0x98] sm:$0xff]
        %v353 = vld [vmem:[#allocation2 + $0xa8] sm:$0xff]
        %v354 = vld [vmem:[#allocation2 + $0xb0] sm:$0xff]
        %v355 = vld [vmem:[#allocation2 + $0xc0] sm:$0xff]
        %v356 = vld [vmem:[#allocation2 + $0xc8] sm:$0xff]
        %v357 = vld [vmem:[#allocation2 + $0xd8] sm:$0xff]
        %v358 = vld [vmem:[#allocation2 + $0xe0] sm:$0xff]
        %v359 = vld [vmem:[#allocation2 + $0xf0] sm:$0xff]
        %v360 = vld [vmem:[#allocation2 + $0xf8] sm:$0xff]
        %v361 = vld [vmem:[#allocation2 + $0x108] sm:$0xff]
        %v362 = vld [vmem:[#allocation2 + $0x110] sm:$0xff]
        %v363 = vld [vmem:[#allocation2 + $0x120] sm:$0xff]
        %v364 = vld [vmem:[#allocation2 + $0x128] sm:$0xff]
        %v365 = vld [vmem:[#allocation2 + $0x138] sm:$0xff]
        %v366 = vld [vmem:[#allocation2 + $0x140] sm:$0xff]
        %v367 = vld [vmem:[#allocation2 + $0x150] sm:$0xff]
        %v368 = vld [vmem:[#allocation2 + $0x158] sm:$0xff]
        %v369 = vld [vmem:[#allocation2 + $0x168] sm:$0xff]
        %v370 = vld [vmem:[#allocation2 + $0x170] sm:$0xff]
        %371 = vst.msk [vmem:[#allocation3] sm:$0xff] %vm256, %v339
        %372 = vst.msk [vmem:[#allocation3 + $0x8] sm:$0xff] %vm256, %v340
        %373 = vst.msk [vmem:[#allocation3 + $0x10] sm:$0xff] %vm256, %v341
        %374 = vst.msk [vmem:[#allocation3 + $0x18] sm:$0xff] %vm256, %v342
        %375 = vst.msk [vmem:[#allocation3 + $0x20] sm:$0xff] %vm256, %v343
        %376 = vst.msk [vmem:[#allocation3 + $0x28] sm:$0xff] %vm256, %v344
        %377 = vst.msk [vmem:[#allocation3 + $0x30] sm:$0xff] %vm256, %v345
        %378 = vst.msk [vmem:[#allocation3 + $0x38] sm:$0xff] %vm256, %v346
        %379 = vst.msk [vmem:[#allocation3 + $0x40] sm:$0xff] %vm256, %v347
        %380 = vst.msk [vmem:[#allocation3 + $0x48] sm:$0xff] %vm256, %v348
        %381 = vst.msk [vmem:[#allocation3 + $0x50] sm:$0xff] %vm256, %v349
        %382 = vst.msk [vmem:[#allocation3 + $0x58] sm:$0xff] %vm256, %v350
        %383 = vst.msk [vmem:[#allocation3 + $0x60] sm:$0xff] %vm256, %v351
        %384 = vst.msk [vmem:[#allocation3 + $0x68] sm:$0xff] %vm256, %v352
        %385 = vst.msk [vmem:[#allocation3 + $0x70] sm:$0xff] %vm256, %v353
        %386 = vst.msk [vmem:[#allocation3 + $0x78] sm:$0xff] %vm256, %v354
        %387 = vst.msk [vmem:[#allocation3 + $0x80] sm:$0xff] %vm256, %v355
        %388 = vst.msk [vmem:[#allocation3 + $0x88] sm:$0xff] %vm256, %v356
        %389 = vst.msk [vmem:[#allocation3 + $0x90] sm:$0xff] %vm256, %v357
        %390 = vst.msk [vmem:[#allocation3 + $0x98] sm:$0xff] %vm256, %v358
        %391 = vst.msk [vmem:[#allocation3 + $0xa0] sm:$0xff] %vm256, %v359
        %392 = vst.msk [vmem:[#allocation3 + $0xa8] sm:$0xff] %vm256, %v360
        %393 = vst.msk [vmem:[#allocation3 + $0xb0] sm:$0xff] %vm256, %v361
        %394 = vst.msk [vmem:[#allocation3 + $0xb8] sm:$0xff] %vm256, %v362
        %395 = vst.msk [vmem:[#allocation3 + $0xc0] sm:$0xff] %vm256, %v363
        %396 = vst.msk [vmem:[#allocation3 + $0xc8] sm:$0xff] %vm256, %v364
        %397 = vst.msk [vmem:[#allocation3 + $0xd0] sm:$0xff] %vm256, %v365
        %398 = vst.msk [vmem:[#allocation3 + $0xd8] sm:$0xff] %vm256, %v366
        %399 = vst.msk [vmem:[#allocation3 + $0xe0] sm:$0xff] %vm256, %v367
        %400 = vst.msk [vmem:[#allocation3 + $0xe8] sm:$0xff] %vm256, %v368
        %401 = vst.msk [vmem:[#allocation3 + $0xf0] sm:$0xff] %vm256, %v369
        %402 = vst.msk [vmem:[#allocation3 + $0xf8] sm:$0xff] %vm256, %v370
        %v403 = vld [vmem:[#allocation2 + $0x1] sm:$0xff]
        %v404 = vld [vmem:[#allocation2 + $0x9] sm:$0xff]
        %v405 = vld [vmem:[#allocation2 + $0x19] sm:$0xff]
        %v406 = vld [vmem:[#allocation2 + $0x21] sm:$0xff]
        %v407 = vld [vmem:[#allocation2 + $0x31] sm:$0xff]
        %v408 = vld [vmem:[#allocation2 + $0x39] sm:$0xff]
        %v409 = vld [vmem:[#allocation2 + $0x49] sm:$0xff]
        %v410 = vld [vmem:[#allocation2 + $0x51] sm:$0xff]
        %v411 = vld [vmem:[#allocation2 + $0x61] sm:$0xff]
        %v412 = vld [vmem:[#allocation2 + $0x69] sm:$0xff]
        %v413 = vld [vmem:[#allocation2 + $0x79] sm:$0xff]
        %v414 = vld [vmem:[#allocation2 + $0x81] sm:$0xff]
        %v415 = vld [vmem:[#allocation2 + $0x91] sm:$0xff]
        %v416 = vld [vmem:[#allocation2 + $0x99] sm:$0xff]
        %v417 = vld [vmem:[#allocation2 + $0xa9] sm:$0xff]
        %v418 = vld [vmem:[#allocation2 + $0xb1] sm:$0xff]
        %v419 = vld [vmem:[#allocation2 + $0xc1] sm:$0xff]
        %v420 = vld [vmem:[#allocation2 + $0xc9] sm:$0xff]
        %v421 = vld [vmem:[#allocation2 + $0xd9] sm:$0xff]
        %v422 = vld [vmem:[#allocation2 + $0xe1] sm:$0xff]
        %v423 = vld [vmem:[#allocation2 + $0xf1] sm:$0xff]
        %v424 = vld [vmem:[#allocation2 + $0xf9] sm:$0xff]
        %v425 = vld [vmem:[#allocation2 + $0x109] sm:$0xff]
        %v426 = vld [vmem:[#allocation2 + $0x111] sm:$0xff]
        %v427 = vld [vmem:[#allocation2 + $0x121] sm:$0xff]
        %v428 = vld [vmem:[#allocation2 + $0x129] sm:$0xff]
        %v429 = vld [vmem:[#allocation2 + $0x139] sm:$0xff]
        %v430 = vld [vmem:[#allocation2 + $0x141] sm:$0xff]
        %v431 = vld [vmem:[#allocation2 + $0x151] sm:$0xff]
        %v432 = vld [vmem:[#allocation2 + $0x159] sm:$0xff]
        %v433 = vld [vmem:[#allocation2 + $0x169] sm:$0xff]
        %v434 = vld [vmem:[#allocation2 + $0x171] sm:$0xff]
        %467 = vrot.lane.b32.xlu0 %v403, 4
        %v468 = vpop.permute.xlu0 %467
        %469 = vrot.lane.b32.xlu0 %v404, 4
        %v470 = vpop.permute.xlu0 %469
        %471 = vrot.lane.b32.xlu0 %v405, 4
        %v472 = vpop.permute.xlu0 %471
        %473 = vrot.lane.b32.xlu0 %v406, 4
        %v474 = vpop.permute.xlu0 %473
        %475 = vrot.lane.b32.xlu0 %v407, 4
        %v476 = vpop.permute.xlu0 %475
        %477 = vrot.lane.b32.xlu0 %v408, 4
        %v478 = vpop.permute.xlu0 %477
        %479 = vrot.lane.b32.xlu0 %v409, 4
        %v480 = vpop.permute.xlu0 %479
        %481 = vrot.lane.b32.xlu0 %v410, 4
        %v482 = vpop.permute.xlu0 %481
        %483 = vrot.lane.b32.xlu0 %v411, 4
        %v484 = vpop.permute.xlu0 %483
        %485 = vrot.lane.b32.xlu0 %v412, 4
        %v486 = vpop.permute.xlu0 %485
        %487 = vrot.lane.b32.xlu0 %v413, 4
        %v488 = vpop.permute.xlu0 %487
        %489 = vrot.lane.b32.xlu0 %v414, 4
        %v490 = vpop.permute.xlu0 %489
        %491 = vrot.lane.b32.xlu0 %v415, 4
        %v492 = vpop.permute.xlu0 %491
        %493 = vrot.lane.b32.xlu0 %v416, 4
        %v494 = vpop.permute.xlu0 %493
        %495 = vrot.lane.b32.xlu0 %v417, 4
        %v496 = vpop.permute.xlu0 %495
        %497 = vrot.lane.b32.xlu0 %v418, 4
        %v498 = vpop.permute.xlu0 %497
        %499 = vrot.lane.b32.xlu0 %v419, 4
        %v500 = vpop.permute.xlu0 %499
        %501 = vrot.lane.b32.xlu0 %v420, 4
        %v502 = vpop.permute.xlu0 %501
        %503 = vrot.lane.b32.xlu0 %v421, 4
        %v504 = vpop.permute.xlu0 %503
        %505 = vrot.lane.b32.xlu0 %v422, 4
        %v506 = vpop.permute.xlu0 %505
        %507 = vrot.lane.b32.xlu0 %v423, 4
        %v508 = vpop.permute.xlu0 %507
        %509 = vrot.lane.b32.xlu0 %v424, 4
        %v510 = vpop.permute.xlu0 %509
        %511 = vrot.lane.b32.xlu0 %v425, 4
        %v512 = vpop.permute.xlu0 %511
        %513 = vrot.lane.b32.xlu0 %v426, 4
        %v514 = vpop.permute.xlu0 %513
        %515 = vrot.lane.b32.xlu0 %v427, 4
        %v516 = vpop.permute.xlu0 %515
        %517 = vrot.lane.b32.xlu0 %v428, 4
        %v518 = vpop.permute.xlu0 %517
        %519 = vrot.lane.b32.xlu0 %v429, 4
        %v520 = vpop.permute.xlu0 %519
        %521 = vrot.lane.b32.xlu0 %v430, 4
        %v522 = vpop.permute.xlu0 %521
        %523 = vrot.lane.b32.xlu0 %v431, 4
        %v524 = vpop.permute.xlu0 %523
        %525 = vrot.lane.b32.xlu0 %v432, 4
        %v526 = vpop.permute.xlu0 %525
        %527 = vrot.lane.b32.xlu0 %v433, 4
        %v528 = vpop.permute.xlu0 %527
        %529 = vrot.lane.b32.xlu0 %v434, 4
        %v530 = vpop.permute.xlu0 %529
        %vm563 = vcmask 64544
        %564 = vst.msk [vmem:[#allocation3] sm:$0xff] %vm563, %v468
        %565 = vst.msk [vmem:[#allocation3 + $0x8] sm:$0xff] %vm563, %v470
        %566 = vst.msk [vmem:[#allocation3 + $0x10] sm:$0xff] %vm563, %v472
        %567 = vst.msk [vmem:[#allocation3 + $0x18] sm:$0xff] %vm563, %v474
        %568 = vst.msk [vmem:[#allocation3 + $0x20] sm:$0xff] %vm563, %v476
        %569 = vst.msk [vmem:[#allocation3 + $0x28] sm:$0xff] %vm563, %v478
        %570 = vst.msk [vmem:[#allocation3 + $0x30] sm:$0xff] %vm563, %v480
        %571 = vst.msk [vmem:[#allocation3 + $0x38] sm:$0xff] %vm563, %v482
        %572 = vst.msk [vmem:[#allocation3 + $0x40] sm:$0xff] %vm563, %v484
        %573 = vst.msk [vmem:[#allocation3 + $0x48] sm:$0xff] %vm563, %v486
        %574 = vst.msk [vmem:[#allocation3 + $0x50] sm:$0xff] %vm563, %v488
        %575 = vst.msk [vmem:[#allocation3 + $0x58] sm:$0xff] %vm563, %v490
        %576 = vst.msk [vmem:[#allocation3 + $0x60] sm:$0xff] %vm563, %v492
        %577 = vst.msk [vmem:[#allocation3 + $0x68] sm:$0xff] %vm563, %v494
        %578 = vst.msk [vmem:[#allocation3 + $0x70] sm:$0xff] %vm563, %v496
        %579 = vst.msk [vmem:[#allocation3 + $0x78] sm:$0xff] %vm563, %v498
        %580 = vst.msk [vmem:[#allocation3 + $0x80] sm:$0xff] %vm563, %v500
        %581 = vst.msk [vmem:[#allocation3 + $0x88] sm:$0xff] %vm563, %v502
        %582 = vst.msk [vmem:[#allocation3 + $0x90] sm:$0xff] %vm563, %v504
        %583 = vst.msk [vmem:[#allocation3 + $0x98] sm:$0xff] %vm563, %v506
        %584 = vst.msk [vmem:[#allocation3 + $0xa0] sm:$0xff] %vm563, %v508
        %585 = vst.msk [vmem:[#allocation3 + $0xa8] sm:$0xff] %vm563, %v510
        %586 = vst.msk [vmem:[#allocation3 + $0xb0] sm:$0xff] %vm563, %v512
        %587 = vst.msk [vmem:[#allocation3 + $0xb8] sm:$0xff] %vm563, %v514
        %588 = vst.msk [vmem:[#allocation3 + $0xc0] sm:$0xff] %vm563, %v516
        %589 = vst.msk [vmem:[#allocation3 + $0xc8] sm:$0xff] %vm563, %v518
        %590 = vst.msk [vmem:[#allocation3 + $0xd0] sm:$0xff] %vm563, %v520
        %591 = vst.msk [vmem:[#allocation3 + $0xd8] sm:$0xff] %vm563, %v522
        %592 = vst.msk [vmem:[#allocation3 + $0xe0] sm:$0xff] %vm563, %v524
        %593 = vst.msk [vmem:[#allocation3 + $0xe8] sm:$0xff] %vm563, %v526
        %594 = vst.msk [vmem:[#allocation3 + $0xf0] sm:$0xff] %vm563, %v528
        %595 = vst.msk [vmem:[#allocation3 + $0xf8] sm:$0xff] %vm563, %v530
        %v596 = vld [vmem:[#allocation2 + $0x2] sm:$0xff]
        %v597 = vld [vmem:[#allocation2 + $0xa] sm:$0xff]
        %v598 = vld [vmem:[#allocation2 + $0x1a] sm:$0xff]
        %v599 = vld [vmem:[#allocation2 + $0x22] sm:$0xff]
        %v600 = vld [vmem:[#allocation2 + $0x32] sm:$0xff]
        %v601 = vld [vmem:[#allocation2 + $0x3a] sm:$0xff]
        %v602 = vld [vmem:[#allocation2 + $0x4a] sm:$0xff]
        %v603 = vld [vmem:[#allocation2 + $0x52] sm:$0xff]
        %v604 = vld [vmem:[#allocation2 + $0x62] sm:$0xff]
        %v605 = vld [vmem:[#allocation2 + $0x6a] sm:$0xff]
        %v606 = vld [vmem:[#allocation2 + $0x7a] sm:$0xff]
        %v607 = vld [vmem:[#allocation2 + $0x82] sm:$0xff]
        %v608 = vld [vmem:[#allocation2 + $0x92] sm:$0xff]
        %v609 = vld [vmem:[#allocation2 + $0x9a] sm:$0xff]
        %v610 = vld [vmem:[#allocation2 + $0xaa] sm:$0xff]
        %v611 = vld [vmem:[#allocation2 + $0xb2] sm:$0xff]
        %v612 = vld [vmem:[#allocation2 + $0xc2] sm:$0xff]
        %v613 = vld [vmem:[#allocation2 + $0xca] sm:$0xff]
        %v614 = vld [vmem:[#allocation2 + $0xda] sm:$0xff]
        %v615 = vld [vmem:[#allocation2 + $0xe2] sm:$0xff]
        %v616 = vld [vmem:[#allocation2 + $0xf2] sm:$0xff]
        %v617 = vld [vmem:[#allocation2 + $0xfa] sm:$0xff]
        %v618 = vld [vmem:[#allocation2 + $0x10a] sm:$0xff]
        %v619 = vld [vmem:[#allocation2 + $0x112] sm:$0xff]
        %v620 = vld [vmem:[#allocation2 + $0x122] sm:$0xff]
        %v621 = vld [vmem:[#allocation2 + $0x12a] sm:$0xff]
        %v622 = vld [vmem:[#allocation2 + $0x13a] sm:$0xff]
        %v623 = vld [vmem:[#allocation2 + $0x142] sm:$0xff]
        %v624 = vld [vmem:[#allocation2 + $0x152] sm:$0xff]
        %v625 = vld [vmem:[#allocation2 + $0x15a] sm:$0xff]
        %v626 = vld [vmem:[#allocation2 + $0x16a] sm:$0xff]
        %v627 = vld [vmem:[#allocation2 + $0x172] sm:$0xff]
        %660 = vrot.lane.b32.xlu0 %v596, 8
        %v661 = vpop.permute.xlu0 %660
        %662 = vrot.lane.b32.xlu0 %v597, 8
        %v663 = vpop.permute.xlu0 %662
        %664 = vrot.lane.b32.xlu0 %v598, 8
        %v665 = vpop.permute.xlu0 %664
        %666 = vrot.lane.b32.xlu0 %v599, 8
        %v667 = vpop.permute.xlu0 %666
        %668 = vrot.lane.b32.xlu0 %v600, 8
        %v669 = vpop.permute.xlu0 %668
        %670 = vrot.lane.b32.xlu0 %v601, 8
        %v671 = vpop.permute.xlu0 %670
        %672 = vrot.lane.b32.xlu0 %v602, 8
        %v673 = vpop.permute.xlu0 %672
        %674 = vrot.lane.b32.xlu0 %v603, 8
        %v675 = vpop.permute.xlu0 %674
        %676 = vrot.lane.b32.xlu0 %v604, 8
        %v677 = vpop.permute.xlu0 %676
        %678 = vrot.lane.b32.xlu0 %v605, 8
        %v679 = vpop.permute.xlu0 %678
        %680 = vrot.lane.b32.xlu0 %v606, 8
        %v681 = vpop.permute.xlu0 %680
        %682 = vrot.lane.b32.xlu0 %v607, 8
        %v683 = vpop.permute.xlu0 %682
        %684 = vrot.lane.b32.xlu0 %v608, 8
        %v685 = vpop.permute.xlu0 %684
        %686 = vrot.lane.b32.xlu0 %v609, 8
        %v687 = vpop.permute.xlu0 %686
        %688 = vrot.lane.b32.xlu0 %v610, 8
        %v689 = vpop.permute.xlu0 %688
        %690 = vrot.lane.b32.xlu0 %v611, 8
        %v691 = vpop.permute.xlu0 %690
        %692 = vrot.lane.b32.xlu0 %v612, 8
        %v693 = vpop.permute.xlu0 %692
        %694 = vrot.lane.b32.xlu0 %v613, 8
        %v695 = vpop.permute.xlu0 %694
        %696 = vrot.lane.b32.xlu0 %v614, 8
        %v697 = vpop.permute.xlu0 %696
        %698 = vrot.lane.b32.xlu0 %v615, 8
        %v699 = vpop.permute.xlu0 %698
        %700 = vrot.lane.b32.xlu0 %v616, 8
        %v701 = vpop.permute.xlu0 %700
        %702 = vrot.lane.b32.xlu0 %v617, 8
        %v703 = vpop.permute.xlu0 %702
        %704 = vrot.lane.b32.xlu0 %v618, 8
        %v705 = vpop.permute.xlu0 %704
        %706 = vrot.lane.b32.xlu0 %v619, 8
        %v707 = vpop.permute.xlu0 %706
        %708 = vrot.lane.b32.xlu0 %v620, 8
        %v709 = vpop.permute.xlu0 %708
        %710 = vrot.lane.b32.xlu0 %v621, 8
        %v711 = vpop.permute.xlu0 %710
        %712 = vrot.lane.b32.xlu0 %v622, 8
        %v713 = vpop.permute.xlu0 %712
        %714 = vrot.lane.b32.xlu0 %v623, 8
        %v715 = vpop.permute.xlu0 %714
        %716 = vrot.lane.b32.xlu0 %v624, 8
        %v717 = vpop.permute.xlu0 %716
        %718 = vrot.lane.b32.xlu0 %v625, 8
        %v719 = vpop.permute.xlu0 %718
        %720 = vrot.lane.b32.xlu0 %v626, 8
        %v721 = vpop.permute.xlu0 %720
        %722 = vrot.lane.b32.xlu0 %v627, 8
        %v723 = vpop.permute.xlu0 %722
        %vm756 = vcmask 97344
        %757 = vst.msk [vmem:[#allocation3] sm:$0xff] %vm756, %v661
        %758 = vst.msk [vmem:[#allocation3 + $0x8] sm:$0xff] %vm756, %v663
        %759 = vst.msk [vmem:[#allocation3 + $0x10] sm:$0xff] %vm756, %v665
        %760 = vst.msk [vmem:[#allocation3 + $0x18] sm:$0xff] %vm756, %v667
        %761 = vst.msk [vmem:[#allocation3 + $0x20] sm:$0xff] %vm756, %v669
        %762 = vst.msk [vmem:[#allocation3 + $0x28] sm:$0xff] %vm756, %v671
        %763 = vst.msk [vmem:[#allocation3 + $0x30] sm:$0xff] %vm756, %v673
        %764 = vst.msk [vmem:[#allocation3 + $0x38] sm:$0xff] %vm756, %v675
        %765 = vst.msk [vmem:[#allocation3 + $0x40] sm:$0xff] %vm756, %v677
        %766 = vst.msk [vmem:[#allocation3 + $0x48] sm:$0xff] %vm756, %v679
        %767 = vst.msk [vmem:[#allocation3 + $0x50] sm:$0xff] %vm756, %v681
        %768 = vst.msk [vmem:[#allocation3 + $0x58] sm:$0xff] %vm756, %v683
        %769 = vst.msk [vmem:[#allocation3 + $0x60] sm:$0xff] %vm756, %v685
        %770 = vst.msk [vmem:[#allocation3 + $0x68] sm:$0xff] %vm756, %v687
        %771 = vst.msk [vmem:[#allocation3 + $0x70] sm:$0xff] %vm756, %v689
        %772 = vst.msk [vmem:[#allocation3 + $0x78] sm:$0xff] %vm756, %v691
        %773 = vst.msk [vmem:[#allocation3 + $0x80] sm:$0xff] %vm756, %v693
        %774 = vst.msk [vmem:[#allocation3 + $0x88] sm:$0xff] %vm756, %v695
        %775 = vst.msk [vmem:[#allocation3 + $0x90] sm:$0xff] %vm756, %v697
        %776 = vst.msk [vmem:[#allocation3 + $0x98] sm:$0xff] %vm756, %v699
        %777 = vst.msk [vmem:[#allocation3 + $0xa0] sm:$0xff] %vm756, %v701
        %778 = vst.msk [vmem:[#allocation3 + $0xa8] sm:$0xff] %vm756, %v703
        %779 = vst.msk [vmem:[#allocation3 + $0xb0] sm:$0xff] %vm756, %v705
        %780 = vst.msk [vmem:[#allocation3 + $0xb8] sm:$0xff] %vm756, %v707
        %781 = vst.msk [vmem:[#allocation3 + $0xc0] sm:$0xff] %vm756, %v709
        %782 = vst.msk [vmem:[#allocation3 + $0xc8] sm:$0xff] %vm756, %v711
        %783 = vst.msk [vmem:[#allocation3 + $0xd0] sm:$0xff] %vm756, %v713
        %784 = vst.msk [vmem:[#allocation3 + $0xd8] sm:$0xff] %vm756, %v715
        %785 = vst.msk [vmem:[#allocation3 + $0xe0] sm:$0xff] %vm756, %v717
        %786 = vst.msk [vmem:[#allocation3 + $0xe8] sm:$0xff] %vm756, %v719
        %787 = vst.msk [vmem:[#allocation3 + $0xf0] sm:$0xff] %vm756, %v721
        %788 = vst.msk [vmem:[#allocation3 + $0xf8] sm:$0xff] %vm756, %v723
        %v789 = vld [vmem:[%s255] sm:$0xff]
        %v790 = vld [vmem:[%s255 + $0x8] sm:$0xff]
        %v791 = vld [vmem:[%s255 + $0x18] sm:$0xff]
        %v792 = vld [vmem:[%s255 + $0x20] sm:$0xff]
        %v793 = vld [vmem:[%s255 + $0x30] sm:$0xff]
        %v794 = vld [vmem:[%s255 + $0x38] sm:$0xff]
        %v795 = vld [vmem:[%s255 + $0x48] sm:$0xff]
        %v796 = vld [vmem:[%s255 + $0x50] sm:$0xff]
        %v797 = vld [vmem:[%s255 + $0x60] sm:$0xff]
        %v798 = vld [vmem:[%s255 + $0x68] sm:$0xff]
        %v799 = vld [vmem:[%s255 + $0x78] sm:$0xff]
        %v800 = vld [vmem:[%s255 + $0x80] sm:$0xff]
        %v801 = vld [vmem:[%s255 + $0x90] sm:$0xff]
        %v802 = vld [vmem:[%s255 + $0x98] sm:$0xff]
        %v803 = vld [vmem:[%s255 + $0xa8] sm:$0xff]
        %v804 = vld [vmem:[%s255 + $0xb0] sm:$0xff]
        %v805 = vld [vmem:[%s255 + $0xc0] sm:$0xff]
        %v806 = vld [vmem:[%s255 + $0xc8] sm:$0xff]
        %v807 = vld [vmem:[%s255 + $0xd8] sm:$0xff]
        %v808 = vld [vmem:[%s255 + $0xe0] sm:$0xff]
        %v809 = vld [vmem:[%s255 + $0xf0] sm:$0xff]
        %v810 = vld [vmem:[%s255 + $0xf8] sm:$0xff]
        %v811 = vld [vmem:[%s255 + $0x108] sm:$0xff]
        %v812 = vld [vmem:[%s255 + $0x110] sm:$0xff]
        %v813 = vld [vmem:[%s255 + $0x120] sm:$0xff]
        %v814 = vld [vmem:[%s255 + $0x128] sm:$0xff]
        %v815 = vld [vmem:[%s255 + $0x138] sm:$0xff]
        %v816 = vld [vmem:[%s255 + $0x140] sm:$0xff]
        %v817 = vld [vmem:[%s255 + $0x150] sm:$0xff]
        %v818 = vld [vmem:[%s255 + $0x158] sm:$0xff]
        %v819 = vld [vmem:[%s255 + $0x168] sm:$0xff]
        %v820 = vld [vmem:[%s255 + $0x170] sm:$0xff]
        %853 = vrot.lane.b32.xlu0 %v789, 12
        %v854 = vpop.permute.xlu0 %853
        %855 = vrot.lane.b32.xlu0 %v790, 12
        %v856 = vpop.permute.xlu0 %855
        %857 = vrot.lane.b32.xlu0 %v791, 12
        %v858 = vpop.permute.xlu0 %857
        %859 = vrot.lane.b32.xlu0 %v792, 12
        %v860 = vpop.permute.xlu0 %859
        %861 = vrot.lane.b32.xlu0 %v793, 12
        %v862 = vpop.permute.xlu0 %861
        %863 = vrot.lane.b32.xlu0 %v794, 12
        %v864 = vpop.permute.xlu0 %863
        %865 = vrot.lane.b32.xlu0 %v795, 12
        %v866 = vpop.permute.xlu0 %865
        %867 = vrot.lane.b32.xlu0 %v796, 12
        %v868 = vpop.permute.xlu0 %867
        %869 = vrot.lane.b32.xlu0 %v797, 12
        %v870 = vpop.permute.xlu0 %869
        %871 = vrot.lane.b32.xlu0 %v798, 12
        %v872 = vpop.permute.xlu0 %871
        %873 = vrot.lane.b32.xlu0 %v799, 12
        %v874 = vpop.permute.xlu0 %873
        %875 = vrot.lane.b32.xlu0 %v800, 12
        %v876 = vpop.permute.xlu0 %875
        %877 = vrot.lane.b32.xlu0 %v801, 12
        %v878 = vpop.permute.xlu0 %877
        %879 = vrot.lane.b32.xlu0 %v802, 12
        %v880 = vpop.permute.xlu0 %879
        %881 = vrot.lane.b32.xlu0 %v803, 12
        %v882 = vpop.permute.xlu0 %881
        %883 = vrot.lane.b32.xlu0 %v804, 12
        %v884 = vpop.permute.xlu0 %883
        %885 = vrot.lane.b32.xlu0 %v805, 12
        %v886 = vpop.permute.xlu0 %885
        %887 = vrot.lane.b32.xlu0 %v806, 12
        %v888 = vpop.permute.xlu0 %887
        %889 = vrot.lane.b32.xlu0 %v807, 12
        %v890 = vpop.permute.xlu0 %889
        %891 = vrot.lane.b32.xlu0 %v808, 12
        %v892 = vpop.permute.xlu0 %891
        %893 = vrot.lane.b32.xlu0 %v809, 12
        %v894 = vpop.permute.xlu0 %893
        %895 = vrot.lane.b32.xlu0 %v810, 12
        %v896 = vpop.permute.xlu0 %895
        %897 = vrot.lane.b32.xlu0 %v811, 12
        %v898 = vpop.permute.xlu0 %897
        %899 = vrot.lane.b32.xlu0 %v812, 12
        %v900 = vpop.permute.xlu0 %899
        %901 = vrot.lane.b32.xlu0 %v813, 12
        %v902 = vpop.permute.xlu0 %901
        %903 = vrot.lane.b32.xlu0 %v814, 12
        %v904 = vpop.permute.xlu0 %903
        %905 = vrot.lane.b32.xlu0 %v815, 12
        %v906 = vpop.permute.xlu0 %905
        %907 = vrot.lane.b32.xlu0 %v816, 12
        %v908 = vpop.permute.xlu0 %907
        %909 = vrot.lane.b32.xlu0 %v817, 12
        %v910 = vpop.permute.xlu0 %909
        %911 = vrot.lane.b32.xlu0 %v818, 12
        %v912 = vpop.permute.xlu0 %911
        %913 = vrot.lane.b32.xlu0 %v819, 12
        %v914 = vpop.permute.xlu0 %913
        %915 = vrot.lane.b32.xlu0 %v820, 12
        %v916 = vpop.permute.xlu0 %915
        %vm949 = vcmask 130144
        %950 = vst.msk [vmem:[#allocation3] sm:$0xff] %vm949, %v854
        %951 = vst.msk [vmem:[#allocation3 + $0x8] sm:$0xff] %vm949, %v856
        %952 = vst.msk [vmem:[#allocation3 + $0x10] sm:$0xff] %vm949, %v858
        %953 = vst.msk [vmem:[#allocation3 + $0x18] sm:$0xff] %vm949, %v860
        %954 = vst.msk [vmem:[#allocation3 + $0x20] sm:$0xff] %vm949, %v862
        %955 = vst.msk [vmem:[#allocation3 + $0x28] sm:$0xff] %vm949, %v864
        %956 = vst.msk [vmem:[#allocation3 + $0x30] sm:$0xff] %vm949, %v866
        %957 = vst.msk [vmem:[#allocation3 + $0x38] sm:$0xff] %vm949, %v868
        %958 = vst.msk [vmem:[#allocation3 + $0x40] sm:$0xff] %vm949, %v870
        %959 = vst.msk [vmem:[#allocation3 + $0x48] sm:$0xff] %vm949, %v872
        %960 = vst.msk [vmem:[#allocation3 + $0x50] sm:$0xff] %vm949, %v874
        %961 = vst.msk [vmem:[#allocation3 + $0x58] sm:$0xff] %vm949, %v876
        %962 = vst.msk [vmem:[#allocation3 + $0x60] sm:$0xff] %vm949, %v878
        %963 = vst.msk [vmem:[#allocation3 + $0x68] sm:$0xff] %vm949, %v880
        %964 = vst.msk [vmem:[#allocation3 + $0x70] sm:$0xff] %vm949, %v882
        %965 = vst.msk [vmem:[#allocation3 + $0x78] sm:$0xff] %vm949, %v884
        %966 = vst.msk [vmem:[#allocation3 + $0x80] sm:$0xff] %vm949, %v886
        %967 = vst.msk [vmem:[#allocation3 + $0x88] sm:$0xff] %vm949, %v888
        %968 = vst.msk [vmem:[#allocation3 + $0x90] sm:$0xff] %vm949, %v890
        %969 = vst.msk [vmem:[#allocation3 + $0x98] sm:$0xff] %vm949, %v892
        %970 = vst.msk [vmem:[#allocation3 + $0xa0] sm:$0xff] %vm949, %v894
        %971 = vst.msk [vmem:[#allocation3 + $0xa8] sm:$0xff] %vm949, %v896
        %972 = vst.msk [vmem:[#allocation3 + $0xb0] sm:$0xff] %vm949, %v898
        %973 = vst.msk [vmem:[#allocation3 + $0xb8] sm:$0xff] %vm949, %v900
        %974 = vst.msk [vmem:[#allocation3 + $0xc0] sm:$0xff] %vm949, %v902
        %975 = vst.msk [vmem:[#allocation3 + $0xc8] sm:$0xff] %vm949, %v904
        %976 = vst.msk [vmem:[#allocation3 + $0xd0] sm:$0xff] %vm949, %v906
        %977 = vst.msk [vmem:[#allocation3 + $0xd8] sm:$0xff] %vm949, %v908
        %978 = vst.msk [vmem:[#allocation3 + $0xe0] sm:$0xff] %vm949, %v910
        %979 = vst.msk [vmem:[#allocation3 + $0xe8] sm:$0xff] %vm949, %v912
        %980 = vst.msk [vmem:[#allocation3 + $0xf0] sm:$0xff] %vm949, %v914
        %981 = vst.msk [vmem:[#allocation3 + $0xf8] sm:$0xff] %vm949, %v916
        %v982 = vld [vmem:[%s255 + $0x1] sm:$0xff]
        %v983 = vld [vmem:[%s255 + $0x9] sm:$0xff]
        %v984 = vld [vmem:[%s255 + $0x19] sm:$0xff]
        %v985 = vld [vmem:[%s255 + $0x21] sm:$0xff]
        %v986 = vld [vmem:[%s255 + $0x31] sm:$0xff]
        %v987 = vld [vmem:[%s255 + $0x39] sm:$0xff]
        %v988 = vld [vmem:[%s255 + $0x49] sm:$0xff]
        %v989 = vld [vmem:[%s255 + $0x51] sm:$0xff]
        %v990 = vld [vmem:[%s255 + $0x61] sm:$0xff]
        %v991 = vld [vmem:[%s255 + $0x69] sm:$0xff]
        %v992 = vld [vmem:[%s255 + $0x79] sm:$0xff]
        %v993 = vld [vmem:[%s255 + $0x81] sm:$0xff]
        %v994 = vld [vmem:[%s255 + $0x91] sm:$0xff]
        %v995 = vld [vmem:[%s255 + $0x99] sm:$0xff]
        %v996 = vld [vmem:[%s255 + $0xa9] sm:$0xff]
        %v997 = vld [vmem:[%s255 + $0xb1] sm:$0xff]
        %v998 = vld [vmem:[%s255 + $0xc1] sm:$0xff]
        %v999 = vld [vmem:[%s255 + $0xc9] sm:$0xff]
        %v1000 = vld [vmem:[%s255 + $0xd9] sm:$0xff]
        %v1001 = vld [vmem:[%s255 + $0xe1] sm:$0xff]
        %v1002 = vld [vmem:[%s255 + $0xf1] sm:$0xff]
        %v1003 = vld [vmem:[%s255 + $0xf9] sm:$0xff]
        %v1004 = vld [vmem:[%s255 + $0x109] sm:$0xff]
        %v1005 = vld [vmem:[%s255 + $0x111] sm:$0xff]
        %v1006 = vld [vmem:[%s255 + $0x121] sm:$0xff]
        %v1007 = vld [vmem:[%s255 + $0x129] sm:$0xff]
        %v1008 = vld [vmem:[%s255 + $0x139] sm:$0xff]
        %v1009 = vld [vmem:[%s255 + $0x141] sm:$0xff]
        %v1010 = vld [vmem:[%s255 + $0x151] sm:$0xff]
        %v1011 = vld [vmem:[%s255 + $0x159] sm:$0xff]
        %v1012 = vld [vmem:[%s255 + $0x169] sm:$0xff]
        %v1013 = vld [vmem:[%s255 + $0x171] sm:$0xff]
        %1046 = vrot.lane.b32.xlu0 %v982, 16
        %v1047 = vpop.permute.xlu0 %1046
        %1048 = vrot.lane.b32.xlu0 %v983, 16
        %v1049 = vpop.permute.xlu0 %1048
        %1050 = vrot.lane.b32.xlu0 %v984, 16
        %v1051 = vpop.permute.xlu0 %1050
        %1052 = vrot.lane.b32.xlu0 %v985, 16
        %v1053 = vpop.permute.xlu0 %1052
        %1054 = vrot.lane.b32.xlu0 %v986, 16
        %v1055 = vpop.permute.xlu0 %1054
        %1056 = vrot.lane.b32.xlu0 %v987, 16
        %v1057 = vpop.permute.xlu0 %1056
        %1058 = vrot.lane.b32.xlu0 %v988, 16
        %v1059 = vpop.permute.xlu0 %1058
        %1060 = vrot.lane.b32.xlu0 %v989, 16
        %v1061 = vpop.permute.xlu0 %1060
        %1062 = vrot.lane.b32.xlu0 %v990, 16
        %v1063 = vpop.permute.xlu0 %1062
        %1064 = vrot.lane.b32.xlu0 %v991, 16
        %v1065 = vpop.permute.xlu0 %1064
        %1066 = vrot.lane.b32.xlu0 %v992, 16
        %v1067 = vpop.permute.xlu0 %1066
        %1068 = vrot.lane.b32.xlu0 %v993, 16
        %v1069 = vpop.permute.xlu0 %1068
        %1070 = vrot.lane.b32.xlu0 %v994, 16
        %v1071 = vpop.permute.xlu0 %1070
        %1072 = vrot.lane.b32.xlu0 %v995, 16
        %v1073 = vpop.permute.xlu0 %1072
        %1074 = vrot.lane.b32.xlu0 %v996, 16
        %v1075 = vpop.permute.xlu0 %1074
        %1076 = vrot.lane.b32.xlu0 %v997, 16
        %v1077 = vpop.permute.xlu0 %1076
        %1078 = vrot.lane.b32.xlu0 %v998, 16
        %v1079 = vpop.permute.xlu0 %1078
        %1080 = vrot.lane.b32.xlu0 %v999, 16
        %v1081 = vpop.permute.xlu0 %1080
        %1082 = vrot.lane.b32.xlu0 %v1000, 16
        %v1083 = vpop.permute.xlu0 %1082
        %1084 = vrot.lane.b32.xlu0 %v1001, 16
        %v1085 = vpop.permute.xlu0 %1084
        %1086 = vrot.lane.b32.xlu0 %v1002, 16
        %v1087 = vpop.permute.xlu0 %1086
        %1088 = vrot.lane.b32.xlu0 %v1003, 16
        %v1089 = vpop.permute.xlu0 %1088
        %1090 = vrot.lane.b32.xlu0 %v1004, 16
        %v1091 = vpop.permute.xlu0 %1090
        %1092 = vrot.lane.b32.xlu0 %v1005, 16
        %v1093 = vpop.permute.xlu0 %1092
        %1094 = vrot.lane.b32.xlu0 %v1006, 16
        %v1095 = vpop.permute.xlu0 %1094
        %1096 = vrot.lane.b32.xlu0 %v1007, 16
        %v1097 = vpop.permute.xlu0 %1096
        %1098 = vrot.lane.b32.xlu0 %v1008, 16
        %v1099 = vpop.permute.xlu0 %1098
        %1100 = vrot.lane.b32.xlu0 %v1009, 16
        %v1101 = vpop.permute.xlu0 %1100
        %1102 = vrot.lane.b32.xlu0 %v1010, 16
        %v1103 = vpop.permute.xlu0 %1102
        %1104 = vrot.lane.b32.xlu0 %v1011, 16
        %v1105 = vpop.permute.xlu0 %1104
        %1106 = vrot.lane.b32.xlu0 %v1012, 16
        %v1107 = vpop.permute.xlu0 %1106
        %1108 = vrot.lane.b32.xlu0 %v1013, 16
        %v1109 = vpop.permute.xlu0 %1108
        %vm1142 = vcmask 162944
        %1143 = vst.msk [vmem:[#allocation3] sm:$0xff] %vm1142, %v1047
        %1144 = vst.msk [vmem:[#allocation3 + $0x8] sm:$0xff] %vm1142, %v1049
        %1145 = vst.msk [vmem:[#allocation3 + $0x10] sm:$0xff] %vm1142, %v1051
        %1146 = vst.msk [vmem:[#allocation3 + $0x18] sm:$0xff] %vm1142, %v1053
        %1147 = vst.msk [vmem:[#allocation3 + $0x20] sm:$0xff] %vm1142, %v1055
        %1148 = vst.msk [vmem:[#allocation3 + $0x28] sm:$0xff] %vm1142, %v1057
        %1149 = vst.msk [vmem:[#allocation3 + $0x30] sm:$0xff] %vm1142, %v1059
        %1150 = vst.msk [vmem:[#allocation3 + $0x38] sm:$0xff] %vm1142, %v1061
        %1151 = vst.msk [vmem:[#allocation3 + $0x40] sm:$0xff] %vm1142, %v1063
        %1152 = vst.msk [vmem:[#allocation3 + $0x48] sm:$0xff] %vm1142, %v1065
        %1153 = vst.msk [vmem:[#allocation3 + $0x50] sm:$0xff] %vm1142, %v1067
        %1154 = vst.msk [vmem:[#allocation3 + $0x58] sm:$0xff] %vm1142, %v1069
        %1155 = vst.msk [vmem:[#allocation3 + $0x60] sm:$0xff] %vm1142, %v1071
        %1156 = vst.msk [vmem:[#allocation3 + $0x68] sm:$0xff] %vm1142, %v1073
        %1157 = vst.msk [vmem:[#allocation3 + $0x70] sm:$0xff] %vm1142, %v1075
        %1158 = vst.msk [vmem:[#allocation3 + $0x78] sm:$0xff] %vm1142, %v1077
        %1159 = vst.msk [vmem:[#allocation3 + $0x80] sm:$0xff] %vm1142, %v1079
        %1160 = vst.msk [vmem:[#allocation3 + $0x88] sm:$0xff] %vm1142, %v1081
        %1161 = vst.msk [vmem:[#allocation3 + $0x90] sm:$0xff] %vm1142, %v1083
        %1162 = vst.msk [vmem:[#allocation3 + $0x98] sm:$0xff] %vm1142, %v1085
        %1163 = vst.msk [vmem:[#allocation3 + $0xa0] sm:$0xff] %vm1142, %v1087
        %1164 = vst.msk [vmem:[#allocation3 + $0xa8] sm:$0xff] %vm1142, %v1089
        %1165 = vst.msk [vmem:[#allocation3 + $0xb0] sm:$0xff] %vm1142, %v1091
        %1166 = vst.msk [vmem:[#allocation3 + $0xb8] sm:$0xff] %vm1142, %v1093
        %1167 = vst.msk [vmem:[#allocation3 + $0xc0] sm:$0xff] %vm1142, %v1095
        %1168 = vst.msk [vmem:[#allocation3 + $0xc8] sm:$0xff] %vm1142, %v1097
        %1169 = vst.msk [vmem:[#allocation3 + $0xd0] sm:$0xff] %vm1142, %v1099
        %1170 = vst.msk [vmem:[#allocation3 + $0xd8] sm:$0xff] %vm1142, %v1101
        %1171 = vst.msk [vmem:[#allocation3 + $0xe0] sm:$0xff] %vm1142, %v1103
        %1172 = vst.msk [vmem:[#allocation3 + $0xe8] sm:$0xff] %vm1142, %v1105
        %1173 = vst.msk [vmem:[#allocation3 + $0xf0] sm:$0xff] %vm1142, %v1107
        %1174 = vst.msk [vmem:[#allocation3 + $0xf8] sm:$0xff] %vm1142, %v1109
        %v1175 = vld [vmem:[%s255 + $0x2] sm:$0xff]
        %v1176 = vld [vmem:[%s255 + $0xa] sm:$0xff]
        %v1177 = vld [vmem:[%s255 + $0x1a] sm:$0xff]
        %v1178 = vld [vmem:[%s255 + $0x22] sm:$0xff]
        %v1179 = vld [vmem:[%s255 + $0x32] sm:$0xff]
        %v1180 = vld [vmem:[%s255 + $0x3a] sm:$0xff]
        %v1181 = vld [vmem:[%s255 + $0x4a] sm:$0xff]
        %v1182 = vld [vmem:[%s255 + $0x52] sm:$0xff]
        %v1183 = vld [vmem:[%s255 + $0x62] sm:$0xff]
        %v1184 = vld [vmem:[%s255 + $0x6a] sm:$0xff]
        %v1185 = vld [vmem:[%s255 + $0x7a] sm:$0xff]
        %v1186 = vld [vmem:[%s255 + $0x82] sm:$0xff]
        %v1187 = vld [vmem:[%s255 + $0x92] sm:$0xff]
        %v1188 = vld [vmem:[%s255 + $0x9a] sm:$0xff]
        %v1189 = vld [vmem:[%s255 + $0xaa] sm:$0xff]
        %v1190 = vld [vmem:[%s255 + $0xb2] sm:$0xff]
        %v1191 = vld [vmem:[%s255 + $0xc2] sm:$0xff]
        %v1192 = vld [vmem:[%s255 + $0xca] sm:$0xff]
        %v1193 = vld [vmem:[%s255 + $0xda] sm:$0xff]
        %v1194 = vld [vmem:[%s255 + $0xe2] sm:$0xff]
        %v1195 = vld [vmem:[%s255 + $0xf2] sm:$0xff]
        %v1196 = vld [vmem:[%s255 + $0xfa] sm:$0xff]
        %v1197 = vld [vmem:[%s255 + $0x10a] sm:$0xff]
        %v1198 = vld [vmem:[%s255 + $0x112] sm:$0xff]
        %v1199 = vld [vmem:[%s255 + $0x122] sm:$0xff]
        %v1200 = vld [vmem:[%s255 + $0x12a] sm:$0xff]
        %v1201 = vld [vmem:[%s255 + $0x13a] sm:$0xff]
        %v1202 = vld [vmem:[%s255 + $0x142] sm:$0xff]
        %v1203 = vld [vmem:[%s255 + $0x152] sm:$0xff]
        %v1204 = vld [vmem:[%s255 + $0x15a] sm:$0xff]
        %v1205 = vld [vmem:[%s255 + $0x16a] sm:$0xff]
        %v1206 = vld [vmem:[%s255 + $0x172] sm:$0xff]
        %1239 = vrot.lane.b32.xlu0 %v1175, 20
        %v1240 = vpop.permute.xlu0 %1239
        %1241 = vrot.lane.b32.xlu0 %v1176, 20
        %v1242 = vpop.permute.xlu0 %1241
        %1243 = vrot.lane.b32.xlu0 %v1177, 20
        %v1244 = vpop.permute.xlu0 %1243
        %1245 = vrot.lane.b32.xlu0 %v1178, 20
        %v1246 = vpop.permute.xlu0 %1245
        %1247 = vrot.lane.b32.xlu0 %v1179, 20
        %v1248 = vpop.permute.xlu0 %1247
        %1249 = vrot.lane.b32.xlu0 %v1180, 20
        %v1250 = vpop.permute.xlu0 %1249
        %1251 = vrot.lane.b32.xlu0 %v1181, 20
        %v1252 = vpop.permute.xlu0 %1251
        %1253 = vrot.lane.b32.xlu0 %v1182, 20
        %v1254 = vpop.permute.xlu0 %1253
        %1255 = vrot.lane.b32.xlu0 %v1183, 20
        %v1256 = vpop.permute.xlu0 %1255
        %1257 = vrot.lane.b32.xlu0 %v1184, 20
        %v1258 = vpop.permute.xlu0 %1257
        %1259 = vrot.lane.b32.xlu0 %v1185, 20
        %v1260 = vpop.permute.xlu0 %1259
        %1261 = vrot.lane.b32.xlu0 %v1186, 20
        %v1262 = vpop.permute.xlu0 %1261
        %1263 = vrot.lane.b32.xlu0 %v1187, 20
        %v1264 = vpop.permute.xlu0 %1263
        %1265 = vrot.lane.b32.xlu0 %v1188, 20
        %v1266 = vpop.permute.xlu0 %1265
        %1267 = vrot.lane.b32.xlu0 %v1189, 20
        %v1268 = vpop.permute.xlu0 %1267
        %1269 = vrot.lane.b32.xlu0 %v1190, 20
        %v1270 = vpop.permute.xlu0 %1269
        %1271 = vrot.lane.b32.xlu0 %v1191, 20
        %v1272 = vpop.permute.xlu0 %1271
        %1273 = vrot.lane.b32.xlu0 %v1192, 20
        %v1274 = vpop.permute.xlu0 %1273
        %1275 = vrot.lane.b32.xlu0 %v1193, 20
        %v1276 = vpop.permute.xlu0 %1275
        %1277 = vrot.lane.b32.xlu0 %v1194, 20
        %v1278 = vpop.permute.xlu0 %1277
        %1279 = vrot.lane.b32.xlu0 %v1195, 20
        %v1280 = vpop.permute.xlu0 %1279
        %1281 = vrot.lane.b32.xlu0 %v1196, 20
        %v1282 = vpop.permute.xlu0 %1281
        %1283 = vrot.lane.b32.xlu0 %v1197, 20
        %v1284 = vpop.permute.xlu0 %1283
        %1285 = vrot.lane.b32.xlu0 %v1198, 20
        %v1286 = vpop.permute.xlu0 %1285
        %1287 = vrot.lane.b32.xlu0 %v1199, 20
        %v1288 = vpop.permute.xlu0 %1287
        %1289 = vrot.lane.b32.xlu0 %v1200, 20
        %v1290 = vpop.permute.xlu0 %1289
        %1291 = vrot.lane.b32.xlu0 %v1201, 20
        %v1292 = vpop.permute.xlu0 %1291
        %1293 = vrot.lane.b32.xlu0 %v1202, 20
        %v1294 = vpop.permute.xlu0 %1293
        %1295 = vrot.lane.b32.xlu0 %v1203, 20
        %v1296 = vpop.permute.xlu0 %1295
        %1297 = vrot.lane.b32.xlu0 %v1204, 20
        %v1298 = vpop.permute.xlu0 %1297
        %1299 = vrot.lane.b32.xlu0 %v1205, 20
        %v1300 = vpop.permute.xlu0 %1299
        %1301 = vrot.lane.b32.xlu0 %v1206, 20
        %v1302 = vpop.permute.xlu0 %1301
        %vm1335 = vcmask 195744
        %1336 = vst.msk [vmem:[#allocation3] sm:$0xff] %vm1335, %v1240
        %1337 = vst.msk [vmem:[#allocation3 + $0x8] sm:$0xff] %vm1335, %v1242
        %1338 = vst.msk [vmem:[#allocation3 + $0x10] sm:$0xff] %vm1335, %v1244
        %1339 = vst.msk [vmem:[#allocation3 + $0x18] sm:$0xff] %vm1335, %v1246
        %1340 = vst.msk [vmem:[#allocation3 + $0x20] sm:$0xff] %vm1335, %v1248
        %1341 = vst.msk [vmem:[#allocation3 + $0x28] sm:$0xff] %vm1335, %v1250
        %1342 = vst.msk [vmem:[#allocation3 + $0x30] sm:$0xff] %vm1335, %v1252
        %1343 = vst.msk [vmem:[#allocation3 + $0x38] sm:$0xff] %vm1335, %v1254
        %1344 = vst.msk [vmem:[#allocation3 + $0x40] sm:$0xff] %vm1335, %v1256
        %1345 = vst.msk [vmem:[#allocation3 + $0x48] sm:$0xff] %vm1335, %v1258
        %1346 = vst.msk [vmem:[#allocation3 + $0x50] sm:$0xff] %vm1335, %v1260
        %1347 = vst.msk [vmem:[#allocation3 + $0x58] sm:$0xff] %vm1335, %v1262
        %1348 = vst.msk [vmem:[#allocation3 + $0x60] sm:$0xff] %vm1335, %v1264
        %1349 = vst.msk [vmem:[#allocation3 + $0x68] sm:$0xff] %vm1335, %v1266
        %1350 = vst.msk [vmem:[#allocation3 + $0x70] sm:$0xff] %vm1335, %v1268
        %1351 = vst.msk [vmem:[#allocation3 + $0x78] sm:$0xff] %vm1335, %v1270
        %1352 = vst.msk [vmem:[#allocation3 + $0x80] sm:$0xff] %vm1335, %v1272
        %1353 = vst.msk [vmem:[#allocation3 + $0x88] sm:$0xff] %vm1335, %v1274
        %1354 = vst.msk [vmem:[#allocation3 + $0x90] sm:$0xff] %vm1335, %v1276
        %1355 = vst.msk [vmem:[#allocation3 + $0x98] sm:$0xff] %vm1335, %v1278
        %1356 = vst.msk [vmem:[#allocation3 + $0xa0] sm:$0xff] %vm1335, %v1280
        %1357 = vst.msk [vmem:[#allocation3 + $0xa8] sm:$0xff] %vm1335, %v1282
        %1358 = vst.msk [vmem:[#allocation3 + $0xb0] sm:$0xff] %vm1335, %v1284
        %1359 = vst.msk [vmem:[#allocation3 + $0xb8] sm:$0xff] %vm1335, %v1286
        %1360 = vst.msk [vmem:[#allocation3 + $0xc0] sm:$0xff] %vm1335, %v1288
        %1361 = vst.msk [vmem:[#allocation3 + $0xc8] sm:$0xff] %vm1335, %v1290
        %1362 = vst.msk [vmem:[#allocation3 + $0xd0] sm:$0xff] %vm1335, %v1292
        %1363 = vst.msk [vmem:[#allocation3 + $0xd8] sm:$0xff] %vm1335, %v1294
        %1364 = vst.msk [vmem:[#allocation3 + $0xe0] sm:$0xff] %vm1335, %v1296
        %1365 = vst.msk [vmem:[#allocation3 + $0xe8] sm:$0xff] %vm1335, %v1298
        %1366 = vst.msk [vmem:[#allocation3 + $0xf0] sm:$0xff] %vm1335, %v1300
        %1367 = vst.msk [vmem:[#allocation3 + $0xf8] sm:$0xff] %vm1335, %v1302
        %v1368 = vld [vmem:[%s323] sm:$0xff]
        %v1369 = vld [vmem:[%s323 + $0x8] sm:$0xff]
        %v1370 = vld [vmem:[%s323 + $0x18] sm:$0xff]
        %v1371 = vld [vmem:[%s323 + $0x20] sm:$0xff]
        %v1372 = vld [vmem:[%s323 + $0x30] sm:$0xff]
        %v1373 = vld [vmem:[%s323 + $0x38] sm:$0xff]
        %v1374 = vld [vmem:[%s323 + $0x48] sm:$0xff]
        %v1375 = vld [vmem:[%s323 + $0x50] sm:$0xff]
        %v1376 = vld [vmem:[%s323 + $0x60] sm:$0xff]
        %v1377 = vld [vmem:[%s323 + $0x68] sm:$0xff]
        %v1378 = vld [vmem:[%s323 + $0x78] sm:$0xff]
        %v1379 = vld [vmem:[%s323 + $0x80] sm:$0xff]
        %v1380 = vld [vmem:[%s323 + $0x90] sm:$0xff]
        %v1381 = vld [vmem:[%s323 + $0x98] sm:$0xff]
        %v1382 = vld [vmem:[%s323 + $0xa8] sm:$0xff]
        %v1383 = vld [vmem:[%s323 + $0xb0] sm:$0xff]
        %v1384 = vld [vmem:[%s323 + $0xc0] sm:$0xff]
        %v1385 = vld [vmem:[%s323 + $0xc8] sm:$0xff]
        %v1386 = vld [vmem:[%s323 + $0xd8] sm:$0xff]
        %v1387 = vld [vmem:[%s323 + $0xe0] sm:$0xff]
        %v1388 = vld [vmem:[%s323 + $0xf0] sm:$0xff]
        %v1389 = vld [vmem:[%s323 + $0xf8] sm:$0xff]
        %v1390 = vld [vmem:[%s323 + $0x108] sm:$0xff]
        %v1391 = vld [vmem:[%s323 + $0x110] sm:$0xff]
        %v1392 = vld [vmem:[%s323 + $0x120] sm:$0xff]
        %v1393 = vld [vmem:[%s323 + $0x128] sm:$0xff]
        %v1394 = vld [vmem:[%s323 + $0x138] sm:$0xff]
        %v1395 = vld [vmem:[%s323 + $0x140] sm:$0xff]
        %v1396 = vld [vmem:[%s323 + $0x150] sm:$0xff]
        %v1397 = vld [vmem:[%s323 + $0x158] sm:$0xff]
        %v1398 = vld [vmem:[%s323 + $0x168] sm:$0xff]
        %v1399 = vld [vmem:[%s323 + $0x170] sm:$0xff]
        %1432 = vrot.lane.b32.xlu0 %v1368, 24
        %v1433 = vpop.permute.xlu0 %1432
        %1434 = vrot.lane.b32.xlu0 %v1369, 24
        %v1435 = vpop.permute.xlu0 %1434
        %1436 = vrot.lane.b32.xlu0 %v1370, 24
        %v1437 = vpop.permute.xlu0 %1436
        %1438 = vrot.lane.b32.xlu0 %v1371, 24
        %v1439 = vpop.permute.xlu0 %1438
        %1440 = vrot.lane.b32.xlu0 %v1372, 24
        %v1441 = vpop.permute.xlu0 %1440
        %1442 = vrot.lane.b32.xlu0 %v1373, 24
        %v1443 = vpop.permute.xlu0 %1442
        %1444 = vrot.lane.b32.xlu0 %v1374, 24
        %v1445 = vpop.permute.xlu0 %1444
        %1446 = vrot.lane.b32.xlu0 %v1375, 24
        %v1447 = vpop.permute.xlu0 %1446
        %1448 = vrot.lane.b32.xlu0 %v1376, 24
        %v1449 = vpop.permute.xlu0 %1448
        %1450 = vrot.lane.b32.xlu0 %v1377, 24
        %v1451 = vpop.permute.xlu0 %1450
        %1452 = vrot.lane.b32.xlu0 %v1378, 24
        %v1453 = vpop.permute.xlu0 %1452
        %1454 = vrot.lane.b32.xlu0 %v1379, 24
        %v1455 = vpop.permute.xlu0 %1454
        %1456 = vrot.lane.b32.xlu0 %v1380, 24
        %v1457 = vpop.permute.xlu0 %1456
        %1458 = vrot.lane.b32.xlu0 %v1381, 24
        %v1459 = vpop.permute.xlu0 %1458
        %1460 = vrot.lane.b32.xlu0 %v1382, 24
        %v1461 = vpop.permute.xlu0 %1460
        %1462 = vrot.lane.b32.xlu0 %v1383, 24
        %v1463 = vpop.permute.xlu0 %1462
        %1464 = vrot.lane.b32.xlu0 %v1384, 24
        %v1465 = vpop.permute.xlu0 %1464
        %1466 = vrot.lane.b32.xlu0 %v1385, 24
        %v1467 = vpop.permute.xlu0 %1466
        %1468 = vrot.lane.b32.xlu0 %v1386, 24
        %v1469 = vpop.permute.xlu0 %1468
        %1470 = vrot.lane.b32.xlu0 %v1387, 24
        %v1471 = vpop.permute.xlu0 %1470
        %1472 = vrot.lane.b32.xlu0 %v1388, 24
        %v1473 = vpop.permute.xlu0 %1472
        %1474 = vrot.lane.b32.xlu0 %v1389, 24
        %v1475 = vpop.permute.xlu0 %1474
        %1476 = vrot.lane.b32.xlu0 %v1390, 24
        %v1477 = vpop.permute.xlu0 %1476
        %1478 = vrot.lane.b32.xlu0 %v1391, 24
        %v1479 = vpop.permute.xlu0 %1478
        %1480 = vrot.lane.b32.xlu0 %v1392, 24
        %v1481 = vpop.permute.xlu0 %1480
        %1482 = vrot.lane.b32.xlu0 %v1393, 24
        %v1483 = vpop.permute.xlu0 %1482
        %1484 = vrot.lane.b32.xlu0 %v1394, 24
        %v1485 = vpop.permute.xlu0 %1484
        %1486 = vrot.lane.b32.xlu0 %v1395, 24
        %v1487 = vpop.permute.xlu0 %1486
        %1488 = vrot.lane.b32.xlu0 %v1396, 24
        %v1489 = vpop.permute.xlu0 %1488
        %1490 = vrot.lane.b32.xlu0 %v1397, 24
        %v1491 = vpop.permute.xlu0 %1490
        %1492 = vrot.lane.b32.xlu0 %v1398, 24
        %v1493 = vpop.permute.xlu0 %1492
        %1494 = vrot.lane.b32.xlu0 %v1399, 24
        %v1495 = vpop.permute.xlu0 %1494
        %vm1528 = vcmask 228544
        %1529 = vst.msk [vmem:[#allocation3] sm:$0xff] %vm1528, %v1433
        %1530 = vst.msk [vmem:[#allocation3 + $0x8] sm:$0xff] %vm1528, %v1435
        %1531 = vst.msk [vmem:[#allocation3 + $0x10] sm:$0xff] %vm1528, %v1437
        %1532 = vst.msk [vmem:[#allocation3 + $0x18] sm:$0xff] %vm1528, %v1439
        %1533 = vst.msk [vmem:[#allocation3 + $0x20] sm:$0xff] %vm1528, %v1441
        %1534 = vst.msk [vmem:[#allocation3 + $0x28] sm:$0xff] %vm1528, %v1443
        %1535 = vst.msk [vmem:[#allocation3 + $0x30] sm:$0xff] %vm1528, %v1445
        %1536 = vst.msk [vmem:[#allocation3 + $0x38] sm:$0xff] %vm1528, %v1447
        %1537 = vst.msk [vmem:[#allocation3 + $0x40] sm:$0xff] %vm1528, %v1449
        %1538 = vst.msk [vmem:[#allocation3 + $0x48] sm:$0xff] %vm1528, %v1451
        %1539 = vst.msk [vmem:[#allocation3 + $0x50] sm:$0xff] %vm1528, %v1453
        %1540 = vst.msk [vmem:[#allocation3 + $0x58] sm:$0xff] %vm1528, %v1455
        %1541 = vst.msk [vmem:[#allocation3 + $0x60] sm:$0xff] %vm1528, %v1457
        %1542 = vst.msk [vmem:[#allocation3 + $0x68] sm:$0xff] %vm1528, %v1459
        %1543 = vst.msk [vmem:[#allocation3 + $0x70] sm:$0xff] %vm1528, %v1461
        %1544 = vst.msk [vmem:[#allocation3 + $0x78] sm:$0xff] %vm1528, %v1463
        %1545 = vst.msk [vmem:[#allocation3 + $0x80] sm:$0xff] %vm1528, %v1465
        %1546 = vst.msk [vmem:[#allocation3 + $0x88] sm:$0xff] %vm1528, %v1467
        %1547 = vst.msk [vmem:[#allocation3 + $0x90] sm:$0xff] %vm1528, %v1469
        %1548 = vst.msk [vmem:[#allocation3 + $0x98] sm:$0xff] %vm1528, %v1471
        %1549 = vst.msk [vmem:[#allocation3 + $0xa0] sm:$0xff] %vm1528, %v1473
        %1550 = vst.msk [vmem:[#allocation3 + $0xa8] sm:$0xff] %vm1528, %v1475
        %1551 = vst.msk [vmem:[#allocation3 + $0xb0] sm:$0xff] %vm1528, %v1477
        %1552 = vst.msk [vmem:[#allocation3 + $0xb8] sm:$0xff] %vm1528, %v1479
        %1553 = vst.msk [vmem:[#allocation3 + $0xc0] sm:$0xff] %vm1528, %v1481
        %1554 = vst.msk [vmem:[#allocation3 + $0xc8] sm:$0xff] %vm1528, %v1483
        %1555 = vst.msk [vmem:[#allocation3 + $0xd0] sm:$0xff] %vm1528, %v1485
        %1556 = vst.msk [vmem:[#allocation3 + $0xd8] sm:$0xff] %vm1528, %v1487
        %1557 = vst.msk [vmem:[#allocation3 + $0xe0] sm:$0xff] %vm1528, %v1489
        %1558 = vst.msk [vmem:[#allocation3 + $0xe8] sm:$0xff] %vm1528, %v1491
        %1559 = vst.msk [vmem:[#allocation3 + $0xf0] sm:$0xff] %vm1528, %v1493
        %1560 = vst.msk [vmem:[#allocation3 + $0xf8] sm:$0xff] %vm1528, %v1495
        %v1561 = vld [vmem:[%s323 + $0x1] sm:$0xff]
        %v1562 = vld [vmem:[%s323 + $0x9] sm:$0xff]
        %v1563 = vld [vmem:[%s323 + $0x19] sm:$0xff]
        %v1564 = vld [vmem:[%s323 + $0x21] sm:$0xff]
        %v1565 = vld [vmem:[%s323 + $0x31] sm:$0xff]
        %v1566 = vld [vmem:[%s323 + $0x39] sm:$0xff]
        %v1567 = vld [vmem:[%s323 + $0x49] sm:$0xff]
        %v1568 = vld [vmem:[%s323 + $0x51] sm:$0xff]
        %v1569 = vld [vmem:[%s323 + $0x61] sm:$0xff]
        %v1570 = vld [vmem:[%s323 + $0x69] sm:$0xff]
        %v1571 = vld [vmem:[%s323 + $0x79] sm:$0xff]
        %v1572 = vld [vmem:[%s323 + $0x81] sm:$0xff]
        %v1573 = vld [vmem:[%s323 + $0x91] sm:$0xff]
        %v1574 = vld [vmem:[%s323 + $0x99] sm:$0xff]
        %v1575 = vld [vmem:[%s323 + $0xa9] sm:$0xff]
        %v1576 = vld [vmem:[%s323 + $0xb1] sm:$0xff]
        %v1577 = vld [vmem:[%s323 + $0xc1] sm:$0xff]
        %v1578 = vld [vmem:[%s323 + $0xc9] sm:$0xff]
        %v1579 = vld [vmem:[%s323 + $0xd9] sm:$0xff]
        %v1580 = vld [vmem:[%s323 + $0xe1] sm:$0xff]
        %v1581 = vld [vmem:[%s323 + $0xf1] sm:$0xff]
        %v1582 = vld [vmem:[%s323 + $0xf9] sm:$0xff]
        %v1583 = vld [vmem:[%s323 + $0x109] sm:$0xff]
        %v1584 = vld [vmem:[%s323 + $0x111] sm:$0xff]
        %v1585 = vld [vmem:[%s323 + $0x121] sm:$0xff]
        %v1586 = vld [vmem:[%s323 + $0x129] sm:$0xff]
        %v1587 = vld [vmem:[%s323 + $0x139] sm:$0xff]
        %v1588 = vld [vmem:[%s323 + $0x141] sm:$0xff]
        %v1589 = vld [vmem:[%s323 + $0x151] sm:$0xff]
        %v1590 = vld [vmem:[%s323 + $0x159] sm:$0xff]
        %v1591 = vld [vmem:[%s323 + $0x169] sm:$0xff]
        %v1592 = vld [vmem:[%s323 + $0x171] sm:$0xff]
        %1625 = vrot.lane.b32.xlu0 %v1561, 28
        %v1626 = vpop.permute.xlu0 %1625
        %1627 = vrot.lane.b32.xlu0 %v1562, 28
        %v1628 = vpop.permute.xlu0 %1627
        %1629 = vrot.lane.b32.xlu0 %v1563, 28
        %v1630 = vpop.permute.xlu0 %1629
        %1631 = vrot.lane.b32.xlu0 %v1564, 28
        %v1632 = vpop.permute.xlu0 %1631
        %1633 = vrot.lane.b32.xlu0 %v1565, 28
        %v1634 = vpop.permute.xlu0 %1633
        %1635 = vrot.lane.b32.xlu0 %v1566, 28
        %v1636 = vpop.permute.xlu0 %1635
        %1637 = vrot.lane.b32.xlu0 %v1567, 28
        %v1638 = vpop.permute.xlu0 %1637
        %1639 = vrot.lane.b32.xlu0 %v1568, 28
        %v1640 = vpop.permute.xlu0 %1639
        %1641 = vrot.lane.b32.xlu0 %v1569, 28
        %v1642 = vpop.permute.xlu0 %1641
        %1643 = vrot.lane.b32.xlu0 %v1570, 28
        %v1644 = vpop.permute.xlu0 %1643
        %1645 = vrot.lane.b32.xlu0 %v1571, 28
        %v1646 = vpop.permute.xlu0 %1645
        %1647 = vrot.lane.b32.xlu0 %v1572, 28
        %v1648 = vpop.permute.xlu0 %1647
        %1649 = vrot.lane.b32.xlu0 %v1573, 28
        %v1650 = vpop.permute.xlu0 %1649
        %1651 = vrot.lane.b32.xlu0 %v1574, 28
        %v1652 = vpop.permute.xlu0 %1651
        %1653 = vrot.lane.b32.xlu0 %v1575, 28
        %v1654 = vpop.permute.xlu0 %1653
        %1655 = vrot.lane.b32.xlu0 %v1576, 28
        %v1656 = vpop.permute.xlu0 %1655
        %1657 = vrot.lane.b32.xlu0 %v1577, 28
        %v1658 = vpop.permute.xlu0 %1657
        %1659 = vrot.lane.b32.xlu0 %v1578, 28
        %v1660 = vpop.permute.xlu0 %1659
        %1661 = vrot.lane.b32.xlu0 %v1579, 28
        %v1662 = vpop.permute.xlu0 %1661
        %1663 = vrot.lane.b32.xlu0 %v1580, 28
        %v1664 = vpop.permute.xlu0 %1663
        %1665 = vrot.lane.b32.xlu0 %v1581, 28
        %v1666 = vpop.permute.xlu0 %1665
        %1667 = vrot.lane.b32.xlu0 %v1582, 28
        %v1668 = vpop.permute.xlu0 %1667
        %1669 = vrot.lane.b32.xlu0 %v1583, 28
        %v1670 = vpop.permute.xlu0 %1669
        %1671 = vrot.lane.b32.xlu0 %v1584, 28
        %v1672 = vpop.permute.xlu0 %1671
        %1673 = vrot.lane.b32.xlu0 %v1585, 28
        %v1674 = vpop.permute.xlu0 %1673
        %1675 = vrot.lane.b32.xlu0 %v1586, 28
        %v1676 = vpop.permute.xlu0 %1675
        %1677 = vrot.lane.b32.xlu0 %v1587, 28
        %v1678 = vpop.permute.xlu0 %1677
        %1679 = vrot.lane.b32.xlu0 %v1588, 28
        %v1680 = vpop.permute.xlu0 %1679
        %1681 = vrot.lane.b32.xlu0 %v1589, 28
        %v1682 = vpop.permute.xlu0 %1681
        %1683 = vrot.lane.b32.xlu0 %v1590, 28
        %v1684 = vpop.permute.xlu0 %1683
        %1685 = vrot.lane.b32.xlu0 %v1591, 28
        %v1686 = vpop.permute.xlu0 %1685
        %1687 = vrot.lane.b32.xlu0 %v1592, 28
        %v1688 = vpop.permute.xlu0 %1687
        %vm1721 = vcmask 261344
        %1722 = vst.msk [vmem:[#allocation3] sm:$0xff] %vm1721, %v1626
        %1723 = vst.msk [vmem:[#allocation3 + $0x8] sm:$0xff] %vm1721, %v1628
        %1724 = vst.msk [vmem:[#allocation3 + $0x10] sm:$0xff] %vm1721, %v1630
        %1725 = vst.msk [vmem:[#allocation3 + $0x18] sm:$0xff] %vm1721, %v1632
        %1726 = vst.msk [vmem:[#allocation3 + $0x20] sm:$0xff] %vm1721, %v1634
        %1727 = vst.msk [vmem:[#allocation3 + $0x28] sm:$0xff] %vm1721, %v1636
        %1728 = vst.msk [vmem:[#allocation3 + $0x30] sm:$0xff] %vm1721, %v1638
        %1729 = vst.msk [vmem:[#allocation3 + $0x38] sm:$0xff] %vm1721, %v1640
        %1730 = vst.msk [vmem:[#allocation3 + $0x40] sm:$0xff] %vm1721, %v1642
        %1731 = vst.msk [vmem:[#allocation3 + $0x48] sm:$0xff] %vm1721, %v1644
        %1732 = vst.msk [vmem:[#allocation3 + $0x50] sm:$0xff] %vm1721, %v1646
        %1733 = vst.msk [vmem:[#allocation3 + $0x58] sm:$0xff] %vm1721, %v1648
        %1734 = vst.msk [vmem:[#allocation3 + $0x60] sm:$0xff] %vm1721, %v1650
        %1735 = vst.msk [vmem:[#allocation3 + $0x68] sm:$0xff] %vm1721, %v1652
        %1736 = vst.msk [vmem:[#allocation3 + $0x70] sm:$0xff] %vm1721, %v1654
        %1737 = vst.msk [vmem:[#allocation3 + $0x78] sm:$0xff] %vm1721, %v1656
        %1738 = vst.msk [vmem:[#allocation3 + $0x80] sm:$0xff] %vm1721, %v1658
        %1739 = vst.msk [vmem:[#allocation3 + $0x88] sm:$0xff] %vm1721, %v1660
        %1740 = vst.msk [vmem:[#allocation3 + $0x90] sm:$0xff] %vm1721, %v1662
        %1741 = vst.msk [vmem:[#allocation3 + $0x98] sm:$0xff] %vm1721, %v1664
        %1742 = vst.msk [vmem:[#allocation3 + $0xa0] sm:$0xff] %vm1721, %v1666
        %1743 = vst.msk [vmem:[#allocation3 + $0xa8] sm:$0xff] %vm1721, %v1668
        %1744 = vst.msk [vmem:[#allocation3 + $0xb0] sm:$0xff] %vm1721, %v1670
        %1745 = vst.msk [vmem:[#allocation3 + $0xb8] sm:$0xff] %vm1721, %v1672
        %1746 = vst.msk [vmem:[#allocation3 + $0xc0] sm:$0xff] %vm1721, %v1674
        %1747 = vst.msk [vmem:[#allocation3 + $0xc8] sm:$0xff] %vm1721, %v1676
        %1748 = vst.msk [vmem:[#allocation3 + $0xd0] sm:$0xff] %vm1721, %v1678
        %1749 = vst.msk [vmem:[#allocation3 + $0xd8] sm:$0xff] %vm1721, %v1680
        %1750 = vst.msk [vmem:[#allocation3 + $0xe0] sm:$0xff] %vm1721, %v1682
        %1751 = vst.msk [vmem:[#allocation3 + $0xe8] sm:$0xff] %vm1721, %v1684
        %1752 = vst.msk [vmem:[#allocation3 + $0xf0] sm:$0xff] %vm1721, %v1686
        %1753 = vst.msk [vmem:[#allocation3 + $0xf8] sm:$0xff] %vm1721, %v1688
        %v1754 = vld [vmem:[%s323 + $0x2] sm:$0xff]
        %v1755 = vld [vmem:[%s323 + $0xa] sm:$0xff]
        %v1756 = vld [vmem:[%s323 + $0x1a] sm:$0xff]
        %v1757 = vld [vmem:[%s323 + $0x22] sm:$0xff]
        %v1758 = vld [vmem:[%s323 + $0x32] sm:$0xff]
        %v1759 = vld [vmem:[%s323 + $0x3a] sm:$0xff]
        %v1760 = vld [vmem:[%s323 + $0x4a] sm:$0xff]
        %v1761 = vld [vmem:[%s323 + $0x52] sm:$0xff]
        %v1762 = vld [vmem:[%s323 + $0x62] sm:$0xff]
        %v1763 = vld [vmem:[%s323 + $0x6a] sm:$0xff]
        %v1764 = vld [vmem:[%s323 + $0x7a] sm:$0xff]
        %v1765 = vld [vmem:[%s323 + $0x82] sm:$0xff]
        %v1766 = vld [vmem:[%s323 + $0x92] sm:$0xff]
        %v1767 = vld [vmem:[%s323 + $0x9a] sm:$0xff]
        %v1768 = vld [vmem:[%s323 + $0xaa] sm:$0xff]
        %v1769 = vld [vmem:[%s323 + $0xb2] sm:$0xff]
        %v1770 = vld [vmem:[%s323 + $0xc2] sm:$0xff]
        %v1771 = vld [vmem:[%s323 + $0xca] sm:$0xff]
        %v1772 = vld [vmem:[%s323 + $0xda] sm:$0xff]
        %v1773 = vld [vmem:[%s323 + $0xe2] sm:$0xff]
        %v1774 = vld [vmem:[%s323 + $0xf2] sm:$0xff]
        %v1775 = vld [vmem:[%s323 + $0xfa] sm:$0xff]
        %v1776 = vld [vmem:[%s323 + $0x10a] sm:$0xff]
        %v1777 = vld [vmem:[%s323 + $0x112] sm:$0xff]
        %v1778 = vld [vmem:[%s323 + $0x122] sm:$0xff]
        %v1779 = vld [vmem:[%s323 + $0x12a] sm:$0xff]
        %v1780 = vld [vmem:[%s323 + $0x13a] sm:$0xff]
        %v1781 = vld [vmem:[%s323 + $0x142] sm:$0xff]
        %v1782 = vld [vmem:[%s323 + $0x152] sm:$0xff]
        %v1783 = vld [vmem:[%s323 + $0x15a] sm:$0xff]
        %v1784 = vld [vmem:[%s323 + $0x16a] sm:$0xff]
        %v1785 = vld [vmem:[%s323 + $0x172] sm:$0xff]
        %1818 = vrot.lane.b32.xlu0 %v1754, 32
        %v1819 = vpop.permute.xlu0 %1818
        %1820 = vrot.lane.b32.xlu0 %v1755, 32
        %v1821 = vpop.permute.xlu0 %1820
        %1822 = vrot.lane.b32.xlu0 %v1756, 32
        %v1823 = vpop.permute.xlu0 %1822
        %1824 = vrot.lane.b32.xlu0 %v1757, 32
        %v1825 = vpop.permute.xlu0 %1824
        %1826 = vrot.lane.b32.xlu0 %v1758, 32
        %v1827 = vpop.permute.xlu0 %1826
        %1828 = vrot.lane.b32.xlu0 %v1759, 32
        %v1829 = vpop.permute.xlu0 %1828
        %1830 = vrot.lane.b32.xlu0 %v1760, 32
        %v1831 = vpop.permute.xlu0 %1830
        %1832 = vrot.lane.b32.xlu0 %v1761, 32
        %v1833 = vpop.permute.xlu0 %1832
        %1834 = vrot.lane.b32.xlu0 %v1762, 32
        %v1835 = vpop.permute.xlu0 %1834
        %1836 = vrot.lane.b32.xlu0 %v1763, 32
        %v1837 = vpop.permute.xlu0 %1836
        %1838 = vrot.lane.b32.xlu0 %v1764, 32
        %v1839 = vpop.permute.xlu0 %1838
        %1840 = vrot.lane.b32.xlu0 %v1765, 32
        %v1841 = vpop.permute.xlu0 %1840
        %1842 = vrot.lane.b32.xlu0 %v1766, 32
        %v1843 = vpop.permute.xlu0 %1842
        %1844 = vrot.lane.b32.xlu0 %v1767, 32
        %v1845 = vpop.permute.xlu0 %1844
        %1846 = vrot.lane.b32.xlu0 %v1768, 32
        %v1847 = vpop.permute.xlu0 %1846
        %1848 = vrot.lane.b32.xlu0 %v1769, 32
        %v1849 = vpop.permute.xlu0 %1848
        %1850 = vrot.lane.b32.xlu0 %v1770, 32
        %v1851 = vpop.permute.xlu0 %1850
        %1852 = vrot.lane.b32.xlu0 %v1771, 32
        %v1853 = vpop.permute.xlu0 %1852
        %1854 = vrot.lane.b32.xlu0 %v1772, 32
        %v1855 = vpop.permute.xlu0 %1854
        %1856 = vrot.lane.b32.xlu0 %v1773, 32
        %v1857 = vpop.permute.xlu0 %1856
        %1858 = vrot.lane.b32.xlu0 %v1774, 32
        %v1859 = vpop.permute.xlu0 %1858
        %1860 = vrot.lane.b32.xlu0 %v1775, 32
        %v1861 = vpop.permute.xlu0 %1860
        %1862 = vrot.lane.b32.xlu0 %v1776, 32
        %v1863 = vpop.permute.xlu0 %1862
        %1864 = vrot.lane.b32.xlu0 %v1777, 32
        %v1865 = vpop.permute.xlu0 %1864
        %1866 = vrot.lane.b32.xlu0 %v1778, 32
        %v1867 = vpop.permute.xlu0 %1866
        %1868 = vrot.lane.b32.xlu0 %v1779, 32
        %v1869 = vpop.permute.xlu0 %1868
        %1870 = vrot.lane.b32.xlu0 %v1780, 32
        %v1871 = vpop.permute.xlu0 %1870
        %1872 = vrot.lane.b32.xlu0 %v1781, 32
        %v1873 = vpop.permute.xlu0 %1872
        %1874 = vrot.lane.b32.xlu0 %v1782, 32
        %v1875 = vpop.permute.xlu0 %1874
        %1876 = vrot.lane.b32.xlu0 %v1783, 32
        %v1877 = vpop.permute.xlu0 %1876
        %1878 = vrot.lane.b32.xlu0 %v1784, 32
        %v1879 = vpop.permute.xlu0 %1878
        %1880 = vrot.lane.b32.xlu0 %v1785, 32
        %v1881 = vpop.permute.xlu0 %1880
        %vm1914 = vcmask 294144
        %1915 = vst.msk [vmem:[#allocation3] sm:$0xff] %vm1914, %v1819
        %1916 = vst.msk [vmem:[#allocation3 + $0x8] sm:$0xff] %vm1914, %v1821
        %1917 = vst.msk [vmem:[#allocation3 + $0x10] sm:$0xff] %vm1914, %v1823
        %1918 = vst.msk [vmem:[#allocation3 + $0x18] sm:$0xff] %vm1914, %v1825
        %1919 = vst.msk [vmem:[#allocation3 + $0x20] sm:$0xff] %vm1914, %v1827
        %1920 = vst.msk [vmem:[#allocation3 + $0x28] sm:$0xff] %vm1914, %v1829
        %1921 = vst.msk [vmem:[#allocation3 + $0x30] sm:$0xff] %vm1914, %v1831
        %1922 = vst.msk [vmem:[#allocation3 + $0x38] sm:$0xff] %vm1914, %v1833
        %1923 = vst.msk [vmem:[#allocation3 + $0x40] sm:$0xff] %vm1914, %v1835
        %1924 = vst.msk [vmem:[#allocation3 + $0x48] sm:$0xff] %vm1914, %v1837
        %1925 = vst.msk [vmem:[#allocation3 + $0x50] sm:$0xff] %vm1914, %v1839
        %1926 = vst.msk [vmem:[#allocation3 + $0x58] sm:$0xff] %vm1914, %v1841
        %1927 = vst.msk [vmem:[#allocation3 + $0x60] sm:$0xff] %vm1914, %v1843
        %1928 = vst.msk [vmem:[#allocation3 + $0x68] sm:$0xff] %vm1914, %v1845
        %1929 = vst.msk [vmem:[#allocation3 + $0x70] sm:$0xff] %vm1914, %v1847
        %1930 = vst.msk [vmem:[#allocation3 + $0x78] sm:$0xff] %vm1914, %v1849
        %1931 = vst.msk [vmem:[#allocation3 + $0x80] sm:$0xff] %vm1914, %v1851
        %1932 = vst.msk [vmem:[#allocation3 + $0x88] sm:$0xff] %vm1914, %v1853
        %1933 = vst.msk [vmem:[#allocation3 + $0x90] sm:$0xff] %vm1914, %v1855
        %1934 = vst.msk [vmem:[#allocation3 + $0x98] sm:$0xff] %vm1914, %v1857
        %1935 = vst.msk [vmem:[#allocation3 + $0xa0] sm:$0xff] %vm1914, %v1859
        %1936 = vst.msk [vmem:[#allocation3 + $0xa8] sm:$0xff] %vm1914, %v1861
        %1937 = vst.msk [vmem:[#allocation3 + $0xb0] sm:$0xff] %vm1914, %v1863
        %1938 = vst.msk [vmem:[#allocation3 + $0xb8] sm:$0xff] %vm1914, %v1865
        %1939 = vst.msk [vmem:[#allocation3 + $0xc0] sm:$0xff] %vm1914, %v1867
        %1940 = vst.msk [vmem:[#allocation3 + $0xc8] sm:$0xff] %vm1914, %v1869
        %1941 = vst.msk [vmem:[#allocation3 + $0xd0] sm:$0xff] %vm1914, %v1871
        %1942 = vst.msk [vmem:[#allocation3 + $0xd8] sm:$0xff] %vm1914, %v1873
        %1943 = vst.msk [vmem:[#allocation3 + $0xe0] sm:$0xff] %vm1914, %v1875
        %1944 = vst.msk [vmem:[#allocation3 + $0xe8] sm:$0xff] %vm1914, %v1877
        %1945 = vst.msk [vmem:[#allocation3 + $0xf0] sm:$0xff] %vm1914, %v1879
        %1946 = vst.msk [vmem:[#allocation3 + $0xf8] sm:$0xff] %vm1914, %v1881
        %v1947 = vld [vmem:[#allocation3] sm:$0xff]
        %v1948 = vld [vmem:[#allocation3 + $0x8] sm:$0xff]
        %v1949 = vld [vmem:[#allocation3 + $0x10] sm:$0xff]
        %v1950 = vld [vmem:[#allocation3 + $0x18] sm:$0xff]
        %v1951 = vld [vmem:[#allocation3 + $0x20] sm:$0xff]
        %v1952 = vld [vmem:[#allocation3 + $0x28] sm:$0xff]
        %v1953 = vld [vmem:[#allocation3 + $0x30] sm:$0xff]
        %v1954 = vld [vmem:[#allocation3 + $0x38] sm:$0xff]
        %v1955 = vld [vmem:[#allocation3 + $0x40] sm:$0xff]
        %v1956 = vld [vmem:[#allocation3 + $0x48] sm:$0xff]
        %v1957 = vld [vmem:[#allocation3 + $0x50] sm:$0xff]
        %v1958 = vld [vmem:[#allocation3 + $0x58] sm:$0xff]
        %v1959 = vld [vmem:[#allocation3 + $0x60] sm:$0xff]
        %v1960 = vld [vmem:[#allocation3 + $0x68] sm:$0xff]
        %v1961 = vld [vmem:[#allocation3 + $0x70] sm:$0xff]
        %v1962 = vld [vmem:[#allocation3 + $0x78] sm:$0xff]
        %v1963 = vld [vmem:[#allocation3 + $0x80] sm:$0xff]
        %v1964 = vld [vmem:[#allocation3 + $0x88] sm:$0xff]
        %v1965 = vld [vmem:[#allocation3 + $0x90] sm:$0xff]
        %v1966 = vld [vmem:[#allocation3 + $0x98] sm:$0xff]
        %v1967 = vld [vmem:[#allocation3 + $0xa0] sm:$0xff]
        %v1968 = vld [vmem:[#allocation3 + $0xa8] sm:$0xff]
        %v1969 = vld [vmem:[#allocation3 + $0xb0] sm:$0xff]
        %v1970 = vld [vmem:[#allocation3 + $0xb8] sm:$0xff]
        %v1971 = vld [vmem:[#allocation3 + $0xc0] sm:$0xff]
        %v1972 = vld [vmem:[#allocation3 + $0xc8] sm:$0xff]
        %v1973 = vld [vmem:[#allocation3 + $0xd0] sm:$0xff]
        %v1974 = vld [vmem:[#allocation3 + $0xd8] sm:$0xff]
        %v1975 = vld [vmem:[#allocation3 + $0xe0] sm:$0xff]
        %v1976 = vld [vmem:[#allocation3 + $0xe8] sm:$0xff]
        %v1977 = vld [vmem:[#allocation3 + $0xf0] sm:$0xff]
        %v1978 = vld [vmem:[#allocation3 + $0xf8] sm:$0xff]
        %v1979 = vld [vmem:[%s1] sm:$0xff]
        %v1980 = vld [vmem:[%s1 + $0x8] sm:$0xff]
        %v1981 = vld [vmem:[%s1 + $0x10] sm:$0xff]
        %v1982 = vld [vmem:[%s1 + $0x18] sm:$0xff]
        %v1983 = vld [vmem:[%s1 + $0x20] sm:$0xf]
        %v1984 = vld [vmem:[%s2] sm:$0x1]
        %v1986 = vlaneseq
        %v1987 = vshrl.u32 %v1986, 7
        %v1988 = vsub.s32 0, %v1987
        %v1989 = vrot.slane %v1984, %v1988
        %vm1991 = vcmask 293888
        %v1993 = vsel %vm1991, %v1947, 0
        %v1996 = vsel %vm1991, %v1948, 0
        %v1999 = vsel %vm1991, %v1949, 0
        %v2002 = vsel %vm1991, %v1950, 0
        %v2005 = vsel %vm1991, %v1951, 0
        %v2008 = vsel %vm1991, %v1952, 0
        %v2011 = vsel %vm1991, %v1953, 0
        %v2014 = vsel %vm1991, %v1954, 0
        %v2017 = vsel %vm1991, %v1955, 0
        %v2020 = vsel %vm1991, %v1956, 0
        %v2023 = vsel %vm1991, %v1957, 0
        %v2026 = vsel %vm1991, %v1958, 0
        %v2029 = vsel %vm1991, %v1959, 0
        %v2032 = vsel %vm1991, %v1960, 0
        %v2035 = vsel %vm1991, %v1961, 0
        %v2038 = vsel %vm1991, %v1962, 0
        %v2041 = vsel %vm1991, %v1963, 0
        %v2044 = vsel %vm1991, %v1964, 0
        %v2047 = vsel %vm1991, %v1965, 0
        %v2050 = vsel %vm1991, %v1966, 0
        %v2053 = vsel %vm1991, %v1967, 0
        %v2056 = vsel %vm1991, %v1968, 0
        %v2059 = vsel %vm1991, %v1969, 0
        %v2062 = vsel %vm1991, %v1970, 0
        %v2065 = vsel %vm1991, %v1971, 0
        %v2068 = vsel %vm1991, %v1972, 0
        %v2071 = vsel %vm1991, %v1973, 0
        %v2074 = vsel %vm1991, %v1974, 0
        %v2077 = vsel %vm1991, %v1975, 0
        %v2080 = vsel %vm1991, %v1976, 0
        %v2083 = vsel %vm1991, %v1977, 0
        %v2086 = vsel %vm1991, %v1978, 0
        %vm2088 = vcmask 1043456
        %v2090 = vsel %vm2088, %v1983, 0
        %2092 = vmatprep.subr.mxu0 0.0
        %2093 = vmatpush1.msra.mxu0 %v1979
        %2094 = vmatprep.subr.mxu0 0.0
        %2095 = vmatpush1.msra.mxu0 %v1980
        %2096 = vmatprep.subr.mxu0 0.0
        %2097 = vmatpush1.msra.mxu0 %v1981
        %2098 = vmatprep.subr.mxu0 0.0
        %2099 = vmatpush1.msra.mxu0 %v1982
        %2100 = vmatprep.subr.mxu0 0.0
        %2101 = vmatpush1.msra.mxu0 %v2090
        %2102 = vmatprep.subr.mxu0 0.0
        %2103 = vmatpush1.msra.mxu0 0.0
        %2104 = vmatprep.subr.mxu0 0.0
        %2105 = vmatpush1.msra.mxu0 0.0
        %2106 = vmatprep.subr.mxu0 0.0
        %2107 = vmatpush1.msra.mxu0 0.0
        %2108 = vmatprep.subr.mxu0 0.0
        %2109 = vmatpush1.msra.mxu0 0.0
        %2110 = vmatprep.subr.mxu0 0.0
        %2111 = vmatpush1.msra.mxu0 0.0
        %2112 = vmatprep.subr.mxu0 0.0
        %2113 = vmatpush1.msra.mxu0 0.0
        %2114 = vmatprep.subr.mxu0 0.0
        %2115 = vmatpush1.msra.mxu0 0.0
        %2116 = vmatprep.subr.mxu0 0.0
        %2117 = vmatpush1.msra.mxu0 0.0
        %2118 = vmatprep.subr.mxu0 0.0
        %2119 = vmatpush1.msra.mxu0 0.0
        %2120 = vmatprep.subr.mxu0 0.0
        %2121 = vmatpush1.msra.mxu0 0.0
        %2122 = vmatprep.subr.mxu0 0.0
        %2123 = vmatpush1.msra.mxu0 0.0
        %2124 = vmatprep.subr.mxu0 0.0
        %2125 = vmatpush1.msra.mxu0 0.0
        %2126 = vmatprep.subr.mxu0 0.0
        %2127 = vmatpush1.msra.mxu0 0.0
        %2128 = vmatprep.subr.mxu0 0.0
        %2129 = vmatpush1.msra.mxu0 0.0
        %2130 = vmatprep.subr.mxu0 0.0
        %2131 = vmatpush1.msra.mxu0 0.0
        %2132 = vmatprep.subr.mxu0 0.0
        %2133 = vmatpush1.msra.mxu0 0.0
        %2134 = vmatprep.subr.mxu0 0.0
        %2135 = vmatpush1.msra.mxu0 0.0
        %2136 = vmatprep.subr.mxu0 0.0
        %2137 = vmatpush1.msra.mxu0 0.0
        %2138 = vmatprep.subr.mxu0 0.0
        %2139 = vmatpush1.msra.mxu0 0.0
        %2140 = vmatprep.subr.mxu0 0.0
        %2141 = vmatpush1.msra.mxu0 0.0
        %2142 = vmatprep.subr.mxu0 0.0
        %2143 = vmatpush1.msra.mxu0 0.0
        %2144 = vmatprep.subr.mxu0 0.0
        %2145 = vmatpush1.msra.mxu0 0.0
        %2146 = vmatprep.subr.mxu0 0.0
        %2147 = vmatpush1.msra.mxu0 0.0
        %2148 = vmatprep.subr.mxu0 0.0
        %2149 = vmatpush1.msra.mxu0 0.0
        %2150 = vmatprep.subr.mxu0 0.0
        %2151 = vmatpush1.msra.mxu0 0.0
        %2152 = vmatprep.subr.mxu0 0.0
        %2153 = vmatpush1.msra.mxu0 0.0
        %2154 = vmatprep.subr.mxu0 0.0
        %2155 = vmatpush1.msra.mxu0 0.0
        %2156 = vmatprep.mubr.f32.mxu0 0.0
        %2157 = vmatmul.mubr.f32.gmra.mrb[0].mxu0 %v1993
        %v2158 = vpop.f32.mrb[0].mxu0
        %v2159 = vadd.f32 %v1989, %v2158
        %v2160 = vpop.f32.mrb[0].mxu0
        %2161 = vmatprep.mubr.f32.mxu0 0.0
        %2162 = vmatmul.mubr.f32.gmra.mrb[0].mxu0 %v1996
        %v2163 = vpop.f32.mrb[0].mxu0
        %v2164 = vadd.f32 %v1989, %v2163
        %v2165 = vpop.f32.mrb[0].mxu0
        %2166 = vmatprep.mubr.f32.mxu0 0.0
        %2167 = vmatmul.mubr.f32.gmra.mrb[0].mxu0 %v1999
        %v2168 = vpop.f32.mrb[0].mxu0
        %v2169 = vadd.f32 %v1989, %v2168
        %v2170 = vpop.f32.mrb[0].mxu0
        %2171 = vmatprep.mubr.f32.mxu0 0.0
        %2172 = vmatmul.mubr.f32.gmra.mrb[0].mxu0 %v2002
        %v2173 = vpop.f32.mrb[0].mxu0
        %v2174 = vadd.f32 %v1989, %v2173
        %v2175 = vpop.f32.mrb[0].mxu0
        %2176 = vmatprep.mubr.f32.mxu0 0.0
        %2177 = vmatmul.mubr.f32.gmra.mrb[0].mxu0 %v2005
        %v2178 = vpop.f32.mrb[0].mxu0
        %v2179 = vadd.f32 %v1989, %v2178
        %v2180 = vpop.f32.mrb[0].mxu0
        %2181 = vmatprep.mubr.f32.mxu0 0.0
        %2182 = vmatmul.mubr.f32.gmra.mrb[0].mxu0 %v2008
        %v2183 = vpop.f32.mrb[0].mxu0
        %v2184 = vadd.f32 %v1989, %v2183
        %v2185 = vpop.f32.mrb[0].mxu0
        %2186 = vmatprep.mubr.f32.mxu0 0.0
        %2187 = vmatmul.mubr.f32.gmra.mrb[0].mxu0 %v2011
        %v2188 = vpop.f32.mrb[0].mxu0
        %v2189 = vadd.f32 %v1989, %v2188
        %v2190 = vpop.f32.mrb[0].mxu0
        %2191 = vmatprep.mubr.f32.mxu0 0.0
        %2192 = vmatmul.mubr.f32.gmra.mrb[0].mxu0 %v2014
        %v2193 = vpop.f32.mrb[0].mxu0
        %v2194 = vadd.f32 %v1989, %v2193
        %v2195 = vpop.f32.mrb[0].mxu0
        %2196 = vmatprep.mubr.f32.mxu0 0.0
        %2197 = vmatmul.mubr.f32.gmra.mrb[0].mxu0 %v2017
        %v2198 = vpop.f32.mrb[0].mxu0
        %v2199 = vadd.f32 %v1989, %v2198
        %v2200 = vpop.f32.mrb[0].mxu0
        %2201 = vmatprep.mubr.f32.mxu0 0.0
        %2202 = vmatmul.mubr.f32.gmra.mrb[0].mxu0 %v2020
        %v2203 = vpop.f32.mrb[0].mxu0
        %v2204 = vadd.f32 %v1989, %v2203
        %v2205 = vpop.f32.mrb[0].mxu0
        %2206 = vmatprep.mubr.f32.mxu0 0.0
        %2207 = vmatmul.mubr.f32.gmra.mrb[0].mxu0 %v2023
        %v2208 = vpop.f32.mrb[0].mxu0
        %v2209 = vadd.f32 %v1989, %v2208
        %v2210 = vpop.f32.mrb[0].mxu0
        %2211 = vmatprep.mubr.f32.mxu0 0.0
        %2212 = vmatmul.mubr.f32.gmra.mrb[0].mxu0 %v2026
        %v2213 = vpop.f32.mrb[0].mxu0
        %v2214 = vadd.f32 %v1989, %v2213
        %v2215 = vpop.f32.mrb[0].mxu0
        %2216 = vmatprep.mubr.f32.mxu0 0.0
        %2217 = vmatmul.mubr.f32.gmra.mrb[0].mxu0 %v2029
        %v2218 = vpop.f32.mrb[0].mxu0
        %v2219 = vadd.f32 %v1989, %v2218
        %v2220 = vpop.f32.mrb[0].mxu0
        %2221 = vmatprep.mubr.f32.mxu0 0.0
        %2222 = vmatmul.mubr.f32.gmra.mrb[0].mxu0 %v2032
        %v2223 = vpop.f32.mrb[0].mxu0
        %v2224 = vadd.f32 %v1989, %v2223
        %v2225 = vpop.f32.mrb[0].mxu0
        %2226 = vmatprep.mubr.f32.mxu0 0.0
        %2227 = vmatmul.mubr.f32.gmra.mrb[0].mxu0 %v2035
        %v2228 = vpop.f32.mrb[0].mxu0
        %v2229 = vadd.f32 %v1989, %v2228
        %v2230 = vpop.f32.mrb[0].mxu0
        %2231 = vmatprep.mubr.f32.mxu0 0.0
        %2232 = vmatmul.mubr.f32.gmra.mrb[0].mxu0 %v2038
        %v2233 = vpop.f32.mrb[0].mxu0
        %v2234 = vadd.f32 %v1989, %v2233
        %v2235 = vpop.f32.mrb[0].mxu0
        %2236 = vmatprep.mubr.f32.mxu0 0.0
        %2237 = vmatmul.mubr.f32.gmra.mrb[0].mxu0 %v2041
        %v2238 = vpop.f32.mrb[0].mxu0
        %v2239 = vadd.f32 %v1989, %v2238
        %v2240 = vpop.f32.mrb[0].mxu0
        %2241 = vmatprep.mubr.f32.mxu0 0.0
        %2242 = vmatmul.mubr.f32.gmra.mrb[0].mxu0 %v2044
        %v2243 = vpop.f32.mrb[0].mxu0
        %v2244 = vadd.f32 %v1989, %v2243
        %v2245 = vpop.f32.mrb[0].mxu0
        %2246 = vmatprep.mubr.f32.mxu0 0.0
        %2247 = vmatmul.mubr.f32.gmra.mrb[0].mxu0 %v2047
        %v2248 = vpop.f32.mrb[0].mxu0
        %v2249 = vadd.f32 %v1989, %v2248
        %v2250 = vpop.f32.mrb[0].mxu0
        %2251 = vmatprep.mubr.f32.mxu0 0.0
        %2252 = vmatmul.mubr.f32.gmra.mrb[0].mxu0 %v2050
        %v2253 = vpop.f32.mrb[0].mxu0
        %v2254 = vadd.f32 %v1989, %v2253
        %v2255 = vpop.f32.mrb[0].mxu0
        %2256 = vmatprep.mubr.f32.mxu0 0.0
        %2257 = vmatmul.mubr.f32.gmra.mrb[0].mxu0 %v2053
        %v2258 = vpop.f32.mrb[0].mxu0
        %v2259 = vadd.f32 %v1989, %v2258
        %v2260 = vpop.f32.mrb[0].mxu0
        %2261 = vmatprep.mubr.f32.mxu0 0.0
        %2262 = vmatmul.mubr.f32.gmra.mrb[0].mxu0 %v2056
        %v2263 = vpop.f32.mrb[0].mxu0
        %v2264 = vadd.f32 %v1989, %v2263
        %v2265 = vpop.f32.mrb[0].mxu0
        %2266 = vmatprep.mubr.f32.mxu0 0.0
        %2267 = vmatmul.mubr.f32.gmra.mrb[0].mxu0 %v2059
        %v2268 = vpop.f32.mrb[0].mxu0
        %v2269 = vadd.f32 %v1989, %v2268
        %v2270 = vpop.f32.mrb[0].mxu0
        %2271 = vmatprep.mubr.f32.mxu0 0.0
        %2272 = vmatmul.mubr.f32.gmra.mrb[0].mxu0 %v2062
        %v2273 = vpop.f32.mrb[0].mxu0
        %v2274 = vadd.f32 %v1989, %v2273
        %v2275 = vpop.f32.mrb[0].mxu0
        %2276 = vmatprep.mubr.f32.mxu0 0.0
        %2277 = vmatmul.mubr.f32.gmra.mrb[0].mxu0 %v2065
        %v2278 = vpop.f32.mrb[0].mxu0
        %v2279 = vadd.f32 %v1989, %v2278
        %v2280 = vpop.f32.mrb[0].mxu0
        %2281 = vmatprep.mubr.f32.mxu0 0.0
        %2282 = vmatmul.mubr.f32.gmra.mrb[0].mxu0 %v2068
        %v2283 = vpop.f32.mrb[0].mxu0
        %v2284 = vadd.f32 %v1989, %v2283
        %v2285 = vpop.f32.mrb[0].mxu0
        %2286 = vmatprep.mubr.f32.mxu0 0.0
        %2287 = vmatmul.mubr.f32.gmra.mrb[0].mxu0 %v2071
        %v2288 = vpop.f32.mrb[0].mxu0
        %v2289 = vadd.f32 %v1989, %v2288
        %v2290 = vpop.f32.mrb[0].mxu0
        %2291 = vmatprep.mubr.f32.mxu0 0.0
        %2292 = vmatmul.mubr.f32.gmra.mrb[0].mxu0 %v2074
        %v2293 = vpop.f32.mrb[0].mxu0
        %v2294 = vadd.f32 %v1989, %v2293
        %v2295 = vpop.f32.mrb[0].mxu0
        %2296 = vmatprep.mubr.f32.mxu0 0.0
        %2297 = vmatmul.mubr.f32.gmra.mrb[0].mxu0 %v2077
        %v2298 = vpop.f32.mrb[0].mxu0
        %v2299 = vadd.f32 %v1989, %v2298
        %v2300 = vpop.f32.mrb[0].mxu0
        %2301 = vmatprep.mubr.f32.mxu0 0.0
        %2302 = vmatmul.mubr.f32.gmra.mrb[0].mxu0 %v2080
        %v2303 = vpop.f32.mrb[0].mxu0
        %v2304 = vadd.f32 %v1989, %v2303
        %v2305 = vpop.f32.mrb[0].mxu0
        %2306 = vmatprep.mubr.f32.mxu0 0.0
        %2307 = vmatmul.mubr.f32.gmra.mrb[0].mxu0 %v2083
        %v2308 = vpop.f32.mrb[0].mxu0
        %v2309 = vadd.f32 %v1989, %v2308
        %v2310 = vpop.f32.mrb[0].mxu0
        %2311 = vmatprep.mubr.f32.mxu0 0.0
        %2312 = vmatmul.mubr.f32.gmra.mrb[0].mxu0 %v2086
        %v2313 = vpop.f32.mrb[0].mxu0
        %v2314 = vadd.f32 %v1989, %v2313
        %v2315 = vpop.f32.mrb[0].mxu0
        %2316 = vdwg.mxu0
        %v2317 = vsel %vm256, %v2159, 0.0
        %v2318 = vsel %vm256, %v2164, 0.0
        %v2319 = vadd.f32 %v2317, %v2318
        %v2320 = vsel %vm256, %v2169, 0.0
        %v2321 = vadd.f32 %v2319, %v2320
        %v2322 = vsel %vm256, %v2174, 0.0
        %v2323 = vadd.f32 %v2321, %v2322
        %v2324 = vsel %vm256, %v2179, 0.0
        %v2325 = vadd.f32 %v2323, %v2324
        %v2326 = vsel %vm256, %v2184, 0.0
        %v2327 = vadd.f32 %v2325, %v2326
        %v2328 = vsel %vm256, %v2189, 0.0
        %v2329 = vadd.f32 %v2327, %v2328
        %v2330 = vsel %vm256, %v2194, 0.0
        %v2331 = vadd.f32 %v2329, %v2330
        %v2332 = vsel %vm256, %v2199, 0.0
        %v2333 = vadd.f32 %v2331, %v2332
        %v2334 = vsel %vm256, %v2204, 0.0
        %v2335 = vadd.f32 %v2333, %v2334
        %v2336 = vsel %vm256, %v2209, 0.0
        %v2337 = vadd.f32 %v2335, %v2336
        %v2338 = vsel %vm256, %v2214, 0.0
        %v2339 = vadd.f32 %v2337, %v2338
        %v2340 = vsel %vm256, %v2219, 0.0
        %v2341 = vadd.f32 %v2339, %v2340
        %v2342 = vsel %vm256, %v2224, 0.0
        %v2343 = vadd.f32 %v2341, %v2342
        %v2344 = vsel %vm256, %v2229, 0.0
        %v2345 = vadd.f32 %v2343, %v2344
        %v2346 = vsel %vm256, %v2234, 0.0
        %v2347 = vadd.f32 %v2345, %v2346
        %v2348 = vsel %vm256, %v2239, 0.0
        %v2349 = vadd.f32 %v2347, %v2348
        %v2350 = vsel %vm256, %v2244, 0.0
        %v2351 = vadd.f32 %v2349, %v2350
        %v2352 = vsel %vm256, %v2249, 0.0
        %v2353 = vadd.f32 %v2351, %v2352
        %v2354 = vsel %vm256, %v2254, 0.0
        %v2355 = vadd.f32 %v2353, %v2354
        %v2356 = vsel %vm256, %v2259, 0.0
        %v2357 = vadd.f32 %v2355, %v2356
        %v2358 = vsel %vm256, %v2264, 0.0
        %v2359 = vadd.f32 %v2357, %v2358
        %v2360 = vsel %vm256, %v2269, 0.0
        %v2361 = vadd.f32 %v2359, %v2360
        %v2362 = vsel %vm256, %v2274, 0.0
        %v2363 = vadd.f32 %v2361, %v2362
        %v2364 = vsel %vm256, %v2279, 0.0
        %v2365 = vadd.f32 %v2363, %v2364
        %v2366 = vsel %vm256, %v2284, 0.0
        %v2367 = vadd.f32 %v2365, %v2366
        %v2368 = vsel %vm256, %v2289, 0.0
        %v2369 = vadd.f32 %v2367, %v2368
        %v2370 = vsel %vm256, %v2294, 0.0
        %v2371 = vadd.f32 %v2369, %v2370
        %v2372 = vsel %vm256, %v2299, 0.0
        %v2373 = vadd.f32 %v2371, %v2372
        %v2374 = vsel %vm256, %v2304, 0.0
        %v2375 = vadd.f32 %v2373, %v2374
        %v2376 = vsel %vm256, %v2309, 0.0
        %v2377 = vadd.f32 %v2375, %v2376
        %v2378 = vsel %vm256, %v2314, 0.0
        %v2379 = vadd.f32 %v2377, %v2378
        %v2380 = vrot.slane %v2379, 4
        %v2381 = vadd.f32 %v2379, %v2380
        %v2382 = vrot.slane %v2381, 2
        %v2383 = vadd.f32 %v2381, %v2382
        %v2384 = vrot.slane %v2383, 1
        %v2385 = vadd.f32 %v2383, %v2384
        %v2386 = vmul.f32 %v2385, 0.00390625
        %v2387 = vsub.f32 %v2159, %v2386
        %v2388 = vsub.f32 %v2164, %v2386
        %v2389 = vsub.f32 %v2169, %v2386
        %v2390 = vsub.f32 %v2174, %v2386
        %v2391 = vsub.f32 %v2179, %v2386
        %v2392 = vsub.f32 %v2184, %v2386
        %v2393 = vsub.f32 %v2189, %v2386
        %v2394 = vsub.f32 %v2194, %v2386
        %v2395 = vsub.f32 %v2199, %v2386
        %v2396 = vsub.f32 %v2204, %v2386
        %v2397 = vsub.f32 %v2209, %v2386
        %v2398 = vsub.f32 %v2214, %v2386
        %v2399 = vsub.f32 %v2219, %v2386
        %v2400 = vsub.f32 %v2224, %v2386
        %v2401 = vsub.f32 %v2229, %v2386
        %v2402 = vsub.f32 %v2234, %v2386
        %v2403 = vsub.f32 %v2239, %v2386
        %v2404 = vsub.f32 %v2244, %v2386
        %v2405 = vsub.f32 %v2249, %v2386
        %v2406 = vsub.f32 %v2254, %v2386
        %v2407 = vsub.f32 %v2259, %v2386
        %v2408 = vsub.f32 %v2264, %v2386
        %v2409 = vsub.f32 %v2269, %v2386
        %v2410 = vsub.f32 %v2274, %v2386
        %v2411 = vsub.f32 %v2279, %v2386
        %v2412 = vsub.f32 %v2284, %v2386
        %v2413 = vsub.f32 %v2289, %v2386
        %v2414 = vsub.f32 %v2294, %v2386
        %v2415 = vsub.f32 %v2299, %v2386
        %v2416 = vsub.f32 %v2304, %v2386
        %v2417 = vsub.f32 %v2309, %v2386
        %v2418 = vsub.f32 %v2314, %v2386
        %v2419 = vmul.f32 %v2387, %v2387
        %v2420 = vmul.f32 %v2388, %v2388
        %v2421 = vmul.f32 %v2389, %v2389
        %v2422 = vmul.f32 %v2390, %v2390
        %v2423 = vmul.f32 %v2391, %v2391
        %v2424 = vmul.f32 %v2392, %v2392
        %v2425 = vmul.f32 %v2393, %v2393
        %v2426 = vmul.f32 %v2394, %v2394
        %v2427 = vmul.f32 %v2395, %v2395
        %v2428 = vmul.f32 %v2396, %v2396
        %v2429 = vmul.f32 %v2397, %v2397
        %v2430 = vmul.f32 %v2398, %v2398
        %v2431 = vmul.f32 %v2399, %v2399
        %v2432 = vmul.f32 %v2400, %v2400
        %v2433 = vmul.f32 %v2401, %v2401
        %v2434 = vmul.f32 %v2402, %v2402
        %v2435 = vmul.f32 %v2403, %v2403
        %v2436 = vmul.f32 %v2404, %v2404
        %v2437 = vmul.f32 %v2405, %v2405
        %v2438 = vmul.f32 %v2406, %v2406
        %v2439 = vmul.f32 %v2407, %v2407
        %v2440 = vmul.f32 %v2408, %v2408
        %v2441 = vmul.f32 %v2409, %v2409
        %v2442 = vmul.f32 %v2410, %v2410
        %v2443 = vmul.f32 %v2411, %v2411
        %v2444 = vmul.f32 %v2412, %v2412
        %v2445 = vmul.f32 %v2413, %v2413
        %v2446 = vmul.f32 %v2414, %v2414
        %v2447 = vmul.f32 %v2415, %v2415
        %v2448 = vmul.f32 %v2416, %v2416
        %v2449 = vmul.f32 %v2417, %v2417
        %v2450 = vmul.f32 %v2418, %v2418
        %v2451 = vsel %vm256, %v2419, 0.0
        %v2452 = vsel %vm256, %v2420, 0.0
        %v2453 = vadd.f32 %v2451, %v2452
        %v2454 = vsel %vm256, %v2421, 0.0
        %v2455 = vadd.f32 %v2453, %v2454
        %v2456 = vsel %vm256, %v2422, 0.0
        %v2457 = vadd.f32 %v2455, %v2456
        %v2458 = vsel %vm256, %v2423, 0.0
        %v2459 = vadd.f32 %v2457, %v2458
        %v2460 = vsel %vm256, %v2424, 0.0
        %v2461 = vadd.f32 %v2459, %v2460
        %v2462 = vsel %vm256, %v2425, 0.0
        %v2463 = vadd.f32 %v2461, %v2462
        %v2464 = vsel %vm256, %v2426, 0.0
        %v2465 = vadd.f32 %v2463, %v2464
        %v2466 = vsel %vm256, %v2427, 0.0
        %v2467 = vadd.f32 %v2465, %v2466
        %v2468 = vsel %vm256, %v2428, 0.0
        %v2469 = vadd.f32 %v2467, %v2468
        %v2470 = vsel %vm256, %v2429, 0.0
        %v2471 = vadd.f32 %v2469, %v2470
        %v2472 = vsel %vm256, %v2430, 0.0
        %v2473 = vadd.f32 %v2471, %v2472
        %v2474 = vsel %vm256, %v2431, 0.0
        %v2475 = vadd.f32 %v2473, %v2474
        %v2476 = vsel %vm256, %v2432, 0.0
        %v2477 = vadd.f32 %v2475, %v2476
        %v2478 = vsel %vm256, %v2433, 0.0
        %v2479 = vadd.f32 %v2477, %v2478
        %v2480 = vsel %vm256, %v2434, 0.0
        %v2481 = vadd.f32 %v2479, %v2480
        %v2482 = vsel %vm256, %v2435, 0.0
        %v2483 = vadd.f32 %v2481, %v2482
        %v2484 = vsel %vm256, %v2436, 0.0
        %v2485 = vadd.f32 %v2483, %v2484
        %v2486 = vsel %vm256, %v2437, 0.0
        %v2487 = vadd.f32 %v2485, %v2486
        %v2488 = vsel %vm256, %v2438, 0.0
        %v2489 = vadd.f32 %v2487, %v2488
        %v2490 = vsel %vm256, %v2439, 0.0
        %v2491 = vadd.f32 %v2489, %v2490
        %v2492 = vsel %vm256, %v2440, 0.0
        %v2493 = vadd.f32 %v2491, %v2492
        %v2494 = vsel %vm256, %v2441, 0.0
        %v2495 = vadd.f32 %v2493, %v2494
        %v2496 = vsel %vm256, %v2442, 0.0
        %v2497 = vadd.f32 %v2495, %v2496
        %v2498 = vsel %vm256, %v2443, 0.0
        %v2499 = vadd.f32 %v2497, %v2498
        %v2500 = vsel %vm256, %v2444, 0.0
        %v2501 = vadd.f32 %v2499, %v2500
        %v2502 = vsel %vm256, %v2445, 0.0
        %v2503 = vadd.f32 %v2501, %v2502
        %v2504 = vsel %vm256, %v2446, 0.0
        %v2505 = vadd.f32 %v2503, %v2504
        %v2506 = vsel %vm256, %v2447, 0.0
        %v2507 = vadd.f32 %v2505, %v2506
        %v2508 = vsel %vm256, %v2448, 0.0
        %v2509 = vadd.f32 %v2507, %v2508
        %v2510 = vsel %vm256, %v2449, 0.0
        %v2511 = vadd.f32 %v2509, %v2510
        %v2512 = vsel %vm256, %v2450, 0.0
        %v2513 = vadd.f32 %v2511, %v2512
        %v2514 = vrot.slane %v2513, 4
        %v2515 = vadd.f32 %v2513, %v2514
        %v2516 = vrot.slane %v2515, 2
        %v2517 = vadd.f32 %v2515, %v2516
        %v2518 = vrot.slane %v2517, 1
        %v2519 = vadd.f32 %v2517, %v2518
        %v2520 = vmul.f32 %v2519, 0.00390625
        %v2521 = vadd.f32 %v2520, 1e-05
        %v2522 = vrsqrt.pop %v2521
        %v2523 = vmul.f32 %v2387, %v2522
        %v2524 = vmul.f32 %v2388, %v2522
        %v2525 = vmul.f32 %v2389, %v2522
        %v2526 = vmul.f32 %v2390, %v2522
        %v2527 = vmul.f32 %v2391, %v2522
        %v2528 = vmul.f32 %v2392, %v2522
        %v2529 = vmul.f32 %v2393, %v2522
        %v2530 = vmul.f32 %v2394, %v2522
        %v2531 = vmul.f32 %v2395, %v2522
        %v2532 = vmul.f32 %v2396, %v2522
        %v2533 = vmul.f32 %v2397, %v2522
        %v2534 = vmul.f32 %v2398, %v2522
        %v2535 = vmul.f32 %v2399, %v2522
        %v2536 = vmul.f32 %v2400, %v2522
        %v2537 = vmul.f32 %v2401, %v2522
        %v2538 = vmul.f32 %v2402, %v2522
        %v2539 = vmul.f32 %v2403, %v2522
        %v2540 = vmul.f32 %v2404, %v2522
        %v2541 = vmul.f32 %v2405, %v2522
        %v2542 = vmul.f32 %v2406, %v2522
        %v2543 = vmul.f32 %v2407, %v2522
        %v2544 = vmul.f32 %v2408, %v2522
        %v2545 = vmul.f32 %v2409, %v2522
        %v2546 = vmul.f32 %v2410, %v2522
        %v2547 = vmul.f32 %v2411, %v2522
        %v2548 = vmul.f32 %v2412, %v2522
        %v2549 = vmul.f32 %v2413, %v2522
        %v2550 = vmul.f32 %v2414, %v2522
        %v2551 = vmul.f32 %v2415, %v2522
        %v2552 = vmul.f32 %v2416, %v2522
        %v2553 = vmul.f32 %v2417, %v2522
        %v2554 = vmul.f32 %v2418, %v2522
        %v2555 = vmax.f32 %v2523, 0.0
        %v2556 = vmax.f32 %v2524, 0.0
        %v2557 = vmax.f32 %v2525, 0.0
        %v2558 = vmax.f32 %v2526, 0.0
        %v2559 = vmax.f32 %v2527, 0.0
        %v2560 = vmax.f32 %v2528, 0.0
        %v2561 = vmax.f32 %v2529, 0.0
        %v2562 = vmax.f32 %v2530, 0.0
        %v2563 = vmax.f32 %v2531, 0.0
        %v2564 = vmax.f32 %v2532, 0.0
        %v2565 = vmax.f32 %v2533, 0.0
        %v2566 = vmax.f32 %v2534, 0.0
        %v2567 = vmax.f32 %v2535, 0.0
        %v2568 = vmax.f32 %v2536, 0.0
        %v2569 = vmax.f32 %v2537, 0.0
        %v2570 = vmax.f32 %v2538, 0.0
        %v2571 = vmax.f32 %v2539, 0.0
        %v2572 = vmax.f32 %v2540, 0.0
        %v2573 = vmax.f32 %v2541, 0.0
        %v2574 = vmax.f32 %v2542, 0.0
        %v2575 = vmax.f32 %v2543, 0.0
        %v2576 = vmax.f32 %v2544, 0.0
        %v2577 = vmax.f32 %v2545, 0.0
        %v2578 = vmax.f32 %v2546, 0.0
        %v2579 = vmax.f32 %v2547, 0.0
        %v2580 = vmax.f32 %v2548, 0.0
        %v2581 = vmax.f32 %v2549, 0.0
        %v2582 = vmax.f32 %v2550, 0.0
        %v2583 = vmax.f32 %v2551, 0.0
        %v2584 = vmax.f32 %v2552, 0.0
        %v2585 = vmax.f32 %v2553, 0.0
        %v2586 = vmax.f32 %v2554, 0.0
        %2587 = vst.msk [vmem:[%s255 + $0x1] sm:$0xff] %vm256, %v2555
        %2588 = vst.msk [vmem:[%s255 + $0x9] sm:$0xff] %vm256, %v2556
        %2589 = vst.msk [vmem:[%s255 + $0x19] sm:$0xff] %vm256, %v2557
        %2590 = vst.msk [vmem:[%s255 + $0x21] sm:$0xff] %vm256, %v2558
        %2591 = vst.msk [vmem:[%s255 + $0x31] sm:$0xff] %vm256, %v2559
        %2592 = vst.msk [vmem:[%s255 + $0x39] sm:$0xff] %vm256, %v2560
        %2593 = vst.msk [vmem:[%s255 + $0x49] sm:$0xff] %vm256, %v2561
        %2594 = vst.msk [vmem:[%s255 + $0x51] sm:$0xff] %vm256, %v2562
        %2595 = vst.msk [vmem:[%s255 + $0x61] sm:$0xff] %vm256, %v2563
        %2596 = vst.msk [vmem:[%s255 + $0x69] sm:$0xff] %vm256, %v2564
        %2597 = vst.msk [vmem:[%s255 + $0x79] sm:$0xff] %vm256, %v2565
        %2598 = vst.msk [vmem:[%s255 + $0x81] sm:$0xff] %vm256, %v2566
        %2599 = vst.msk [vmem:[%s255 + $0x91] sm:$0xff] %vm256, %v2567
        %2600 = vst.msk [vmem:[%s255 + $0x99] sm:$0xff] %vm256, %v2568
        %2601 = vst.msk [vmem:[%s255 + $0xa9] sm:$0xff] %vm256, %v2569
        %2602 = vst.msk [vmem:[%s255 + $0xb1] sm:$0xff] %vm256, %v2570
        %2603 = vst.msk [vmem:[%s255 + $0xc1] sm:$0xff] %vm256, %v2571
        %2604 = vst.msk [vmem:[%s255 + $0xc9] sm:$0xff] %vm256, %v2572
        %2605 = vst.msk [vmem:[%s255 + $0xd9] sm:$0xff] %vm256, %v2573
        %2606 = vst.msk [vmem:[%s255 + $0xe1] sm:$0xff] %vm256, %v2574
        %2607 = vst.msk [vmem:[%s255 + $0xf1] sm:$0xff] %vm256, %v2575
        %2608 = vst.msk [vmem:[%s255 + $0xf9] sm:$0xff] %vm256, %v2576
        %2609 = vst.msk [vmem:[%s255 + $0x109] sm:$0xff] %vm256, %v2577
        %2610 = vst.msk [vmem:[%s255 + $0x111] sm:$0xff] %vm256, %v2578
        %2611 = vst.msk [vmem:[%s255 + $0x121] sm:$0xff] %vm256, %v2579
        %2612 = vst.msk [vmem:[%s255 + $0x129] sm:$0xff] %vm256, %v2580
        %2613 = vst.msk [vmem:[%s255 + $0x139] sm:$0xff] %vm256, %v2581
        %2614 = vst.msk [vmem:[%s255 + $0x141] sm:$0xff] %vm256, %v2582
        %2615 = vst.msk [vmem:[%s255 + $0x151] sm:$0xff] %vm256, %v2583
        %2616 = vst.msk [vmem:[%s255 + $0x159] sm:$0xff] %vm256, %v2584
        %2617 = vst.msk [vmem:[%s255 + $0x169] sm:$0xff] %vm256, %v2585
        %2618 = vst.msk [vmem:[%s255 + $0x171] sm:$0xff] %vm256, %v2586
        %2619 = vst.msk [vmem:[%s255 - $0x1] sm:$0x2] %vm289, %v2555
        %2620 = vst.msk [vmem:[%s255 + $0x17] sm:$0x2] %vm289, %v2557
        %2621 = vst.msk [vmem:[%s255 + $0x2f] sm:$0x2] %vm289, %v2559
        %2622 = vst.msk [vmem:[%s255 + $0x47] sm:$0x2] %vm289, %v2561
        %2623 = vst.msk [vmem:[%s255 + $0x5f] sm:$0x2] %vm289, %v2563
        %2624 = vst.msk [vmem:[%s255 + $0x77] sm:$0x2] %vm289, %v2565
        %2625 = vst.msk [vmem:[%s255 + $0x8f] sm:$0x2] %vm289, %v2567
        %2626 = vst.msk [vmem:[%s255 + $0xa7] sm:$0x2] %vm289, %v2569
        %2627 = vst.msk [vmem:[%s255 + $0xbf] sm:$0x2] %vm289, %v2571
        %2628 = vst.msk [vmem:[%s255 + $0xd7] sm:$0x2] %vm289, %v2573
        %2629 = vst.msk [vmem:[%s255 + $0xef] sm:$0x2] %vm289, %v2575
        %2630 = vst.msk [vmem:[%s255 + $0x107] sm:$0x2] %vm289, %v2577
        %2631 = vst.msk [vmem:[%s255 + $0x11f] sm:$0x2] %vm289, %v2579
        %2632 = vst.msk [vmem:[%s255 + $0x137] sm:$0x2] %vm289, %v2581
        %2633 = vst.msk [vmem:[%s255 + $0x14f] sm:$0x2] %vm289, %v2583
        %2634 = vst.msk [vmem:[%s255 + $0x167] sm:$0x2] %vm289, %v2585
        %2635 = vst.msk [vmem:[%s255 + $0xb] sm:$0x40] %vm306, %v2556
        %2636 = vst.msk [vmem:[%s255 + $0x23] sm:$0x40] %vm306, %v2558
        %2637 = vst.msk [vmem:[%s255 + $0x3b] sm:$0x40] %vm306, %v2560
        %2638 = vst.msk [vmem:[%s255 + $0x53] sm:$0x40] %vm306, %v2562
        %2639 = vst.msk [vmem:[%s255 + $0x6b] sm:$0x40] %vm306, %v2564
        %2640 = vst.msk [vmem:[%s255 + $0x83] sm:$0x40] %vm306, %v2566
        %2641 = vst.msk [vmem:[%s255 + $0x9b] sm:$0x40] %vm306, %v2568
        %2642 = vst.msk [vmem:[%s255 + $0xb3] sm:$0x40] %vm306, %v2570
        %2643 = vst.msk [vmem:[%s255 + $0xcb] sm:$0x40] %vm306, %v2572
        %2644 = vst.msk [vmem:[%s255 + $0xe3] sm:$0x40] %vm306, %v2574
        %2645 = vst.msk [vmem:[%s255 + $0xfb] sm:$0x40] %vm306, %v2576
        %2646 = vst.msk [vmem:[%s255 + $0x113] sm:$0x40] %vm306, %v2578
        %2647 = vst.msk [vmem:[%s255 + $0x12b] sm:$0x40] %vm306, %v2580
        %2648 = vst.msk [vmem:[%s255 + $0x143] sm:$0x40] %vm306, %v2582
        %2649 = vst.msk [vmem:[%s255 + $0x15b] sm:$0x40] %vm306, %v2584
        %2650 = vst.msk [vmem:[%s255 + $0x173] sm:$0x40] %vm306, %v2586
        %v2651 = vld [vmem:[%s323] sm:$0xff]
        %v2652 = vld [vmem:[%s323 + $0x8] sm:$0xff]
        %v2653 = vld [vmem:[%s323 + $0x10] sm:$0x3]
        %2654 = vst.msk [vmem:[#allocation2] sm:$0xff] %vm256, %v2651
        %2655 = vst.msk [vmem:[#allocation2 + $0x8] sm:$0xff] %vm256, %v2652
        %2656 = vst.msk [vmem:[#allocation2 + $0x10] sm:$0x3] %vm329, %v2653
        %v2657 = vld [vmem:[%s331] sm:$0xff]
        %v2658 = vld [vmem:[%s331 + $0x8] sm:$0xff]
        %v2659 = vld [vmem:[%s331 + $0x10] sm:$0x3]
        %2660 = vst.msk [vmem:[%s335] sm:$0xff] %vm256, %v2657
        %2661 = vst.msk [vmem:[%s335 + $0x8] sm:$0xff] %vm256, %v2658
        %2662 = vst.msk [vmem:[%s335 + $0x10] sm:$0x3] %vm329, %v2659
        %v2663 = vld [vmem:[#allocation2] sm:$0xff]
        %v2664 = vld [vmem:[#allocation2 + $0x8] sm:$0xff]
        %v2665 = vld [vmem:[#allocation2 + $0x18] sm:$0xff]
        %v2666 = vld [vmem:[#allocation2 + $0x20] sm:$0xff]
        %v2667 = vld [vmem:[#allocation2 + $0x30] sm:$0xff]
        %v2668 = vld [vmem:[#allocation2 + $0x38] sm:$0xff]
        %v2669 = vld [vmem:[#allocation2 + $0x48] sm:$0xff]
        %v2670 = vld [vmem:[#allocation2 + $0x50] sm:$0xff]
        %v2671 = vld [vmem:[#allocation2 + $0x60] sm:$0xff]
        %v2672 = vld [vmem:[#allocation2 + $0x68] sm:$0xff]
        %v2673 = vld [vmem:[#allocation2 + $0x78] sm:$0xff]
        %v2674 = vld [vmem:[#allocation2 + $0x80] sm:$0xff]
        %v2675 = vld [vmem:[#allocation2 + $0x90] sm:$0xff]
        %v2676 = vld [vmem:[#allocation2 + $0x98] sm:$0xff]
        %v2677 = vld [vmem:[#allocation2 + $0xa8] sm:$0xff]
        %v2678 = vld [vmem:[#allocation2 + $0xb0] sm:$0xff]
        %v2679 = vld [vmem:[#allocation2 + $0xc0] sm:$0xff]
        %v2680 = vld [vmem:[#allocation2 + $0xc8] sm:$0xff]
        %v2681 = vld [vmem:[#allocation2 + $0xd8] sm:$0xff]
        %v2682 = vld [vmem:[#allocation2 + $0xe0] sm:$0xff]
        %v2683 = vld [vmem:[#allocation2 + $0xf0] sm:$0xff]
        %v2684 = vld [vmem:[#allocation2 + $0xf8] sm:$0xff]
        %v2685 = vld [vmem:[#allocation2 + $0x108] sm:$0xff]
        %v2686 = vld [vmem:[#allocation2 + $0x110] sm:$0xff]
        %v2687 = vld [vmem:[#allocation2 + $0x120] sm:$0xff]
        %v2688 = vld [vmem:[#allocation2 + $0x128] sm:$0xff]
        %v2689 = vld [vmem:[#allocation2 + $0x138] sm:$0xff]
        %v2690 = vld [vmem:[#allocation2 + $0x140] sm:$0xff]
        %v2691 = vld [vmem:[#allocation2 + $0x150] sm:$0xff]
        %v2692 = vld [vmem:[#allocation2 + $0x158] sm:$0xff]
        %v2693 = vld [vmem:[#allocation2 + $0x168] sm:$0xff]
        %v2694 = vld [vmem:[#allocation2 + $0x170] sm:$0xff]
        %2695 = vst.msk [vmem:[#allocation3] sm:$0xff] %vm256, %v2663
        %2696 = vst.msk [vmem:[#allocation3 + $0x8] sm:$0xff] %vm256, %v2664
        %2697 = vst.msk [vmem:[#allocation3 + $0x10] sm:$0xff] %vm256, %v2665
        %2698 = vst.msk [vmem:[#allocation3 + $0x18] sm:$0xff] %vm256, %v2666
        %2699 = vst.msk [vmem:[#allocation3 + $0x20] sm:$0xff] %vm256, %v2667
        %2700 = vst.msk [vmem:[#allocation3 + $0x28] sm:$0xff] %vm256, %v2668
        %2701 = vst.msk [vmem:[#allocation3 + $0x30] sm:$0xff] %vm256, %v2669
        %2702 = vst.msk [vmem:[#allocation3 + $0x38] sm:$0xff] %vm256, %v2670
        %2703 = vst.msk [vmem:[#allocation3 + $0x40] sm:$0xff] %vm256, %v2671
        %2704 = vst.msk [vmem:[#allocation3 + $0x48] sm:$0xff] %vm256, %v2672
        %2705 = vst.msk [vmem:[#allocation3 + $0x50] sm:$0xff] %vm256, %v2673
        %2706 = vst.msk [vmem:[#allocation3 + $0x58] sm:$0xff] %vm256, %v2674
        %2707 = vst.msk [vmem:[#allocation3 + $0x60] sm:$0xff] %vm256, %v2675
        %2708 = vst.msk [vmem:[#allocation3 + $0x68] sm:$0xff] %vm256, %v2676
        %2709 = vst.msk [vmem:[#allocation3 + $0x70] sm:$0xff] %vm256, %v2677
        %2710 = vst.msk [vmem:[#allocation3 + $0x78] sm:$0xff] %vm256, %v2678
        %2711 = vst.msk [vmem:[#allocation3 + $0x80] sm:$0xff] %vm256, %v2679
        %2712 = vst.msk [vmem:[#allocation3 + $0x88] sm:$0xff] %vm256, %v2680
        %2713 = vst.msk [vmem:[#allocation3 + $0x90] sm:$0xff] %vm256, %v2681
        %2714 = vst.msk [vmem:[#allocation3 + $0x98] sm:$0xff] %vm256, %v2682
        %2715 = vst.msk [vmem:[#allocation3 + $0xa0] sm:$0xff] %vm256, %v2683
        %2716 = vst.msk [vmem:[#allocation3 + $0xa8] sm:$0xff] %vm256, %v2684
        %2717 = vst.msk [vmem:[#allocation3 + $0xb0] sm:$0xff] %vm256, %v2685
        %2718 = vst.msk [vmem:[#allocation3 + $0xb8] sm:$0xff] %vm256, %v2686
        %2719 = vst.msk [vmem:[#allocation3 + $0xc0] sm:$0xff] %vm256, %v2687
        %2720 = vst.msk [vmem:[#allocation3 + $0xc8] sm:$0xff] %vm256, %v2688
        %2721 = vst.msk [vmem:[#allocation3 + $0xd0] sm:$0xff] %vm256, %v2689
        %2722 = vst.msk [vmem:[#allocation3 + $0xd8] sm:$0xff] %vm256, %v2690
        %2723 = vst.msk [vmem:[#allocation3 + $0xe0] sm:$0xff] %vm256, %v2691
        %2724 = vst.msk [vmem:[#allocation3 + $0xe8] sm:$0xff] %vm256, %v2692
        %2725 = vst.msk [vmem:[#allocation3 + $0xf0] sm:$0xff] %vm256, %v2693
        %2726 = vst.msk [vmem:[#allocation3 + $0xf8] sm:$0xff] %vm256, %v2694
        %v2727 = vld [vmem:[#allocation2 + $0x1] sm:$0xff]
        %v2728 = vld [vmem:[#allocation2 + $0x9] sm:$0xff]
        %v2729 = vld [vmem:[#allocation2 + $0x19] sm:$0xff]
        %v2730 = vld [vmem:[#allocation2 + $0x21] sm:$0xff]
        %v2731 = vld [vmem:[#allocation2 + $0x31] sm:$0xff]
        %v2732 = vld [vmem:[#allocation2 + $0x39] sm:$0xff]
        %v2733 = vld [vmem:[#allocation2 + $0x49] sm:$0xff]
        %v2734 = vld [vmem:[#allocation2 + $0x51] sm:$0xff]
        %v2735 = vld [vmem:[#allocation2 + $0x61] sm:$0xff]
        %v2736 = vld [vmem:[#allocation2 + $0x69] sm:$0xff]
        %v2737 = vld [vmem:[#allocation2 + $0x79] sm:$0xff]
        %v2738 = vld [vmem:[#allocation2 + $0x81] sm:$0xff]
        %v2739 = vld [vmem:[#allocation2 + $0x91] sm:$0xff]
        %v2740 = vld [vmem:[#allocation2 + $0x99] sm:$0xff]
        %v2741 = vld [vmem:[#allocation2 + $0xa9] sm:$0xff]
        %v2742 = vld [vmem:[#allocation2 + $0xb1] sm:$0xff]
        %v2743 = vld [vmem:[#allocation2 + $0xc1] sm:$0xff]
        %v2744 = vld [vmem:[#allocation2 + $0xc9] sm:$0xff]
        %v2745 = vld [vmem:[#allocation2 + $0xd9] sm:$0xff]
        %v2746 = vld [vmem:[#allocation2 + $0xe1] sm:$0xff]
        %v2747 = vld [vmem:[#allocation2 + $0xf1] sm:$0xff]
        %v2748 = vld [vmem:[#allocation2 + $0xf9] sm:$0xff]
        %v2749 = vld [vmem:[#allocation2 + $0x109] sm:$0xff]
        %v2750 = vld [vmem:[#allocation2 + $0x111] sm:$0xff]
        %v2751 = vld [vmem:[#allocation2 + $0x121] sm:$0xff]
        %v2752 = vld [vmem:[#allocation2 + $0x129] sm:$0xff]
        %v2753 = vld [vmem:[#allocation2 + $0x139] sm:$0xff]
        %v2754 = vld [vmem:[#allocation2 + $0x141] sm:$0xff]
        %v2755 = vld [vmem:[#allocation2 + $0x151] sm:$0xff]
        %v2756 = vld [vmem:[#allocation2 + $0x159] sm:$0xff]
        %v2757 = vld [vmem:[#allocation2 + $0x169] sm:$0xff]
        %v2758 = vld [vmem:[#allocation2 + $0x171] sm:$0xff]
        %2791 = vrot.lane.b32.xlu0 %v2727, 4
        %v2792 = vpop.permute.xlu0 %2791
        %2793 = vrot.lane.b32.xlu0 %v2728, 4
        %v2794 = vpop.permute.xlu0 %2793
        %2795 = vrot.lane.b32.xlu0 %v2729, 4
        %v2796 = vpop.permute.xlu0 %2795
        %2797 = vrot.lane.b32.xlu0 %v2730, 4
        %v2798 = vpop.permute.xlu0 %2797
        %2799 = vrot.lane.b32.xlu0 %v2731, 4
        %v2800 = vpop.permute.xlu0 %2799
        %2801 = vrot.lane.b32.xlu0 %v2732, 4
        %v2802 = vpop.permute.xlu0 %2801
        %2803 = vrot.lane.b32.xlu0 %v2733, 4
        %v2804 = vpop.permute.xlu0 %2803
        %2805 = vrot.lane.b32.xlu0 %v2734, 4
        %v2806 = vpop.permute.xlu0 %2805
        %2807 = vrot.lane.b32.xlu0 %v2735, 4
        %v2808 = vpop.permute.xlu0 %2807
        %2809 = vrot.lane.b32.xlu0 %v2736, 4
        %v2810 = vpop.permute.xlu0 %2809
        %2811 = vrot.lane.b32.xlu0 %v2737, 4
        %v2812 = vpop.permute.xlu0 %2811
        %2813 = vrot.lane.b32.xlu0 %v2738, 4
        %v2814 = vpop.permute.xlu0 %2813
        %2815 = vrot.lane.b32.xlu0 %v2739, 4
        %v2816 = vpop.permute.xlu0 %2815
        %2817 = vrot.lane.b32.xlu0 %v2740, 4
        %v2818 = vpop.permute.xlu0 %2817
        %2819 = vrot.lane.b32.xlu0 %v2741, 4
        %v2820 = vpop.permute.xlu0 %2819
        %2821 = vrot.lane.b32.xlu0 %v2742, 4
        %v2822 = vpop.permute.xlu0 %2821
        %2823 = vrot.lane.b32.xlu0 %v2743, 4
        %v2824 = vpop.permute.xlu0 %2823
        %2825 = vrot.lane.b32.xlu0 %v2744, 4
        %v2826 = vpop.permute.xlu0 %2825
        %2827 = vrot.lane.b32.xlu0 %v2745, 4
        %v2828 = vpop.permute.xlu0 %2827
        %2829 = vrot.lane.b32.xlu0 %v2746, 4
        %v2830 = vpop.permute.xlu0 %2829
        %2831 = vrot.lane.b32.xlu0 %v2747, 4
        %v2832 = vpop.permute.xlu0 %2831
        %2833 = vrot.lane.b32.xlu0 %v2748, 4
        %v2834 = vpop.permute.xlu0 %2833
        %2835 = vrot.lane.b32.xlu0 %v2749, 4
        %v2836 = vpop.permute.xlu0 %2835
        %2837 = vrot.lane.b32.xlu0 %v2750, 4
        %v2838 = vpop.permute.xlu0 %2837
        %2839 = vrot.lane.b32.xlu0 %v2751, 4
        %v2840 = vpop.permute.xlu0 %2839
        %2841 = vrot.lane.b32.xlu0 %v2752, 4
        %v2842 = vpop.permute.xlu0 %2841
        %2843 = vrot.lane.b32.xlu0 %v2753, 4
        %v2844 = vpop.permute.xlu0 %2843
        %2845 = vrot.lane.b32.xlu0 %v2754, 4
        %v2846 = vpop.permute.xlu0 %2845
        %2847 = vrot.lane.b32.xlu0 %v2755, 4
        %v2848 = vpop.permute.xlu0 %2847
        %2849 = vrot.lane.b32.xlu0 %v2756, 4
        %v2850 = vpop.permute.xlu0 %2849
        %2851 = vrot.lane.b32.xlu0 %v2757, 4
        %v2852 = vpop.permute.xlu0 %2851
        %2853 = vrot.lane.b32.xlu0 %v2758, 4
        %v2854 = vpop.permute.xlu0 %2853
        %2887 = vst.msk [vmem:[#allocation3] sm:$0xff] %vm563, %v2792
        %2888 = vst.msk [vmem:[#allocation3 + $0x8] sm:$0xff] %vm563, %v2794
        %2889 = vst.msk [vmem:[#allocation3 + $0x10] sm:$0xff] %vm563, %v2796
        %2890 = vst.msk [vmem:[#allocation3 + $0x18] sm:$0xff] %vm563, %v2798
        %2891 = vst.msk [vmem:[#allocation3 + $0x20] sm:$0xff] %vm563, %v2800
        %2892 = vst.msk [vmem:[#allocation3 + $0x28] sm:$0xff] %vm563, %v2802
        %2893 = vst.msk [vmem:[#allocation3 + $0x30] sm:$0xff] %vm563, %v2804
        %2894 = vst.msk [vmem:[#allocation3 + $0x38] sm:$0xff] %vm563, %v2806
        %2895 = vst.msk [vmem:[#allocation3 + $0x40] sm:$0xff] %vm563, %v2808
        %2896 = vst.msk [vmem:[#allocation3 + $0x48] sm:$0xff] %vm563, %v2810
        %2897 = vst.msk [vmem:[#allocation3 + $0x50] sm:$0xff] %vm563, %v2812
        %2898 = vst.msk [vmem:[#allocation3 + $0x58] sm:$0xff] %vm563, %v2814
        %2899 = vst.msk [vmem:[#allocation3 + $0x60] sm:$0xff] %vm563, %v2816
        %2900 = vst.msk [vmem:[#allocation3 + $0x68] sm:$0xff] %vm563, %v2818
        %2901 = vst.msk [vmem:[#allocation3 + $0x70] sm:$0xff] %vm563, %v2820
        %2902 = vst.msk [vmem:[#allocation3 + $0x78] sm:$0xff] %vm563, %v2822
        %2903 = vst.msk [vmem:[#allocation3 + $0x80] sm:$0xff] %vm563, %v2824
        %2904 = vst.msk [vmem:[#allocation3 + $0x88] sm:$0xff] %vm563, %v2826
        %2905 = vst.msk [vmem:[#allocation3 + $0x90] sm:$0xff] %vm563, %v2828
        %2906 = vst.msk [vmem:[#allocation3 + $0x98] sm:$0xff] %vm563, %v2830
        %2907 = vst.msk [vmem:[#allocation3 + $0xa0] sm:$0xff] %vm563, %v2832
        %2908 = vst.msk [vmem:[#allocation3 + $0xa8] sm:$0xff] %vm563, %v2834
        %2909 = vst.msk [vmem:[#allocation3 + $0xb0] sm:$0xff] %vm563, %v2836
        %2910 = vst.msk [vmem:[#allocation3 + $0xb8] sm:$0xff] %vm563, %v2838
        %2911 = vst.msk [vmem:[#allocation3 + $0xc0] sm:$0xff] %vm563, %v2840
        %2912 = vst.msk [vmem:[#allocation3 + $0xc8] sm:$0xff] %vm563, %v2842
        %2913 = vst.msk [vmem:[#allocation3 + $0xd0] sm:$0xff] %vm563, %v2844
        %2914 = vst.msk [vmem:[#allocation3 + $0xd8] sm:$0xff] %vm563, %v2846
        %2915 = vst.msk [vmem:[#allocation3 + $0xe0] sm:$0xff] %vm563, %v2848
        %2916 = vst.msk [vmem:[#allocation3 + $0xe8] sm:$0xff] %vm563, %v2850
        %2917 = vst.msk [vmem:[#allocation3 + $0xf0] sm:$0xff] %vm563, %v2852
        %2918 = vst.msk [vmem:[#allocation3 + $0xf8] sm:$0xff] %vm563, %v2854
        %v2919 = vld [vmem:[#allocation2 + $0x2] sm:$0xff]
        %v2920 = vld [vmem:[#allocation2 + $0xa] sm:$0xff]
        %v2921 = vld [vmem:[#allocation2 + $0x1a] sm:$0xff]
        %v2922 = vld [vmem:[#allocation2 + $0x22] sm:$0xff]
        %v2923 = vld [vmem:[#allocation2 + $0x32] sm:$0xff]
        %v2924 = vld [vmem:[#allocation2 + $0x3a] sm:$0xff]
        %v2925 = vld [vmem:[#allocation2 + $0x4a] sm:$0xff]
        %v2926 = vld [vmem:[#allocation2 + $0x52] sm:$0xff]
        %v2927 = vld [vmem:[#allocation2 + $0x62] sm:$0xff]
        %v2928 = vld [vmem:[#allocation2 + $0x6a] sm:$0xff]
        %v2929 = vld [vmem:[#allocation2 + $0x7a] sm:$0xff]
        %v2930 = vld [vmem:[#allocation2 + $0x82] sm:$0xff]
        %v2931 = vld [vmem:[#allocation2 + $0x92] sm:$0xff]
        %v2932 = vld [vmem:[#allocation2 + $0x9a] sm:$0xff]
        %v2933 = vld [vmem:[#allocation2 + $0xaa] sm:$0xff]
        %v2934 = vld [vmem:[#allocation2 + $0xb2] sm:$0xff]
        %v2935 = vld [vmem:[#allocation2 + $0xc2] sm:$0xff]
        %v2936 = vld [vmem:[#allocation2 + $0xca] sm:$0xff]
        %v2937 = vld [vmem:[#allocation2 + $0xda] sm:$0xff]
        %v2938 = vld [vmem:[#allocation2 + $0xe2] sm:$0xff]
        %v2939 = vld [vmem:[#allocation2 + $0xf2] sm:$0xff]
        %v2940 = vld [vmem:[#allocation2 + $0xfa] sm:$0xff]
        %v2941 = vld [vmem:[#allocation2 + $0x10a] sm:$0xff]
        %v2942 = vld [vmem:[#allocation2 + $0x112] sm:$0xff]
        %v2943 = vld [vmem:[#allocation2 + $0x122] sm:$0xff]
        %v2944 = vld [vmem:[#allocation2 + $0x12a] sm:$0xff]
        %v2945 = vld [vmem:[#allocation2 + $0x13a] sm:$0xff]
        %v2946 = vld [vmem:[#allocation2 + $0x142] sm:$0xff]
        %v2947 = vld [vmem:[#allocation2 + $0x152] sm:$0xff]
        %v2948 = vld [vmem:[#allocation2 + $0x15a] sm:$0xff]
        %v2949 = vld [vmem:[#allocation2 + $0x16a] sm:$0xff]
        %v2950 = vld [vmem:[#allocation2 + $0x172] sm:$0xff]
        %2983 = vrot.lane.b32.xlu0 %v2919, 8
        %v2984 = vpop.permute.xlu0 %2983
        %2985 = vrot.lane.b32.xlu0 %v2920, 8
        %v2986 = vpop.permute.xlu0 %2985
        %2987 = vrot.lane.b32.xlu0 %v2921, 8
        %v2988 = vpop.permute.xlu0 %2987
        %2989 = vrot.lane.b32.xlu0 %v2922, 8
        %v2990 = vpop.permute.xlu0 %2989
        %2991 = vrot.lane.b32.xlu0 %v2923, 8
        %v2992 = vpop.permute.xlu0 %2991
        %2993 = vrot.lane.b32.xlu0 %v2924, 8
        %v2994 = vpop.permute.xlu0 %2993
        %2995 = vrot.lane.b32.xlu0 %v2925, 8
        %v2996 = vpop.permute.xlu0 %2995
        %2997 = vrot.lane.b32.xlu0 %v2926, 8
        %v2998 = vpop.permute.xlu0 %2997
        %2999 = vrot.lane.b32.xlu0 %v2927, 8
        %v3000 = vpop.permute.xlu0 %2999
        %3001 = vrot.lane.b32.xlu0 %v2928, 8
        %v3002 = vpop.permute.xlu0 %3001
        %3003 = vrot.lane.b32.xlu0 %v2929, 8
        %v3004 = vpop.permute.xlu0 %3003
        %3005 = vrot.lane.b32.xlu0 %v2930, 8
        %v3006 = vpop.permute.xlu0 %3005
        %3007 = vrot.lane.b32.xlu0 %v2931, 8
        %v3008 = vpop.permute.xlu0 %3007
        %3009 = vrot.lane.b32.xlu0 %v2932, 8
        %v3010 = vpop.permute.xlu0 %3009
        %3011 = vrot.lane.b32.xlu0 %v2933, 8
        %v3012 = vpop.permute.xlu0 %3011
        %3013 = vrot.lane.b32.xlu0 %v2934, 8
        %v3014 = vpop.permute.xlu0 %3013
        %3015 = vrot.lane.b32.xlu0 %v2935, 8
        %v3016 = vpop.permute.xlu0 %3015
        %3017 = vrot.lane.b32.xlu0 %v2936, 8
        %v3018 = vpop.permute.xlu0 %3017
        %3019 = vrot.lane.b32.xlu0 %v2937, 8
        %v3020 = vpop.permute.xlu0 %3019
        %3021 = vrot.lane.b32.xlu0 %v2938, 8
        %v3022 = vpop.permute.xlu0 %3021
        %3023 = vrot.lane.b32.xlu0 %v2939, 8
        %v3024 = vpop.permute.xlu0 %3023
        %3025 = vrot.lane.b32.xlu0 %v2940, 8
        %v3026 = vpop.permute.xlu0 %3025
        %3027 = vrot.lane.b32.xlu0 %v2941, 8
        %v3028 = vpop.permute.xlu0 %3027
        %3029 = vrot.lane.b32.xlu0 %v2942, 8
        %v3030 = vpop.permute.xlu0 %3029
        %3031 = vrot.lane.b32.xlu0 %v2943, 8
        %v3032 = vpop.permute.xlu0 %3031
        %3033 = vrot.lane.b32.xlu0 %v2944, 8
        %v3034 = vpop.permute.xlu0 %3033
        %3035 = vrot.lane.b32.xlu0 %v2945, 8
        %v3036 = vpop.permute.xlu0 %3035
        %3037 = vrot.lane.b32.xlu0 %v2946, 8
        %v3038 = vpop.permute.xlu0 %3037
        %3039 = vrot.lane.b32.xlu0 %v2947, 8
        %v3040 = vpop.permute.xlu0 %3039
        %3041 = vrot.lane.b32.xlu0 %v2948, 8
        %v3042 = vpop.permute.xlu0 %3041
        %3043 = vrot.lane.b32.xlu0 %v2949, 8
        %v3044 = vpop.permute.xlu0 %3043
        %3045 = vrot.lane.b32.xlu0 %v2950, 8
        %v3046 = vpop.permute.xlu0 %3045
        %3079 = vst.msk [vmem:[#allocation3] sm:$0xff] %vm756, %v2984
        %3080 = vst.msk [vmem:[#allocation3 + $0x8] sm:$0xff] %vm756, %v2986
        %3081 = vst.msk [vmem:[#allocation3 + $0x10] sm:$0xff] %vm756, %v2988
        %3082 = vst.msk [vmem:[#allocation3 + $0x18] sm:$0xff] %vm756, %v2990
        %3083 = vst.msk [vmem:[#allocation3 + $0x20] sm:$0xff] %vm756, %v2992
        %3084 = vst.msk [vmem:[#allocation3 + $0x28] sm:$0xff] %vm756, %v2994
        %3085 = vst.msk [vmem:[#allocation3 + $0x30] sm:$0xff] %vm756, %v2996
        %3086 = vst.msk [vmem:[#allocation3 + $0x38] sm:$0xff] %vm756, %v2998
        %3087 = vst.msk [vmem:[#allocation3 + $0x40] sm:$0xff] %vm756, %v3000
        %3088 = vst.msk [vmem:[#allocation3 + $0x48] sm:$0xff] %vm756, %v3002
        %3089 = vst.msk [vmem:[#allocation3 + $0x50] sm:$0xff] %vm756, %v3004
        %3090 = vst.msk [vmem:[#allocation3 + $0x58] sm:$0xff] %vm756, %v3006
        %3091 = vst.msk [vmem:[#allocation3 + $0x60] sm:$0xff] %vm756, %v3008
        %3092 = vst.msk [vmem:[#allocation3 + $0x68] sm:$0xff] %vm756, %v3010
        %3093 = vst.msk [vmem:[#allocation3 + $0x70] sm:$0xff] %vm756, %v3012
        %3094 = vst.msk [vmem:[#allocation3 + $0x78] sm:$0xff] %vm756, %v3014
        %3095 = vst.msk [vmem:[#allocation3 + $0x80] sm:$0xff] %vm756, %v3016
        %3096 = vst.msk [vmem:[#allocation3 + $0x88] sm:$0xff] %vm756, %v3018
        %3097 = vst.msk [vmem:[#allocation3 + $0x90] sm:$0xff] %vm756, %v3020
        %3098 = vst.msk [vmem:[#allocation3 + $0x98] sm:$0xff] %vm756, %v3022
        %3099 = vst.msk [vmem:[#allocation3 + $0xa0] sm:$0xff] %vm756, %v3024
        %3100 = vst.msk [vmem:[#allocation3 + $0xa8] sm:$0xff] %vm756, %v3026
        %3101 = vst.msk [vmem:[#allocation3 + $0xb0] sm:$0xff] %vm756, %v3028
        %3102 = vst.msk [vmem:[#allocation3 + $0xb8] sm:$0xff] %vm756, %v3030
        %3103 = vst.msk [vmem:[#allocation3 + $0xc0] sm:$0xff] %vm756, %v3032
        %3104 = vst.msk [vmem:[#allocation3 + $0xc8] sm:$0xff] %vm756, %v3034
        %3105 = vst.msk [vmem:[#allocation3 + $0xd0] sm:$0xff] %vm756, %v3036
        %3106 = vst.msk [vmem:[#allocation3 + $0xd8] sm:$0xff] %vm756, %v3038
        %3107 = vst.msk [vmem:[#allocation3 + $0xe0] sm:$0xff] %vm756, %v3040
        %3108 = vst.msk [vmem:[#allocation3 + $0xe8] sm:$0xff] %vm756, %v3042
        %3109 = vst.msk [vmem:[#allocation3 + $0xf0] sm:$0xff] %vm756, %v3044
        %3110 = vst.msk [vmem:[#allocation3 + $0xf8] sm:$0xff] %vm756, %v3046
        %v3111 = vld [vmem:[%s255] sm:$0xff]
        %v3112 = vld [vmem:[%s255 + $0x8] sm:$0xff]
        %v3113 = vld [vmem:[%s255 + $0x18] sm:$0xff]
        %v3114 = vld [vmem:[%s255 + $0x20] sm:$0xff]
        %v3115 = vld [vmem:[%s255 + $0x30] sm:$0xff]
        %v3116 = vld [vmem:[%s255 + $0x38] sm:$0xff]
        %v3117 = vld [vmem:[%s255 + $0x48] sm:$0xff]
        %v3118 = vld [vmem:[%s255 + $0x50] sm:$0xff]
        %v3119 = vld [vmem:[%s255 + $0x60] sm:$0xff]
        %v3120 = vld [vmem:[%s255 + $0x68] sm:$0xff]
        %v3121 = vld [vmem:[%s255 + $0x78] sm:$0xff]
        %v3122 = vld [vmem:[%s255 + $0x80] sm:$0xff]
        %v3123 = vld [vmem:[%s255 + $0x90] sm:$0xff]
        %v3124 = vld [vmem:[%s255 + $0x98] sm:$0xff]
        %v3125 = vld [vmem:[%s255 + $0xa8] sm:$0xff]
        %v3126 = vld [vmem:[%s255 + $0xb0] sm:$0xff]
        %v3127 = vld [vmem:[%s255 + $0xc0] sm:$0xff]
        %v3128 = vld [vmem:[%s255 + $0xc8] sm:$0xff]
        %v3129 = vld [vmem:[%s255 + $0xd8] sm:$0xff]
        %v3130 = vld [vmem:[%s255 + $0xe0] sm:$0xff]
        %v3131 = vld [vmem:[%s255 + $0xf0] sm:$0xff]
        %v3132 = vld [vmem:[%s255 + $0xf8] sm:$0xff]
        %v3133 = vld [vmem:[%s255 + $0x108] sm:$0xff]
        %v3134 = vld [vmem:[%s255 + $0x110] sm:$0xff]
        %v3135 = vld [vmem:[%s255 + $0x120] sm:$0xff]
        %v3136 = vld [vmem:[%s255 + $0x128] sm:$0xff]
        %v3137 = vld [vmem:[%s255 + $0x138] sm:$0xff]
        %v3138 = vld [vmem:[%s255 + $0x140] sm:$0xff]
        %v3139 = vld [vmem:[%s255 + $0x150] sm:$0xff]
        %v3140 = vld [vmem:[%s255 + $0x158] sm:$0xff]
        %v3141 = vld [vmem:[%s255 + $0x168] sm:$0xff]
        %v3142 = vld [vmem:[%s255 + $0x170] sm:$0xff]
        %3175 = vrot.lane.b32.xlu0 %v3111, 12
        %v3176 = vpop.permute.xlu0 %3175
        %3177 = vrot.lane.b32.xlu0 %v3112, 12
        %v3178 = vpop.permute.xlu0 %3177
        %3179 = vrot.lane.b32.xlu0 %v3113, 12
        %v3180 = vpop.permute.xlu0 %3179
        %3181 = vrot.lane.b32.xlu0 %v3114, 12
        %v3182 = vpop.permute.xlu0 %3181
        %3183 = vrot.lane.b32.xlu0 %v3115, 12
        %v3184 = vpop.permute.xlu0 %3183
        %3185 = vrot.lane.b32.xlu0 %v3116, 12
        %v3186 = vpop.permute.xlu0 %3185
        %3187 = vrot.lane.b32.xlu0 %v3117, 12
        %v3188 = vpop.permute.xlu0 %3187
        %3189 = vrot.lane.b32.xlu0 %v3118, 12
        %v3190 = vpop.permute.xlu0 %3189
        %3191 = vrot.lane.b32.xlu0 %v3119, 12
        %v3192 = vpop.permute.xlu0 %3191
        %3193 = vrot.lane.b32.xlu0 %v3120, 12
        %v3194 = vpop.permute.xlu0 %3193
        %3195 = vrot.lane.b32.xlu0 %v3121, 12
        %v3196 = vpop.permute.xlu0 %3195
        %3197 = vrot.lane.b32.xlu0 %v3122, 12
        %v3198 = vpop.permute.xlu0 %3197
        %3199 = vrot.lane.b32.xlu0 %v3123, 12
        %v3200 = vpop.permute.xlu0 %3199
        %3201 = vrot.lane.b32.xlu0 %v3124, 12
        %v3202 = vpop.permute.xlu0 %3201
        %3203 = vrot.lane.b32.xlu0 %v3125, 12
        %v3204 = vpop.permute.xlu0 %3203
        %3205 = vrot.lane.b32.xlu0 %v3126, 12
        %v3206 = vpop.permute.xlu0 %3205
        %3207 = vrot.lane.b32.xlu0 %v3127, 12
        %v3208 = vpop.permute.xlu0 %3207
        %3209 = vrot.lane.b32.xlu0 %v3128, 12
        %v3210 = vpop.permute.xlu0 %3209
        %3211 = vrot.lane.b32.xlu0 %v3129, 12
        %v3212 = vpop.permute.xlu0 %3211
        %3213 = vrot.lane.b32.xlu0 %v3130, 12
        %v3214 = vpop.permute.xlu0 %3213
        %3215 = vrot.lane.b32.xlu0 %v3131, 12
        %v3216 = vpop.permute.xlu0 %3215
        %3217 = vrot.lane.b32.xlu0 %v3132, 12
        %v3218 = vpop.permute.xlu0 %3217
        %3219 = vrot.lane.b32.xlu0 %v3133, 12
        %v3220 = vpop.permute.xlu0 %3219
        %3221 = vrot.lane.b32.xlu0 %v3134, 12
        %v3222 = vpop.permute.xlu0 %3221
        %3223 = vrot.lane.b32.xlu0 %v3135, 12
        %v3224 = vpop.permute.xlu0 %3223
        %3225 = vrot.lane.b32.xlu0 %v3136, 12
        %v3226 = vpop.permute.xlu0 %3225
        %3227 = vrot.lane.b32.xlu0 %v3137, 12
        %v3228 = vpop.permute.xlu0 %3227
        %3229 = vrot.lane.b32.xlu0 %v3138, 12
        %v3230 = vpop.permute.xlu0 %3229
        %3231 = vrot.lane.b32.xlu0 %v3139, 12
        %v3232 = vpop.permute.xlu0 %3231
        %3233 = vrot.lane.b32.xlu0 %v3140, 12
        %v3234 = vpop.permute.xlu0 %3233
        %3235 = vrot.lane.b32.xlu0 %v3141, 12
        %v3236 = vpop.permute.xlu0 %3235
        %3237 = vrot.lane.b32.xlu0 %v3142, 12
        %v3238 = vpop.permute.xlu0 %3237
        %3271 = vst.msk [vmem:[#allocation3] sm:$0xff] %vm949, %v3176
        %3272 = vst.msk [vmem:[#allocation3 + $0x8] sm:$0xff] %vm949, %v3178
        %3273 = vst.msk [vmem:[#allocation3 + $0x10] sm:$0xff] %vm949, %v3180
        %3274 = vst.msk [vmem:[#allocation3 + $0x18] sm:$0xff] %vm949, %v3182
        %3275 = vst.msk [vmem:[#allocation3 + $0x20] sm:$0xff] %vm949, %v3184
        %3276 = vst.msk [vmem:[#allocation3 + $0x28] sm:$0xff] %vm949, %v3186
        %3277 = vst.msk [vmem:[#allocation3 + $0x30] sm:$0xff] %vm949, %v3188
        %3278 = vst.msk [vmem:[#allocation3 + $0x38] sm:$0xff] %vm949, %v3190
        %3279 = vst.msk [vmem:[#allocation3 + $0x40] sm:$0xff] %vm949, %v3192
        %3280 = vst.msk [vmem:[#allocation3 + $0x48] sm:$0xff] %vm949, %v3194
        %3281 = vst.msk [vmem:[#allocation3 + $0x50] sm:$0xff] %vm949, %v3196
        %3282 = vst.msk [vmem:[#allocation3 + $0x58] sm:$0xff] %vm949, %v3198
        %3283 = vst.msk [vmem:[#allocation3 + $0x60] sm:$0xff] %vm949, %v3200
        %3284 = vst.msk [vmem:[#allocation3 + $0x68] sm:$0xff] %vm949, %v3202
        %3285 = vst.msk [vmem:[#allocation3 + $0x70] sm:$0xff] %vm949, %v3204
        %3286 = vst.msk [vmem:[#allocation3 + $0x78] sm:$0xff] %vm949, %v3206
        %3287 = vst.msk [vmem:[#allocation3 + $0x80] sm:$0xff] %vm949, %v3208
        %3288 = vst.msk [vmem:[#allocation3 + $0x88] sm:$0xff] %vm949, %v3210
        %3289 = vst.msk [vmem:[#allocation3 + $0x90] sm:$0xff] %vm949, %v3212
        %3290 = vst.msk [vmem:[#allocation3 + $0x98] sm:$0xff] %vm949, %v3214
        %3291 = vst.msk [vmem:[#allocation3 + $0xa0] sm:$0xff] %vm949, %v3216
        %3292 = vst.msk [vmem:[#allocation3 + $0xa8] sm:$0xff] %vm949, %v3218
        %3293 = vst.msk [vmem:[#allocation3 + $0xb0] sm:$0xff] %vm949, %v3220
        %3294 = vst.msk [vmem:[#allocation3 + $0xb8] sm:$0xff] %vm949, %v3222
        %3295 = vst.msk [vmem:[#allocation3 + $0xc0] sm:$0xff] %vm949, %v3224
        %3296 = vst.msk [vmem:[#allocation3 + $0xc8] sm:$0xff] %vm949, %v3226
        %3297 = vst.msk [vmem:[#allocation3 + $0xd0] sm:$0xff] %vm949, %v3228
        %3298 = vst.msk [vmem:[#allocation3 + $0xd8] sm:$0xff] %vm949, %v3230
        %3299 = vst.msk [vmem:[#allocation3 + $0xe0] sm:$0xff] %vm949, %v3232
        %3300 = vst.msk [vmem:[#allocation3 + $0xe8] sm:$0xff] %vm949, %v3234
        %3301 = vst.msk [vmem:[#allocation3 + $0xf0] sm:$0xff] %vm949, %v3236
        %3302 = vst.msk [vmem:[#allocation3 + $0xf8] sm:$0xff] %vm949, %v3238
        %v3303 = vld [vmem:[%s255 + $0x1] sm:$0xff]
        %v3304 = vld [vmem:[%s255 + $0x9] sm:$0xff]
        %v3305 = vld [vmem:[%s255 + $0x19] sm:$0xff]
        %v3306 = vld [vmem:[%s255 + $0x21] sm:$0xff]
        %v3307 = vld [vmem:[%s255 + $0x31] sm:$0xff]
        %v3308 = vld [vmem:[%s255 + $0x39] sm:$0xff]
        %v3309 = vld [vmem:[%s255 + $0x49] sm:$0xff]
        %v3310 = vld [vmem:[%s255 + $0x51] sm:$0xff]
        %v3311 = vld [vmem:[%s255 + $0x61] sm:$0xff]
        %v3312 = vld [vmem:[%s255 + $0x69] sm:$0xff]
        %v3313 = vld [vmem:[%s255 + $0x79] sm:$0xff]
        %v3314 = vld [vmem:[%s255 + $0x81] sm:$0xff]
        %v3315 = vld [vmem:[%s255 + $0x91] sm:$0xff]
        %v3316 = vld [vmem:[%s255 + $0x99] sm:$0xff]
        %v3317 = vld [vmem:[%s255 + $0xa9] sm:$0xff]
        %v3318 = vld [vmem:[%s255 + $0xb1] sm:$0xff]
        %v3319 = vld [vmem:[%s255 + $0xc1] sm:$0xff]
        %v3320 = vld [vmem:[%s255 + $0xc9] sm:$0xff]
        %v3321 = vld [vmem:[%s255 + $0xd9] sm:$0xff]
        %v3322 = vld [vmem:[%s255 + $0xe1] sm:$0xff]
        %v3323 = vld [vmem:[%s255 + $0xf1] sm:$0xff]
        %v3324 = vld [vmem:[%s255 + $0xf9] sm:$0xff]
        %v3325 = vld [vmem:[%s255 + $0x109] sm:$0xff]
        %v3326 = vld [vmem:[%s255 + $0x111] sm:$0xff]
        %v3327 = vld [vmem:[%s255 + $0x121] sm:$0xff]
        %v3328 = vld [vmem:[%s255 + $0x129] sm:$0xff]
        %v3329 = vld [vmem:[%s255 + $0x139] sm:$0xff]
        %v3330 = vld [vmem:[%s255 + $0x141] sm:$0xff]
        %v3331 = vld [vmem:[%s255 + $0x151] sm:$0xff]
        %v3332 = vld [vmem:[%s255 + $0x159] sm:$0xff]
        %v3333 = vld [vmem:[%s255 + $0x169] sm:$0xff]
        %v3334 = vld [vmem:[%s255 + $0x171] sm:$0xff]
        %3367 = vrot.lane.b32.xlu0 %v3303, 16
        %v3368 = vpop.permute.xlu0 %3367
        %3369 = vrot.lane.b32.xlu0 %v3304, 16
        %v3370 = vpop.permute.xlu0 %3369
        %3371 = vrot.lane.b32.xlu0 %v3305, 16
        %v3372 = vpop.permute.xlu0 %3371
        %3373 = vrot.lane.b32.xlu0 %v3306, 16
        %v3374 = vpop.permute.xlu0 %3373
        %3375 = vrot.lane.b32.xlu0 %v3307, 16
        %v3376 = vpop.permute.xlu0 %3375
        %3377 = vrot.lane.b32.xlu0 %v3308, 16
        %v3378 = vpop.permute.xlu0 %3377
        %3379 = vrot.lane.b32.xlu0 %v3309, 16
        %v3380 = vpop.permute.xlu0 %3379
        %3381 = vrot.lane.b32.xlu0 %v3310, 16
        %v3382 = vpop.permute.xlu0 %3381
        %3383 = vrot.lane.b32.xlu0 %v3311, 16
        %v3384 = vpop.permute.xlu0 %3383
        %3385 = vrot.lane.b32.xlu0 %v3312, 16
        %v3386 = vpop.permute.xlu0 %3385
        %3387 = vrot.lane.b32.xlu0 %v3313, 16
        %v3388 = vpop.permute.xlu0 %3387
        %3389 = vrot.lane.b32.xlu0 %v3314, 16
        %v3390 = vpop.permute.xlu0 %3389
        %3391 = vrot.lane.b32.xlu0 %v3315, 16
        %v3392 = vpop.permute.xlu0 %3391
        %3393 = vrot.lane.b32.xlu0 %v3316, 16
        %v3394 = vpop.permute.xlu0 %3393
        %3395 = vrot.lane.b32.xlu0 %v3317, 16
        %v3396 = vpop.permute.xlu0 %3395
        %3397 = vrot.lane.b32.xlu0 %v3318, 16
        %v3398 = vpop.permute.xlu0 %3397
        %3399 = vrot.lane.b32.xlu0 %v3319, 16
        %v3400 = vpop.permute.xlu0 %3399
        %3401 = vrot.lane.b32.xlu0 %v3320, 16
        %v3402 = vpop.permute.xlu0 %3401
        %3403 = vrot.lane.b32.xlu0 %v3321, 16
        %v3404 = vpop.permute.xlu0 %3403
        %3405 = vrot.lane.b32.xlu0 %v3322, 16
        %v3406 = vpop.permute.xlu0 %3405
        %3407 = vrot.lane.b32.xlu0 %v3323, 16
        %v3408 = vpop.permute.xlu0 %3407
        %3409 = vrot.lane.b32.xlu0 %v3324, 16
        %v3410 = vpop.permute.xlu0 %3409
        %3411 = vrot.lane.b32.xlu0 %v3325, 16
        %v3412 = vpop.permute.xlu0 %3411
        %3413 = vrot.lane.b32.xlu0 %v3326, 16
        %v3414 = vpop.permute.xlu0 %3413
        %3415 = vrot.lane.b32.xlu0 %v3327, 16
        %v3416 = vpop.permute.xlu0 %3415
        %3417 = vrot.lane.b32.xlu0 %v3328, 16
        %v3418 = vpop.permute.xlu0 %3417
        %3419 = vrot.lane.b32.xlu0 %v3329, 16
        %v3420 = vpop.permute.xlu0 %3419
        %3421 = vrot.lane.b32.xlu0 %v3330, 16
        %v3422 = vpop.permute.xlu0 %3421
        %3423 = vrot.lane.b32.xlu0 %v3331, 16
        %v3424 = vpop.permute.xlu0 %3423
        %3425 = vrot.lane.b32.xlu0 %v3332, 16
        %v3426 = vpop.permute.xlu0 %3425
        %3427 = vrot.lane.b32.xlu0 %v3333, 16
        %v3428 = vpop.permute.xlu0 %3427
        %3429 = vrot.lane.b32.xlu0 %v3334, 16
        %v3430 = vpop.permute.xlu0 %3429
        %3463 = vst.msk [vmem:[#allocation3] sm:$0xff] %vm1142, %v3368
        %3464 = vst.msk [vmem:[#allocation3 + $0x8] sm:$0xff] %vm1142, %v3370
        %3465 = vst.msk [vmem:[#allocation3 + $0x10] sm:$0xff] %vm1142, %v3372
        %3466 = vst.msk [vmem:[#allocation3 + $0x18] sm:$0xff] %vm1142, %v3374
        %3467 = vst.msk [vmem:[#allocation3 + $0x20] sm:$0xff] %vm1142, %v3376
        %3468 = vst.msk [vmem:[#allocation3 + $0x28] sm:$0xff] %vm1142, %v3378
        %3469 = vst.msk [vmem:[#allocation3 + $0x30] sm:$0xff] %vm1142, %v3380
        %3470 = vst.msk [vmem:[#allocation3 + $0x38] sm:$0xff] %vm1142, %v3382
        %3471 = vst.msk [vmem:[#allocation3 + $0x40] sm:$0xff] %vm1142, %v3384
        %3472 = vst.msk [vmem:[#allocation3 + $0x48] sm:$0xff] %vm1142, %v3386
        %3473 = vst.msk [vmem:[#allocation3 + $0x50] sm:$0xff] %vm1142, %v3388
        %3474 = vst.msk [vmem:[#allocation3 + $0x58] sm:$0xff] %vm1142, %v3390
        %3475 = vst.msk [vmem:[#allocation3 + $0x60] sm:$0xff] %vm1142, %v3392
        %3476 = vst.msk [vmem:[#allocation3 + $0x68] sm:$0xff] %vm1142, %v3394
        %3477 = vst.msk [vmem:[#allocation3 + $0x70] sm:$0xff] %vm1142, %v3396
        %3478 = vst.msk [vmem:[#allocation3 + $0x78] sm:$0xff] %vm1142, %v3398
        %3479 = vst.msk [vmem:[#allocation3 + $0x80] sm:$0xff] %vm1142, %v3400
        %3480 = vst.msk [vmem:[#allocation3 + $0x88] sm:$0xff] %vm1142, %v3402
        %3481 = vst.msk [vmem:[#allocation3 + $0x90] sm:$0xff] %vm1142, %v3404
        %3482 = vst.msk [vmem:[#allocation3 + $0x98] sm:$0xff] %vm1142, %v3406
        %3483 = vst.msk [vmem:[#allocation3 + $0xa0] sm:$0xff] %vm1142, %v3408
        %3484 = vst.msk [vmem:[#allocation3 + $0xa8] sm:$0xff] %vm1142, %v3410
        %3485 = vst.msk [vmem:[#allocation3 + $0xb0] sm:$0xff] %vm1142, %v3412
        %3486 = vst.msk [vmem:[#allocation3 + $0xb8] sm:$0xff] %vm1142, %v3414
        %3487 = vst.msk [vmem:[#allocation3 + $0xc0] sm:$0xff] %vm1142, %v3416
        %3488 = vst.msk [vmem:[#allocation3 + $0xc8] sm:$0xff] %vm1142, %v3418
        %3489 = vst.msk [vmem:[#allocation3 + $0xd0] sm:$0xff] %vm1142, %v3420
        %3490 = vst.msk [vmem:[#allocation3 + $0xd8] sm:$0xff] %vm1142, %v3422
        %3491 = vst.msk [vmem:[#allocation3 + $0xe0] sm:$0xff] %vm1142, %v3424
        %3492 = vst.msk [vmem:[#allocation3 + $0xe8] sm:$0xff] %vm1142, %v3426
        %3493 = vst.msk [vmem:[#allocation3 + $0xf0] sm:$0xff] %vm1142, %v3428
        %3494 = vst.msk [vmem:[#allocation3 + $0xf8] sm:$0xff] %vm1142, %v3430
        %v3495 = vld [vmem:[%s255 + $0x2] sm:$0xff]
        %v3496 = vld [vmem:[%s255 + $0xa] sm:$0xff]
        %v3497 = vld [vmem:[%s255 + $0x1a] sm:$0xff]
        %v3498 = vld [vmem:[%s255 + $0x22] sm:$0xff]
        %v3499 = vld [vmem:[%s255 + $0x32] sm:$0xff]
        %v3500 = vld [vmem:[%s255 + $0x3a] sm:$0xff]
        %v3501 = vld [vmem:[%s255 + $0x4a] sm:$0xff]
        %v3502 = vld [vmem:[%s255 + $0x52] sm:$0xff]
        %v3503 = vld [vmem:[%s255 + $0x62] sm:$0xff]
        %v3504 = vld [vmem:[%s255 + $0x6a] sm:$0xff]
        %v3505 = vld [vmem:[%s255 + $0x7a] sm:$0xff]
        %v3506 = vld [vmem:[%s255 + $0x82] sm:$0xff]
        %v3507 = vld [vmem:[%s255 + $0x92] sm:$0xff]
        %v3508 = vld [vmem:[%s255 + $0x9a] sm:$0xff]
        %v3509 = vld [vmem:[%s255 + $0xaa] sm:$0xff]
        %v3510 = vld [vmem:[%s255 + $0xb2] sm:$0xff]
        %v3511 = vld [vmem:[%s255 + $0xc2] sm:$0xff]
        %v3512 = vld [vmem:[%s255 + $0xca] sm:$0xff]
        %v3513 = vld [vmem:[%s255 + $0xda] sm:$0xff]
        %v3514 = vld [vmem:[%s255 + $0xe2] sm:$0xff]
        %v3515 = vld [vmem:[%s255 + $0xf2] sm:$0xff]
        %v3516 = vld [vmem:[%s255 + $0xfa] sm:$0xff]
        %v3517 = vld [vmem:[%s255 + $0x10a] sm:$0xff]
        %v3518 = vld [vmem:[%s255 + $0x112] sm:$0xff]
        %v3519 = vld [vmem:[%s255 + $0x122] sm:$0xff]
        %v3520 = vld [vmem:[%s255 + $0x12a] sm:$0xff]
        %v3521 = vld [vmem:[%s255 + $0x13a] sm:$0xff]
        %v3522 = vld [vmem:[%s255 + $0x142] sm:$0xff]
        %v3523 = vld [vmem:[%s255 + $0x152] sm:$0xff]
        %v3524 = vld [vmem:[%s255 + $0x15a] sm:$0xff]
        %v3525 = vld [vmem:[%s255 + $0x16a] sm:$0xff]
        %v3526 = vld [vmem:[%s255 + $0x172] sm:$0xff]
        %3559 = vrot.lane.b32.xlu0 %v3495, 20
        %v3560 = vpop.permute.xlu0 %3559
        %3561 = vrot.lane.b32.xlu0 %v3496, 20
        %v3562 = vpop.permute.xlu0 %3561
        %3563 = vrot.lane.b32.xlu0 %v3497, 20
        %v3564 = vpop.permute.xlu0 %3563
        %3565 = vrot.lane.b32.xlu0 %v3498, 20
        %v3566 = vpop.permute.xlu0 %3565
        %3567 = vrot.lane.b32.xlu0 %v3499, 20
        %v3568 = vpop.permute.xlu0 %3567
        %3569 = vrot.lane.b32.xlu0 %v3500, 20
        %v3570 = vpop.permute.xlu0 %3569
        %3571 = vrot.lane.b32.xlu0 %v3501, 20
        %v3572 = vpop.permute.xlu0 %3571
        %3573 = vrot.lane.b32.xlu0 %v3502, 20
        %v3574 = vpop.permute.xlu0 %3573
        %3575 = vrot.lane.b32.xlu0 %v3503, 20
        %v3576 = vpop.permute.xlu0 %3575
        %3577 = vrot.lane.b32.xlu0 %v3504, 20
        %v3578 = vpop.permute.xlu0 %3577
        %3579 = vrot.lane.b32.xlu0 %v3505, 20
        %v3580 = vpop.permute.xlu0 %3579
        %3581 = vrot.lane.b32.xlu0 %v3506, 20
        %v3582 = vpop.permute.xlu0 %3581
        %3583 = vrot.lane.b32.xlu0 %v3507, 20
        %v3584 = vpop.permute.xlu0 %3583
        %3585 = vrot.lane.b32.xlu0 %v3508, 20
        %v3586 = vpop.permute.xlu0 %3585
        %3587 = vrot.lane.b32.xlu0 %v3509, 20
        %v3588 = vpop.permute.xlu0 %3587
        %3589 = vrot.lane.b32.xlu0 %v3510, 20
        %v3590 = vpop.permute.xlu0 %3589
        %3591 = vrot.lane.b32.xlu0 %v3511, 20
        %v3592 = vpop.permute.xlu0 %3591
        %3593 = vrot.lane.b32.xlu0 %v3512, 20
        %v3594 = vpop.permute.xlu0 %3593
        %3595 = vrot.lane.b32.xlu0 %v3513, 20
        %v3596 = vpop.permute.xlu0 %3595
        %3597 = vrot.lane.b32.xlu0 %v3514, 20
        %v3598 = vpop.permute.xlu0 %3597
        %3599 = vrot.lane.b32.xlu0 %v3515, 20
        %v3600 = vpop.permute.xlu0 %3599
        %3601 = vrot.lane.b32.xlu0 %v3516, 20
        %v3602 = vpop.permute.xlu0 %3601
        %3603 = vrot.lane.b32.xlu0 %v3517, 20
        %v3604 = vpop.permute.xlu0 %3603
        %3605 = vrot.lane.b32.xlu0 %v3518, 20
        %v3606 = vpop.permute.xlu0 %3605
        %3607 = vrot.lane.b32.xlu0 %v3519, 20
        %v3608 = vpop.permute.xlu0 %3607
        %3609 = vrot.lane.b32.xlu0 %v3520, 20
        %v3610 = vpop.permute.xlu0 %3609
        %3611 = vrot.lane.b32.xlu0 %v3521, 20
        %v3612 = vpop.permute.xlu0 %3611
        %3613 = vrot.lane.b32.xlu0 %v3522, 20
        %v3614 = vpop.permute.xlu0 %3613
        %3615 = vrot.lane.b32.xlu0 %v3523, 20
        %v3616 = vpop.permute.xlu0 %3615
        %3617 = vrot.lane.b32.xlu0 %v3524, 20
        %v3618 = vpop.permute.xlu0 %3617
        %3619 = vrot.lane.b32.xlu0 %v3525, 20
        %v3620 = vpop.permute.xlu0 %3619
        %3621 = vrot.lane.b32.xlu0 %v3526, 20
        %v3622 = vpop.permute.xlu0 %3621
        %3655 = vst.msk [vmem:[#allocation3] sm:$0xff] %vm1335, %v3560
        %3656 = vst.msk [vmem:[#allocation3 + $0x8] sm:$0xff] %vm1335, %v3562
        %3657 = vst.msk [vmem:[#allocation3 + $0x10] sm:$0xff] %vm1335, %v3564
        %3658 = vst.msk [vmem:[#allocation3 + $0x18] sm:$0xff] %vm1335, %v3566
        %3659 = vst.msk [vmem:[#allocation3 + $0x20] sm:$0xff] %vm1335, %v3568
        %3660 = vst.msk [vmem:[#allocation3 + $0x28] sm:$0xff] %vm1335, %v3570
        %3661 = vst.msk [vmem:[#allocation3 + $0x30] sm:$0xff] %vm1335, %v3572
        %3662 = vst.msk [vmem:[#allocation3 + $0x38] sm:$0xff] %vm1335, %v3574
        %3663 = vst.msk [vmem:[#allocation3 + $0x40] sm:$0xff] %vm1335, %v3576
        %3664 = vst.msk [vmem:[#allocation3 + $0x48] sm:$0xff] %vm1335, %v3578
        %3665 = vst.msk [vmem:[#allocation3 + $0x50] sm:$0xff] %vm1335, %v3580
        %3666 = vst.msk [vmem:[#allocation3 + $0x58] sm:$0xff] %vm1335, %v3582
        %3667 = vst.msk [vmem:[#allocation3 + $0x60] sm:$0xff] %vm1335, %v3584
        %3668 = vst.msk [vmem:[#allocation3 + $0x68] sm:$0xff] %vm1335, %v3586
        %3669 = vst.msk [vmem:[#allocation3 + $0x70] sm:$0xff] %vm1335, %v3588
        %3670 = vst.msk [vmem:[#allocation3 + $0x78] sm:$0xff] %vm1335, %v3590
        %3671 = vst.msk [vmem:[#allocation3 + $0x80] sm:$0xff] %vm1335, %v3592
        %3672 = vst.msk [vmem:[#allocation3 + $0x88] sm:$0xff] %vm1335, %v3594
        %3673 = vst.msk [vmem:[#allocation3 + $0x90] sm:$0xff] %vm1335, %v3596
        %3674 = vst.msk [vmem:[#allocation3 + $0x98] sm:$0xff] %vm1335, %v3598
        %3675 = vst.msk [vmem:[#allocation3 + $0xa0] sm:$0xff] %vm1335, %v3600
        %3676 = vst.msk [vmem:[#allocation3 + $0xa8] sm:$0xff] %vm1335, %v3602
        %3677 = vst.msk [vmem:[#allocation3 + $0xb0] sm:$0xff] %vm1335, %v3604
        %3678 = vst.msk [vmem:[#allocation3 + $0xb8] sm:$0xff] %vm1335, %v3606
        %3679 = vst.msk [vmem:[#allocation3 + $0xc0] sm:$0xff] %vm1335, %v3608
        %3680 = vst.msk [vmem:[#allocation3 + $0xc8] sm:$0xff] %vm1335, %v3610
        %3681 = vst.msk [vmem:[#allocation3 + $0xd0] sm:$0xff] %vm1335, %v3612
        %3682 = vst.msk [vmem:[#allocation3 + $0xd8] sm:$0xff] %vm1335, %v3614
        %3683 = vst.msk [vmem:[#allocation3 + $0xe0] sm:$0xff] %vm1335, %v3616
        %3684 = vst.msk [vmem:[#allocation3 + $0xe8] sm:$0xff] %vm1335, %v3618
        %3685 = vst.msk [vmem:[#allocation3 + $0xf0] sm:$0xff] %vm1335, %v3620
        %3686 = vst.msk [vmem:[#allocation3 + $0xf8] sm:$0xff] %vm1335, %v3622
        %v3687 = vld [vmem:[%s323] sm:$0xff]
        %v3688 = vld [vmem:[%s323 + $0x8] sm:$0xff]
        %v3689 = vld [vmem:[%s323 + $0x18] sm:$0xff]
        %v3690 = vld [vmem:[%s323 + $0x20] sm:$0xff]
        %v3691 = vld [vmem:[%s323 + $0x30] sm:$0xff]
        %v3692 = vld [vmem:[%s323 + $0x38] sm:$0xff]
        %v3693 = vld [vmem:[%s323 + $0x48] sm:$0xff]
        %v3694 = vld [vmem:[%s323 + $0x50] sm:$0xff]
        %v3695 = vld [vmem:[%s323 + $0x60] sm:$0xff]
        %v3696 = vld [vmem:[%s323 + $0x68] sm:$0xff]
        %v3697 = vld [vmem:[%s323 + $0x78] sm:$0xff]
        %v3698 = vld [vmem:[%s323 + $0x80] sm:$0xff]
        %v3699 = vld [vmem:[%s323 + $0x90] sm:$0xff]
        %v3700 = vld [vmem:[%s323 + $0x98] sm:$0xff]
        %v3701 = vld [vmem:[%s323 + $0xa8] sm:$0xff]
        %v3702 = vld [vmem:[%s323 + $0xb0] sm:$0xff]
        %v3703 = vld [vmem:[%s323 + $0xc0] sm:$0xff]
        %v3704 = vld [vmem:[%s323 + $0xc8] sm:$0xff]
        %v3705 = vld [vmem:[%s323 + $0xd8] sm:$0xff]
        %v3706 = vld [vmem:[%s323 + $0xe0] sm:$0xff]
        %v3707 = vld [vmem:[%s323 + $0xf0] sm:$0xff]
        %v3708 = vld [vmem:[%s323 + $0xf8] sm:$0xff]
        %v3709 = vld [vmem:[%s323 + $0x108] sm:$0xff]
        %v3710 = vld [vmem:[%s323 + $0x110] sm:$0xff]
        %v3711 = vld [vmem:[%s323 + $0x120] sm:$0xff]
        %v3712 = vld [vmem:[%s323 + $0x128] sm:$0xff]
        %v3713 = vld [vmem:[%s323 + $0x138] sm:$0xff]
        %v3714 = vld [vmem:[%s323 + $0x140] sm:$0xff]
        %v3715 = vld [vmem:[%s323 + $0x150] sm:$0xff]
        %v3716 = vld [vmem:[%s323 + $0x158] sm:$0xff]
        %v3717 = vld [vmem:[%s323 + $0x168] sm:$0xff]
        %v3718 = vld [vmem:[%s323 + $0x170] sm:$0xff]
        %3751 = vrot.lane.b32.xlu0 %v3687, 24
        %v3752 = vpop.permute.xlu0 %3751
        %3753 = vrot.lane.b32.xlu0 %v3688, 24
        %v3754 = vpop.permute.xlu0 %3753
        %3755 = vrot.lane.b32.xlu0 %v3689, 24
        %v3756 = vpop.permute.xlu0 %3755
        %3757 = vrot.lane.b32.xlu0 %v3690, 24
        %v3758 = vpop.permute.xlu0 %3757
        %3759 = vrot.lane.b32.xlu0 %v3691, 24
        %v3760 = vpop.permute.xlu0 %3759
        %3761 = vrot.lane.b32.xlu0 %v3692, 24
        %v3762 = vpop.permute.xlu0 %3761
        %3763 = vrot.lane.b32.xlu0 %v3693, 24
        %v3764 = vpop.permute.xlu0 %3763
        %3765 = vrot.lane.b32.xlu0 %v3694, 24
        %v3766 = vpop.permute.xlu0 %3765
        %3767 = vrot.lane.b32.xlu0 %v3695, 24
        %v3768 = vpop.permute.xlu0 %3767
        %3769 = vrot.lane.b32.xlu0 %v3696, 24
        %v3770 = vpop.permute.xlu0 %3769
        %3771 = vrot.lane.b32.xlu0 %v3697, 24
        %v3772 = vpop.permute.xlu0 %3771
        %3773 = vrot.lane.b32.xlu0 %v3698, 24
        %v3774 = vpop.permute.xlu0 %3773
        %3775 = vrot.lane.b32.xlu0 %v3699, 24
        %v3776 = vpop.permute.xlu0 %3775
        %3777 = vrot.lane.b32.xlu0 %v3700, 24
        %v3778 = vpop.permute.xlu0 %3777
        %3779 = vrot.lane.b32.xlu0 %v3701, 24
        %v3780 = vpop.permute.xlu0 %3779
        %3781 = vrot.lane.b32.xlu0 %v3702, 24
        %v3782 = vpop.permute.xlu0 %3781
        %3783 = vrot.lane.b32.xlu0 %v3703, 24
        %v3784 = vpop.permute.xlu0 %3783
        %3785 = vrot.lane.b32.xlu0 %v3704, 24
        %v3786 = vpop.permute.xlu0 %3785
        %3787 = vrot.lane.b32.xlu0 %v3705, 24
        %v3788 = vpop.permute.xlu0 %3787
        %3789 = vrot.lane.b32.xlu0 %v3706, 24
        %v3790 = vpop.permute.xlu0 %3789
        %3791 = vrot.lane.b32.xlu0 %v3707, 24
        %v3792 = vpop.permute.xlu0 %3791
        %3793 = vrot.lane.b32.xlu0 %v3708, 24
        %v3794 = vpop.permute.xlu0 %3793
        %3795 = vrot.lane.b32.xlu0 %v3709, 24
        %v3796 = vpop.permute.xlu0 %3795
        %3797 = vrot.lane.b32.xlu0 %v3710, 24
        %v3798 = vpop.permute.xlu0 %3797
        %3799 = vrot.lane.b32.xlu0 %v3711, 24
        %v3800 = vpop.permute.xlu0 %3799
        %3801 = vrot.lane.b32.xlu0 %v3712, 24
        %v3802 = vpop.permute.xlu0 %3801
        %3803 = vrot.lane.b32.xlu0 %v3713, 24
        %v3804 = vpop.permute.xlu0 %3803
        %3805 = vrot.lane.b32.xlu0 %v3714, 24
        %v3806 = vpop.permute.xlu0 %3805
        %3807 = vrot.lane.b32.xlu0 %v3715, 24
        %v3808 = vpop.permute.xlu0 %3807
        %3809 = vrot.lane.b32.xlu0 %v3716, 24
        %v3810 = vpop.permute.xlu0 %3809
        %3811 = vrot.lane.b32.xlu0 %v3717, 24
        %v3812 = vpop.permute.xlu0 %3811
        %3813 = vrot.lane.b32.xlu0 %v3718, 24
        %v3814 = vpop.permute.xlu0 %3813
        %3847 = vst.msk [vmem:[#allocation3] sm:$0xff] %vm1528, %v3752
        %3848 = vst.msk [vmem:[#allocation3 + $0x8] sm:$0xff] %vm1528, %v3754
        %3849 = vst.msk [vmem:[#allocation3 + $0x10] sm:$0xff] %vm1528, %v3756
        %3850 = vst.msk [vmem:[#allocation3 + $0x18] sm:$0xff] %vm1528, %v3758
        %3851 = vst.msk [vmem:[#allocation3 + $0x20] sm:$0xff] %vm1528, %v3760
        %3852 = vst.msk [vmem:[#allocation3 + $0x28] sm:$0xff] %vm1528, %v3762
        %3853 = vst.msk [vmem:[#allocation3 + $0x30] sm:$0xff] %vm1528, %v3764
        %3854 = vst.msk [vmem:[#allocation3 + $0x38] sm:$0xff] %vm1528, %v3766
        %3855 = vst.msk [vmem:[#allocation3 + $0x40] sm:$0xff] %vm1528, %v3768
        %3856 = vst.msk [vmem:[#allocation3 + $0x48] sm:$0xff] %vm1528, %v3770
        %3857 = vst.msk [vmem:[#allocation3 + $0x50] sm:$0xff] %vm1528, %v3772
        %3858 = vst.msk [vmem:[#allocation3 + $0x58] sm:$0xff] %vm1528, %v3774
        %3859 = vst.msk [vmem:[#allocation3 + $0x60] sm:$0xff] %vm1528, %v3776
        %3860 = vst.msk [vmem:[#allocation3 + $0x68] sm:$0xff] %vm1528, %v3778
        %3861 = vst.msk [vmem:[#allocation3 + $0x70] sm:$0xff] %vm1528, %v3780
        %3862 = vst.msk [vmem:[#allocation3 + $0x78] sm:$0xff] %vm1528, %v3782
        %3863 = vst.msk [vmem:[#allocation3 + $0x80] sm:$0xff] %vm1528, %v3784
        %3864 = vst.msk [vmem:[#allocation3 + $0x88] sm:$0xff] %vm1528, %v3786
        %3865 = vst.msk [vmem:[#allocation3 + $0x90] sm:$0xff] %vm1528, %v3788
        %3866 = vst.msk [vmem:[#allocation3 + $0x98] sm:$0xff] %vm1528, %v3790
        %3867 = vst.msk [vmem:[#allocation3 + $0xa0] sm:$0xff] %vm1528, %v3792
        %3868 = vst.msk [vmem:[#allocation3 + $0xa8] sm:$0xff] %vm1528, %v3794
        %3869 = vst.msk [vmem:[#allocation3 + $0xb0] sm:$0xff] %vm1528, %v3796
        %3870 = vst.msk [vmem:[#allocation3 + $0xb8] sm:$0xff] %vm1528, %v3798
        %3871 = vst.msk [vmem:[#allocation3 + $0xc0] sm:$0xff] %vm1528, %v3800
        %3872 = vst.msk [vmem:[#allocation3 + $0xc8] sm:$0xff] %vm1528, %v3802
        %3873 = vst.msk [vmem:[#allocation3 + $0xd0] sm:$0xff] %vm1528, %v3804
        %3874 = vst.msk [vmem:[#allocation3 + $0xd8] sm:$0xff] %vm1528, %v3806
        %3875 = vst.msk [vmem:[#allocation3 + $0xe0] sm:$0xff] %vm1528, %v3808
        %3876 = vst.msk [vmem:[#allocation3 + $0xe8] sm:$0xff] %vm1528, %v3810
        %3877 = vst.msk [vmem:[#allocation3 + $0xf0] sm:$0xff] %vm1528, %v3812
        %3878 = vst.msk [vmem:[#allocation3 + $0xf8] sm:$0xff] %vm1528, %v3814
        %v3879 = vld [vmem:[%s323 + $0x1] sm:$0xff]
        %v3880 = vld [vmem:[%s323 + $0x9] sm:$0xff]
        %v3881 = vld [vmem:[%s323 + $0x19] sm:$0xff]
        %v3882 = vld [vmem:[%s323 + $0x21] sm:$0xff]
        %v3883 = vld [vmem:[%s323 + $0x31] sm:$0xff]
        %v3884 = vld [vmem:[%s323 + $0x39] sm:$0xff]
        %v3885 = vld [vmem:[%s323 + $0x49] sm:$0xff]
        %v3886 = vld [vmem:[%s323 + $0x51] sm:$0xff]
        %v3887 = vld [vmem:[%s323 + $0x61] sm:$0xff]
        %v3888 = vld [vmem:[%s323 + $0x69] sm:$0xff]
        %v3889 = vld [vmem:[%s323 + $0x79] sm:$0xff]
        %v3890 = vld [vmem:[%s323 + $0x81] sm:$0xff]
        %v3891 = vld [vmem:[%s323 + $0x91] sm:$0xff]
        %v3892 = vld [vmem:[%s323 + $0x99] sm:$0xff]
        %v3893 = vld [vmem:[%s323 + $0xa9] sm:$0xff]
        %v3894 = vld [vmem:[%s323 + $0xb1] sm:$0xff]
        %v3895 = vld [vmem:[%s323 + $0xc1] sm:$0xff]
        %v3896 = vld [vmem:[%s323 + $0xc9] sm:$0xff]
        %v3897 = vld [vmem:[%s323 + $0xd9] sm:$0xff]
        %v3898 = vld [vmem:[%s323 + $0xe1] sm:$0xff]
        %v3899 = vld [vmem:[%s323 + $0xf1] sm:$0xff]
        %v3900 = vld [vmem:[%s323 + $0xf9] sm:$0xff]
        %v3901 = vld [vmem:[%s323 + $0x109] sm:$0xff]
        %v3902 = vld [vmem:[%s323 + $0x111] sm:$0xff]
        %v3903 = vld [vmem:[%s323 + $0x121] sm:$0xff]
        %v3904 = vld [vmem:[%s323 + $0x129] sm:$0xff]
        %v3905 = vld [vmem:[%s323 + $0x139] sm:$0xff]
        %v3906 = vld [vmem:[%s323 + $0x141] sm:$0xff]
        %v3907 = vld [vmem:[%s323 + $0x151] sm:$0xff]
        %v3908 = vld [vmem:[%s323 + $0x159] sm:$0xff]
        %v3909 = vld [vmem:[%s323 + $0x169] sm:$0xff]
        %v3910 = vld [vmem:[%s323 + $0x171] sm:$0xff]
        %3943 = vrot.lane.b32.xlu0 %v3879, 28
        %v3944 = vpop.permute.xlu0 %3943
        %3945 = vrot.lane.b32.xlu0 %v3880, 28
        %v3946 = vpop.permute.xlu0 %3945
        %3947 = vrot.lane.b32.xlu0 %v3881, 28
        %v3948 = vpop.permute.xlu0 %3947
        %3949 = vrot.lane.b32.xlu0 %v3882, 28
        %v3950 = vpop.permute.xlu0 %3949
        %3951 = vrot.lane.b32.xlu0 %v3883, 28
        %v3952 = vpop.permute.xlu0 %3951
        %3953 = vrot.lane.b32.xlu0 %v3884, 28
        %v3954 = vpop.permute.xlu0 %3953
        %3955 = vrot.lane.b32.xlu0 %v3885, 28
        %v3956 = vpop.permute.xlu0 %3955
        %3957 = vrot.lane.b32.xlu0 %v3886, 28
        %v3958 = vpop.permute.xlu0 %3957
        %3959 = vrot.lane.b32.xlu0 %v3887, 28
        %v3960 = vpop.permute.xlu0 %3959
        %3961 = vrot.lane.b32.xlu0 %v3888, 28
        %v3962 = vpop.permute.xlu0 %3961
        %3963 = vrot.lane.b32.xlu0 %v3889, 28
        %v3964 = vpop.permute.xlu0 %3963
        %3965 = vrot.lane.b32.xlu0 %v3890, 28
        %v3966 = vpop.permute.xlu0 %3965
        %3967 = vrot.lane.b32.xlu0 %v3891, 28
        %v3968 = vpop.permute.xlu0 %3967
        %3969 = vrot.lane.b32.xlu0 %v3892, 28
        %v3970 = vpop.permute.xlu0 %3969
        %3971 = vrot.lane.b32.xlu0 %v3893, 28
        %v3972 = vpop.permute.xlu0 %3971
        %3973 = vrot.lane.b32.xlu0 %v3894, 28
        %v3974 = vpop.permute.xlu0 %3973
        %3975 = vrot.lane.b32.xlu0 %v3895, 28
        %v3976 = vpop.permute.xlu0 %3975
        %3977 = vrot.lane.b32.xlu0 %v3896, 28
        %v3978 = vpop.permute.xlu0 %3977
        %3979 = vrot.lane.b32.xlu0 %v3897, 28
        %v3980 = vpop.permute.xlu0 %3979
        %3981 = vrot.lane.b32.xlu0 %v3898, 28
        %v3982 = vpop.permute.xlu0 %3981
        %3983 = vrot.lane.b32.xlu0 %v3899, 28
        %v3984 = vpop.permute.xlu0 %3983
        %3985 = vrot.lane.b32.xlu0 %v3900, 28
        %v3986 = vpop.permute.xlu0 %3985
        %3987 = vrot.lane.b32.xlu0 %v3901, 28
        %v3988 = vpop.permute.xlu0 %3987
        %3989 = vrot.lane.b32.xlu0 %v3902, 28
        %v3990 = vpop.permute.xlu0 %3989
        %3991 = vrot.lane.b32.xlu0 %v3903, 28
        %v3992 = vpop.permute.xlu0 %3991
        %3993 = vrot.lane.b32.xlu0 %v3904, 28
        %v3994 = vpop.permute.xlu0 %3993
        %3995 = vrot.lane.b32.xlu0 %v3905, 28
        %v3996 = vpop.permute.xlu0 %3995
        %3997 = vrot.lane.b32.xlu0 %v3906, 28
        %v3998 = vpop.permute.xlu0 %3997
        %3999 = vrot.lane.b32.xlu0 %v3907, 28
        %v4000 = vpop.permute.xlu0 %3999
        %4001 = vrot.lane.b32.xlu0 %v3908, 28
        %v4002 = vpop.permute.xlu0 %4001
        %4003 = vrot.lane.b32.xlu0 %v3909, 28
        %v4004 = vpop.permute.xlu0 %4003
        %4005 = vrot.lane.b32.xlu0 %v3910, 28
        %v4006 = vpop.permute.xlu0 %4005
        %4039 = vst.msk [vmem:[#allocation3] sm:$0xff] %vm1721, %v3944
        %4040 = vst.msk [vmem:[#allocation3 + $0x8] sm:$0xff] %vm1721, %v3946
        %4041 = vst.msk [vmem:[#allocation3 + $0x10] sm:$0xff] %vm1721, %v3948
        %4042 = vst.msk [vmem:[#allocation3 + $0x18] sm:$0xff] %vm1721, %v3950
        %4043 = vst.msk [vmem:[#allocation3 + $0x20] sm:$0xff] %vm1721, %v3952
        %4044 = vst.msk [vmem:[#allocation3 + $0x28] sm:$0xff] %vm1721, %v3954
        %4045 = vst.msk [vmem:[#allocation3 + $0x30] sm:$0xff] %vm1721, %v3956
        %4046 = vst.msk [vmem:[#allocation3 + $0x38] sm:$0xff] %vm1721, %v3958
        %4047 = vst.msk [vmem:[#allocation3 + $0x40] sm:$0xff] %vm1721, %v3960
        %4048 = vst.msk [vmem:[#allocation3 + $0x48] sm:$0xff] %vm1721, %v3962
        %4049 = vst.msk [vmem:[#allocation3 + $0x50] sm:$0xff] %vm1721, %v3964
        %4050 = vst.msk [vmem:[#allocation3 + $0x58] sm:$0xff] %vm1721, %v3966
        %4051 = vst.msk [vmem:[#allocation3 + $0x60] sm:$0xff] %vm1721, %v3968
        %4052 = vst.msk [vmem:[#allocation3 + $0x68] sm:$0xff] %vm1721, %v3970
        %4053 = vst.msk [vmem:[#allocation3 + $0x70] sm:$0xff] %vm1721, %v3972
        %4054 = vst.msk [vmem:[#allocation3 + $0x78] sm:$0xff] %vm1721, %v3974
        %4055 = vst.msk [vmem:[#allocation3 + $0x80] sm:$0xff] %vm1721, %v3976
        %4056 = vst.msk [vmem:[#allocation3 + $0x88] sm:$0xff] %vm1721, %v3978
        %4057 = vst.msk [vmem:[#allocation3 + $0x90] sm:$0xff] %vm1721, %v3980
        %4058 = vst.msk [vmem:[#allocation3 + $0x98] sm:$0xff] %vm1721, %v3982
        %4059 = vst.msk [vmem:[#allocation3 + $0xa0] sm:$0xff] %vm1721, %v3984
        %4060 = vst.msk [vmem:[#allocation3 + $0xa8] sm:$0xff] %vm1721, %v3986
        %4061 = vst.msk [vmem:[#allocation3 + $0xb0] sm:$0xff] %vm1721, %v3988
        %4062 = vst.msk [vmem:[#allocation3 + $0xb8] sm:$0xff] %vm1721, %v3990
        %4063 = vst.msk [vmem:[#allocation3 + $0xc0] sm:$0xff] %vm1721, %v3992
        %4064 = vst.msk [vmem:[#allocation3 + $0xc8] sm:$0xff] %vm1721, %v3994
        %4065 = vst.msk [vmem:[#allocation3 + $0xd0] sm:$0xff] %vm1721, %v3996
        %4066 = vst.msk [vmem:[#allocation3 + $0xd8] sm:$0xff] %vm1721, %v3998
        %4067 = vst.msk [vmem:[#allocation3 + $0xe0] sm:$0xff] %vm1721, %v4000
        %4068 = vst.msk [vmem:[#allocation3 + $0xe8] sm:$0xff] %vm1721, %v4002
        %4069 = vst.msk [vmem:[#allocation3 + $0xf0] sm:$0xff] %vm1721, %v4004
        %4070 = vst.msk [vmem:[#allocation3 + $0xf8] sm:$0xff] %vm1721, %v4006
        %v4071 = vld [vmem:[%s323 + $0x2] sm:$0xff]
        %v4072 = vld [vmem:[%s323 + $0xa] sm:$0xff]
        %v4073 = vld [vmem:[%s323 + $0x1a] sm:$0xff]
        %v4074 = vld [vmem:[%s323 + $0x22] sm:$0xff]
        %v4075 = vld [vmem:[%s323 + $0x32] sm:$0xff]
        %v4076 = vld [vmem:[%s323 + $0x3a] sm:$0xff]
        %v4077 = vld [vmem:[%s323 + $0x4a] sm:$0xff]
        %v4078 = vld [vmem:[%s323 + $0x52] sm:$0xff]
        %v4079 = vld [vmem:[%s323 + $0x62] sm:$0xff]
        %v4080 = vld [vmem:[%s323 + $0x6a] sm:$0xff]
        %v4081 = vld [vmem:[%s323 + $0x7a] sm:$0xff]
        %v4082 = vld [vmem:[%s323 + $0x82] sm:$0xff]
        %v4083 = vld [vmem:[%s323 + $0x92] sm:$0xff]
        %v4084 = vld [vmem:[%s323 + $0x9a] sm:$0xff]
        %v4085 = vld [vmem:[%s323 + $0xaa] sm:$0xff]
        %v4086 = vld [vmem:[%s323 + $0xb2] sm:$0xff]
        %v4087 = vld [vmem:[%s323 + $0xc2] sm:$0xff]
        %v4088 = vld [vmem:[%s323 + $0xca] sm:$0xff]
        %v4089 = vld [vmem:[%s323 + $0xda] sm:$0xff]
        %v4090 = vld [vmem:[%s323 + $0xe2] sm:$0xff]
        %v4091 = vld [vmem:[%s323 + $0xf2] sm:$0xff]
        %v4092 = vld [vmem:[%s323 + $0xfa] sm:$0xff]
        %v4093 = vld [vmem:[%s323 + $0x10a] sm:$0xff]
        %v4094 = vld [vmem:[%s323 + $0x112] sm:$0xff]
        %v4095 = vld [vmem:[%s323 + $0x122] sm:$0xff]
        %v4096 = vld [vmem:[%s323 + $0x12a] sm:$0xff]
        %v4097 = vld [vmem:[%s323 + $0x13a] sm:$0xff]
        %v4098 = vld [vmem:[%s323 + $0x142] sm:$0xff]
        %v4099 = vld [vmem:[%s323 + $0x152] sm:$0xff]
        %v4100 = vld [vmem:[%s323 + $0x15a] sm:$0xff]
        %v4101 = vld [vmem:[%s323 + $0x16a] sm:$0xff]
        %v4102 = vld [vmem:[%s323 + $0x172] sm:$0xff]
        %4135 = vrot.lane.b32.xlu0 %v4071, 32
        %v4136 = vpop.permute.xlu0 %4135
        %4137 = vrot.lane.b32.xlu0 %v4072, 32
        %v4138 = vpop.permute.xlu0 %4137
        %4139 = vrot.lane.b32.xlu0 %v4073, 32
        %v4140 = vpop.permute.xlu0 %4139
        %4141 = vrot.lane.b32.xlu0 %v4074, 32
        %v4142 = vpop.permute.xlu0 %4141
        %4143 = vrot.lane.b32.xlu0 %v4075, 32
        %v4144 = vpop.permute.xlu0 %4143
        %4145 = vrot.lane.b32.xlu0 %v4076, 32
        %v4146 = vpop.permute.xlu0 %4145
        %4147 = vrot.lane.b32.xlu0 %v4077, 32
        %v4148 = vpop.permute.xlu0 %4147
        %4149 = vrot.lane.b32.xlu0 %v4078, 32
        %v4150 = vpop.permute.xlu0 %4149
        %4151 = vrot.lane.b32.xlu0 %v4079, 32
        %v4152 = vpop.permute.xlu0 %4151
        %4153 = vrot.lane.b32.xlu0 %v4080, 32
        %v4154 = vpop.permute.xlu0 %4153
        %4155 = vrot.lane.b32.xlu0 %v4081, 32
        %v4156 = vpop.permute.xlu0 %4155
        %4157 = vrot.lane.b32.xlu0 %v4082, 32
        %v4158 = vpop.permute.xlu0 %4157
        %4159 = vrot.lane.b32.xlu0 %v4083, 32
        %v4160 = vpop.permute.xlu0 %4159
        %4161 = vrot.lane.b32.xlu0 %v4084, 32
        %v4162 = vpop.permute.xlu0 %4161
        %4163 = vrot.lane.b32.xlu0 %v4085, 32
        %v4164 = vpop.permute.xlu0 %4163
        %4165 = vrot.lane.b32.xlu0 %v4086, 32
        %v4166 = vpop.permute.xlu0 %4165
        %4167 = vrot.lane.b32.xlu0 %v4087, 32
        %v4168 = vpop.permute.xlu0 %4167
        %4169 = vrot.lane.b32.xlu0 %v4088, 32
        %v4170 = vpop.permute.xlu0 %4169
        %4171 = vrot.lane.b32.xlu0 %v4089, 32
        %v4172 = vpop.permute.xlu0 %4171
        %4173 = vrot.lane.b32.xlu0 %v4090, 32
        %v4174 = vpop.permute.xlu0 %4173
        %4175 = vrot.lane.b32.xlu0 %v4091, 32
        %v4176 = vpop.permute.xlu0 %4175
        %4177 = vrot.lane.b32.xlu0 %v4092, 32
        %v4178 = vpop.permute.xlu0 %4177
        %4179 = vrot.lane.b32.xlu0 %v4093, 32
        %v4180 = vpop.permute.xlu0 %4179
        %4181 = vrot.lane.b32.xlu0 %v4094, 32
        %v4182 = vpop.permute.xlu0 %4181
        %4183 = vrot.lane.b32.xlu0 %v4095, 32
        %v4184 = vpop.permute.xlu0 %4183
        %4185 = vrot.lane.b32.xlu0 %v4096, 32
        %v4186 = vpop.permute.xlu0 %4185
        %4187 = vrot.lane.b32.xlu0 %v4097, 32
        %v4188 = vpop.permute.xlu0 %4187
        %4189 = vrot.lane.b32.xlu0 %v4098, 32
        %v4190 = vpop.permute.xlu0 %4189
        %4191 = vrot.lane.b32.xlu0 %v4099, 32
        %v4192 = vpop.permute.xlu0 %4191
        %4193 = vrot.lane.b32.xlu0 %v4100, 32
        %v4194 = vpop.permute.xlu0 %4193
        %4195 = vrot.lane.b32.xlu0 %v4101, 32
        %v4196 = vpop.permute.xlu0 %4195
        %4197 = vrot.lane.b32.xlu0 %v4102, 32
        %v4198 = vpop.permute.xlu0 %4197
        %4231 = vst.msk [vmem:[#allocation3] sm:$0xff] %vm1914, %v4136
        %4232 = vst.msk [vmem:[#allocation3 + $0x8] sm:$0xff] %vm1914, %v4138
        %4233 = vst.msk [vmem:[#allocation3 + $0x10] sm:$0xff] %vm1914, %v4140
        %4234 = vst.msk [vmem:[#allocation3 + $0x18] sm:$0xff] %vm1914, %v4142
        %4235 = vst.msk [vmem:[#allocation3 + $0x20] sm:$0xff] %vm1914, %v4144
        %4236 = vst.msk [vmem:[#allocation3 + $0x28] sm:$0xff] %vm1914, %v4146
        %4237 = vst.msk [vmem:[#allocation3 + $0x30] sm:$0xff] %vm1914, %v4148
        %4238 = vst.msk [vmem:[#allocation3 + $0x38] sm:$0xff] %vm1914, %v4150
        %4239 = vst.msk [vmem:[#allocation3 + $0x40] sm:$0xff] %vm1914, %v4152
        %4240 = vst.msk [vmem:[#allocation3 + $0x48] sm:$0xff] %vm1914, %v4154
        %4241 = vst.msk [vmem:[#allocation3 + $0x50] sm:$0xff] %vm1914, %v4156
        %4242 = vst.msk [vmem:[#allocation3 + $0x58] sm:$0xff] %vm1914, %v4158
        %4243 = vst.msk [vmem:[#allocation3 + $0x60] sm:$0xff] %vm1914, %v4160
        %4244 = vst.msk [vmem:[#allocation3 + $0x68] sm:$0xff] %vm1914, %v4162
        %4245 = vst.msk [vmem:[#allocation3 + $0x70] sm:$0xff] %vm1914, %v4164
        %4246 = vst.msk [vmem:[#allocation3 + $0x78] sm:$0xff] %vm1914, %v4166
        %4247 = vst.msk [vmem:[#allocation3 + $0x80] sm:$0xff] %vm1914, %v4168
        %4248 = vst.msk [vmem:[#allocation3 + $0x88] sm:$0xff] %vm1914, %v4170
        %4249 = vst.msk [vmem:[#allocation3 + $0x90] sm:$0xff] %vm1914, %v4172
        %4250 = vst.msk [vmem:[#allocation3 + $0x98] sm:$0xff] %vm1914, %v4174
        %4251 = vst.msk [vmem:[#allocation3 + $0xa0] sm:$0xff] %vm1914, %v4176
        %4252 = vst.msk [vmem:[#allocation3 + $0xa8] sm:$0xff] %vm1914, %v4178
        %4253 = vst.msk [vmem:[#allocation3 + $0xb0] sm:$0xff] %vm1914, %v4180
        %4254 = vst.msk [vmem:[#allocation3 + $0xb8] sm:$0xff] %vm1914, %v4182
        %4255 = vst.msk [vmem:[#allocation3 + $0xc0] sm:$0xff] %vm1914, %v4184
        %4256 = vst.msk [vmem:[#allocation3 + $0xc8] sm:$0xff] %vm1914, %v4186
        %4257 = vst.msk [vmem:[#allocation3 + $0xd0] sm:$0xff] %vm1914, %v4188
        %4258 = vst.msk [vmem:[#allocation3 + $0xd8] sm:$0xff] %vm1914, %v4190
        %4259 = vst.msk [vmem:[#allocation3 + $0xe0] sm:$0xff] %vm1914, %v4192
        %4260 = vst.msk [vmem:[#allocation3 + $0xe8] sm:$0xff] %vm1914, %v4194
        %4261 = vst.msk [vmem:[#allocation3 + $0xf0] sm:$0xff] %vm1914, %v4196
        %4262 = vst.msk [vmem:[#allocation3 + $0xf8] sm:$0xff] %vm1914, %v4198
        %v4263 = vld [vmem:[#allocation3] sm:$0xff]
        %v4264 = vld [vmem:[#allocation3 + $0x8] sm:$0xff]
        %v4265 = vld [vmem:[#allocation3 + $0x10] sm:$0xff]
        %v4266 = vld [vmem:[#allocation3 + $0x18] sm:$0xff]
        %v4267 = vld [vmem:[#allocation3 + $0x20] sm:$0xff]
        %v4268 = vld [vmem:[#allocation3 + $0x28] sm:$0xff]
        %v4269 = vld [vmem:[#allocation3 + $0x30] sm:$0xff]
        %v4270 = vld [vmem:[#allocation3 + $0x38] sm:$0xff]
        %v4271 = vld [vmem:[#allocation3 + $0x40] sm:$0xff]
        %v4272 = vld [vmem:[#allocation3 + $0x48] sm:$0xff]
        %v4273 = vld [vmem:[#allocation3 + $0x50] sm:$0xff]
        %v4274 = vld [vmem:[#allocation3 + $0x58] sm:$0xff]
        %v4275 = vld [vmem:[#allocation3 + $0x60] sm:$0xff]
        %v4276 = vld [vmem:[#allocation3 + $0x68] sm:$0xff]
        %v4277 = vld [vmem:[#allocation3 + $0x70] sm:$0xff]
        %v4278 = vld [vmem:[#allocation3 + $0x78] sm:$0xff]
        %v4279 = vld [vmem:[#allocation3 + $0x80] sm:$0xff]
        %v4280 = vld [vmem:[#allocation3 + $0x88] sm:$0xff]
        %v4281 = vld [vmem:[#allocation3 + $0x90] sm:$0xff]
        %v4282 = vld [vmem:[#allocation3 + $0x98] sm:$0xff]
        %v4283 = vld [vmem:[#allocation3 + $0xa0] sm:$0xff]
        %v4284 = vld [vmem:[#allocation3 + $0xa8] sm:$0xff]
        %v4285 = vld [vmem:[#allocation3 + $0xb0] sm:$0xff]
        %v4286 = vld [vmem:[#allocation3 + $0xb8] sm:$0xff]
        %v4287 = vld [vmem:[#allocation3 + $0xc0] sm:$0xff]
        %v4288 = vld [vmem:[#allocation3 + $0xc8] sm:$0xff]
        %v4289 = vld [vmem:[#allocation3 + $0xd0] sm:$0xff]
        %v4290 = vld [vmem:[#allocation3 + $0xd8] sm:$0xff]
        %v4291 = vld [vmem:[#allocation3 + $0xe0] sm:$0xff]
        %v4292 = vld [vmem:[#allocation3 + $0xe8] sm:$0xff]
        %v4293 = vld [vmem:[#allocation3 + $0xf0] sm:$0xff]
        %v4294 = vld [vmem:[#allocation3 + $0xf8] sm:$0xff]
        %v4295 = vld [vmem:[%s3] sm:$0xff]
        %v4296 = vld [vmem:[%s3 + $0x8] sm:$0xff]
        %v4297 = vld [vmem:[%s3 + $0x10] sm:$0xff]
        %v4298 = vld [vmem:[%s3 + $0x18] sm:$0xff]
        %v4299 = vld [vmem:[%s3 + $0x20] sm:$0xf]
        %v4300 = vld [vmem:[%s4] sm:$0x1]
        %v4302 = vlaneseq
        %v4303 = vshrl.u32 %v4302, 7
        %v4304 = vsub.s32 0, %v4303
        %v4305 = vrot.slane %v4300, %v4304
        %v4308 = vsel %vm1991, %v4263, 0
        %v4311 = vsel %vm1991, %v4264, 0
        %v4314 = vsel %vm1991, %v4265, 0
        %v4317 = vsel %vm1991, %v4266, 0
        %v4320 = vsel %vm1991, %v4267, 0
        %v4323 = vsel %vm1991, %v4268, 0
        %v4326 = vsel %vm1991, %v4269, 0
        %v4329 = vsel %vm1991, %v4270, 0
        %v4332 = vsel %vm1991, %v4271, 0
        %v4335 = vsel %vm1991, %v4272, 0
        %v4338 = vsel %vm1991, %v4273, 0
        %v4341 = vsel %vm1991, %v4274, 0
        %v4344 = vsel %vm1991, %v4275, 0
        %v4347 = vsel %vm1991, %v4276, 0
        %v4350 = vsel %vm1991, %v4277, 0
        %v4353 = vsel %vm1991, %v4278, 0
        %v4356 = vsel %vm1991, %v4279, 0
        %v4359 = vsel %vm1991, %v4280, 0
        %v4362 = vsel %vm1991, %v4281, 0
        %v4365 = vsel %vm1991, %v4282, 0
        %v4368 = vsel %vm1991, %v4283, 0
        %v4371 = vsel %vm1991, %v4284, 0
        %v4374 = vsel %vm1991, %v4285, 0
        %v4377 = vsel %vm1991, %v4286, 0
        %v4380 = vsel %vm1991, %v4287, 0
        %v4383 = vsel %vm1991, %v4288, 0
        %v4386 = vsel %vm1991, %v4289, 0
        %v4389 = vsel %vm1991, %v4290, 0
        %v4392 = vsel %vm1991, %v4291, 0
        %v4395 = vsel %vm1991, %v4292, 0
        %v4398 = vsel %vm1991, %v4293, 0
        %v4401 = vsel %vm1991, %v4294, 0
        %v4404 = vsel %vm2088, %v4299, 0
        %4406 = vmatprep.subr.mxu0 0.0
        %4407 = vmatpush1.msra.mxu0 %v4295
        %4408 = vmatprep.subr.mxu0 0.0
        %4409 = vmatpush1.msra.mxu0 %v4296
        %4410 = vmatprep.subr.mxu0 0.0
        %4411 = vmatpush1.msra.mxu0 %v4297
        %4412 = vmatprep.subr.mxu0 0.0
        %4413 = vmatpush1.msra.mxu0 %v4298
        %4414 = vmatprep.subr.mxu0 0.0
        %4415 = vmatpush1.msra.mxu0 %v4404
        %4416 = vmatprep.subr.mxu0 0.0
        %4417 = vmatpush1.msra.mxu0 0.0
        %4418 = vmatprep.subr.mxu0 0.0
        %4419 = vmatpush1.msra.mxu0 0.0
        %4420 = vmatprep.subr.mxu0 0.0
        %4421 = vmatpush1.msra.mxu0 0.0
        %4422 = vmatprep.subr.mxu0 0.0
        %4423 = vmatpush1.msra.mxu0 0.0
        %4424 = vmatprep.subr.mxu0 0.0
        %4425 = vmatpush1.msra.mxu0 0.0
        %4426 = vmatprep.subr.mxu0 0.0
        %4427 = vmatpush1.msra.mxu0 0.0
        %4428 = vmatprep.subr.mxu0 0.0
        %4429 = vmatpush1.msra.mxu0 0.0
        %4430 = vmatprep.subr.mxu0 0.0
        %4431 = vmatpush1.msra.mxu0 0.0
        %4432 = vmatprep.subr.mxu0 0.0
        %4433 = vmatpush1.msra.mxu0 0.0
        %4434 = vmatprep.subr.mxu0 0.0
        %4435 = vmatpush1.msra.mxu0 0.0
        %4436 = vmatprep.subr.mxu0 0.0
        %4437 = vmatpush1.msra.mxu0 0.0
        %4438 = vmatprep.subr.mxu0 0.0
        %4439 = vmatpush1.msra.mxu0 0.0
        %4440 = vmatprep.subr.mxu0 0.0
        %4441 = vmatpush1.msra.mxu0 0.0
        %4442 = vmatprep.subr.mxu0 0.0
        %4443 = vmatpush1.msra.mxu0 0.0
        %4444 = vmatprep.subr.mxu0 0.0
        %4445 = vmatpush1.msra.mxu0 0.0
        %4446 = vmatprep.subr.mxu0 0.0
        %4447 = vmatpush1.msra.mxu0 0.0
        %4448 = vmatprep.subr.mxu0 0.0
        %4449 = vmatpush1.msra.mxu0 0.0
        %4450 = vmatprep.subr.mxu0 0.0
        %4451 = vmatpush1.msra.mxu0 0.0
        %4452 = vmatprep.subr.mxu0 0.0
        %4453 = vmatpush1.msra.mxu0 0.0
        %4454 = vmatprep.subr.mxu0 0.0
        %4455 = vmatpush1.msra.mxu0 0.0
        %4456 = vmatprep.subr.mxu0 0.0
        %4457 = vmatpush1.msra.mxu0 0.0
        %4458 = vmatprep.subr.mxu0 0.0
        %4459 = vmatpush1.msra.mxu0 0.0
        %4460 = vmatprep.subr.mxu0 0.0
        %4461 = vmatpush1.msra.mxu0 0.0
        %4462 = vmatprep.subr.mxu0 0.0
        %4463 = vmatpush1.msra.mxu0 0.0
        %4464 = vmatprep.subr.mxu0 0.0
        %4465 = vmatpush1.msra.mxu0 0.0
        %4466 = vmatprep.subr.mxu0 0.0
        %4467 = vmatpush1.msra.mxu0 0.0
        %4468 = vmatprep.subr.mxu0 0.0
        %4469 = vmatpush1.msra.mxu0 0.0
        %4470 = vmatprep.mubr.f32.mxu0 0.0
        %4471 = vmatmul.mubr.f32.gmra.mrb[0].mxu0 %v4308
        %v4472 = vpop.f32.mrb[0].mxu0
        %v4473 = vadd.f32 %v4305, %v4472
        %v4474 = vpop.f32.mrb[0].mxu0
        %4475 = vmatprep.mubr.f32.mxu0 0.0
        %4476 = vmatmul.mubr.f32.gmra.mrb[0].mxu0 %v4311
        %v4477 = vpop.f32.mrb[0].mxu0
        %v4478 = vadd.f32 %v4305, %v4477
        %v4479 = vpop.f32.mrb[0].mxu0
        %4480 = vmatprep.mubr.f32.mxu0 0.0
        %4481 = vmatmul.mubr.f32.gmra.mrb[0].mxu0 %v4314
        %v4482 = vpop.f32.mrb[0].mxu0
        %v4483 = vadd.f32 %v4305, %v4482
        %v4484 = vpop.f32.mrb[0].mxu0
        %4485 = vmatprep.mubr.f32.mxu0 0.0
        %4486 = vmatmul.mubr.f32.gmra.mrb[0].mxu0 %v4317
        %v4487 = vpop.f32.mrb[0].mxu0
        %v4488 = vadd.f32 %v4305, %v4487
        %v4489 = vpop.f32.mrb[0].mxu0
        %4490 = vmatprep.mubr.f32.mxu0 0.0
        %4491 = vmatmul.mubr.f32.gmra.mrb[0].mxu0 %v4320
        %v4492 = vpop.f32.mrb[0].mxu0
        %v4493 = vadd.f32 %v4305, %v4492
        %v4494 = vpop.f32.mrb[0].mxu0
        %4495 = vmatprep.mubr.f32.mxu0 0.0
        %4496 = vmatmul.mubr.f32.gmra.mrb[0].mxu0 %v4323
        %v4497 = vpop.f32.mrb[0].mxu0
        %v4498 = vadd.f32 %v4305, %v4497
        %v4499 = vpop.f32.mrb[0].mxu0
        %4500 = vmatprep.mubr.f32.mxu0 0.0
        %4501 = vmatmul.mubr.f32.gmra.mrb[0].mxu0 %v4326
        %v4502 = vpop.f32.mrb[0].mxu0
        %v4503 = vadd.f32 %v4305, %v4502
        %v4504 = vpop.f32.mrb[0].mxu0
        %4505 = vmatprep.mubr.f32.mxu0 0.0
        %4506 = vmatmul.mubr.f32.gmra.mrb[0].mxu0 %v4329
        %v4507 = vpop.f32.mrb[0].mxu0
        %v4508 = vadd.f32 %v4305, %v4507
        %v4509 = vpop.f32.mrb[0].mxu0
        %4510 = vmatprep.mubr.f32.mxu0 0.0
        %4511 = vmatmul.mubr.f32.gmra.mrb[0].mxu0 %v4332
        %v4512 = vpop.f32.mrb[0].mxu0
        %v4513 = vadd.f32 %v4305, %v4512
        %v4514 = vpop.f32.mrb[0].mxu0
        %4515 = vmatprep.mubr.f32.mxu0 0.0
        %4516 = vmatmul.mubr.f32.gmra.mrb[0].mxu0 %v4335
        %v4517 = vpop.f32.mrb[0].mxu0
        %v4518 = vadd.f32 %v4305, %v4517
        %v4519 = vpop.f32.mrb[0].mxu0
        %4520 = vmatprep.mubr.f32.mxu0 0.0
        %4521 = vmatmul.mubr.f32.gmra.mrb[0].mxu0 %v4338
        %v4522 = vpop.f32.mrb[0].mxu0
        %v4523 = vadd.f32 %v4305, %v4522
        %v4524 = vpop.f32.mrb[0].mxu0
        %4525 = vmatprep.mubr.f32.mxu0 0.0
        %4526 = vmatmul.mubr.f32.gmra.mrb[0].mxu0 %v4341
        %v4527 = vpop.f32.mrb[0].mxu0
        %v4528 = vadd.f32 %v4305, %v4527
        %v4529 = vpop.f32.mrb[0].mxu0
        %4530 = vmatprep.mubr.f32.mxu0 0.0
        %4531 = vmatmul.mubr.f32.gmra.mrb[0].mxu0 %v4344
        %v4532 = vpop.f32.mrb[0].mxu0
        %v4533 = vadd.f32 %v4305, %v4532
        %v4534 = vpop.f32.mrb[0].mxu0
        %4535 = vmatprep.mubr.f32.mxu0 0.0
        %4536 = vmatmul.mubr.f32.gmra.mrb[0].mxu0 %v4347
        %v4537 = vpop.f32.mrb[0].mxu0
        %v4538 = vadd.f32 %v4305, %v4537
        %v4539 = vpop.f32.mrb[0].mxu0
        %4540 = vmatprep.mubr.f32.mxu0 0.0
        %4541 = vmatmul.mubr.f32.gmra.mrb[0].mxu0 %v4350
        %v4542 = vpop.f32.mrb[0].mxu0
        %v4543 = vadd.f32 %v4305, %v4542
        %v4544 = vpop.f32.mrb[0].mxu0
        %4545 = vmatprep.mubr.f32.mxu0 0.0
        %4546 = vmatmul.mubr.f32.gmra.mrb[0].mxu0 %v4353
        %v4547 = vpop.f32.mrb[0].mxu0
        %v4548 = vadd.f32 %v4305, %v4547
        %v4549 = vpop.f32.mrb[0].mxu0
        %4550 = vmatprep.mubr.f32.mxu0 0.0
        %4551 = vmatmul.mubr.f32.gmra.mrb[0].mxu0 %v4356
        %v4552 = vpop.f32.mrb[0].mxu0
        %v4553 = vadd.f32 %v4305, %v4552
        %v4554 = vpop.f32.mrb[0].mxu0
        %4555 = vmatprep.mubr.f32.mxu0 0.0
        %4556 = vmatmul.mubr.f32.gmra.mrb[0].mxu0 %v4359
        %v4557 = vpop.f32.mrb[0].mxu0
        %v4558 = vadd.f32 %v4305, %v4557
        %v4559 = vpop.f32.mrb[0].mxu0
        %4560 = vmatprep.mubr.f32.mxu0 0.0
        %4561 = vmatmul.mubr.f32.gmra.mrb[0].mxu0 %v4362
        %v4562 = vpop.f32.mrb[0].mxu0
        %v4563 = vadd.f32 %v4305, %v4562
        %v4564 = vpop.f32.mrb[0].mxu0
        %4565 = vmatprep.mubr.f32.mxu0 0.0
        %4566 = vmatmul.mubr.f32.gmra.mrb[0].mxu0 %v4365
        %v4567 = vpop.f32.mrb[0].mxu0
        %v4568 = vadd.f32 %v4305, %v4567
        %v4569 = vpop.f32.mrb[0].mxu0
        %4570 = vmatprep.mubr.f32.mxu0 0.0
        %4571 = vmatmul.mubr.f32.gmra.mrb[0].mxu0 %v4368
        %v4572 = vpop.f32.mrb[0].mxu0
        %v4573 = vadd.f32 %v4305, %v4572
        %v4574 = vpop.f32.mrb[0].mxu0
        %4575 = vmatprep.mubr.f32.mxu0 0.0
        %4576 = vmatmul.mubr.f32.gmra.mrb[0].mxu0 %v4371
        %v4577 = vpop.f32.mrb[0].mxu0
        %v4578 = vadd.f32 %v4305, %v4577
        %v4579 = vpop.f32.mrb[0].mxu0
        %4580 = vmatprep.mubr.f32.mxu0 0.0
        %4581 = vmatmul.mubr.f32.gmra.mrb[0].mxu0 %v4374
        %v4582 = vpop.f32.mrb[0].mxu0
        %v4583 = vadd.f32 %v4305, %v4582
        %v4584 = vpop.f32.mrb[0].mxu0
        %4585 = vmatprep.mubr.f32.mxu0 0.0
        %4586 = vmatmul.mubr.f32.gmra.mrb[0].mxu0 %v4377
        %v4587 = vpop.f32.mrb[0].mxu0
        %v4588 = vadd.f32 %v4305, %v4587
        %v4589 = vpop.f32.mrb[0].mxu0
        %4590 = vmatprep.mubr.f32.mxu0 0.0
        %4591 = vmatmul.mubr.f32.gmra.mrb[0].mxu0 %v4380
        %v4592 = vpop.f32.mrb[0].mxu0
        %v4593 = vadd.f32 %v4305, %v4592
        %v4594 = vpop.f32.mrb[0].mxu0
        %4595 = vmatprep.mubr.f32.mxu0 0.0
        %4596 = vmatmul.mubr.f32.gmra.mrb[0].mxu0 %v4383
        %v4597 = vpop.f32.mrb[0].mxu0
        %v4598 = vadd.f32 %v4305, %v4597
        %v4599 = vpop.f32.mrb[0].mxu0
        %4600 = vmatprep.mubr.f32.mxu0 0.0
        %4601 = vmatmul.mubr.f32.gmra.mrb[0].mxu0 %v4386
        %v4602 = vpop.f32.mrb[0].mxu0
        %v4603 = vadd.f32 %v4305, %v4602
        %v4604 = vpop.f32.mrb[0].mxu0
        %4605 = vmatprep.mubr.f32.mxu0 0.0
        %4606 = vmatmul.mubr.f32.gmra.mrb[0].mxu0 %v4389
        %v4607 = vpop.f32.mrb[0].mxu0
        %v4608 = vadd.f32 %v4305, %v4607
        %v4609 = vpop.f32.mrb[0].mxu0
        %4610 = vmatprep.mubr.f32.mxu0 0.0
        %4611 = vmatmul.mubr.f32.gmra.mrb[0].mxu0 %v4392
        %v4612 = vpop.f32.mrb[0].mxu0
        %v4613 = vadd.f32 %v4305, %v4612
        %v4614 = vpop.f32.mrb[0].mxu0
        %4615 = vmatprep.mubr.f32.mxu0 0.0
        %4616 = vmatmul.mubr.f32.gmra.mrb[0].mxu0 %v4395
        %v4617 = vpop.f32.mrb[0].mxu0
        %v4618 = vadd.f32 %v4305, %v4617
        %v4619 = vpop.f32.mrb[0].mxu0
        %4620 = vmatprep.mubr.f32.mxu0 0.0
        %4621 = vmatmul.mubr.f32.gmra.mrb[0].mxu0 %v4398
        %v4622 = vpop.f32.mrb[0].mxu0
        %v4623 = vadd.f32 %v4305, %v4622
        %v4624 = vpop.f32.mrb[0].mxu0
        %4625 = vmatprep.mubr.f32.mxu0 0.0
        %4626 = vmatmul.mubr.f32.gmra.mrb[0].mxu0 %v4401
        %v4627 = vpop.f32.mrb[0].mxu0
        %v4628 = vadd.f32 %v4305, %v4627
        %v4629 = vpop.f32.mrb[0].mxu0
        %4630 = vdwg.mxu0
        %v4631 = vadd.f32 %v4473, %v4478
        %v4632 = vadd.f32 %v4631, %v4483
        %v4633 = vadd.f32 %v4632, %v4488
        %v4634 = vadd.f32 %v4633, %v4493
        %v4635 = vadd.f32 %v4634, %v4498
        %v4636 = vadd.f32 %v4635, %v4503
        %v4637 = vadd.f32 %v4636, %v4508
        %v4638 = vadd.f32 %v4637, %v4513
        %v4639 = vadd.f32 %v4638, %v4518
        %v4640 = vadd.f32 %v4639, %v4523
        %v4641 = vadd.f32 %v4640, %v4528
        %v4642 = vadd.f32 %v4641, %v4533
        %v4643 = vadd.f32 %v4642, %v4538
        %v4644 = vadd.f32 %v4643, %v4543
        %v4645 = vadd.f32 %v4644, %v4548
        %v4646 = vadd.f32 %v4645, %v4553
        %v4647 = vadd.f32 %v4646, %v4558
        %v4648 = vadd.f32 %v4647, %v4563
        %v4649 = vadd.f32 %v4648, %v4568
        %v4650 = vadd.f32 %v4649, %v4573
        %v4651 = vadd.f32 %v4650, %v4578
        %v4652 = vadd.f32 %v4651, %v4583
        %v4653 = vadd.f32 %v4652, %v4588
        %v4654 = vadd.f32 %v4653, %v4593
        %v4655 = vadd.f32 %v4654, %v4598
        %v4656 = vadd.f32 %v4655, %v4603
        %v4657 = vadd.f32 %v4656, %v4608
        %v4658 = vadd.f32 %v4657, %v4613
        %v4659 = vadd.f32 %v4658, %v4618
        %v4660 = vadd.f32 %v4659, %v4623
        %v4661 = vadd.f32 %v4660, %v4628
        %v4662 = vrot.slane %v4661, 4
        %v4663 = vadd.f32 %v4661, %v4662
        %v4664 = vrot.slane %v4663, 2
        %v4665 = vadd.f32 %v4663, %v4664
        %v4666 = vrot.slane %v4665, 1
        %v4667 = vadd.f32 %v4665, %v4666
        %v4668 = vmul.f32 %v4667, 0.00390625
        %v4669 = vsub.f32 %v4473, %v4668
        %v4670 = vsub.f32 %v4478, %v4668
        %v4671 = vsub.f32 %v4483, %v4668
        %v4672 = vsub.f32 %v4488, %v4668
        %v4673 = vsub.f32 %v4493, %v4668
        %v4674 = vsub.f32 %v4498, %v4668
        %v4675 = vsub.f32 %v4503, %v4668
        %v4676 = vsub.f32 %v4508, %v4668
        %v4677 = vsub.f32 %v4513, %v4668
        %v4678 = vsub.f32 %v4518, %v4668
        %v4679 = vsub.f32 %v4523, %v4668
        %v4680 = vsub.f32 %v4528, %v4668
        %v4681 = vsub.f32 %v4533, %v4668
        %v4682 = vsub.f32 %v4538, %v4668
        %v4683 = vsub.f32 %v4543, %v4668
        %v4684 = vsub.f32 %v4548, %v4668
        %v4685 = vsub.f32 %v4553, %v4668
        %v4686 = vsub.f32 %v4558, %v4668
        %v4687 = vsub.f32 %v4563, %v4668
        %v4688 = vsub.f32 %v4568, %v4668
        %v4689 = vsub.f32 %v4573, %v4668
        %v4690 = vsub.f32 %v4578, %v4668
        %v4691 = vsub.f32 %v4583, %v4668
        %v4692 = vsub.f32 %v4588, %v4668
        %v4693 = vsub.f32 %v4593, %v4668
        %v4694 = vsub.f32 %v4598, %v4668
        %v4695 = vsub.f32 %v4603, %v4668
        %v4696 = vsub.f32 %v4608, %v4668
        %v4697 = vsub.f32 %v4613, %v4668
        %v4698 = vsub.f32 %v4618, %v4668
        %v4699 = vsub.f32 %v4623, %v4668
        %v4700 = vsub.f32 %v4628, %v4668
        %v4701 = vmul.f32 %v4669, %v4669
        %v4702 = vmul.f32 %v4670, %v4670
        %v4703 = vmul.f32 %v4671, %v4671
        %v4704 = vmul.f32 %v4672, %v4672
        %v4705 = vmul.f32 %v4673, %v4673
        %v4706 = vmul.f32 %v4674, %v4674
        %v4707 = vmul.f32 %v4675, %v4675
        %v4708 = vmul.f32 %v4676, %v4676
        %v4709 = vmul.f32 %v4677, %v4677
        %v4710 = vmul.f32 %v4678, %v4678
        %v4711 = vmul.f32 %v4679, %v4679
        %v4712 = vmul.f32 %v4680, %v4680
        %v4713 = vmul.f32 %v4681, %v4681
        %v4714 = vmul.f32 %v4682, %v4682
        %v4715 = vmul.f32 %v4683, %v4683
        %v4716 = vmul.f32 %v4684, %v4684
        %v4717 = vmul.f32 %v4685, %v4685
        %v4718 = vmul.f32 %v4686, %v4686
        %v4719 = vmul.f32 %v4687, %v4687
        %v4720 = vmul.f32 %v4688, %v4688
        %v4721 = vmul.f32 %v4689, %v4689
        %v4722 = vmul.f32 %v4690, %v4690
        %v4723 = vmul.f32 %v4691, %v4691
        %v4724 = vmul.f32 %v4692, %v4692
        %v4725 = vmul.f32 %v4693, %v4693
        %v4726 = vmul.f32 %v4694, %v4694
        %v4727 = vmul.f32 %v4695, %v4695
        %v4728 = vmul.f32 %v4696, %v4696
        %v4729 = vmul.f32 %v4697, %v4697
        %v4730 = vmul.f32 %v4698, %v4698
        %v4731 = vmul.f32 %v4699, %v4699
        %v4732 = vmul.f32 %v4700, %v4700
        %v4733 = vadd.f32 %v4701, %v4702
        %v4734 = vadd.f32 %v4733, %v4703
        %v4735 = vadd.f32 %v4734, %v4704
        %v4736 = vadd.f32 %v4735, %v4705
        %v4737 = vadd.f32 %v4736, %v4706
        %v4738 = vadd.f32 %v4737, %v4707
        %v4739 = vadd.f32 %v4738, %v4708
        %v4740 = vadd.f32 %v4739, %v4709
        %v4741 = vadd.f32 %v4740, %v4710
        %v4742 = vadd.f32 %v4741, %v4711
        %v4743 = vadd.f32 %v4742, %v4712
        %v4744 = vadd.f32 %v4743, %v4713
        %v4745 = vadd.f32 %v4744, %v4714
        %v4746 = vadd.f32 %v4745, %v4715
        %v4747 = vadd.f32 %v4746, %v4716
        %v4748 = vadd.f32 %v4747, %v4717
        %v4749 = vadd.f32 %v4748, %v4718
        %v4750 = vadd.f32 %v4749, %v4719
        %v4751 = vadd.f32 %v4750, %v4720
        %v4752 = vadd.f32 %v4751, %v4721
        %v4753 = vadd.f32 %v4752, %v4722
        %v4754 = vadd.f32 %v4753, %v4723
        %v4755 = vadd.f32 %v4754, %v4724
        %v4756 = vadd.f32 %v4755, %v4725
        %v4757 = vadd.f32 %v4756, %v4726
        %v4758 = vadd.f32 %v4757, %v4727
        %v4759 = vadd.f32 %v4758, %v4728
        %v4760 = vadd.f32 %v4759, %v4729
        %v4761 = vadd.f32 %v4760, %v4730
        %v4762 = vadd.f32 %v4761, %v4731
        %v4763 = vadd.f32 %v4762, %v4732
        %v4764 = vrot.slane %v4763, 4
        %v4765 = vadd.f32 %v4763, %v4764
        %v4766 = vrot.slane %v4765, 2
        %v4767 = vadd.f32 %v4765, %v4766
        %v4768 = vrot.slane %v4767, 1
        %v4769 = vadd.f32 %v4767, %v4768
        %v4770 = vmul.f32 %v4769, 0.00390625
        %v4771 = vadd.f32 %v4770, 1e-05
        %v4772 = vrsqrt.pop %v4771
        %v4773 = vmul.f32 %v4669, %v4772
        %v4774 = vmul.f32 %v4670, %v4772
        %v4775 = vmul.f32 %v4671, %v4772
        %v4776 = vmul.f32 %v4672, %v4772
        %v4777 = vmul.f32 %v4673, %v4772
        %v4778 = vmul.f32 %v4674, %v4772
        %v4779 = vmul.f32 %v4675, %v4772
        %v4780 = vmul.f32 %v4676, %v4772
        %v4781 = vmul.f32 %v4677, %v4772
        %v4782 = vmul.f32 %v4678, %v4772
        %v4783 = vmul.f32 %v4679, %v4772
        %v4784 = vmul.f32 %v4680, %v4772
        %v4785 = vmul.f32 %v4681, %v4772
        %v4786 = vmul.f32 %v4682, %v4772
        %v4787 = vmul.f32 %v4683, %v4772
        %v4788 = vmul.f32 %v4684, %v4772
        %v4789 = vmul.f32 %v4685, %v4772
        %v4790 = vmul.f32 %v4686, %v4772
        %v4791 = vmul.f32 %v4687, %v4772
        %v4792 = vmul.f32 %v4688, %v4772
        %v4793 = vmul.f32 %v4689, %v4772
        %v4794 = vmul.f32 %v4690, %v4772
        %v4795 = vmul.f32 %v4691, %v4772
        %v4796 = vmul.f32 %v4692, %v4772
        %v4797 = vmul.f32 %v4693, %v4772
        %v4798 = vmul.f32 %v4694, %v4772
        %v4799 = vmul.f32 %v4695, %v4772
        %v4800 = vmul.f32 %v4696, %v4772
        %v4801 = vmul.f32 %v4697, %v4772
        %v4802 = vmul.f32 %v4698, %v4772
        %v4803 = vmul.f32 %v4699, %v4772
        %v4804 = vmul.f32 %v4700, %v4772
        %v4805 = vsel %vm256, %v223, 0.0
        %v4806 = vsel %vm256, %v224, 0.0
        %v4807 = vsel %vm256, %v225, 0.0
        %v4808 = vsel %vm256, %v226, 0.0
        %v4809 = vsel %vm256, %v227, 0.0
        %v4810 = vsel %vm256, %v228, 0.0
        %v4811 = vsel %vm256, %v229, 0.0
        %v4812 = vsel %vm256, %v230, 0.0
        %v4813 = vsel %vm256, %v231, 0.0
        %v4814 = vsel %vm256, %v232, 0.0
        %v4815 = vsel %vm256, %v233, 0.0
        %v4816 = vsel %vm256, %v234, 0.0
        %v4817 = vsel %vm256, %v235, 0.0
        %v4818 = vsel %vm256, %v236, 0.0
        %v4819 = vsel %vm256, %v237, 0.0
        %v4820 = vsel %vm256, %v238, 0.0
        %v4821 = vsel %vm256, %v239, 0.0
        %v4822 = vsel %vm256, %v240, 0.0
        %v4823 = vsel %vm256, %v241, 0.0
        %v4824 = vsel %vm256, %v242, 0.0
        %v4825 = vsel %vm256, %v243, 0.0
        %v4826 = vsel %vm256, %v244, 0.0
        %v4827 = vsel %vm256, %v245, 0.0
        %v4828 = vsel %vm256, %v246, 0.0
        %v4829 = vsel %vm256, %v247, 0.0
        %v4830 = vsel %vm256, %v248, 0.0
        %v4831 = vsel %vm256, %v249, 0.0
        %v4832 = vsel %vm256, %v250, 0.0
        %v4833 = vsel %vm256, %v251, 0.0
        %v4834 = vsel %vm256, %v252, 0.0
        %v4835 = vsel %vm256, %v253, 0.0
        %v4836 = vsel %vm256, %v254, 0.0
        %v4837 = vadd.f32 %v4773, %v4805
        %v4838 = vadd.f32 %v4774, %v4806
        %v4839 = vadd.f32 %v4775, %v4807
        %v4840 = vadd.f32 %v4776, %v4808
        %v4841 = vadd.f32 %v4777, %v4809
        %v4842 = vadd.f32 %v4778, %v4810
        %v4843 = vadd.f32 %v4779, %v4811
        %v4844 = vadd.f32 %v4780, %v4812
        %v4845 = vadd.f32 %v4781, %v4813
        %v4846 = vadd.f32 %v4782, %v4814
        %v4847 = vadd.f32 %v4783, %v4815
        %v4848 = vadd.f32 %v4784, %v4816
        %v4849 = vadd.f32 %v4785, %v4817
        %v4850 = vadd.f32 %v4786, %v4818
        %v4851 = vadd.f32 %v4787, %v4819
        %v4852 = vadd.f32 %v4788, %v4820
        %v4853 = vadd.f32 %v4789, %v4821
        %v4854 = vadd.f32 %v4790, %v4822
        %v4855 = vadd.f32 %v4791, %v4823
        %v4856 = vadd.f32 %v4792, %v4824
        %v4857 = vadd.f32 %v4793, %v4825
        %v4858 = vadd.f32 %v4794, %v4826
        %v4859 = vadd.f32 %v4795, %v4827
        %v4860 = vadd.f32 %v4796, %v4828
        %v4861 = vadd.f32 %v4797, %v4829
        %v4862 = vadd.f32 %v4798, %v4830
        %v4863 = vadd.f32 %v4799, %v4831
        %v4864 = vadd.f32 %v4800, %v4832
        %v4865 = vadd.f32 %v4801, %v4833
        %v4866 = vadd.f32 %v4802, %v4834
        %v4867 = vadd.f32 %v4803, %v4835
        %v4868 = vadd.f32 %v4804, %v4836
        %4869 = vst [vmem:[%s217] sm:$0xff] %v4837
        %4870 = vst [vmem:[%s217 + $0x8] sm:$0xff] %v4838
        %4871 = vst [vmem:[%s217 + $0x10] sm:$0xff] %v4839
        %4872 = vst [vmem:[%s217 + $0x18] sm:$0xff] %v4840
        %4873 = vst [vmem:[%s217 + $0x20] sm:$0xff] %v4841
        %4874 = vst [vmem:[%s217 + $0x28] sm:$0xff] %v4842
        %4875 = vst [vmem:[%s217 + $0x30] sm:$0xff] %v4843
        %4876 = vst [vmem:[%s217 + $0x38] sm:$0xff] %v4844
        %4877 = vst [vmem:[%s217 + $0x40] sm:$0xff] %v4845
        %4878 = vst [vmem:[%s217 + $0x48] sm:$0xff] %v4846
        %4879 = vst [vmem:[%s217 + $0x50] sm:$0xff] %v4847
        %4880 = vst [vmem:[%s217 + $0x58] sm:$0xff] %v4848
        %4881 = vst [vmem:[%s217 + $0x60] sm:$0xff] %v4849
        %4882 = vst [vmem:[%s217 + $0x68] sm:$0xff] %v4850
        %4883 = vst [vmem:[%s217 + $0x70] sm:$0xff] %v4851
        %4884 = vst [vmem:[%s217 + $0x78] sm:$0xff] %v4852
        %4885 = vst [vmem:[%s217 + $0x80] sm:$0xff] %v4853
        %4886 = vst [vmem:[%s217 + $0x88] sm:$0xff] %v4854
        %4887 = vst [vmem:[%s217 + $0x90] sm:$0xff] %v4855
        %4888 = vst [vmem:[%s217 + $0x98] sm:$0xff] %v4856
        %4889 = vst [vmem:[%s217 + $0xa0] sm:$0xff] %v4857
        %4890 = vst [vmem:[%s217 + $0xa8] sm:$0xff] %v4858
        %4891 = vst [vmem:[%s217 + $0xb0] sm:$0xff] %v4859
        %4892 = vst [vmem:[%s217 + $0xb8] sm:$0xff] %v4860
        %4893 = vst [vmem:[%s217 + $0xc0] sm:$0xff] %v4861
        %4894 = vst [vmem:[%s217 + $0xc8] sm:$0xff] %v4862
        %4895 = vst [vmem:[%s217 + $0xd0] sm:$0xff] %v4863
        %4896 = vst [vmem:[%s217 + $0xd8] sm:$0xff] %v4864
        %4897 = vst [vmem:[%s217 + $0xe0] sm:$0xff] %v4865
        %4898 = vst [vmem:[%s217 + $0xe8] sm:$0xff] %v4866
        %4899 = vst [vmem:[%s217 + $0xf0] sm:$0xff] %v4867
        %4900 = vst [vmem:[%s217 + $0xf8] sm:$0xff] %v4868
        %s4901 = sand.u32 %s137, 1
        %s4902 = scalar_lea.sflag [#allocation5], %s4901
        %s4903 = sand.u32 %s137, 1
        %s4904 = smul.addr %s4903, 256
        %s4905 = scalar_lea.vmem [#allocation4], %s4904
        // Predicated region
        $region41: #{tpu_custom_call.1} parent=39 // pred_check
          %p4906 = pneg %p147
        $region42: #{tpu_custom_call.1} parent=39 // pred_check_branch
          %4908 = sbr.rel (%p4906) target = $region44
        $region43: #{tpu_custom_call.1} parent=39 // pred_region
          %s4910 = ssub.s32 4096, 4096
          %4911 = vsyncadd %s4902, %s4910
          %s4912 = smul.addr %s19, 32
          %s4913 = smul.addr %s4912, 128
          %s4914 = scalar_lea.hbm %s5, %s4913
          %s4915 = sshll.u32 %s4905, 4
          %s4916 = int_to_ptr.vmem [resolvable:$true] %s4915
          %4921 = dma.vmem_to_hbm [thread:$0]  %s4916, 4096, %s4914, %s4902, 128, 128, 8
        $region44: #{tpu_custom_call.1} parent=39 // pred_fallthru
          _
      $region40: #{tpu_custom_call.1} parent=5 // pred_fallthru
        _
      %p4922 = scmp.le.s32.totalorder 2, %s14
      // Predicated region
      $region45: #{tpu_custom_call.1} parent=5 // pred_check
        %p4923 = pneg %p4922
      $region46: #{tpu_custom_call.1} parent=5 // pred_check_branch
        %4925 = sbr.rel (%p4923) target = $region48
      $region47: #{tpu_custom_call.1} parent=5 // pred_region
        %s4926 = ssub.s32 %s14, 2
        // Predicated region
        $region49: #{tpu_custom_call.1} parent=47 // pred_check
          %p4927 = pneg %p153
        $region50: #{tpu_custom_call.1} parent=47 // pred_check_branch
          %4929 = sbr.rel (%p4927) target = $region52
        $region51: #{tpu_custom_call.1} parent=47 // pred_region
          %s4930 = sand.u32 %s138, 1
          %s4931 = scalar_lea.sflag [#allocation5], %s4930
          %s4932 = sand.u32 %s138, 1
          %s4933 = smul.addr %s4932, 256
          %s4934 = scalar_lea.vmem [#allocation4], %s4933
          %4935 = dma.done %s4931, 4096
        $region52: #{tpu_custom_call.1} parent=47 // pred_fallthru
          _
      $region48: #{tpu_custom_call.1} parent=5 // pred_fallthru
        _
    $region6: #{tpu_custom_call.1} parent=1 // loop_footer
      %s18 = sadd.s32 1, %s14
    $region7: #{tpu_custom_call.1} parent=1 // loop_footer_branch
      %13 = sbr.rel target = $region3
    $region8: #{tpu_custom_call.1} parent=1 // loop_exit
      _
    %4936 = vsyncpa [#allocation5], 1
    %s4937 = scalar_lea.sflag [#allocation5], 1
    %4938 = vsyncpa %s4937, 1

// kernel: tpu_custom_call.1
$region0: #{tpu_custom_call.1}
  #allocation0 [shape = 'u32[]', space=smem, size = 0x4, offset = 0x4, fixed_abs, tag = 'smem constant byte address 0x4 - core index']
  #allocation1 [shape = 'u32[144,128]{1,0:T(1,128)}', space=vmem, size = 0x12000, scoped, tag = 'internal scratch']
  #allocation2 [shape = 'f32[18,18,4]{2,1,0:T(8,128)}', space=vmem, size = 0x36000, scoped, tag = 'scratch operand']
  #allocation3 [shape = 'f32[256,36]{1,0:T(8,128)}', space=vmem, size = 0x20000, scoped, tag = 'scratch operand']
  %s0 = inlined_call_operand.vmem [shape: f32[2,16,16,4], index: 0, kind: input, shape index: {}]
  %s1 = inlined_call_operand.vmem [shape: f32[36,4], index: 1, kind: input, shape index: {}]
  %s2 = inlined_call_operand.vmem [shape: f32[1,4], index: 2, kind: input, shape index: {}]
  %s3 = inlined_call_operand.vmem [shape: f32[36,128], index: 3, kind: input, shape index: {}]
  %s4 = inlined_call_operand.vmem [shape: f32[1,128], index: 4, kind: input, shape index: {}]
  %s5 = inlined_call_operand.hbm [shape: f32[2,256,128], index: 5, kind: output, shape index: {}]
  %s6 = sld [smem:[#allocation0]]
  $region53: #{tpu_custom_call.1} parent=0
    _
  %s8 = ssub.s32 1, %s6
  %s9 = scalar_select 0, %s8, %s6
  $region1: #{tpu_custom_call.1} parent=0
    #allocation4 [shape = 'u8[262144]{0}', space=vmem, size = 0x40000, scoped, tag = 'output window, operand 0']
    #allocation5 [shape = 's32[2]{0}', space=sflag, size = 0x8, scoped, tag = 'scoped memory for tpu_custom_call.1']
    %10 = vsyncpa [#allocation5], 0
    %s11 = scalar_lea.sflag [#allocation5], 1
    %12 = vsyncpa %s11, 0
    loop: start=0, step=1, limit=4
    $region2: #{tpu_custom_call.1} parent=1 // loop_pre_header
      _
    $region3: #{tpu_custom_call.1} parent=1 // loop_header
      %s14 = sphi 0, %s18
      %p15 = scmp.ge.s32.totalorder %s14, 4
      %s24 = sphi 0, %s26
      %s27 = sphi 0, %s24
      %s28 = sphi 0, %s27
      %s44 = sphi 0, %s28
      %s48 = sphi 0, %s48
      %s50 = sphi 0, %s48
      %s51 = sphi 0, %s50
      %s65 = sphi 0, %s51
      %s69 = sphi 0, %s69
      %s71 = sphi 0, %s69
      %s72 = sphi 0, %s71
      %s86 = sphi 0, %s72
      %s90 = sphi 0, %s90
      %s92 = sphi 0, %s90
      %s93 = sphi 0, %s92
      %s107 = sphi 0, %s93
      %s111 = sphi 0, %s111
      %s113 = sphi 0, %s111
      %s114 = sphi 0, %s113
      %s128 = sphi 0, %s114
      %s134 = sphi 0, %s136
      %s137 = sphi 0, %s134
      %s138 = sphi 0, %s137
      %s154 = sphi 0, %s138
    $region4: #{tpu_custom_call.1} parent=1 // loop_header_branch
      %17 = sbr.rel (%p15) target = $region8
    $region5: #{tpu_custom_call.1} parent=1 // loop_body
      %s19 = ssub.s32 %s14, 1
      %s20 = ssub.s32 %s14, 2
      %s21 = sadd.s32 %s14, 1
      %s22 = ssub.s32 %s14, %s21
      %p23 = scmp.eq.s32.totalorder %s22, 0
      %s25 = sadd.s32 %s24, 1
      %s26 = scalar_select %p23, %s24, %s25
      %p29 = pneg %p23
      %p30 = scmp.eq.s32.totalorder %s14, 1
      %p31 = por %p29, %p30
      %p32 = scmp.ne.s32.totalorder %s24, %s27
      %p33 = scmp.eq.s32.totalorder %s14, 0
      %p34 = por %p32, %p33
      %p35 = scmp.ne.s32.totalorder %s24, %s27
      %p36 = scmp.eq.s32.totalorder %s19, 1
      %p37 = por %p35, %p36
      %p38 = scmp.ne.s32.totalorder %s27, %s28
      %p39 = scmp.eq.s32.totalorder %s19, 0
      %p40 = por %p38, %p39
      %p41 = scmp.ne.s32.totalorder %s27, %s28
      %p42 = scmp.eq.s32.totalorder %s20, 1
      %p43 = por %p41, %p42
      %p45 = scmp.ne.s32.totalorder %s28, %s44
      %p46 = scmp.eq.s32.totalorder %s20, 0
      %p47 = por %p45, %p46
      %s49 = sadd.s32 %s48, 1
      %p52 = scmp.eq.s32.totalorder %s14, 1
      %p53 = scmp.ne.s32.totalorder %s48, %s50
      %p54 = scmp.eq.s32.totalorder %s14, 0
      %p55 = por %p53, %p54
      %p56 = scmp.ne.s32.totalorder %s48, %s50
      %p57 = scmp.eq.s32.totalorder %s19, 1
      %p58 = por %p56, %p57
      %p59 = scmp.ne.s32.totalorder %s50, %s51
      %p60 = scmp.eq.s32.totalorder %s19, 0
      %p61 = por %p59, %p60
      %p62 = scmp.ne.s32.totalorder %s50, %s51
      %p63 = scmp.eq.s32.totalorder %s20, 1
      %p64 = por %p62, %p63
      %p66 = scmp.ne.s32.totalorder %s51, %s65
      %p67 = scmp.eq.s32.totalorder %s20, 0
      %p68 = por %p66, %p67
      %s70 = sadd.s32 %s69, 1
      %p73 = scmp.eq.s32.totalorder %s14, 1
      %p74 = scmp.ne.s32.totalorder %s69, %s71
      %p75 = scmp.eq.s32.totalorder %s14, 0
      %p76 = por %p74, %p75
      %p77 = scmp.ne.s32.totalorder %s69, %s71
      %p78 = scmp.eq.s32.totalorder %s19, 1
      %p79 = por %p77, %p78
      %p80 = scmp.ne.s32.totalorder %s71, %s72
      %p81 = scmp.eq.s32.totalorder %s19, 0
      %p82 = por %p80, %p81
      %p83 = scmp.ne.s32.totalorder %s71, %s72
      %p84 = scmp.eq.s32.totalorder %s20, 1
      %p85 = por %p83, %p84
      %p87 = scmp.ne.s32.totalorder %s72, %s86
      %p88 = scmp.eq.s32.totalorder %s20, 0
      %p89 = por %p87, %p88
      %s91 = sadd.s32 %s90, 1
      %p94 = scmp.eq.s32.totalorder %s14, 1
      %p95 = scmp.ne.s32.totalorder %s90, %s92
      %p96 = scmp.eq.s32.totalorder %s14, 0
      %p97 = por %p95, %p96
      %p98 = scmp.ne.s32.totalorder %s90, %s92
      %p99 = scmp.eq.s32.totalorder %s19, 1
      %p100 = por %p98, %p99
      %p101 = scmp.ne.s32.totalorder %s92, %s93
      %p102 = scmp.eq.s32.totalorder %s19, 0
      %p103 = por %p101, %p102
      %p104 = scmp.ne.s32.totalorder %s92, %s93
      %p105 = scmp.eq.s32.totalorder %s20, 1
      %p106 = por %p104, %p105
      %p108 = scmp.ne.s32.totalorder %s93, %s107
      %p109 = scmp.eq.s32.totalorder %s20, 0
      %p110 = por %p108, %p109
      %s112 = sadd.s32 %s111, 1
      %p115 = scmp.eq.s32.totalorder %s14, 1
      %p116 = scmp.ne.s32.totalorder %s111, %s113
      %p117 = scmp.eq.s32.totalorder %s14, 0
      %p118 = por %p116, %p117
      %p119 = scmp.ne.s32.totalorder %s111, %s113
      %p120 = scmp.eq.s32.totalorder %s19, 1
      %p121 = por %p119, %p120
      %p122 = scmp.ne.s32.totalorder %s113, %s114
      %p123 = scmp.eq.s32.totalorder %s19, 0
      %p124 = por %p122, %p123
      %p125 = scmp.ne.s32.totalorder %s113, %s114
      %p126 = scmp.eq.s32.totalorder %s20, 1
      %p127 = por %p125, %p126
      %p129 = scmp.ne.s32.totalorder %s114, %s128
      %p130 = scmp.eq.s32.totalorder %s20, 0
      %p131 = por %p129, %p130
      %s132 = ssub.s32 %s14, %s21
      %p133 = scmp.eq.s32.totalorder %s132, 0
      %s135 = sadd.s32 %s134, 1
      %s136 = scalar_select %p133, %s134, %s135
      %p139 = pneg %p133
      %p140 = scmp.eq.s32.totalorder %s14, 1
      %p141 = por %p139, %p140
      %p142 = scmp.ne.s32.totalorder %s134, %s137
      %p143 = scmp.eq.s32.totalorder %s14, 0
      %p144 = por %p142, %p143
      %p145 = scmp.ne.s32.totalorder %s134, %s137
      %p146 = scmp.eq.s32.totalorder %s19, 1
      %p147 = por %p145, %p146
      %p148 = scmp.ne.s32.totalorder %s137, %s138
      %p149 = scmp.eq.s32.totalorder %s19, 0
      %p150 = por %p148, %p149
      %p151 = scmp.ne.s32.totalorder %s137, %s138
      %p152 = scmp.eq.s32.totalorder %s20, 1
      %p153 = por %p151, %p152
      %p155 = scmp.ne.s32.totalorder %s138, %s154
      %p156 = scmp.eq.s32.totalorder %s20, 0
      %p157 = por %p155, %p156
      %p158 = scmp.le.s32.totalorder 1, %s14
      %p159 = scmp.lt.s32.totalorder %s14, 3
      %p160 = pnand %p158, %p159
      %p161 = pneg %p160
      // Predicated region
      $region9: #{tpu_custom_call.1} parent=5 // pred_check
        _
      $region10: #{tpu_custom_call.1} parent=5 // pred_check_branch
        %163 = sbr.rel (%p160) target = $region12
      $region11: #{tpu_custom_call.1} parent=5 // pred_region
        %s164 = ssub.s32 %s14, 1
        // Predicated region
        $region13: #{tpu_custom_call.1} parent=11 // pred_check
          %p165 = pneg %p61
        $region14: #{tpu_custom_call.1} parent=11 // pred_check_branch
          %167 = sbr.rel (%p165) target = $region16
        $region15: #{tpu_custom_call.1} parent=11 // pred_region
          _
        $region16: #{tpu_custom_call.1} parent=11 // pred_fallthru
          _
        // Predicated region
        $region17: #{tpu_custom_call.1} parent=11 // pred_check
          %p168 = pneg %p82
        $region18: #{tpu_custom_call.1} parent=11 // pred_check_branch
          %170 = sbr.rel (%p168) target = $region20
        $region19: #{tpu_custom_call.1} parent=11 // pred_region
          _
        $region20: #{tpu_custom_call.1} parent=11 // pred_fallthru
          _
        // Predicated region
        $region21: #{tpu_custom_call.1} parent=11 // pred_check
          %p171 = pneg %p103
        $region22: #{tpu_custom_call.1} parent=11 // pred_check_branch
          %173 = sbr.rel (%p171) target = $region24
        $region23: #{tpu_custom_call.1} parent=11 // pred_region
          _
        $region24: #{tpu_custom_call.1} parent=11 // pred_fallthru
          _
        // Predicated region
        $region25: #{tpu_custom_call.1} parent=11 // pred_check
          %p174 = pneg %p124
        $region26: #{tpu_custom_call.1} parent=11 // pred_check_branch
          %176 = sbr.rel (%p174) target = $region28
        $region27: #{tpu_custom_call.1} parent=11 // pred_region
          _
        $region28: #{tpu_custom_call.1} parent=11 // pred_fallthru
          _
      $region12: #{tpu_custom_call.1} parent=5 // pred_fallthru
        _
      %p177 = scmp.lt.s32.totalorder %s14, 2
      // Predicated region
      $region29: #{tpu_custom_call.1} parent=5 // pred_check
        %p178 = pneg %p177
      $region30: #{tpu_custom_call.1} parent=5 // pred_check_branch
        %180 = sbr.rel (%p178) target = $region32
      $region31: #{tpu_custom_call.1} parent=5 // pred_region
        // Predicated region
        $region33: #{tpu_custom_call.1} parent=31 // pred_check
          %p181 = pneg %p34
        $region34: #{tpu_custom_call.1} parent=31 // pred_check_branch
          %183 = sbr.rel (%p181) target = $region36
        $region35: #{tpu_custom_call.1} parent=31 // pred_region
          %p184 = scmp.lt.s32.totalorder %s14, 1
          %s185 = scalar_select %p184, %s14, 1
          %s186 = smul.addr %s185, 32
          %s187 = smul.addr %s186, 8
          %s188 = scalar_lea.vmem %s0, %s187
        $region36: #{tpu_custom_call.1} parent=31 // pred_fallthru
          _
      $region32: #{tpu_custom_call.1} parent=5 // pred_fallthru
        _
      %p189 = scmp.le.s32.totalorder 1, %s14
      %p190 = scmp.lt.s32.totalorder %s14, 3
      %p191 = pnand %p189, %p190
      %p192 = pneg %p191
      // Predicated region
      $region37: #{tpu_custom_call.1} parent=5 // pred_check
        _
      $region38: #{tpu_custom_call.1} parent=5 // pred_check_branch
        %194 = sbr.rel (%p191) target = $region40
      $region39: #{tpu_custom_call.1} parent=5 // pred_region
        %s195 = ssub.s32 %s14, 1
        %p196 = scmp.lt.s32.totalorder %s19, 1
        %s197 = scalar_select %p196, %s19, 1
        %s198 = smul.addr %s197, 32
        %s199 = smul.addr %s198, 8
        %s200 = scalar_lea.vmem %s0, %s199
        %p201 = pneg %p40
        %p202 = pneg %p37
        %p203 = pneg %p61
        %p204 = pneg %p58
        %p205 = pneg %p82
        %p206 = pneg %p79
        %p207 = pneg %p103
        %p208 = pneg %p100
        %p209 = pneg %p124
        %p210 = pneg %p121
        %p211 = pneg %p150
        %p212 = pneg %p147
        %s213 = sand.u32 %s137, 1
        %s214 = scalar_lea.sflag [#allocation5], %s213
        %s215 = sand.u32 %s137, 1
        %s216 = smul.addr %s215, 256
        %s217 = scalar_lea.vmem [#allocation4], %s216
        %p218 = scmp.lt.s32.totalorder %s19, 1
        %s219 = scalar_select %p218, %s19, 1
        %s220 = smul.addr %s219, 32
        %s221 = smul.addr %s220, 8
        %s222 = scalar_lea.vmem %s0, %s221
        %v223 = vld [vmem:[%s222] sm:$0xff]
        %v224 = vld [vmem:[%s222 + $0x8] sm:$0xff]
        %v225 = vld [vmem:[%s222 + $0x10] sm:$0xff]
        %v226 = vld [vmem:[%s222 + $0x18] sm:$0xff]
        %v227 = vld [vmem:[%s222 + $0x20] sm:$0xff]
        %v228 = vld [vmem:[%s222 + $0x28] sm:$0xff]
        %v229 = vld [vmem:[%s222 + $0x30] sm:$0xff]
        %v230 = vld [vmem:[%s222 + $0x38] sm:$0xff]
        %v231 = vld [vmem:[%s222 + $0x40] sm:$0xff]
        %v232 = vld [vmem:[%s222 + $0x48] sm:$0xff]
        %v233 = vld [vmem:[%s222 + $0x50] sm:$0xff]
        %v234 = vld [vmem:[%s222 + $0x58] sm:$0xff]
        %v235 = vld [vmem:[%s222 + $0x60] sm:$0xff]
        %v236 = vld [vmem:[%s222 + $0x68] sm:$0xff]
        %v237 = vld [vmem:[%s222 + $0x70] sm:$0xff]
        %v238 = vld [vmem:[%s222 + $0x78] sm:$0xff]
        %v239 = vld [vmem:[%s222 + $0x80] sm:$0xff]
        %v240 = vld [vmem:[%s222 + $0x88] sm:$0xff]
        %v241 = vld [vmem:[%s222 + $0x90] sm:$0xff]
        %v242 = vld [vmem:[%s222 + $0x98] sm:$0xff]
        %v243 = vld [vmem:[%s222 + $0xa0] sm:$0xff]
        %v244 = vld [vmem:[%s222 + $0xa8] sm:$0xff]
        %v245 = vld [vmem:[%s222 + $0xb0] sm:$0xff]
        %v246 = vld [vmem:[%s222 + $0xb8] sm:$0xff]
        %v247 = vld [vmem:[%s222 + $0xc0] sm:$0xff]
        %v248 = vld [vmem:[%s222 + $0xc8] sm:$0xff]
        %v249 = vld [vmem:[%s222 + $0xd0] sm:$0xff]
        %v250 = vld [vmem:[%s222 + $0xd8] sm:$0xff]
        %v251 = vld [vmem:[%s222 + $0xe0] sm:$0xff]
        %v252 = vld [vmem:[%s222 + $0xe8] sm:$0xff]
        %v253 = vld [vmem:[%s222 + $0xf0] sm:$0xff]
        %v254 = vld [vmem:[%s222 + $0xf8] sm:$0xff]
        %s255 = scalar_lea.vmem [#allocation2], 24
        %vm256 = vcmask 31744
        %257 = vst.msk [vmem:[%s255 + $0x1] sm:$0xff] %vm256, %v223
        %258 = vst.msk [vmem:[%s255 + $0x9] sm:$0xff] %vm256, %v224
        %259 = vst.msk [vmem:[%s255 + $0x19] sm:$0xff] %vm256, %v225
        %260 = vst.msk [vmem:[%s255 + $0x21] sm:$0xff] %vm256, %v226
        %261 = vst.msk [vmem:[%s255 + $0x31] sm:$0xff] %vm256, %v227
        %262 = vst.msk [vmem:[%s255 + $0x39] sm:$0xff] %vm256, %v228
        %263 = vst.msk [vmem:[%s255 + $0x49] sm:$0xff] %vm256, %v229
        %264 = vst.msk [vmem:[%s255 + $0x51] sm:$0xff] %vm256, %v230
        %265 = vst.msk [vmem:[%s255 + $0x61] sm:$0xff] %vm256, %v231
        %266 = vst.msk [vmem:[%s255 + $0x69] sm:$0xff] %vm256, %v232
        %267 = vst.msk [vmem:[%s255 + $0x79] sm:$0xff] %vm256, %v233
        %268 = vst.msk [vmem:[%s255 + $0x81] sm:$0xff] %vm256, %v234
        %269 = vst.msk [vmem:[%s255 + $0x91] sm:$0xff] %vm256, %v235
        %270 = vst.msk [vmem:[%s255 + $0x99] sm:$0xff] %vm256, %v236
        %271 = vst.msk [vmem:[%s255 + $0xa9] sm:$0xff] %vm256, %v237
        %272 = vst.msk [vmem:[%s255 + $0xb1] sm:$0xff] %vm256, %v238
        %273 = vst.msk [vmem:[%s255 + $0xc1] sm:$0xff] %vm256, %v239
        %274 = vst.msk [vmem:[%s255 + $0xc9] sm:$0xff] %vm256, %v240
        %275 = vst.msk [vmem:[%s255 + $0xd9] sm:$0xff] %vm256, %v241
        %276 = vst.msk [vmem:[%s255 + $0xe1] sm:$0xff] %vm256, %v242
        %277 = vst.msk [vmem:[%s255 + $0xf1] sm:$0xff] %vm256, %v243
        %278 = vst.msk [vmem:[%s255 + $0xf9] sm:$0xff] %vm256, %v244
        %279 = vst.msk [vmem:[%s255 + $0x109] sm:$0xff] %vm256, %v245
        %280 = vst.msk [vmem:[%s255 + $0x111] sm:$0xff] %vm256, %v246
        %281 = vst.msk [vmem:[%s255 + $0x121] sm:$0xff] %vm256, %v247
        %282 = vst.msk [vmem:[%s255 + $0x129] sm:$0xff] %vm256, %v248
        %283 = vst.msk [vmem:[%s255 + $0x139] sm:$0xff] %vm256, %v249
        %284 = vst.msk [vmem:[%s255 + $0x141] sm:$0xff] %vm256, %v250
        %285 = vst.msk [vmem:[%s255 + $0x151] sm:$0xff] %vm256, %v251
        %286 = vst.msk [vmem:[%s255 + $0x159] sm:$0xff] %vm256, %v252
        %287 = vst.msk [vmem:[%s255 + $0x169] sm:$0xff] %vm256, %v253
        %288 = vst.msk [vmem:[%s255 + $0x171] sm:$0xff] %vm256, %v254
        %vm289 = vcmask 25601
        %290 = vst.msk [vmem:[%s255 - $0x1] sm:$0x2] %vm289, %v223
        %291 = vst.msk [vmem:[%s255 + $0x17] sm:$0x2] %vm289, %v225
        %292 = vst.msk [vmem:[%s255 + $0x2f] sm:$0x2] %vm289, %v227
        %293 = vst.msk [vmem:[%s255 + $0x47] sm:$0x2] %vm289, %v229
        %294 = vst.msk [vmem:[%s255 + $0x5f] sm:$0x2] %vm289, %v231
        %295 = vst.msk [vmem:[%s255 + $0x77] sm:$0x2] %vm289, %v233
        %296 = vst.msk [vmem:[%s255 + $0x8f] sm:$0x2] %vm289, %v235
        %297 = vst.msk [vmem:[%s255 + $0xa7] sm:$0x2] %vm289, %v237
        %298 = vst.msk [vmem:[%s255 + $0xbf] sm:$0x2] %vm289, %v239
        %299 = vst.msk [vmem:[%s255 + $0xd7] sm:$0x2] %vm289, %v241
        %300 = vst.msk [vmem:[%s255 + $0xef] sm:$0x2] %vm289, %v243
        %301 = vst.msk [vmem:[%s255 + $0x107] sm:$0x2] %vm289, %v245
        %302 = vst.msk [vmem:[%s255 + $0x11f] sm:$0x2] %vm289, %v247
        %303 = vst.msk [vmem:[%s255 + $0x137] sm:$0x2] %vm289, %v249
        %304 = vst.msk [vmem:[%s255 + $0x14f] sm:$0x2] %vm289, %v251
        %305 = vst.msk [vmem:[%s255 + $0x167] sm:$0x2] %vm289, %v253
        %vm306 = vcmask 30726
        %307 = vst.msk [vmem:[%s255 + $0xb] sm:$0x40] %vm306, %v224
        %308 = vst.msk [vmem:[%s255 + $0x23] sm:$0x40] %vm306, %v226
        %309 = vst.msk [vmem:[%s255 + $0x3b] sm:$0x40] %vm306, %v228
        %310 = vst.msk [vmem:[%s255 + $0x53] sm:$0x40] %vm306, %v230
        %311 = vst.msk [vmem:[%s255 + $0x6b] sm:$0x40] %vm306, %v232
        %312 = vst.msk [vmem:[%s255 + $0x83] sm:$0x40] %vm306, %v234
        %313 = vst.msk [vmem:[%s255 + $0x9b] sm:$0x40] %vm306, %v236
        %314 = vst.msk [vmem:[%s255 + $0xb3] sm:$0x40] %vm306, %v238
        %315 = vst.msk [vmem:[%s255 + $0xcb] sm:$0x40] %vm306, %v240
        %316 = vst.msk [vmem:[%s255 + $0xe3] sm:$0x40] %vm306, %v242
        %317 = vst.msk [vmem:[%s255 + $0xfb] sm:$0x40] %vm306, %v244
        %318 = vst.msk [vmem:[%s255 + $0x113] sm:$0x40] %vm306, %v246
        %319 = vst.msk [vmem:[%s255 + $0x12b] sm:$0x40] %vm306, %v248
        %320 = vst.msk [vmem:[%s255 + $0x143] sm:$0x40] %vm306, %v250
        %321 = vst.msk [vmem:[%s255 + $0x15b] sm:$0x40] %vm306, %v252
        %322 = vst.msk [vmem:[%s255 + $0x173] sm:$0x40] %vm306, %v254
        %s323 = scalar_lea.vmem [#allocation2], 48
        %v324 = vld [vmem:[%s323] sm:$0xff]
        %v325 = vld [vmem:[%s323 + $0x8] sm:$0xff]
        %v326 = vld [vmem:[%s323 + $0x10] sm:$0x3]
        %327 = vst.msk [vmem:[#allocation2] sm:$0xff] %vm256, %v324
        %328 = vst.msk [vmem:[#allocation2 + $0x8] sm:$0xff] %vm256, %v325
        %vm329 = vcmask 25600
        %330 = vst.msk [vmem:[#allocation2 + $0x10] sm:$0x3] %vm329, %v326
        %s331 = scalar_lea.vmem [#allocation2], 360
        %v332 = vld [vmem:[%s331] sm:$0xff]
        %v333 = vld [vmem:[%s331 + $0x8] sm:$0xff]
        %v334 = vld [vmem:[%s331 + $0x10] sm:$0x3]
        %s335 = scalar_lea.vmem [#allocation2], 408
        %336 = vst.msk [vmem:[%s335] sm:$0xff] %vm256, %v332
        %337 = vst.msk [vmem:[%s335 + $0x8] sm:$0xff] %vm256, %v333
        %338 = vst.msk [vmem:[%s335 + $0x10] sm:$0x3] %vm329, %v334
        %v339 = vld [vmem:[#allocation2] sm:$0xff]
        %v340 = vld [vmem:[#allocation2 + $0x8] sm:$0xff]
        %v341 = vld [vmem:[#allocation2 + $0x18] sm:$0xff]
        %v342 = vld [vmem:[#allocation2 + $0x20] sm:$0xff]
        %v343 = vld [vmem:[#allocation2 + $0x30] sm:$0xff]
        %v344 = vld [vmem:[#allocation2 + $0x38] sm:$0xff]
        %v345 = vld [vmem:[#allocation2 + $0x48] sm:$0xff]
        %v346 = vld [vmem:[#allocation2 + $0x50] sm:$0xff]
        %v347 = vld [vmem:[#allocation2 + $0x60] sm:$0xff]
        %v348 = vld [vmem:[#allocation2 + $0x68] sm:$0xff]
        %v349 = vld [vmem:[#allocation2 + $0x78] sm:$0xff]
        %v350 = vld [vmem:[#allocation2 + $0x80] sm:$0xff]
        %v351 = vld [vmem:[#allocation2 + $0x90] sm:$0xff]
        %v352 = vld [vmem:[#allocation2 + $0x98] sm:$0xff]
        %v353 = vld [vmem:[#allocation2 + $0xa8] sm:$0xff]
        %v354 = vld [vmem:[#allocation2 + $0xb0] sm:$0xff]
        %v355 = vld [vmem:[#allocation2 + $0xc0] sm:$0xff]
        %v356 = vld [vmem:[#allocation2 + $0xc8] sm:$0xff]
        %v357 = vld [vmem:[#allocation2 + $0xd8] sm:$0xff]
        %v358 = vld [vmem:[#allocation2 + $0xe0] sm:$0xff]
        %v359 = vld [vmem:[#allocation2 + $0xf0] sm:$0xff]
        %v360 = vld [vmem:[#allocation2 + $0xf8] sm:$0xff]
        %v361 = vld [vmem:[#allocation2 + $0x108] sm:$0xff]
        %v362 = vld [vmem:[#allocation2 + $0x110] sm:$0xff]
        %v363 = vld [vmem:[#allocation2 + $0x120] sm:$0xff]
        %v364 = vld [vmem:[#allocation2 + $0x128] sm:$0xff]
        %v365 = vld [vmem:[#allocation2 + $0x138] sm:$0xff]
        %v366 = vld [vmem:[#allocation2 + $0x140] sm:$0xff]
        %v367 = vld [vmem:[#allocation2 + $0x150] sm:$0xff]
        %v368 = vld [vmem:[#allocation2 + $0x158] sm:$0xff]
        %v369 = vld [vmem:[#allocation2 + $0x168] sm:$0xff]
        %v370 = vld [vmem:[#allocation2 + $0x170] sm:$0xff]
        %371 = vst.msk [vmem:[#allocation3] sm:$0xff] %vm256, %v339
        %372 = vst.msk [vmem:[#allocation3 + $0x8] sm:$0xff] %vm256, %v340
        %373 = vst.msk [vmem:[#allocation3 + $0x10] sm:$0xff] %vm256, %v341
        %374 = vst.msk [vmem:[#allocation3 + $0x18] sm:$0xff] %vm256, %v342
        %375 = vst.msk [vmem:[#allocation3 + $0x20] sm:$0xff] %vm256, %v343
        %376 = vst.msk [vmem:[#allocation3 + $0x28] sm:$0xff] %vm256, %v344
        %377 = vst.msk [vmem:[#allocation3 + $0x30] sm:$0xff] %vm256, %v345
        %378 = vst.msk [vmem:[#allocation3 + $0x38] sm:$0xff] %vm256, %v346
        %379 = vst.msk [vmem:[#allocation3 + $0x40] sm:$0xff] %vm256, %v347
        %380 = vst.msk [vmem:[#allocation3 + $0x48] sm:$0xff] %vm256, %v348
        %381 = vst.msk [vmem:[#allocation3 + $0x50] sm:$0xff] %vm256, %v349
        %382 = vst.msk [vmem:[#allocation3 + $0x58] sm:$0xff] %vm256, %v350
        %383 = vst.msk [vmem:[#allocation3 + $0x60] sm:$0xff] %vm256, %v351
        %384 = vst.msk [vmem:[#allocation3 + $0x68] sm:$0xff] %vm256, %v352
        %385 = vst.msk [vmem:[#allocation3 + $0x70] sm:$0xff] %vm256, %v353
        %386 = vst.msk [vmem:[#allocation3 + $0x78] sm:$0xff] %vm256, %v354
        %387 = vst.msk [vmem:[#allocation3 + $0x80] sm:$0xff] %vm256, %v355
        %388 = vst.msk [vmem:[#allocation3 + $0x88] sm:$0xff] %vm256, %v356
        %389 = vst.msk [vmem:[#allocation3 + $0x90] sm:$0xff] %vm256, %v357
        %390 = vst.msk [vmem:[#allocation3 + $0x98] sm:$0xff] %vm256, %v358
        %391 = vst.msk [vmem:[#allocation3 + $0xa0] sm:$0xff] %vm256, %v359
        %392 = vst.msk [vmem:[#allocation3 + $0xa8] sm:$0xff] %vm256, %v360
        %393 = vst.msk [vmem:[#allocation3 + $0xb0] sm:$0xff] %vm256, %v361
        %394 = vst.msk [vmem:[#allocation3 + $0xb8] sm:$0xff] %vm256, %v362
        %395 = vst.msk [vmem:[#allocation3 + $0xc0] sm:$0xff] %vm256, %v363
        %396 = vst.msk [vmem:[#allocation3 + $0xc8] sm:$0xff] %vm256, %v364
        %397 = vst.msk [vmem:[#allocation3 + $0xd0] sm:$0xff] %vm256, %v365
        %398 = vst.msk [vmem:[#allocation3 + $0xd8] sm:$0xff] %vm256, %v366
        %399 = vst.msk [vmem:[#allocation3 + $0xe0] sm:$0xff] %vm256, %v367
        %400 = vst.msk [vmem:[#allocation3 + $0xe8] sm:$0xff] %vm256, %v368
        %401 = vst.msk [vmem:[#allocation3 + $0xf0] sm:$0xff] %vm256, %v369
        %402 = vst.msk [vmem:[#allocation3 + $0xf8] sm:$0xff] %vm256, %v370
        %v403 = vld [vmem:[#allocation2 + $0x1] sm:$0xff]
        %v404 = vld [vmem:[#allocation2 + $0x9] sm:$0xff]
        %v405 = vld [vmem:[#allocation2 + $0x19] sm:$0xff]
        %v406 = vld [vmem:[#allocation2 + $0x21] sm:$0xff]
        %v407 = vld [vmem:[#allocation2 + $0x31] sm:$0xff]
        %v408 = vld [vmem:[#allocation2 + $0x39] sm:$0xff]
        %v409 = vld [vmem:[#allocation2 + $0x49] sm:$0xff]
        %v410 = vld [vmem:[#allocation2 + $0x51] sm:$0xff]
        %v411 = vld [vmem:[#allocation2 + $0x61] sm:$0xff]
        %v412 = vld [vmem:[#allocation2 + $0x69] sm:$0xff]
        %v413 = vld [vmem:[#allocation2 + $0x79] sm:$0xff]
        %v414 = vld [vmem:[#allocation2 + $0x81] sm:$0xff]
        %v415 = vld [vmem:[#allocation2 + $0x91] sm:$0xff]
        %v416 = vld [vmem:[#allocation2 + $0x99] sm:$0xff]
        %v417 = vld [vmem:[#allocation2 + $0xa9] sm:$0xff]
        %v418 = vld [vmem:[#allocation2 + $0xb1] sm:$0xff]
        %v419 = vld [vmem:[#allocation2 + $0xc1] sm:$0xff]
        %v420 = vld [vmem:[#allocation2 + $0xc9] sm:$0xff]
        %v421 = vld [vmem:[#allocation2 + $0xd9] sm:$0xff]
        %v422 = vld [vmem:[#allocation2 + $0xe1] sm:$0xff]
        %v423 = vld [vmem:[#allocation2 + $0xf1] sm:$0xff]
        %v424 = vld [vmem:[#allocation2 + $0xf9] sm:$0xff]
        %v425 = vld [vmem:[#allocation2 + $0x109] sm:$0xff]
        %v426 = vld [vmem:[#allocation2 + $0x111] sm:$0xff]
        %v427 = vld [vmem:[#allocation2 + $0x121] sm:$0xff]
        %v428 = vld [vmem:[#allocation2 + $0x129] sm:$0xff]
        %v429 = vld [vmem:[#allocation2 + $0x139] sm:$0xff]
        %v430 = vld [vmem:[#allocation2 + $0x141] sm:$0xff]
        %v431 = vld [vmem:[#allocation2 + $0x151] sm:$0xff]
        %v432 = vld [vmem:[#allocation2 + $0x159] sm:$0xff]
        %v433 = vld [vmem:[#allocation2 + $0x169] sm:$0xff]
        %v434 = vld [vmem:[#allocation2 + $0x171] sm:$0xff]
        %467 = vrot.lane.b32.xlu0 %v403, 4
        %v468 = vpop.permute.xlu0 %467
        %469 = vrot.lane.b32.xlu0 %v404, 4
        %v470 = vpop.permute.xlu0 %469
        %471 = vrot.lane.b32.xlu0 %v405, 4
        %v472 = vpop.permute.xlu0 %471
        %473 = vrot.lane.b32.xlu0 %v406, 4
        %v474 = vpop.permute.xlu0 %473
        %475 = vrot.lane.b32.xlu0 %v407, 4
        %v476 = vpop.permute.xlu0 %475
        %477 = vrot.lane.b32.xlu0 %v408, 4
        %v478 = vpop.permute.xlu0 %477
        %479 = vrot.lane.b32.xlu0 %v409, 4
        %v480 = vpop.permute.xlu0 %479
        %481 = vrot.lane.b32.xlu0 %v410, 4
        %v482 = vpop.permute.xlu0 %481
        %483 = vrot.lane.b32.xlu0 %v411, 4
        %v484 = vpop.permute.xlu0 %483
        %485 = vrot.lane.b32.xlu0 %v412, 4
        %v486 = vpop.permute.xlu0 %485
        %487 = vrot.lane.b32.xlu0 %v413, 4
        %v488 = vpop.permute.xlu0 %487
        %489 = vrot.lane.b32.xlu0 %v414, 4
        %v490 = vpop.permute.xlu0 %489
        %491 = vrot.lane.b32.xlu0 %v415, 4
        %v492 = vpop.permute.xlu0 %491
        %493 = vrot.lane.b32.xlu0 %v416, 4
        %v494 = vpop.permute.xlu0 %493
        %495 = vrot.lane.b32.xlu0 %v417, 4
        %v496 = vpop.permute.xlu0 %495
        %497 = vrot.lane.b32.xlu0 %v418, 4
        %v498 = vpop.permute.xlu0 %497
        %499 = vrot.lane.b32.xlu0 %v419, 4
        %v500 = vpop.permute.xlu0 %499
        %501 = vrot.lane.b32.xlu0 %v420, 4
        %v502 = vpop.permute.xlu0 %501
        %503 = vrot.lane.b32.xlu0 %v421, 4
        %v504 = vpop.permute.xlu0 %503
        %505 = vrot.lane.b32.xlu0 %v422, 4
        %v506 = vpop.permute.xlu0 %505
        %507 = vrot.lane.b32.xlu0 %v423, 4
        %v508 = vpop.permute.xlu0 %507
        %509 = vrot.lane.b32.xlu0 %v424, 4
        %v510 = vpop.permute.xlu0 %509
        %511 = vrot.lane.b32.xlu0 %v425, 4
        %v512 = vpop.permute.xlu0 %511
        %513 = vrot.lane.b32.xlu0 %v426, 4
        %v514 = vpop.permute.xlu0 %513
        %515 = vrot.lane.b32.xlu0 %v427, 4
        %v516 = vpop.permute.xlu0 %515
        %517 = vrot.lane.b32.xlu0 %v428, 4
        %v518 = vpop.permute.xlu0 %517
        %519 = vrot.lane.b32.xlu0 %v429, 4
        %v520 = vpop.permute.xlu0 %519
        %521 = vrot.lane.b32.xlu0 %v430, 4
        %v522 = vpop.permute.xlu0 %521
        %523 = vrot.lane.b32.xlu0 %v431, 4
        %v524 = vpop.permute.xlu0 %523
        %525 = vrot.lane.b32.xlu0 %v432, 4
        %v526 = vpop.permute.xlu0 %525
        %527 = vrot.lane.b32.xlu0 %v433, 4
        %v528 = vpop.permute.xlu0 %527
        %529 = vrot.lane.b32.xlu0 %v434, 4
        %v530 = vpop.permute.xlu0 %529
        %vm563 = vcmask 64544
        %564 = vst.msk [vmem:[#allocation3] sm:$0xff] %vm563, %v468
        %565 = vst.msk [vmem:[#allocation3 + $0x8] sm:$0xff] %vm563, %v470
        %566 = vst.msk [vmem:[#allocation3 + $0x10] sm:$0xff] %vm563, %v472
        %567 = vst.msk [vmem:[#allocation3 + $0x18] sm:$0xff] %vm563, %v474
        %568 = vst.msk [vmem:[#allocation3 + $0x20] sm:$0xff] %vm563, %v476
        %569 = vst.msk [vmem:[#allocation3 + $0x28] sm:$0xff] %vm563, %v478
        %570 = vst.msk [vmem:[#allocation3 + $0x30] sm:$0xff] %vm563, %v480
        %571 = vst.msk [vmem:[#allocation3 + $0x38] sm:$0xff] %vm563, %v482
        %572 = vst.msk [vmem:[#allocation3 + $0x40] sm:$0xff] %vm563, %v484
        %573 = vst.msk [vmem:[#allocation3 + $0x48] sm:$0xff] %vm563, %v486
        %574 = vst.msk [vmem:[#allocation3 + $0x50] sm:$0xff] %vm563, %v488
        %575 = vst.msk [vmem:[#allocation3 + $0x58] sm:$0xff] %vm563, %v490
        %576 = vst.msk [vmem:[#allocation3 + $0x60] sm:$0xff] %vm563, %v492
        %577 = vst.msk [vmem:[#allocation3 + $0x68] sm:$0xff] %vm563, %v494
        %578 = vst.msk [vmem:[#allocation3 + $0x70] sm:$0xff] %vm563, %v496
        %579 = vst.msk [vmem:[#allocation3 + $0x78] sm:$0xff] %vm563, %v498
        %580 = vst.msk [vmem:[#allocation3 + $0x80] sm:$0xff] %vm563, %v500
        %581 = vst.msk [vmem:[#allocation3 + $0x88] sm:$0xff] %vm563, %v502
        %582 = vst.msk [vmem:[#allocation3 + $0x90] sm:$0xff] %vm563, %v504
        %583 = vst.msk [vmem:[#allocation3 + $0x98] sm:$0xff] %vm563, %v506
        %584 = vst.msk [vmem:[#allocation3 + $0xa0] sm:$0xff] %vm563, %v508
        %585 = vst.msk [vmem:[#allocation3 + $0xa8] sm:$0xff] %vm563, %v510
        %586 = vst.msk [vmem:[#allocation3 + $0xb0] sm:$0xff] %vm563, %v512
        %587 = vst.msk [vmem:[#allocation3 + $0xb8] sm:$0xff] %vm563, %v514
        %588 = vst.msk [vmem:[#allocation3 + $0xc0] sm:$0xff] %vm563, %v516
        %589 = vst.msk [vmem:[#allocation3 + $0xc8] sm:$0xff] %vm563, %v518
        %590 = vst.msk [vmem:[#allocation3 + $0xd0] sm:$0xff] %vm563, %v520
        %591 = vst.msk [vmem:[#allocation3 + $0xd8] sm:$0xff] %vm563, %v522
        %592 = vst.msk [vmem:[#allocation3 + $0xe0] sm:$0xff] %vm563, %v524
        %593 = vst.msk [vmem:[#allocation3 + $0xe8] sm:$0xff] %vm563, %v526
        %594 = vst.msk [vmem:[#allocation3 + $0xf0] sm:$0xff] %vm563, %v528
        %595 = vst.msk [vmem:[#allocation3 + $0xf8] sm:$0xff] %vm563, %v530
        %v596 = vld [vmem:[#allocation2 + $0x2] sm:$0xff]
        %v597 = vld [vmem:[#allocation2 + $0xa] sm:$0xff]
        %v598 = vld [vmem:[#allocation2 + $0x1a] sm:$0xff]
        %v599 = vld [vmem:[#allocation2 + $0x22] sm:$0xff]
        %v600 = vld [vmem:[#allocation2 + $0x32] sm:$0xff]
        %v601 = vld [vmem:[#allocation2 + $0x3a] sm:$0xff]
        %v602 = vld [vmem:[#allocation2 + $0x4a] sm:$0xff]
        %v603 = vld [vmem:[#allocation2 + $0x52] sm:$0xff]
        %v604 = vld [vmem:[#allocation2 + $0x62] sm:$0xff]
        %v605 = vld [vmem:[#allocation2 + $0x6a] sm:$0xff]
        %v606 = vld [vmem:[#allocation2 + $0x7a] sm:$0xff]
        %v607 = vld [vmem:[#allocation2 + $0x82] sm:$0xff]
        %v608 = vld [vmem:[#allocation2 + $0x92] sm:$0xff]
        %v609 = vld [vmem:[#allocation2 + $0x9a] sm:$0xff]
        %v610 = vld [vmem:[#allocation2 + $0xaa] sm:$0xff]
        %v611 = vld [vmem:[#allocation2 + $0xb2] sm:$0xff]
        %v612 = vld [vmem:[#allocation2 + $0xc2] sm:$0xff]
        %v613 = vld [vmem:[#allocation2 + $0xca] sm:$0xff]
        %v614 = vld [vmem:[#allocation2 + $0xda] sm:$0xff]
        %v615 = vld [vmem:[#allocation2 + $0xe2] sm:$0xff]
        %v616 = vld [vmem:[#allocation2 + $0xf2] sm:$0xff]
        %v617 = vld [vmem:[#allocation2 + $0xfa] sm:$0xff]
        %v618 = vld [vmem:[#allocation2 + $0x10a] sm:$0xff]
        %v619 = vld [vmem:[#allocation2 + $0x112] sm:$0xff]
        %v620 = vld [vmem:[#allocation2 + $0x122] sm:$0xff]
        %v621 = vld [vmem:[#allocation2 + $0x12a] sm:$0xff]
        %v622 = vld [vmem:[#allocation2 + $0x13a] sm:$0xff]
        %v623 = vld [vmem:[#allocation2 + $0x142] sm:$0xff]
        %v624 = vld [vmem:[#allocation2 + $0x152] sm:$0xff]
        %v625 = vld [vmem:[#allocation2 + $0x15a] sm:$0xff]
        %v626 = vld [vmem:[#allocation2 + $0x16a] sm:$0xff]
        %v627 = vld [vmem:[#allocation2 + $0x172] sm:$0xff]
        %660 = vrot.lane.b32.xlu0 %v596, 8
        %v661 = vpop.permute.xlu0 %660
        %662 = vrot.lane.b32.xlu0 %v597, 8
        %v663 = vpop.permute.xlu0 %662
        %664 = vrot.lane.b32.xlu0 %v598, 8
        %v665 = vpop.permute.xlu0 %664
        %666 = vrot.lane.b32.xlu0 %v599, 8
        %v667 = vpop.permute.xlu0 %666
        %668 = vrot.lane.b32.xlu0 %v600, 8
        %v669 = vpop.permute.xlu0 %668
        %670 = vrot.lane.b32.xlu0 %v601, 8
        %v671 = vpop.permute.xlu0 %670
        %672 = vrot.lane.b32.xlu0 %v602, 8
        %v673 = vpop.permute.xlu0 %672
        %674 = vrot.lane.b32.xlu0 %v603, 8
        %v675 = vpop.permute.xlu0 %674
        %676 = vrot.lane.b32.xlu0 %v604, 8
        %v677 = vpop.permute.xlu0 %676
        %678 = vrot.lane.b32.xlu0 %v605, 8
        %v679 = vpop.permute.xlu0 %678
        %680 = vrot.lane.b32.xlu0 %v606, 8
        %v681 = vpop.permute.xlu0 %680
        %682 = vrot.lane.b32.xlu0 %v607, 8
        %v683 = vpop.permute.xlu0 %682
        %684 = vrot.lane.b32.xlu0 %v608, 8
        %v685 = vpop.permute.xlu0 %684
        %686 = vrot.lane.b32.xlu0 %v609, 8
        %v687 = vpop.permute.xlu0 %686
        %688 = vrot.lane.b32.xlu0 %v610, 8
        %v689 = vpop.permute.xlu0 %688
        %690 = vrot.lane.b32.xlu0 %v611, 8
        %v691 = vpop.permute.xlu0 %690
        %692 = vrot.lane.b32.xlu0 %v612, 8
        %v693 = vpop.permute.xlu0 %692
        %694 = vrot.lane.b32.xlu0 %v613, 8
        %v695 = vpop.permute.xlu0 %694
        %696 = vrot.lane.b32.xlu0 %v614, 8
        %v697 = vpop.permute.xlu0 %696
        %698 = vrot.lane.b32.xlu0 %v615, 8
        %v699 = vpop.permute.xlu0 %698
        %700 = vrot.lane.b32.xlu0 %v616, 8
        %v701 = vpop.permute.xlu0 %700
        %702 = vrot.lane.b32.xlu0 %v617, 8
        %v703 = vpop.permute.xlu0 %702
        %704 = vrot.lane.b32.xlu0 %v618, 8
        %v705 = vpop.permute.xlu0 %704
        %706 = vrot.lane.b32.xlu0 %v619, 8
        %v707 = vpop.permute.xlu0 %706
        %708 = vrot.lane.b32.xlu0 %v620, 8
        %v709 = vpop.permute.xlu0 %708
        %710 = vrot.lane.b32.xlu0 %v621, 8
        %v711 = vpop.permute.xlu0 %710
        %712 = vrot.lane.b32.xlu0 %v622, 8
        %v713 = vpop.permute.xlu0 %712
        %714 = vrot.lane.b32.xlu0 %v623, 8
        %v715 = vpop.permute.xlu0 %714
        %716 = vrot.lane.b32.xlu0 %v624, 8
        %v717 = vpop.permute.xlu0 %716
        %718 = vrot.lane.b32.xlu0 %v625, 8
        %v719 = vpop.permute.xlu0 %718
        %720 = vrot.lane.b32.xlu0 %v626, 8
        %v721 = vpop.permute.xlu0 %720
        %722 = vrot.lane.b32.xlu0 %v627, 8
        %v723 = vpop.permute.xlu0 %722
        %vm756 = vcmask 97344
        %757 = vst.msk [vmem:[#allocation3] sm:$0xff] %vm756, %v661
        %758 = vst.msk [vmem:[#allocation3 + $0x8] sm:$0xff] %vm756, %v663
        %759 = vst.msk [vmem:[#allocation3 + $0x10] sm:$0xff] %vm756, %v665
        %760 = vst.msk [vmem:[#allocation3 + $0x18] sm:$0xff] %vm756, %v667
        %761 = vst.msk [vmem:[#allocation3 + $0x20] sm:$0xff] %vm756, %v669
        %762 = vst.msk [vmem:[#allocation3 + $0x28] sm:$0xff] %vm756, %v671
        %763 = vst.msk [vmem:[#allocation3 + $0x30] sm:$0xff] %vm756, %v673
        %764 = vst.msk [vmem:[#allocation3 + $0x38] sm:$0xff] %vm756, %v675
        %765 = vst.msk [vmem:[#allocation3 + $0x40] sm:$0xff] %vm756, %v677
        %766 = vst.msk [vmem:[#allocation3 + $0x48] sm:$0xff] %vm756, %v679
        %767 = vst.msk [vmem:[#allocation3 + $0x50] sm:$0xff] %vm756, %v681
        %768 = vst.msk [vmem:[#allocation3 + $0x58] sm:$0xff] %vm756, %v683
        %769 = vst.msk [vmem:[#allocation3 + $0x60] sm:$0xff] %vm756, %v685
        %770 = vst.msk [vmem:[#allocation3 + $0x68] sm:$0xff] %vm756, %v687
        %771 = vst.msk [vmem:[#allocation3 + $0x70] sm:$0xff] %vm756, %v689
        %772 = vst.msk [vmem:[#allocation3 + $0x78] sm:$0xff] %vm756, %v691
        %773 = vst.msk [vmem:[#allocation3 + $0x80] sm:$0xff] %vm756, %v693
        %774 = vst.msk [vmem:[#allocation3 + $0x88] sm:$0xff] %vm756, %v695
        %775 = vst.msk [vmem:[#allocation3 + $0x90] sm:$0xff] %vm756, %v697
        %776 = vst.msk [vmem:[#allocation3 + $0x98] sm:$0xff] %vm756, %v699
        %777 = vst.msk [vmem:[#allocation3 + $0xa0] sm:$0xff] %vm756, %v701
        %778 = vst.msk [vmem:[#allocation3 + $0xa8] sm:$0xff] %vm756, %v703
        %779 = vst.msk [vmem:[#allocation3 + $0xb0] sm:$0xff] %vm756, %v705
        %780 = vst.msk [vmem:[#allocation3 + $0xb8] sm:$0xff] %vm756, %v707
        %781 = vst.msk [vmem:[#allocation3 + $0xc0] sm:$0xff] %vm756, %v709
        %782 = vst.msk [vmem:[#allocation3 + $0xc8] sm:$0xff] %vm756, %v711
        %783 = vst.msk [vmem:[#allocation3 + $0xd0] sm:$0xff] %vm756, %v713
        %784 = vst.msk [vmem:[#allocation3 + $0xd8] sm:$0xff] %vm756, %v715
        %785 = vst.msk [vmem:[#allocation3 + $0xe0] sm:$0xff] %vm756, %v717
        %786 = vst.msk [vmem:[#allocation3 + $0xe8] sm:$0xff] %vm756, %v719
        %787 = vst.msk [vmem:[#allocation3 + $0xf0] sm:$0xff] %vm756, %v721
        %788 = vst.msk [vmem:[#allocation3 + $0xf8] sm:$0xff] %vm756, %v723
        %v789 = vld [vmem:[%s255] sm:$0xff]
        %v790 = vld [vmem:[%s255 + $0x8] sm:$0xff]
        %v791 = vld [vmem:[%s255 + $0x18] sm:$0xff]
        %v792 = vld [vmem:[%s255 + $0x20] sm:$0xff]
        %v793 = vld [vmem:[%s255 + $0x30] sm:$0xff]
        %v794 = vld [vmem:[%s255 + $0x38] sm:$0xff]
        %v795 = vld [vmem:[%s255 + $0x48] sm:$0xff]
        %v796 = vld [vmem:[%s255 + $0x50] sm:$0xff]
        %v797 = vld [vmem:[%s255 + $0x60] sm:$0xff]
        %v798 = vld [vmem:[%s255 + $0x68] sm:$0xff]
        %v799 = vld [vmem:[%s255 + $0x78] sm:$0xff]
        %v800 = vld [vmem:[%s255 + $0x80] sm:$0xff]
        %v801 = vld [vmem:[%s255 + $0x90] sm:$0xff]
        %v802 = vld [vmem:[%s255 + $0x98] sm:$0xff]
        %v803 = vld [vmem:[%s255 + $0xa8] sm:$0xff]
        %v804 = vld [vmem:[%s255 + $0xb0] sm:$0xff]
        %v805 = vld [vmem:[%s255 + $0xc0] sm:$0xff]
        %v806 = vld [vmem:[%s255 + $0xc8] sm:$0xff]
        %v807 = vld [vmem:[%s255 + $0xd8] sm:$0xff]
        %v808 = vld [vmem:[%s255 + $0xe0] sm:$0xff]
        %v809 = vld [vmem:[%s255 + $0xf0] sm:$0xff]
        %v810 = vld [vmem:[%s255 + $0xf8] sm:$0xff]
        %v811 = vld [vmem:[%s255 + $0x108] sm:$0xff]
        %v812 = vld [vmem:[%s255 + $0x110] sm:$0xff]
        %v813 = vld [vmem:[%s255 + $0x120] sm:$0xff]
        %v814 = vld [vmem:[%s255 + $0x128] sm:$0xff]
        %v815 = vld [vmem:[%s255 + $0x138] sm:$0xff]
        %v816 = vld [vmem:[%s255 + $0x140] sm:$0xff]
        %v817 = vld [vmem:[%s255 + $0x150] sm:$0xff]
        %v818 = vld [vmem:[%s255 + $0x158] sm:$0xff]
        %v819 = vld [vmem:[%s255 + $0x168] sm:$0xff]
        %v820 = vld [vmem:[%s255 + $0x170] sm:$0xff]
        %853 = vrot.lane.b32.xlu0 %v789, 12
        %v854 = vpop.permute.xlu0 %853
        %855 = vrot.lane.b32.xlu0 %v790, 12
        %v856 = vpop.permute.xlu0 %855
        %857 = vrot.lane.b32.xlu0 %v791, 12
        %v858 = vpop.permute.xlu0 %857
        %859 = vrot.lane.b32.xlu0 %v792, 12
        %v860 = vpop.permute.xlu0 %859
        %861 = vrot.lane.b32.xlu0 %v793, 12
        %v862 = vpop.permute.xlu0 %861
        %863 = vrot.lane.b32.xlu0 %v794, 12
        %v864 = vpop.permute.xlu0 %863
        %865 = vrot.lane.b32.xlu0 %v795, 12
        %v866 = vpop.permute.xlu0 %865
        %867 = vrot.lane.b32.xlu0 %v796, 12
        %v868 = vpop.permute.xlu0 %867
        %869 = vrot.lane.b32.xlu0 %v797, 12
        %v870 = vpop.permute.xlu0 %869
        %871 = vrot.lane.b32.xlu0 %v798, 12
        %v872 = vpop.permute.xlu0 %871
        %873 = vrot.lane.b32.xlu0 %v799, 12
        %v874 = vpop.permute.xlu0 %873
        %875 = vrot.lane.b32.xlu0 %v800, 12
        %v876 = vpop.permute.xlu0 %875
        %877 = vrot.lane.b32.xlu0 %v801, 12
        %v878 = vpop.permute.xlu0 %877
        %879 = vrot.lane.b32.xlu0 %v802, 12
        %v880 = vpop.permute.xlu0 %879
        %881 = vrot.lane.b32.xlu0 %v803, 12
        %v882 = vpop.permute.xlu0 %881
        %883 = vrot.lane.b32.xlu0 %v804, 12
        %v884 = vpop.permute.xlu0 %883
        %885 = vrot.lane.b32.xlu0 %v805, 12
        %v886 = vpop.permute.xlu0 %885
        %887 = vrot.lane.b32.xlu0 %v806, 12
        %v888 = vpop.permute.xlu0 %887
        %889 = vrot.lane.b32.xlu0 %v807, 12
        %v890 = vpop.permute.xlu0 %889
        %891 = vrot.lane.b32.xlu0 %v808, 12
        %v892 = vpop.permute.xlu0 %891
        %893 = vrot.lane.b32.xlu0 %v809, 12
        %v894 = vpop.permute.xlu0 %893
        %895 = vrot.lane.b32.xlu0 %v810, 12
        %v896 = vpop.permute.xlu0 %895
        %897 = vrot.lane.b32.xlu0 %v811, 12
        %v898 = vpop.permute.xlu0 %897
        %899 = vrot.lane.b32.xlu0 %v812, 12
        %v900 = vpop.permute.xlu0 %899
        %901 = vrot.lane.b32.xlu0 %v813, 12
        %v902 = vpop.permute.xlu0 %901
        %903 = vrot.lane.b32.xlu0 %v814, 12
        %v904 = vpop.permute.xlu0 %903
        %905 = vrot.lane.b32.xlu0 %v815, 12
        %v906 = vpop.permute.xlu0 %905
        %907 = vrot.lane.b32.xlu0 %v816, 12
        %v908 = vpop.permute.xlu0 %907
        %909 = vrot.lane.b32.xlu0 %v817, 12
        %v910 = vpop.permute.xlu0 %909
        %911 = vrot.lane.b32.xlu0 %v818, 12
        %v912 = vpop.permute.xlu0 %911
        %913 = vrot.lane.b32.xlu0 %v819, 12
        %v914 = vpop.permute.xlu0 %913
        %915 = vrot.lane.b32.xlu0 %v820, 12
        %v916 = vpop.permute.xlu0 %915
        %vm949 = vcmask 130144
        %950 = vst.msk [vmem:[#allocation3] sm:$0xff] %vm949, %v854
        %951 = vst.msk [vmem:[#allocation3 + $0x8] sm:$0xff] %vm949, %v856
        %952 = vst.msk [vmem:[#allocation3 + $0x10] sm:$0xff] %vm949, %v858
        %953 = vst.msk [vmem:[#allocation3 + $0x18] sm:$0xff] %vm949, %v860
        %954 = vst.msk [vmem:[#allocation3 + $0x20] sm:$0xff] %vm949, %v862
        %955 = vst.msk [vmem:[#allocation3 + $0x28] sm:$0xff] %vm949, %v864
        %956 = vst.msk [vmem:[#allocation3 + $0x30] sm:$0xff] %vm949, %v866
        %957 = vst.msk [vmem:[#allocation3 + $0x38] sm:$0xff] %vm949, %v868
        %958 = vst.msk [vmem:[#allocation3 + $0x40] sm:$0xff] %vm949, %v870
        %959 = vst.msk [vmem:[#allocation3 + $0x48] sm:$0xff] %vm949, %v872
        %960 = vst.msk [vmem:[#allocation3 + $0x50] sm:$0xff] %vm949, %v874
        %961 = vst.msk [vmem:[#allocation3 + $0x58] sm:$0xff] %vm949, %v876
        %962 = vst.msk [vmem:[#allocation3 + $0x60] sm:$0xff] %vm949, %v878
        %963 = vst.msk [vmem:[#allocation3 + $0x68] sm:$0xff] %vm949, %v880
        %964 = vst.msk [vmem:[#allocation3 + $0x70] sm:$0xff] %vm949, %v882
        %965 = vst.msk [vmem:[#allocation3 + $0x78] sm:$0xff] %vm949, %v884
        %966 = vst.msk [vmem:[#allocation3 + $0x80] sm:$0xff] %vm949, %v886
        %967 = vst.msk [vmem:[#allocation3 + $0x88] sm:$0xff] %vm949, %v888
        %968 = vst.msk [vmem:[#allocation3 + $0x90] sm:$0xff] %vm949, %v890
        %969 = vst.msk [vmem:[#allocation3 + $0x98] sm:$0xff] %vm949, %v892
        %970 = vst.msk [vmem:[#allocation3 + $0xa0] sm:$0xff] %vm949, %v894
        %971 = vst.msk [vmem:[#allocation3 + $0xa8] sm:$0xff] %vm949, %v896
        %972 = vst.msk [vmem:[#allocation3 + $0xb0] sm:$0xff] %vm949, %v898
        %973 = vst.msk [vmem:[#allocation3 + $0xb8] sm:$0xff] %vm949, %v900
        %974 = vst.msk [vmem:[#allocation3 + $0xc0] sm:$0xff] %vm949, %v902
        %975 = vst.msk [vmem:[#allocation3 + $0xc8] sm:$0xff] %vm949, %v904
        %976 = vst.msk [vmem:[#allocation3 + $0xd0] sm:$0xff] %vm949, %v906
        %977 = vst.msk [vmem:[#allocation3 + $0xd8] sm:$0xff] %vm949, %v908
        %978 = vst.msk [vmem:[#allocation3 + $0xe0] sm:$0xff] %vm949, %v910
        %979 = vst.msk [vmem:[#allocation3 + $0xe8] sm:$0xff] %vm949, %v912
        %980 = vst.msk [vmem:[#allocation3 + $0xf0] sm:$0xff] %vm949, %v914
        %981 = vst.msk [vmem:[#allocation3 + $0xf8] sm:$0xff] %vm949, %v916
        %v982 = vld [vmem:[%s255 + $0x1] sm:$0xff]
        %v983 = vld [vmem:[%s255 + $0x9] sm:$0xff]
        %v984 = vld [vmem:[%s255 + $0x19] sm:$0xff]
        %v985 = vld [vmem:[%s255 + $0x21] sm:$0xff]
        %v986 = vld [vmem:[%s255 + $0x31] sm:$0xff]
        %v987 = vld [vmem:[%s255 + $0x39] sm:$0xff]
        %v988 = vld [vmem:[%s255 + $0x49] sm:$0xff]
        %v989 = vld [vmem:[%s255 + $0x51] sm:$0xff]
        %v990 = vld [vmem:[%s255 + $0x61] sm:$0xff]
        %v991 = vld [vmem:[%s255 + $0x69] sm:$0xff]
        %v992 = vld [vmem:[%s255 + $0x79] sm:$0xff]
        %v993 = vld [vmem:[%s255 + $0x81] sm:$0xff]
        %v994 = vld [vmem:[%s255 + $0x91] sm:$0xff]
        %v995 = vld [vmem:[%s255 + $0x99] sm:$0xff]
        %v996 = vld [vmem:[%s255 + $0xa9] sm:$0xff]
        %v997 = vld [vmem:[%s255 + $0xb1] sm:$0xff]
        %v998 = vld [vmem:[%s255 + $0xc1] sm:$0xff]
        %v999 = vld [vmem:[%s255 + $0xc9] sm:$0xff]
        %v1000 = vld [vmem:[%s255 + $0xd9] sm:$0xff]
        %v1001 = vld [vmem:[%s255 + $0xe1] sm:$0xff]
        %v1002 = vld [vmem:[%s255 + $0xf1] sm:$0xff]
        %v1003 = vld [vmem:[%s255 + $0xf9] sm:$0xff]
        %v1004 = vld [vmem:[%s255 + $0x109] sm:$0xff]
        %v1005 = vld [vmem:[%s255 + $0x111] sm:$0xff]
        %v1006 = vld [vmem:[%s255 + $0x121] sm:$0xff]
        %v1007 = vld [vmem:[%s255 + $0x129] sm:$0xff]
        %v1008 = vld [vmem:[%s255 + $0x139] sm:$0xff]
        %v1009 = vld [vmem:[%s255 + $0x141] sm:$0xff]
        %v1010 = vld [vmem:[%s255 + $0x151] sm:$0xff]
        %v1011 = vld [vmem:[%s255 + $0x159] sm:$0xff]
        %v1012 = vld [vmem:[%s255 + $0x169] sm:$0xff]
        %v1013 = vld [vmem:[%s255 + $0x171] sm:$0xff]
        %1046 = vrot.lane.b32.xlu0 %v982, 16
        %v1047 = vpop.permute.xlu0 %1046
        %1048 = vrot.lane.b32.xlu0 %v983, 16
        %v1049 = vpop.permute.xlu0 %1048
        %1050 = vrot.lane.b32.xlu0 %v984, 16
        %v1051 = vpop.permute.xlu0 %1050
        %1052 = vrot.lane.b32.xlu0 %v985, 16
        %v1053 = vpop.permute.xlu0 %1052
        %1054 = vrot.lane.b32.xlu0 %v986, 16
        %v1055 = vpop.permute.xlu0 %1054
        %1056 = vrot.lane.b32.xlu0 %v987, 16
        %v1057 = vpop.permute.xlu0 %1056
        %1058 = vrot.lane.b32.xlu0 %v988, 16
        %v1059 = vpop.permute.xlu0 %1058
        %1060 = vrot.lane.b32.xlu0 %v989, 16
        %v1061 = vpop.permute.xlu0 %1060
        %1062 = vrot.lane.b32.xlu0 %v990, 16
        %v1063 = vpop.permute.xlu0 %1062
        %1064 = vrot.lane.b32.xlu0 %v991, 16
        %v1065 = vpop.permute.xlu0 %1064
        %1066 = vrot.lane.b32.xlu0 %v992, 16
        %v1067 = vpop.permute.xlu0 %1066
        %1068 = vrot.lane.b32.xlu0 %v993, 16
        %v1069 = vpop.permute.xlu0 %1068
        %1070 = vrot.lane.b32.xlu0 %v994, 16
        %v1071 = vpop.permute.xlu0 %1070
        %1072 = vrot.lane.b32.xlu0 %v995, 16
        %v1073 = vpop.permute.xlu0 %1072
        %1074 = vrot.lane.b32.xlu0 %v996, 16
        %v1075 = vpop.permute.xlu0 %1074
        %1076 = vrot.lane.b32.xlu0 %v997, 16
        %v1077 = vpop.permute.xlu0 %1076
        %1078 = vrot.lane.b32.xlu0 %v998, 16
        %v1079 = vpop.permute.xlu0 %1078
        %1080 = vrot.lane.b32.xlu0 %v999, 16
        %v1081 = vpop.permute.xlu0 %1080
        %1082 = vrot.lane.b32.xlu0 %v1000, 16
        %v1083 = vpop.permute.xlu0 %1082
        %1084 = vrot.lane.b32.xlu0 %v1001, 16
        %v1085 = vpop.permute.xlu0 %1084
        %1086 = vrot.lane.b32.xlu0 %v1002, 16
        %v1087 = vpop.permute.xlu0 %1086
        %1088 = vrot.lane.b32.xlu0 %v1003, 16
        %v1089 = vpop.permute.xlu0 %1088
        %1090 = vrot.lane.b32.xlu0 %v1004, 16
        %v1091 = vpop.permute.xlu0 %1090
        %1092 = vrot.lane.b32.xlu0 %v1005, 16
        %v1093 = vpop.permute.xlu0 %1092
        %1094 = vrot.lane.b32.xlu0 %v1006, 16
        %v1095 = vpop.permute.xlu0 %1094
        %1096 = vrot.lane.b32.xlu0 %v1007, 16
        %v1097 = vpop.permute.xlu0 %1096
        %1098 = vrot.lane.b32.xlu0 %v1008, 16
        %v1099 = vpop.permute.xlu0 %1098
        %1100 = vrot.lane.b32.xlu0 %v1009, 16
        %v1101 = vpop.permute.xlu0 %1100
        %1102 = vrot.lane.b32.xlu0 %v1010, 16
        %v1103 = vpop.permute.xlu0 %1102
        %1104 = vrot.lane.b32.xlu0 %v1011, 16
        %v1105 = vpop.permute.xlu0 %1104
        %1106 = vrot.lane.b32.xlu0 %v1012, 16
        %v1107 = vpop.permute.xlu0 %1106
        %1108 = vrot.lane.b32.xlu0 %v1013, 16
        %v1109 = vpop.permute.xlu0 %1108
        %vm1142 = vcmask 162944
        %1143 = vst.msk [vmem:[#allocation3] sm:$0xff] %vm1142, %v1047
        %1144 = vst.msk [vmem:[#allocation3 + $0x8] sm:$0xff] %vm1142, %v1049
        %1145 = vst.msk [vmem:[#allocation3 + $0x10] sm:$0xff] %vm1142, %v1051
        %1146 = vst.msk [vmem:[#allocation3 + $0x18] sm:$0xff] %vm1142, %v1053
        %1147 = vst.msk [vmem:[#allocation3 + $0x20] sm:$0xff] %vm1142, %v1055
        %1148 = vst.msk [vmem:[#allocation3 + $0x28] sm:$0xff] %vm1142, %v1057
        %1149 = vst.msk [vmem:[#allocation3 + $0x30] sm:$0xff] %vm1142, %v1059
        %1150 = vst.msk [vmem:[#allocation3 + $0x38] sm:$0xff] %vm1142, %v1061
        %1151 = vst.msk [vmem:[#allocation3 + $0x40] sm:$0xff] %vm1142, %v1063
        %1152 = vst.msk [vmem:[#allocation3 + $0x48] sm:$0xff] %vm1142, %v1065
        %1153 = vst.msk [vmem:[#allocation3 + $0x50] sm:$0xff] %vm1142, %v1067
        %1154 = vst.msk [vmem:[#allocation3 + $0x58] sm:$0xff] %vm1142, %v1069
        %1155 = vst.msk [vmem:[#allocation3 + $0x60] sm:$0xff] %vm1142, %v1071
        %1156 = vst.msk [vmem:[#allocation3 + $0x68] sm:$0xff] %vm1142, %v1073
        %1157 = vst.msk [vmem:[#allocation3 + $0x70] sm:$0xff] %vm1142, %v1075
        %1158 = vst.msk [vmem:[#allocation3 + $0x78] sm:$0xff] %vm1142, %v1077
        %1159 = vst.msk [vmem:[#allocation3 + $0x80] sm:$0xff] %vm1142, %v1079
        %1160 = vst.msk [vmem:[#allocation3 + $0x88] sm:$0xff] %vm1142, %v1081
        %1161 = vst.msk [vmem:[#allocation3 + $0x90] sm:$0xff] %vm1142, %v1083
        %1162 = vst.msk [vmem:[#allocation3 + $0x98] sm:$0xff] %vm1142, %v1085
        %1163 = vst.msk [vmem:[#allocation3 + $0xa0] sm:$0xff] %vm1142, %v1087
        %1164 = vst.msk [vmem:[#allocation3 + $0xa8] sm:$0xff] %vm1142, %v1089
        %1165 = vst.msk [vmem:[#allocation3 + $0xb0] sm:$0xff] %vm1142, %v1091
        %1166 = vst.msk [vmem:[#allocation3 + $0xb8] sm:$0xff] %vm1142, %v1093
        %1167 = vst.msk [vmem:[#allocation3 + $0xc0] sm:$0xff] %vm1142, %v1095
        %1168 = vst.msk [vmem:[#allocation3 + $0xc8] sm:$0xff] %vm1142, %v1097
        %1169 = vst.msk [vmem:[#allocation3 + $0xd0] sm:$0xff] %vm1142, %v1099
        %1170 = vst.msk [vmem:[#allocation3 + $0xd8] sm:$0xff] %vm1142, %v1101
        %1171 = vst.msk [vmem:[#allocation3 + $0xe0] sm:$0xff] %vm1142, %v1103
        %1172 = vst.msk [vmem:[#allocation3 + $0xe8] sm:$0xff] %vm1142, %v1105
        %1173 = vst.msk [vmem:[#allocation3 + $0xf0] sm:$0xff] %vm1142, %v1107
        %1174 = vst.msk [vmem:[#allocation3 + $0xf8] sm:$0xff] %vm1142, %v1109
        %v1175 = vld [vmem:[%s255 + $0x2] sm:$0xff]
        %v1176 = vld [vmem:[%s255 + $0xa] sm:$0xff]
        %v1177 = vld [vmem:[%s255 + $0x1a] sm:$0xff]
        %v1178 = vld [vmem:[%s255 + $0x22] sm:$0xff]
        %v1179 = vld [vmem:[%s255 + $0x32] sm:$0xff]
        %v1180 = vld [vmem:[%s255 + $0x3a] sm:$0xff]
        %v1181 = vld [vmem:[%s255 + $0x4a] sm:$0xff]
        %v1182 = vld [vmem:[%s255 + $0x52] sm:$0xff]
        %v1183 = vld [vmem:[%s255 + $0x62] sm:$0xff]
        %v1184 = vld [vmem:[%s255 + $0x6a] sm:$0xff]
        %v1185 = vld [vmem:[%s255 + $0x7a] sm:$0xff]
        %v1186 = vld [vmem:[%s255 + $0x82] sm:$0xff]
        %v1187 = vld [vmem:[%s255 + $0x92] sm:$0xff]
        %v1188 = vld [vmem:[%s255 + $0x9a] sm:$0xff]
        %v1189 = vld [vmem:[%s255 + $0xaa] sm:$0xff]
        %v1190 = vld [vmem:[%s255 + $0xb2] sm:$0xff]
        %v1191 = vld [vmem:[%s255 + $0xc2] sm:$0xff]
        %v1192 = vld [vmem:[%s255 + $0xca] sm:$0xff]
        %v1193 = vld [vmem:[%s255 + $0xda] sm:$0xff]
        %v1194 = vld [vmem:[%s255 + $0xe2] sm:$0xff]
        %v1195 = vld [vmem:[%s255 + $0xf2] sm:$0xff]
        %v1196 = vld [vmem:[%s255 + $0xfa] sm:$0xff]
        %v1197 = vld [vmem:[%s255 + $0x10a] sm:$0xff]
        %v1198 = vld [vmem:[%s255 + $0x112] sm:$0xff]
        %v1199 = vld [vmem:[%s255 + $0x122] sm:$0xff]
        %v1200 = vld [vmem:[%s255 + $0x12a] sm:$0xff]
        %v1201 = vld [vmem:[%s255 + $0x13a] sm:$0xff]
        %v1202 = vld [vmem:[%s255 + $0x142] sm:$0xff]
        %v1203 = vld [vmem:[%s255 + $0x152] sm:$0xff]
        %v1204 = vld [vmem:[%s255 + $0x15a] sm:$0xff]
        %v1205 = vld [vmem:[%s255 + $0x16a] sm:$0xff]
        %v1206 = vld [vmem:[%s255 + $0x172] sm:$0xff]
        %1239 = vrot.lane.b32.xlu0 %v1175, 20
        %v1240 = vpop.permute.xlu0 %1239
        %1241 = vrot.lane.b32.xlu0 %v1176, 20
        %v1242 = vpop.permute.xlu0 %1241
        %1243 = vrot.lane.b32.xlu0 %v1177, 20
        %v1244 = vpop.permute.xlu0 %1243
        %1245 = vrot.lane.b32.xlu0 %v1178, 20
        %v1246 = vpop.permute.xlu0 %1245
        %1247 = vrot.lane.b32.xlu0 %v1179, 20
        %v1248 = vpop.permute.xlu0 %1247
        %1249 = vrot.lane.b32.xlu0 %v1180, 20
        %v1250 = vpop.permute.xlu0 %1249
        %1251 = vrot.lane.b32.xlu0 %v1181, 20
        %v1252 = vpop.permute.xlu0 %1251
        %1253 = vrot.lane.b32.xlu0 %v1182, 20
        %v1254 = vpop.permute.xlu0 %1253
        %1255 = vrot.lane.b32.xlu0 %v1183, 20
        %v1256 = vpop.permute.xlu0 %1255
        %1257 = vrot.lane.b32.xlu0 %v1184, 20
        %v1258 = vpop.permute.xlu0 %1257
        %1259 = vrot.lane.b32.xlu0 %v1185, 20
        %v1260 = vpop.permute.xlu0 %1259
        %1261 = vrot.lane.b32.xlu0 %v1186, 20
        %v1262 = vpop.permute.xlu0 %1261
        %1263 = vrot.lane.b32.xlu0 %v1187, 20
        %v1264 = vpop.permute.xlu0 %1263
        %1265 = vrot.lane.b32.xlu0 %v1188, 20
        %v1266 = vpop.permute.xlu0 %1265
        %1267 = vrot.lane.b32.xlu0 %v1189, 20
        %v1268 = vpop.permute.xlu0 %1267
        %1269 = vrot.lane.b32.xlu0 %v1190, 20
        %v1270 = vpop.permute.xlu0 %1269
        %1271 = vrot.lane.b32.xlu0 %v1191, 20
        %v1272 = vpop.permute.xlu0 %1271
        %1273 = vrot.lane.b32.xlu0 %v1192, 20
        %v1274 = vpop.permute.xlu0 %1273
        %1275 = vrot.lane.b32.xlu0 %v1193, 20
        %v1276 = vpop.permute.xlu0 %1275
        %1277 = vrot.lane.b32.xlu0 %v1194, 20
        %v1278 = vpop.permute.xlu0 %1277
        %1279 = vrot.lane.b32.xlu0 %v1195, 20
        %v1280 = vpop.permute.xlu0 %1279
        %1281 = vrot.lane.b32.xlu0 %v1196, 20
        %v1282 = vpop.permute.xlu0 %1281
        %1283 = vrot.lane.b32.xlu0 %v1197, 20
        %v1284 = vpop.permute.xlu0 %1283
        %1285 = vrot.lane.b32.xlu0 %v1198, 20
        %v1286 = vpop.permute.xlu0 %1285
        %1287 = vrot.lane.b32.xlu0 %v1199, 20
        %v1288 = vpop.permute.xlu0 %1287
        %1289 = vrot.lane.b32.xlu0 %v1200, 20
        %v1290 = vpop.permute.xlu0 %1289
        %1291 = vrot.lane.b32.xlu0 %v1201, 20
        %v1292 = vpop.permute.xlu0 %1291
        %1293 = vrot.lane.b32.xlu0 %v1202, 20
        %v1294 = vpop.permute.xlu0 %1293
        %1295 = vrot.lane.b32.xlu0 %v1203, 20
        %v1296 = vpop.permute.xlu0 %1295
        %1297 = vrot.lane.b32.xlu0 %v1204, 20
        %v1298 = vpop.permute.xlu0 %1297
        %1299 = vrot.lane.b32.xlu0 %v1205, 20
        %v1300 = vpop.permute.xlu0 %1299
        %1301 = vrot.lane.b32.xlu0 %v1206, 20
        %v1302 = vpop.permute.xlu0 %1301
        %vm1335 = vcmask 195744
        %1336 = vst.msk [vmem:[#allocation3] sm:$0xff] %vm1335, %v1240
        %1337 = vst.msk [vmem:[#allocation3 + $0x8] sm:$0xff] %vm1335, %v1242
        %1338 = vst.msk [vmem:[#allocation3 + $0x10] sm:$0xff] %vm1335, %v1244
        %1339 = vst.msk [vmem:[#allocation3 + $0x18] sm:$0xff] %vm1335, %v1246
        %1340 = vst.msk [vmem:[#allocation3 + $0x20] sm:$0xff] %vm1335, %v1248
        %1341 = vst.msk [vmem:[#allocation3 + $0x28] sm:$0xff] %vm1335, %v1250
        %1342 = vst.msk [vmem:[#allocation3 + $0x30] sm:$0xff] %vm1335, %v1252
        %1343 = vst.msk [vmem:[#allocation3 + $0x38] sm:$0xff] %vm1335, %v1254
        %1344 = vst.msk [vmem:[#allocation3 + $0x40] sm:$0xff] %vm1335, %v1256
        %1345 = vst.msk [vmem:[#allocation3 + $0x48] sm:$0xff] %vm1335, %v1258
        %1346 = vst.msk [vmem:[#allocation3 + $0x50] sm:$0xff] %vm1335, %v1260
        %1347 = vst.msk [vmem:[#allocation3 + $0x58] sm:$0xff] %vm1335, %v1262
        %1348 = vst.msk [vmem:[#allocation3 + $0x60] sm:$0xff] %vm1335, %v1264
        %1349 = vst.msk [vmem:[#allocation3 + $0x68] sm:$0xff] %vm1335, %v1266
        %1350 = vst.msk [vmem:[#allocation3 + $0x70] sm:$0xff] %vm1335, %v1268
        %1351 = vst.msk [vmem:[#allocation3 + $0x78] sm:$0xff] %vm1335, %v1270
        %1352 = vst.msk [vmem:[#allocation3 + $0x80] sm:$0xff] %vm1335, %v1272
        %1353 = vst.msk [vmem:[#allocation3 + $0x88] sm:$0xff] %vm1335, %v1274
        %1354 = vst.msk [vmem:[#allocation3 + $0x90] sm:$0xff] %vm1335, %v1276
        %1355 = vst.msk [vmem:[#allocation3 + $0x98] sm:$0xff] %vm1335, %v1278
        %1356 = vst.msk [vmem:[#allocation3 + $0xa0] sm:$0xff] %vm1335, %v1280
        %1357 = vst.msk [vmem:[#allocation3 + $0xa8] sm:$0xff] %vm1335, %v1282
        %1358 = vst.msk [vmem:[#allocation3 + $0xb0] sm:$0xff] %vm1335, %v1284
        %1359 = vst.msk [vmem:[#allocation3 + $0xb8] sm:$0xff] %vm1335, %v1286
        %1360 = vst.msk [vmem:[#allocation3 + $0xc0] sm:$0xff] %vm1335, %v1288
        %1361 = vst.msk [vmem:[#allocation3 + $0xc8] sm:$0xff] %vm1335, %v1290
        %1362 = vst.msk [vmem:[#allocation3 + $0xd0] sm:$0xff] %vm1335, %v1292
        %1363 = vst.msk [vmem:[#allocation3 + $0xd8] sm:$0xff] %vm1335, %v1294
        %1364 = vst.msk [vmem:[#allocation3 + $0xe0] sm:$0xff] %vm1335, %v1296
        %1365 = vst.msk [vmem:[#allocation3 + $0xe8] sm:$0xff] %vm1335, %v1298
        %1366 = vst.msk [vmem:[#allocation3 + $0xf0] sm:$0xff] %vm1335, %v1300
        %1367 = vst.msk [vmem:[#allocation3 + $0xf8] sm:$0xff] %vm1335, %v1302
        %v1368 = vld [vmem:[%s323] sm:$0xff]
        %v1369 = vld [vmem:[%s323 + $0x8] sm:$0xff]
        %v1370 = vld [vmem:[%s323 + $0x18] sm:$0xff]
        %v1371 = vld [vmem:[%s323 + $0x20] sm:$0xff]
        %v1372 = vld [vmem:[%s323 + $0x30] sm:$0xff]
        %v1373 = vld [vmem:[%s323 + $0x38] sm:$0xff]
        %v1374 = vld [vmem:[%s323 + $0x48] sm:$0xff]
        %v1375 = vld [vmem:[%s323 + $0x50] sm:$0xff]
        %v1376 = vld [vmem:[%s323 + $0x60] sm:$0xff]
        %v1377 = vld [vmem:[%s323 + $0x68] sm:$0xff]
        %v1378 = vld [vmem:[%s323 + $0x78] sm:$0xff]
        %v1379 = vld [vmem:[%s323 + $0x80] sm:$0xff]
        %v1380 = vld [vmem:[%s323 + $0x90] sm:$0xff]
        %v1381 = vld [vmem:[%s323 + $0x98] sm:$0xff]
        %v1382 = vld [vmem:[%s323 + $0xa8] sm:$0xff]
        %v1383 = vld [vmem:[%s323 + $0xb0] sm:$0xff]
        %v1384 = vld [vmem:[%s323 + $0xc0] sm:$0xff]
        %v1385 = vld [vmem:[%s323 + $0xc8] sm:$0xff]
        %v1386 = vld [vmem:[%s323 + $0xd8] sm:$0xff]
        %v1387 = vld [vmem:[%s323 + $0xe0] sm:$0xff]
        %v1388 = vld [vmem:[%s323 + $0xf0] sm:$0xff]
        %v1389 = vld [vmem:[%s323 + $0xf8] sm:$0xff]
        %v1390 = vld [vmem:[%s323 + $0x108] sm:$0xff]
        %v1391 = vld [vmem:[%s323 + $0x110] sm:$0xff]
        %v1392 = vld [vmem:[%s323 + $0x120] sm:$0xff]
        %v1393 = vld [vmem:[%s323 + $0x128] sm:$0xff]
        %v1394 = vld [vmem:[%s323 + $0x138] sm:$0xff]
        %v1395 = vld [vmem:[%s323 + $0x140] sm:$0xff]
        %v1396 = vld [vmem:[%s323 + $0x150] sm:$0xff]
        %v1397 = vld [vmem:[%s323 + $0x158] sm:$0xff]
        %v1398 = vld [vmem:[%s323 + $0x168] sm:$0xff]
        %v1399 = vld [vmem:[%s323 + $0x170] sm:$0xff]
        %1432 = vrot.lane.b32.xlu0 %v1368, 24
        %v1433 = vpop.permute.xlu0 %1432
        %1434 = vrot.lane.b32.xlu0 %v1369, 24
        %v1435 = vpop.permute.xlu0 %1434
        %1436 = vrot.lane.b32.xlu0 %v1370, 24
        %v1437 = vpop.permute.xlu0 %1436
        %1438 = vrot.lane.b32.xlu0 %v1371, 24
        %v1439 = vpop.permute.xlu0 %1438
        %1440 = vrot.lane.b32.xlu0 %v1372, 24
        %v1441 = vpop.permute.xlu0 %1440
        %1442 = vrot.lane.b32.xlu0 %v1373, 24
        %v1443 = vpop.permute.xlu0 %1442
        %1444 = vrot.lane.b32.xlu0 %v1374, 24
        %v1445 = vpop.permute.xlu0 %1444
        %1446 = vrot.lane.b32.xlu0 %v1375, 24
        %v1447 = vpop.permute.xlu0 %1446
        %1448 = vrot.lane.b32.xlu0 %v1376, 24
        %v1449 = vpop.permute.xlu0 %1448
        %1450 = vrot.lane.b32.xlu0 %v1377, 24
        %v1451 = vpop.permute.xlu0 %1450
        %1452 = vrot.lane.b32.xlu0 %v1378, 24
        %v1453 = vpop.permute.xlu0 %1452
        %1454 = vrot.lane.b32.xlu0 %v1379, 24
        %v1455 = vpop.permute.xlu0 %1454
        %1456 = vrot.lane.b32.xlu0 %v1380, 24
        %v1457 = vpop.permute.xlu0 %1456
        %1458 = vrot.lane.b32.xlu0 %v1381, 24
        %v1459 = vpop.permute.xlu0 %1458
        %1460 = vrot.lane.b32.xlu0 %v1382, 24
        %v1461 = vpop.permute.xlu0 %1460
        %1462 = vrot.lane.b32.xlu0 %v1383, 24
        %v1463 = vpop.permute.xlu0 %1462
        %1464 = vrot.lane.b32.xlu0 %v1384, 24
        %v1465 = vpop.permute.xlu0 %1464
        %1466 = vrot.lane.b32.xlu0 %v1385, 24
        %v1467 = vpop.permute.xlu0 %1466
        %1468 = vrot.lane.b32.xlu0 %v1386, 24
        %v1469 = vpop.permute.xlu0 %1468
        %1470 = vrot.lane.b32.xlu0 %v1387, 24
        %v1471 = vpop.permute.xlu0 %1470
        %1472 = vrot.lane.b32.xlu0 %v1388, 24
        %v1473 = vpop.permute.xlu0 %1472
        %1474 = vrot.lane.b32.xlu0 %v1389, 24
        %v1475 = vpop.permute.xlu0 %1474
        %1476 = vrot.lane.b32.xlu0 %v1390, 24
        %v1477 = vpop.permute.xlu0 %1476
        %1478 = vrot.lane.b32.xlu0 %v1391, 24
        %v1479 = vpop.permute.xlu0 %1478
        %1480 = vrot.lane.b32.xlu0 %v1392, 24
        %v1481 = vpop.permute.xlu0 %1480
        %1482 = vrot.lane.b32.xlu0 %v1393, 24
        %v1483 = vpop.permute.xlu0 %1482
        %1484 = vrot.lane.b32.xlu0 %v1394, 24
        %v1485 = vpop.permute.xlu0 %1484
        %1486 = vrot.lane.b32.xlu0 %v1395, 24
        %v1487 = vpop.permute.xlu0 %1486
        %1488 = vrot.lane.b32.xlu0 %v1396, 24
        %v1489 = vpop.permute.xlu0 %1488
        %1490 = vrot.lane.b32.xlu0 %v1397, 24
        %v1491 = vpop.permute.xlu0 %1490
        %1492 = vrot.lane.b32.xlu0 %v1398, 24
        %v1493 = vpop.permute.xlu0 %1492
        %1494 = vrot.lane.b32.xlu0 %v1399, 24
        %v1495 = vpop.permute.xlu0 %1494
        %vm1528 = vcmask 228544
        %1529 = vst.msk [vmem:[#allocation3] sm:$0xff] %vm1528, %v1433
        %1530 = vst.msk [vmem:[#allocation3 + $0x8] sm:$0xff] %vm1528, %v1435
        %1531 = vst.msk [vmem:[#allocation3 + $0x10] sm:$0xff] %vm1528, %v1437
        %1532 = vst.msk [vmem:[#allocation3 + $0x18] sm:$0xff] %vm1528, %v1439
        %1533 = vst.msk [vmem:[#allocation3 + $0x20] sm:$0xff] %vm1528, %v1441
        %1534 = vst.msk [vmem:[#allocation3 + $0x28] sm:$0xff] %vm1528, %v1443
        %1535 = vst.msk [vmem:[#allocation3 + $0x30] sm:$0xff] %vm1528, %v1445
        %1536 = vst.msk [vmem:[#allocation3 + $0x38] sm:$0xff] %vm1528, %v1447
        %1537 = vst.msk [vmem:[#allocation3 + $0x40] sm:$0xff] %vm1528, %v1449
        %1538 = vst.msk [vmem:[#allocation3 + $0x48] sm:$0xff] %vm1528, %v1451
        %1539 = vst.msk [vmem:[#allocation3 + $0x50] sm:$0xff] %vm1528, %v1453
        %1540 = vst.msk [vmem:[#allocation3 + $0x58] sm:$0xff] %vm1528, %v1455
        %1541 = vst.msk [vmem:[#allocation3 + $0x60] sm:$0xff] %vm1528, %v1457
        %1542 = vst.msk [vmem:[#allocation3 + $0x68] sm:$0xff] %vm1528, %v1459
        %1543 = vst.msk [vmem:[#allocation3 + $0x70] sm:$0xff] %vm1528, %v1461
        %1544 = vst.msk [vmem:[#allocation3 + $0x78] sm:$0xff] %vm1528, %v1463
        %1545 = vst.msk [vmem:[#allocation3 + $0x80] sm:$0xff] %vm1528, %v1465
        %1546 = vst.msk [vmem:[#allocation3 + $0x88] sm:$0xff] %vm1528, %v1467
        %1547 = vst.msk [vmem:[#allocation3 + $0x90] sm:$0xff] %vm1528, %v1469
        %1548 = vst.msk [vmem:[#allocation3 + $0x98] sm:$0xff] %vm1528, %v1471
        %1549 = vst.msk [vmem:[#allocation3 + $0xa0] sm:$0xff] %vm1528, %v1473
        %1550 = vst.msk [vmem:[#allocation3 + $0xa8] sm:$0xff] %vm1528, %v1475
        %1551 = vst.msk [vmem:[#allocation3 + $0xb0] sm:$0xff] %vm1528, %v1477
        %1552 = vst.msk [vmem:[#allocation3 + $0xb8] sm:$0xff] %vm1528, %v1479
        %1553 = vst.msk [vmem:[#allocation3 + $0xc0] sm:$0xff] %vm1528, %v1481
        %1554 = vst.msk [vmem:[#allocation3 + $0xc8] sm:$0xff] %vm1528, %v1483
        %1555 = vst.msk [vmem:[#allocation3 + $0xd0] sm:$0xff] %vm1528, %v1485
        %1556 = vst.msk [vmem:[#allocation3 + $0xd8] sm:$0xff] %vm1528, %v1487
        %1557 = vst.msk [vmem:[#allocation3 + $0xe0] sm:$0xff] %vm1528, %v1489
        %1558 = vst.msk [vmem:[#allocation3 + $0xe8] sm:$0xff] %vm1528, %v1491
        %1559 = vst.msk [vmem:[#allocation3 + $0xf0] sm:$0xff] %vm1528, %v1493
        %1560 = vst.msk [vmem:[#allocation3 + $0xf8] sm:$0xff] %vm1528, %v1495
        %v1561 = vld [vmem:[%s323 + $0x1] sm:$0xff]
        %v1562 = vld [vmem:[%s323 + $0x9] sm:$0xff]
        %v1563 = vld [vmem:[%s323 + $0x19] sm:$0xff]
        %v1564 = vld [vmem:[%s323 + $0x21] sm:$0xff]
        %v1565 = vld [vmem:[%s323 + $0x31] sm:$0xff]
        %v1566 = vld [vmem:[%s323 + $0x39] sm:$0xff]
        %v1567 = vld [vmem:[%s323 + $0x49] sm:$0xff]
        %v1568 = vld [vmem:[%s323 + $0x51] sm:$0xff]
        %v1569 = vld [vmem:[%s323 + $0x61] sm:$0xff]
        %v1570 = vld [vmem:[%s323 + $0x69] sm:$0xff]
        %v1571 = vld [vmem:[%s323 + $0x79] sm:$0xff]
        %v1572 = vld [vmem:[%s323 + $0x81] sm:$0xff]
        %v1573 = vld [vmem:[%s323 + $0x91] sm:$0xff]
        %v1574 = vld [vmem:[%s323 + $0x99] sm:$0xff]
        %v1575 = vld [vmem:[%s323 + $0xa9] sm:$0xff]
        %v1576 = vld [vmem:[%s323 + $0xb1] sm:$0xff]
        %v1577 = vld [vmem:[%s323 + $0xc1] sm:$0xff]
        %v1578 = vld [vmem:[%s323 + $0xc9] sm:$0xff]
        %v1579 = vld [vmem:[%s323 + $0xd9] sm:$0xff]
        %v1580 = vld [vmem:[%s323 + $0xe1] sm:$0xff]
        %v1581 = vld [vmem:[%s323 + $0xf1] sm:$0xff]
        %v1582 = vld [vmem:[%s323 + $0xf9] sm:$0xff]
        %v1583 = vld [vmem:[%s323 + $0x109] sm:$0xff]
        %v1584 = vld [vmem:[%s323 + $0x111] sm:$0xff]
        %v1585 = vld [vmem:[%s323 + $0x121] sm:$0xff]
        %v1586 = vld [vmem:[%s323 + $0x129] sm:$0xff]
        %v1587 = vld [vmem:[%s323 + $0x139] sm:$0xff]
        %v1588 = vld [vmem:[%s323 + $0x141] sm:$0xff]
        %v1589 = vld [vmem:[%s323 + $0x151] sm:$0xff]
        %v1590 = vld [vmem:[%s323 + $0x159] sm:$0xff]
        %v1591 = vld [vmem:[%s323 + $0x169] sm:$0xff]
        %v1592 = vld [vmem:[%s323 + $0x171] sm:$0xff]
        %1625 = vrot.lane.b32.xlu0 %v1561, 28
        %v1626 = vpop.permute.xlu0 %1625
        %1627 = vrot.lane.b32.xlu0 %v1562, 28
        %v1628 = vpop.permute.xlu0 %1627
        %1629 = vrot.lane.b32.xlu0 %v1563, 28
        %v1630 = vpop.permute.xlu0 %1629
        %1631 = vrot.lane.b32.xlu0 %v1564, 28
        %v1632 = vpop.permute.xlu0 %1631
        %1633 = vrot.lane.b32.xlu0 %v1565, 28
        %v1634 = vpop.permute.xlu0 %1633
        %1635 = vrot.lane.b32.xlu0 %v1566, 28
        %v1636 = vpop.permute.xlu0 %1635
        %1637 = vrot.lane.b32.xlu0 %v1567, 28
        %v1638 = vpop.permute.xlu0 %1637
        %1639 = vrot.lane.b32.xlu0 %v1568, 28
        %v1640 = vpop.permute.xlu0 %1639
        %1641 = vrot.lane.b32.xlu0 %v1569, 28
        %v1642 = vpop.permute.xlu0 %1641
        %1643 = vrot.lane.b32.xlu0 %v1570, 28
        %v1644 = vpop.permute.xlu0 %1643
        %1645 = vrot.lane.b32.xlu0 %v1571, 28
        %v1646 = vpop.permute.xlu0 %1645
        %1647 = vrot.lane.b32.xlu0 %v1572, 28
        %v1648 = vpop.permute.xlu0 %1647
        %1649 = vrot.lane.b32.xlu0 %v1573, 28
        %v1650 = vpop.permute.xlu0 %1649
        %1651 = vrot.lane.b32.xlu0 %v1574, 28
        %v1652 = vpop.permute.xlu0 %1651
        %1653 = vrot.lane.b32.xlu0 %v1575, 28
        %v1654 = vpop.permute.xlu0 %1653
        %1655 = vrot.lane.b32.xlu0 %v1576, 28
        %v1656 = vpop.permute.xlu0 %1655
        %1657 = vrot.lane.b32.xlu0 %v1577, 28
        %v1658 = vpop.permute.xlu0 %1657
        %1659 = vrot.lane.b32.xlu0 %v1578, 28
        %v1660 = vpop.permute.xlu0 %1659
        %1661 = vrot.lane.b32.xlu0 %v1579, 28
        %v1662 = vpop.permute.xlu0 %1661
        %1663 = vrot.lane.b32.xlu0 %v1580, 28
        %v1664 = vpop.permute.xlu0 %1663
        %1665 = vrot.lane.b32.xlu0 %v1581, 28
        %v1666 = vpop.permute.xlu0 %1665
        %1667 = vrot.lane.b32.xlu0 %v1582, 28
        %v1668 = vpop.permute.xlu0 %1667
        %1669 = vrot.lane.b32.xlu0 %v1583, 28
        %v1670 = vpop.permute.xlu0 %1669
        %1671 = vrot.lane.b32.xlu0 %v1584, 28
        %v1672 = vpop.permute.xlu0 %1671
        %1673 = vrot.lane.b32.xlu0 %v1585, 28
        %v1674 = vpop.permute.xlu0 %1673
        %1675 = vrot.lane.b32.xlu0 %v1586, 28
        %v1676 = vpop.permute.xlu0 %1675
        %1677 = vrot.lane.b32.xlu0 %v1587, 28
        %v1678 = vpop.permute.xlu0 %1677
        %1679 = vrot.lane.b32.xlu0 %v1588, 28
        %v1680 = vpop.permute.xlu0 %1679
        %1681 = vrot.lane.b32.xlu0 %v1589, 28
        %v1682 = vpop.permute.xlu0 %1681
        %1683 = vrot.lane.b32.xlu0 %v1590, 28
        %v1684 = vpop.permute.xlu0 %1683
        %1685 = vrot.lane.b32.xlu0 %v1591, 28
        %v1686 = vpop.permute.xlu0 %1685
        %1687 = vrot.lane.b32.xlu0 %v1592, 28
        %v1688 = vpop.permute.xlu0 %1687
        %vm1721 = vcmask 261344
        %1722 = vst.msk [vmem:[#allocation3] sm:$0xff] %vm1721, %v1626
        %1723 = vst.msk [vmem:[#allocation3 + $0x8] sm:$0xff] %vm1721, %v1628
        %1724 = vst.msk [vmem:[#allocation3 + $0x10] sm:$0xff] %vm1721, %v1630
        %1725 = vst.msk [vmem:[#allocation3 + $0x18] sm:$0xff] %vm1721, %v1632
        %1726 = vst.msk [vmem:[#allocation3 + $0x20] sm:$0xff] %vm1721, %v1634
        %1727 = vst.msk [vmem:[#allocation3 + $0x28] sm:$0xff] %vm1721, %v1636
        %1728 = vst.msk [vmem:[#allocation3 + $0x30] sm:$0xff] %vm1721, %v1638
        %1729 = vst.msk [vmem:[#allocation3 + $0x38] sm:$0xff] %vm1721, %v1640
        %1730 = vst.msk [vmem:[#allocation3 + $0x40] sm:$0xff] %vm1721, %v1642
        %1731 = vst.msk [vmem:[#allocation3 + $0x48] sm:$0xff] %vm1721, %v1644
        %1732 = vst.msk [vmem:[#allocation3 + $0x50] sm:$0xff] %vm1721, %v1646
        %1733 = vst.msk [vmem:[#allocation3 + $0x58] sm:$0xff] %vm1721, %v1648
        %1734 = vst.msk [vmem:[#allocation3 + $0x60] sm:$0xff] %vm1721, %v1650
        %1735 = vst.msk [vmem:[#allocation3 + $0x68] sm:$0xff] %vm1721, %v1652
        %1736 = vst.msk [vmem:[#allocation3 + $0x70] sm:$0xff] %vm1721, %v1654
        %1737 = vst.msk [vmem:[#allocation3 + $0x78] sm:$0xff] %vm1721, %v1656
        %1738 = vst.msk [vmem:[#allocation3 + $0x80] sm:$0xff] %vm1721, %v1658
        %1739 = vst.msk [vmem:[#allocation3 + $0x88] sm:$0xff] %vm1721, %v1660
        %1740 = vst.msk [vmem:[#allocation3 + $0x90] sm:$0xff] %vm1721, %v1662
        %1741 = vst.msk [vmem:[#allocation3 + $0x98] sm:$0xff] %vm1721, %v1664
        %1742 = vst.msk [vmem:[#allocation3 + $0xa0] sm:$0xff] %vm1721, %v1666
        %1743 = vst.msk [vmem:[#allocation3 + $0xa8] sm:$0xff] %vm1721, %v1668
        %1744 = vst.msk [vmem:[#allocation3 + $0xb0] sm:$0xff] %vm1721, %v1670
        %1745 = vst.msk [vmem:[#allocation3 + $0xb8] sm:$0xff] %vm1721, %v1672
        %1746 = vst.msk [vmem:[#allocation3 + $0xc0] sm:$0xff] %vm1721, %v1674
        %1747 = vst.msk [vmem:[#allocation3 + $0xc8] sm:$0xff] %vm1721, %v1676
        %1748 = vst.msk [vmem:[#allocation3 + $0xd0] sm:$0xff] %vm1721, %v1678
        %1749 = vst.msk [vmem:[#allocation3 + $0xd8] sm:$0xff] %vm1721, %v1680
        %1750 = vst.msk [vmem:[#allocation3 + $0xe0] sm:$0xff] %vm1721, %v1682
        %1751 = vst.msk [vmem:[#allocation3 + $0xe8] sm:$0xff] %vm1721, %v1684
        %1752 = vst.msk [vmem:[#allocation3 + $0xf0] sm:$0xff] %vm1721, %v1686
        %1753 = vst.msk [vmem:[#allocation3 + $0xf8] sm:$0xff] %vm1721, %v1688
        %v1754 = vld [vmem:[%s323 + $0x2] sm:$0xff]
        %v1755 = vld [vmem:[%s323 + $0xa] sm:$0xff]
        %v1756 = vld [vmem:[%s323 + $0x1a] sm:$0xff]
        %v1757 = vld [vmem:[%s323 + $0x22] sm:$0xff]
        %v1758 = vld [vmem:[%s323 + $0x32] sm:$0xff]
        %v1759 = vld [vmem:[%s323 + $0x3a] sm:$0xff]
        %v1760 = vld [vmem:[%s323 + $0x4a] sm:$0xff]
        %v1761 = vld [vmem:[%s323 + $0x52] sm:$0xff]
        %v1762 = vld [vmem:[%s323 + $0x62] sm:$0xff]
        %v1763 = vld [vmem:[%s323 + $0x6a] sm:$0xff]
        %v1764 = vld [vmem:[%s323 + $0x7a] sm:$0xff]
        %v1765 = vld [vmem:[%s323 + $0x82] sm:$0xff]
        %v1766 = vld [vmem:[%s323 + $0x92] sm:$0xff]
        %v1767 = vld [vmem:[%s323 + $0x9a] sm:$0xff]
        %v1768 = vld [vmem:[%s323 + $0xaa] sm:$0xff]
        %v1769 = vld [vmem:[%s323 + $0xb2] sm:$0xff]
        %v1770 = vld [vmem:[%s323 + $0xc2] sm:$0xff]
        %v1771 = vld [vmem:[%s323 + $0xca] sm:$0xff]
        %v1772 = vld [vmem:[%s323 + $0xda] sm:$0xff]
        %v1773 = vld [vmem:[%s323 + $0xe2] sm:$0xff]
        %v1774 = vld [vmem:[%s323 + $0xf2] sm:$0xff]
        %v1775 = vld [vmem:[%s323 + $0xfa] sm:$0xff]
        %v1776 = vld [vmem:[%s323 + $0x10a] sm:$0xff]
        %v1777 = vld [vmem:[%s323 + $0x112] sm:$0xff]
        %v1778 = vld [vmem:[%s323 + $0x122] sm:$0xff]
        %v1779 = vld [vmem:[%s323 + $0x12a] sm:$0xff]
        %v1780 = vld [vmem:[%s323 + $0x13a] sm:$0xff]
        %v1781 = vld [vmem:[%s323 + $0x142] sm:$0xff]
        %v1782 = vld [vmem:[%s323 + $0x152] sm:$0xff]
        %v1783 = vld [vmem:[%s323 + $0x15a] sm:$0xff]
        %v1784 = vld [vmem:[%s323 + $0x16a] sm:$0xff]
        %v1785 = vld [vmem:[%s323 + $0x172] sm:$0xff]
        %1818 = vrot.lane.b32.xlu0 %v1754, 32
        %v1819 = vpop.permute.xlu0 %1818
        %1820 = vrot.lane.b32.xlu0 %v1755, 32
        %v1821 = vpop.permute.xlu0 %1820
        %1822 = vrot.lane.b32.xlu0 %v1756, 32
        %v1823 = vpop.permute.xlu0 %1822
        %1824 = vrot.lane.b32.xlu0 %v1757, 32
        %v1825 = vpop.permute.xlu0 %1824
        %1826 = vrot.lane.b32.xlu0 %v1758, 32
        %v1827 = vpop.permute.xlu0 %1826
        %1828 = vrot.lane.b32.xlu0 %v1759, 32
        %v1829 = vpop.permute.xlu0 %1828
        %1830 = vrot.lane.b32.xlu0 %v1760, 32
        %v1831 = vpop.permute.xlu0 %1830
        %1832 = vrot.lane.b32.xlu0 %v1761, 32
        %v1833 = vpop.permute.xlu0 %1832
        %1834 = vrot.lane.b32.xlu0 %v1762, 32
        %v1835 = vpop.permute.xlu0 %1834
        %1836 = vrot.lane.b32.xlu0 %v1763, 32
        %v1837 = vpop.permute.xlu0 %1836
        %1838 = vrot.lane.b32.xlu0 %v1764, 32
        %v1839 = vpop.permute.xlu0 %1838
        %1840 = vrot.lane.b32.xlu0 %v1765, 32
        %v1841 = vpop.permute.xlu0 %1840
        %1842 = vrot.lane.b32.xlu0 %v1766, 32
        %v1843 = vpop.permute.xlu0 %1842
        %1844 = vrot.lane.b32.xlu0 %v1767, 32
        %v1845 = vpop.permute.xlu0 %1844
        %1846 = vrot.lane.b32.xlu0 %v1768, 32
        %v1847 = vpop.permute.xlu0 %1846
        %1848 = vrot.lane.b32.xlu0 %v1769, 32
        %v1849 = vpop.permute.xlu0 %1848
        %1850 = vrot.lane.b32.xlu0 %v1770, 32
        %v1851 = vpop.permute.xlu0 %1850
        %1852 = vrot.lane.b32.xlu0 %v1771, 32
        %v1853 = vpop.permute.xlu0 %1852
        %1854 = vrot.lane.b32.xlu0 %v1772, 32
        %v1855 = vpop.permute.xlu0 %1854
        %1856 = vrot.lane.b32.xlu0 %v1773, 32
        %v1857 = vpop.permute.xlu0 %1856
        %1858 = vrot.lane.b32.xlu0 %v1774, 32
        %v1859 = vpop.permute.xlu0 %1858
        %1860 = vrot.lane.b32.xlu0 %v1775, 32
        %v1861 = vpop.permute.xlu0 %1860
        %1862 = vrot.lane.b32.xlu0 %v1776, 32
        %v1863 = vpop.permute.xlu0 %1862
        %1864 = vrot.lane.b32.xlu0 %v1777, 32
        %v1865 = vpop.permute.xlu0 %1864
        %1866 = vrot.lane.b32.xlu0 %v1778, 32
        %v1867 = vpop.permute.xlu0 %1866
        %1868 = vrot.lane.b32.xlu0 %v1779, 32
        %v1869 = vpop.permute.xlu0 %1868
        %1870 = vrot.lane.b32.xlu0 %v1780, 32
        %v1871 = vpop.permute.xlu0 %1870
        %1872 = vrot.lane.b32.xlu0 %v1781, 32
        %v1873 = vpop.permute.xlu0 %1872
        %1874 = vrot.lane.b32.xlu0 %v1782, 32
        %v1875 = vpop.permute.xlu0 %1874
        %1876 = vrot.lane.b32.xlu0 %v1783, 32
        %v1877 = vpop.permute.xlu0 %1876
        %1878 = vrot.lane.b32.xlu0 %v1784, 32
        %v1879 = vpop.permute.xlu0 %1878
        %1880 = vrot.lane.b32.xlu0 %v1785, 32
        %v1881 = vpop.permute.xlu0 %1880
        %vm1914 = vcmask 294144
        %1915 = vst.msk [vmem:[#allocation3] sm:$0xff] %vm1914, %v1819
        %1916 = vst.msk [vmem:[#allocation3 + $0x8] sm:$0xff] %vm1914, %v1821
        %1917 = vst.msk [vmem:[#allocation3 + $0x10] sm:$0xff] %vm1914, %v1823
        %1918 = vst.msk [vmem:[#allocation3 + $0x18] sm:$0xff] %vm1914, %v1825
        %1919 = vst.msk [vmem:[#allocation3 + $0x20] sm:$0xff] %vm1914, %v1827
        %1920 = vst.msk [vmem:[#allocation3 + $0x28] sm:$0xff] %vm1914, %v1829
        %1921 = vst.msk [vmem:[#allocation3 + $0x30] sm:$0xff] %vm1914, %v1831
        %1922 = vst.msk [vmem:[#allocation3 + $0x38] sm:$0xff] %vm1914, %v1833
        %1923 = vst.msk [vmem:[#allocation3 + $0x40] sm:$0xff] %vm1914, %v1835
        %1924 = vst.msk [vmem:[#allocation3 + $0x48] sm:$0xff] %vm1914, %v1837
        %1925 = vst.msk [vmem:[#allocation3 + $0x50] sm:$0xff] %vm1914, %v1839
        %1926 = vst.msk [vmem:[#allocation3 + $0x58] sm:$0xff] %vm1914, %v1841
        %1927 = vst.msk [vmem:[#allocation3 + $0x60] sm:$0xff] %vm1914, %v1843
        %1928 = vst.msk [vmem:[#allocation3 + $0x68] sm:$0xff] %vm1914, %v1845
        %1929 = vst.msk [vmem:[#allocation3 + $0x70] sm:$0xff] %vm1914, %v1847
        %1930 = vst.msk [vmem:[#allocation3 + $0x78] sm:$0xff] %vm1914, %v1849
        %1931 = vst.msk [vmem:[#allocation3 + $0x80] sm:$0xff] %vm1914, %v1851
        %1932 = vst.msk [vmem:[#allocation3 + $0x88] sm:$0xff] %vm1914, %v1853
        %1933 = vst.msk [vmem:[#allocation3 + $0x90] sm:$0xff] %vm1914, %v1855
        %1934 = vst.msk [vmem:[#allocation3 + $0x98] sm:$0xff] %vm1914, %v1857
        %1935 = vst.msk [vmem:[#allocation3 + $0xa0] sm:$0xff] %vm1914, %v1859
        %1936 = vst.msk [vmem:[#allocation3 + $0xa8] sm:$0xff] %vm1914, %v1861
        %1937 = vst.msk [vmem:[#allocation3 + $0xb0] sm:$0xff] %vm1914, %v1863
        %1938 = vst.msk [vmem:[#allocation3 + $0xb8] sm:$0xff] %vm1914, %v1865
        %1939 = vst.msk [vmem:[#allocation3 + $0xc0] sm:$0xff] %vm1914, %v1867
        %1940 = vst.msk [vmem:[#allocation3 + $0xc8] sm:$0xff] %vm1914, %v1869
        %1941 = vst.msk [vmem:[#allocation3 + $0xd0] sm:$0xff] %vm1914, %v1871
        %1942 = vst.msk [vmem:[#allocation3 + $0xd8] sm:$0xff] %vm1914, %v1873
        %1943 = vst.msk [vmem:[#allocation3 + $0xe0] sm:$0xff] %vm1914, %v1875
        %1944 = vst.msk [vmem:[#allocation3 + $0xe8] sm:$0xff] %vm1914, %v1877
        %1945 = vst.msk [vmem:[#allocation3 + $0xf0] sm:$0xff] %vm1914, %v1879
        %1946 = vst.msk [vmem:[#allocation3 + $0xf8] sm:$0xff] %vm1914, %v1881
        %v1947 = vld [vmem:[#allocation3] sm:$0xff]
        %v1948 = vld [vmem:[#allocation3 + $0x8] sm:$0xff]
        %v1949 = vld [vmem:[#allocation3 + $0x10] sm:$0xff]
        %v1950 = vld [vmem:[#allocation3 + $0x18] sm:$0xff]
        %v1951 = vld [vmem:[#allocation3 + $0x20] sm:$0xff]
        %v1952 = vld [vmem:[#allocation3 + $0x28] sm:$0xff]
        %v1953 = vld [vmem:[#allocation3 + $0x30] sm:$0xff]
        %v1954 = vld [vmem:[#allocation3 + $0x38] sm:$0xff]
        %v1955 = vld [vmem:[#allocation3 + $0x40] sm:$0xff]
        %v1956 = vld [vmem:[#allocation3 + $0x48] sm:$0xff]
        %v1957 = vld [vmem:[#allocation3 + $0x50] sm:$0xff]
        %v1958 = vld [vmem:[#allocation3 + $0x58] sm:$0xff]
        %v1959 = vld [vmem:[#allocation3 + $0x60] sm:$0xff]
        %v1960 = vld [vmem:[#allocation3 + $0x68] sm:$0xff]
        %v1961 = vld [vmem:[#allocation3 + $0x70] sm:$0xff]
        %v1962 = vld [vmem:[#allocation3 + $0x78] sm:$0xff]
        %v1963 = vld [vmem:[#allocation3 + $0x80] sm:$0xff]
        %v1964 = vld [vmem:[#allocation3 + $0x88] sm:$0xff]
        %v1965 = vld [vmem:[#allocation3 + $0x90] sm:$0xff]
        %v1966 = vld [vmem:[#allocation3 + $0x98] sm:$0xff]
        %v1967 = vld [vmem:[#allocation3 + $0xa0] sm:$0xff]
        %v1968 = vld [vmem:[#allocation3 + $0xa8] sm:$0xff]
        %v1969 = vld [vmem:[#allocation3 + $0xb0] sm:$0xff]
        %v1970 = vld [vmem:[#allocation3 + $0xb8] sm:$0xff]
        %v1971 = vld [vmem:[#allocation3 + $0xc0] sm:$0xff]
        %v1972 = vld [vmem:[#allocation3 + $0xc8] sm:$0xff]
        %v1973 = vld [vmem:[#allocation3 + $0xd0] sm:$0xff]
        %v1974 = vld [vmem:[#allocation3 + $0xd8] sm:$0xff]
        %v1975 = vld [vmem:[#allocation3 + $0xe0] sm:$0xff]
        %v1976 = vld [vmem:[#allocation3 + $0xe8] sm:$0xff]
        %v1977 = vld [vmem:[#allocation3 + $0xf0] sm:$0xff]
        %v1978 = vld [vmem:[#allocation3 + $0xf8] sm:$0xff]
        %v1979 = vld [vmem:[%s1] sm:$0xff]
        %v1980 = vld [vmem:[%s1 + $0x8] sm:$0xff]
        %v1981 = vld [vmem:[%s1 + $0x10] sm:$0xff]
        %v1982 = vld [vmem:[%s1 + $0x18] sm:$0xff]
        %v1983 = vld [vmem:[%s1 + $0x20] sm:$0xf]
        %v1984 = vld [vmem:[%s2] sm:$0x1]
        %v1986 = vlaneseq
        %v1987 = vshrl.u32 %v1986, 7
        %v1988 = vsub.s32 0, %v1987
        %v1989 = vrot.slane %v1984, %v1988
        %vm1991 = vcmask 293888
        %v1993 = vsel %vm1991, %v1947, 0
        %v1996 = vsel %vm1991, %v1948, 0
        %v1999 = vsel %vm1991, %v1949, 0
        %v2002 = vsel %vm1991, %v1950, 0
        %v2005 = vsel %vm1991, %v1951, 0
        %v2008 = vsel %vm1991, %v1952, 0
        %v2011 = vsel %vm1991, %v1953, 0
        %v2014 = vsel %vm1991, %v1954, 0
        %v2017 = vsel %vm1991, %v1955, 0
        %v2020 = vsel %vm1991, %v1956, 0
        %v2023 = vsel %vm1991, %v1957, 0
        %v2026 = vsel %vm1991, %v1958, 0
        %v2029 = vsel %vm1991, %v1959, 0
        %v2032 = vsel %vm1991, %v1960, 0
        %v2035 = vsel %vm1991, %v1961, 0
        %v2038 = vsel %vm1991, %v1962, 0
        %v2041 = vsel %vm1991, %v1963, 0
        %v2044 = vsel %vm1991, %v1964, 0
        %v2047 = vsel %vm1991, %v1965, 0
        %v2050 = vsel %vm1991, %v1966, 0
        %v2053 = vsel %vm1991, %v1967, 0
        %v2056 = vsel %vm1991, %v1968, 0
        %v2059 = vsel %vm1991, %v1969, 0
        %v2062 = vsel %vm1991, %v1970, 0
        %v2065 = vsel %vm1991, %v1971, 0
        %v2068 = vsel %vm1991, %v1972, 0
        %v2071 = vsel %vm1991, %v1973, 0
        %v2074 = vsel %vm1991, %v1974, 0
        %v2077 = vsel %vm1991, %v1975, 0
        %v2080 = vsel %vm1991, %v1976, 0
        %v2083 = vsel %vm1991, %v1977, 0
        %v2086 = vsel %vm1991, %v1978, 0
        %vm2088 = vcmask 1043456
        %v2090 = vsel %vm2088, %v1983, 0
        %2092 = vmatprep.subr.mxu0 0.0
        %2093 = vmatpush1.msra.mxu0 %v1979
        %2094 = vmatprep.subr.mxu0 0.0
        %2095 = vmatpush1.msra.mxu0 %v1980
        %2096 = vmatprep.subr.mxu0 0.0
        %2097 = vmatpush1.msra.mxu0 %v1981
        %2098 = vmatprep.subr.mxu0 0.0
        %2099 = vmatpush1.msra.mxu0 %v1982
        %2100 = vmatprep.subr.mxu0 0.0
        %2101 = vmatpush1.msra.mxu0 %v2090
        %2102 = vmatprep.subr.mxu0 0.0
        %2103 = vmatpush1.msra.mxu0 0.0
        %2104 = vmatprep.subr.mxu0 0.0
        %2105 = vmatpush1.msra.mxu0 0.0
        %2106 = vmatprep.subr.mxu0 0.0
        %2107 = vmatpush1.msra.mxu0 0.0
        %2108 = vmatprep.subr.mxu0 0.0
        %2109 = vmatpush1.msra.mxu0 0.0
        %2110 = vmatprep.subr.mxu0 0.0
        %2111 = vmatpush1.msra.mxu0 0.0
        %2112 = vmatprep.subr.mxu0 0.0
        %2113 = vmatpush1.msra.mxu0 0.0
        %2114 = vmatprep.subr.mxu0 0.0
        %2115 = vmatpush1.msra.mxu0 0.0
        %2116 = vmatprep.subr.mxu0 0.0
        %2117 = vmatpush1.msra.mxu0 0.0
        %2118 = vmatprep.subr.mxu0 0.0
        %2119 = vmatpush1.msra.mxu0 0.0
        %2120 = vmatprep.subr.mxu0 0.0
        %2121 = vmatpush1.msra.mxu0 0.0
        %2122 = vmatprep.subr.mxu0 0.0
        %2123 = vmatpush1.msra.mxu0 0.0
        %2124 = vmatprep.subr.mxu0 0.0
        %2125 = vmatpush1.msra.mxu0 0.0
        %2126 = vmatprep.subr.mxu0 0.0
        %2127 = vmatpush1.msra.mxu0 0.0
        %2128 = vmatprep.subr.mxu0 0.0
        %2129 = vmatpush1.msra.mxu0 0.0
        %2130 = vmatprep.subr.mxu0 0.0
        %2131 = vmatpush1.msra.mxu0 0.0
        %2132 = vmatprep.subr.mxu0 0.0
        %2133 = vmatpush1.msra.mxu0 0.0
        %2134 = vmatprep.subr.mxu0 0.0
        %2135 = vmatpush1.msra.mxu0 0.0
        %2136 = vmatprep.subr.mxu0 0.0
        %2137 = vmatpush1.msra.mxu0 0.0
        %2138 = vmatprep.subr.mxu0 0.0
        %2139 = vmatpush1.msra.mxu0 0.0
        %2140 = vmatprep.subr.mxu0 0.0
        %2141 = vmatpush1.msra.mxu0 0.0
        %2142 = vmatprep.subr.mxu0 0.0
        %2143 = vmatpush1.msra.mxu0 0.0
        %2144 = vmatprep.subr.mxu0 0.0
        %2145 = vmatpush1.msra.mxu0 0.0
        %2146 = vmatprep.subr.mxu0 0.0
        %2147 = vmatpush1.msra.mxu0 0.0
        %2148 = vmatprep.subr.mxu0 0.0
        %2149 = vmatpush1.msra.mxu0 0.0
        %2150 = vmatprep.subr.mxu0 0.0
        %2151 = vmatpush1.msra.mxu0 0.0
        %2152 = vmatprep.subr.mxu0 0.0
        %2153 = vmatpush1.msra.mxu0 0.0
        %2154 = vmatprep.subr.mxu0 0.0
        %2155 = vmatpush1.msra.mxu0 0.0
        %2156 = vmatprep.mubr.f32.mxu0 0.0
        %2157 = vmatmul.mubr.f32.gmra.mrb[0].mxu0 %v1993
        %v2158 = vpop.f32.mrb[0].mxu0
        %v2159 = vadd.f32 %v1989, %v2158
        %v2160 = vpop.f32.mrb[0].mxu0
        %2161 = vmatprep.mubr.f32.mxu0 0.0
        %2162 = vmatmul.mubr.f32.gmra.mrb[0].mxu0 %v1996
        %v2163 = vpop.f32.mrb[0].mxu0
        %v2164 = vadd.f32 %v1989, %v2163
        %v2165 = vpop.f32.mrb[0].mxu0
        %2166 = vmatprep.mubr.f32.mxu0 0.0
        %2167 = vmatmul.mubr.f32.gmra.mrb[0].mxu0 %v1999
        %v2168 = vpop.f32.mrb[0].mxu0
        %v2169 = vadd.f32 %v1989, %v2168
        %v2170 = vpop.f32.mrb[0].mxu0
        %2171 = vmatprep.mubr.f32.mxu0 0.0
        %2172 = vmatmul.mubr.f32.gmra.mrb[0].mxu0 %v2002
        %v2173 = vpop.f32.mrb[0].mxu0
        %v2174 = vadd.f32 %v1989, %v2173
        %v2175 = vpop.f32.mrb[0].mxu0
        %2176 = vmatprep.mubr.f32.mxu0 0.0
        %2177 = vmatmul.mubr.f32.gmra.mrb[0].mxu0 %v2005
        %v2178 = vpop.f32.mrb[0].mxu0
        %v2179 = vadd.f32 %v1989, %v2178
        %v2180 = vpop.f32.mrb[0].mxu0
        %2181 = vmatprep.mubr.f32.mxu0 0.0
        %2182 = vmatmul.mubr.f32.gmra.mrb[0].mxu0 %v2008
        %v2183 = vpop.f32.mrb[0].mxu0
        %v2184 = vadd.f32 %v1989, %v2183
        %v2185 = vpop.f32.mrb[0].mxu0
        %2186 = vmatprep.mubr.f32.mxu0 0.0
        %2187 = vmatmul.mubr.f32.gmra.mrb[0].mxu0 %v2011
        %v2188 = vpop.f32.mrb[0].mxu0
        %v2189 = vadd.f32 %v1989, %v2188
        %v2190 = vpop.f32.mrb[0].mxu0
        %2191 = vmatprep.mubr.f32.mxu0 0.0
        %2192 = vmatmul.mubr.f32.gmra.mrb[0].mxu0 %v2014
        %v2193 = vpop.f32.mrb[0].mxu0
        %v2194 = vadd.f32 %v1989, %v2193
        %v2195 = vpop.f32.mrb[0].mxu0
        %2196 = vmatprep.mubr.f32.mxu0 0.0
        %2197 = vmatmul.mubr.f32.gmra.mrb[0].mxu0 %v2017
        %v2198 = vpop.f32.mrb[0].mxu0
        %v2199 = vadd.f32 %v1989, %v2198
        %v2200 = vpop.f32.mrb[0].mxu0
        %2201 = vmatprep.mubr.f32.mxu0 0.0
        %2202 = vmatmul.mubr.f32.gmra.mrb[0].mxu0 %v2020
        %v2203 = vpop.f32.mrb[0].mxu0
        %v2204 = vadd.f32 %v1989, %v2203
        %v2205 = vpop.f32.mrb[0].mxu0
        %2206 = vmatprep.mubr.f32.mxu0 0.0
        %2207 = vmatmul.mubr.f32.gmra.mrb[0].mxu0 %v2023
        %v2208 = vpop.f32.mrb[0].mxu0
        %v2209 = vadd.f32 %v1989, %v2208
        %v2210 = vpop.f32.mrb[0].mxu0
        %2211 = vmatprep.mubr.f32.mxu0 0.0
        %2212 = vmatmul.mubr.f32.gmra.mrb[0].mxu0 %v2026
        %v2213 = vpop.f32.mrb[0].mxu0
        %v2214 = vadd.f32 %v1989, %v2213
        %v2215 = vpop.f32.mrb[0].mxu0
        %2216 = vmatprep.mubr.f32.mxu0 0.0
        %2217 = vmatmul.mubr.f32.gmra.mrb[0].mxu0 %v2029
        %v2218 = vpop.f32.mrb[0].mxu0
        %v2219 = vadd.f32 %v1989, %v2218
        %v2220 = vpop.f32.mrb[0].mxu0
        %2221 = vmatprep.mubr.f32.mxu0 0.0
        %2222 = vmatmul.mubr.f32.gmra.mrb[0].mxu0 %v2032
        %v2223 = vpop.f32.mrb[0].mxu0
        %v2224 = vadd.f32 %v1989, %v2223
        %v2225 = vpop.f32.mrb[0].mxu0
        %2226 = vmatprep.mubr.f32.mxu0 0.0
        %2227 = vmatmul.mubr.f32.gmra.mrb[0].mxu0 %v2035
        %v2228 = vpop.f32.mrb[0].mxu0
        %v2229 = vadd.f32 %v1989, %v2228
        %v2230 = vpop.f32.mrb[0].mxu0
        %2231 = vmatprep.mubr.f32.mxu0 0.0
        %2232 = vmatmul.mubr.f32.gmra.mrb[0].mxu0 %v2038
        %v2233 = vpop.f32.mrb[0].mxu0
        %v2234 = vadd.f32 %v1989, %v2233
        %v2235 = vpop.f32.mrb[0].mxu0
        %2236 = vmatprep.mubr.f32.mxu0 0.0
        %2237 = vmatmul.mubr.f32.gmra.mrb[0].mxu0 %v2041
        %v2238 = vpop.f32.mrb[0].mxu0
        %v2239 = vadd.f32 %v1989, %v2238
        %v2240 = vpop.f32.mrb[0].mxu0
        %2241 = vmatprep.mubr.f32.mxu0 0.0
        %2242 = vmatmul.mubr.f32.gmra.mrb[0].mxu0 %v2044
        %v2243 = vpop.f32.mrb[0].mxu0
        %v2244 = vadd.f32 %v1989, %v2243
        %v2245 = vpop.f32.mrb[0].mxu0
        %2246 = vmatprep.mubr.f32.mxu0 0.0
        %2247 = vmatmul.mubr.f32.gmra.mrb[0].mxu0 %v2047
        %v2248 = vpop.f32.mrb[0].mxu0
        %v2249 = vadd.f32 %v1989, %v2248
        %v2250 = vpop.f32.mrb[0].mxu0
        %2251 = vmatprep.mubr.f32.mxu0 0.0
        %2252 = vmatmul.mubr.f32.gmra.mrb[0].mxu0 %v2050
        %v2253 = vpop.f32.mrb[0].mxu0
        %v2254 = vadd.f32 %v1989, %v2253
        %v2255 = vpop.f32.mrb[0].mxu0
        %2256 = vmatprep.mubr.f32.mxu0 0.0
        %2257 = vmatmul.mubr.f32.gmra.mrb[0].mxu0 %v2053
        %v2258 = vpop.f32.mrb[0].mxu0
        %v2259 = vadd.f32 %v1989, %v2258
        %v2260 = vpop.f32.mrb[0].mxu0
        %2261 = vmatprep.mubr.f32.mxu0 0.0
        %2262 = vmatmul.mubr.f32.gmra.mrb[0].mxu0 %v2056
        %v2263 = vpop.f32.mrb[0].mxu0
        %v2264 = vadd.f32 %v1989, %v2263
        %v2265 = vpop.f32.mrb[0].mxu0
        %2266 = vmatprep.mubr.f32.mxu0 0.0
        %2267 = vmatmul.mubr.f32.gmra.mrb[0].mxu0 %v2059
        %v2268 = vpop.f32.mrb[0].mxu0
        %v2269 = vadd.f32 %v1989, %v2268
        %v2270 = vpop.f32.mrb[0].mxu0
        %2271 = vmatprep.mubr.f32.mxu0 0.0
        %2272 = vmatmul.mubr.f32.gmra.mrb[0].mxu0 %v2062
        %v2273 = vpop.f32.mrb[0].mxu0
        %v2274 = vadd.f32 %v1989, %v2273
        %v2275 = vpop.f32.mrb[0].mxu0
        %2276 = vmatprep.mubr.f32.mxu0 0.0
        %2277 = vmatmul.mubr.f32.gmra.mrb[0].mxu0 %v2065
        %v2278 = vpop.f32.mrb[0].mxu0
        %v2279 = vadd.f32 %v1989, %v2278
        %v2280 = vpop.f32.mrb[0].mxu0
        %2281 = vmatprep.mubr.f32.mxu0 0.0
        %2282 = vmatmul.mubr.f32.gmra.mrb[0].mxu0 %v2068
        %v2283 = vpop.f32.mrb[0].mxu0
        %v2284 = vadd.f32 %v1989, %v2283
        %v2285 = vpop.f32.mrb[0].mxu0
        %2286 = vmatprep.mubr.f32.mxu0 0.0
        %2287 = vmatmul.mubr.f32.gmra.mrb[0].mxu0 %v2071
        %v2288 = vpop.f32.mrb[0].mxu0
        %v2289 = vadd.f32 %v1989, %v2288
        %v2290 = vpop.f32.mrb[0].mxu0
        %2291 = vmatprep.mubr.f32.mxu0 0.0
        %2292 = vmatmul.mubr.f32.gmra.mrb[0].mxu0 %v2074
        %v2293 = vpop.f32.mrb[0].mxu0
        %v2294 = vadd.f32 %v1989, %v2293
        %v2295 = vpop.f32.mrb[0].mxu0
        %2296 = vmatprep.mubr.f32.mxu0 0.0
        %2297 = vmatmul.mubr.f32.gmra.mrb[0].mxu0 %v2077
        %v2298 = vpop.f32.mrb[0].mxu0
        %v2299 = vadd.f32 %v1989, %v2298
        %v2300 = vpop.f32.mrb[0].mxu0
        %2301 = vmatprep.mubr.f32.mxu0 0.0
        %2302 = vmatmul.mubr.f32.gmra.mrb[0].mxu0 %v2080
        %v2303 = vpop.f32.mrb[0].mxu0
        %v2304 = vadd.f32 %v1989, %v2303
        %v2305 = vpop.f32.mrb[0].mxu0
        %2306 = vmatprep.mubr.f32.mxu0 0.0
        %2307 = vmatmul.mubr.f32.gmra.mrb[0].mxu0 %v2083
        %v2308 = vpop.f32.mrb[0].mxu0
        %v2309 = vadd.f32 %v1989, %v2308
        %v2310 = vpop.f32.mrb[0].mxu0
        %2311 = vmatprep.mubr.f32.mxu0 0.0
        %2312 = vmatmul.mubr.f32.gmra.mrb[0].mxu0 %v2086
        %v2313 = vpop.f32.mrb[0].mxu0
        %v2314 = vadd.f32 %v1989, %v2313
        %v2315 = vpop.f32.mrb[0].mxu0
        %2316 = vdwg.mxu0
        %v2317 = vsel %vm256, %v2159, 0.0
        %v2318 = vsel %vm256, %v2164, 0.0
        %v2319 = vadd.f32 %v2317, %v2318
        %v2320 = vsel %vm256, %v2169, 0.0
        %v2321 = vadd.f32 %v2319, %v2320
        %v2322 = vsel %vm256, %v2174, 0.0
        %v2323 = vadd.f32 %v2321, %v2322
        %v2324 = vsel %vm256, %v2179, 0.0
        %v2325 = vadd.f32 %v2323, %v2324
        %v2326 = vsel %vm256, %v2184, 0.0
        %v2327 = vadd.f32 %v2325, %v2326
        %v2328 = vsel %vm256, %v2189, 0.0
        %v2329 = vadd.f32 %v2327, %v2328
        %v2330 = vsel %vm256, %v2194, 0.0
        %v2331 = vadd.f32 %v2329, %v2330
        %v2332 = vsel %vm256, %v2199, 0.0
        %v2333 = vadd.f32 %v2331, %v2332
        %v2334 = vsel %vm256, %v2204, 0.0
        %v2335 = vadd.f32 %v2333, %v2334
        %v2336 = vsel %vm256, %v2209, 0.0
        %v2337 = vadd.f32 %v2335, %v2336
        %v2338 = vsel %vm256, %v2214, 0.0
        %v2339 = vadd.f32 %v2337, %v2338
        %v2340 = vsel %vm256, %v2219, 0.0
        %v2341 = vadd.f32 %v2339, %v2340
        %v2342 = vsel %vm256, %v2224, 0.0
        %v2343 = vadd.f32 %v2341, %v2342
        %v2344 = vsel %vm256, %v2229, 0.0
        %v2345 = vadd.f32 %v2343, %v2344
        %v2346 = vsel %vm256, %v2234, 0.0
        %v2347 = vadd.f32 %v2345, %v2346
        %v2348 = vsel %vm256, %v2239, 0.0
        %v2349 = vadd.f32 %v2347, %v2348
        %v2350 = vsel %vm256, %v2244, 0.0
        %v2351 = vadd.f32 %v2349, %v2350
        %v2352 = vsel %vm256, %v2249, 0.0
        %v2353 = vadd.f32 %v2351, %v2352
        %v2354 = vsel %vm256, %v2254, 0.0
        %v2355 = vadd.f32 %v2353, %v2354
        %v2356 = vsel %vm256, %v2259, 0.0
        %v2357 = vadd.f32 %v2355, %v2356
        %v2358 = vsel %vm256, %v2264, 0.0
        %v2359 = vadd.f32 %v2357, %v2358
        %v2360 = vsel %vm256, %v2269, 0.0
        %v2361 = vadd.f32 %v2359, %v2360
        %v2362 = vsel %vm256, %v2274, 0.0
        %v2363 = vadd.f32 %v2361, %v2362
        %v2364 = vsel %vm256, %v2279, 0.0
        %v2365 = vadd.f32 %v2363, %v2364
        %v2366 = vsel %vm256, %v2284, 0.0
        %v2367 = vadd.f32 %v2365, %v2366
        %v2368 = vsel %vm256, %v2289, 0.0
        %v2369 = vadd.f32 %v2367, %v2368
        %v2370 = vsel %vm256, %v2294, 0.0
        %v2371 = vadd.f32 %v2369, %v2370
        %v2372 = vsel %vm256, %v2299, 0.0
        %v2373 = vadd.f32 %v2371, %v2372
        %v2374 = vsel %vm256, %v2304, 0.0
        %v2375 = vadd.f32 %v2373, %v2374
        %v2376 = vsel %vm256, %v2309, 0.0
        %v2377 = vadd.f32 %v2375, %v2376
        %v2378 = vsel %vm256, %v2314, 0.0
        %v2379 = vadd.f32 %v2377, %v2378
        %v2380 = vrot.slane %v2379, 4
        %v2381 = vadd.f32 %v2379, %v2380
        %v2382 = vrot.slane %v2381, 2
        %v2383 = vadd.f32 %v2381, %v2382
        %v2384 = vrot.slane %v2383, 1
        %v2385 = vadd.f32 %v2383, %v2384
        %v2386 = vmul.f32 %v2385, 0.00390625
        %v2387 = vsub.f32 %v2159, %v2386
        %v2388 = vsub.f32 %v2164, %v2386
        %v2389 = vsub.f32 %v2169, %v2386
        %v2390 = vsub.f32 %v2174, %v2386
        %v2391 = vsub.f32 %v2179, %v2386
        %v2392 = vsub.f32 %v2184, %v2386
        %v2393 = vsub.f32 %v2189, %v2386
        %v2394 = vsub.f32 %v2194, %v2386
        %v2395 = vsub.f32 %v2199, %v2386
        %v2396 = vsub.f32 %v2204, %v2386
        %v2397 = vsub.f32 %v2209, %v2386
        %v2398 = vsub.f32 %v2214, %v2386
        %v2399 = vsub.f32 %v2219, %v2386
        %v2400 = vsub.f32 %v2224, %v2386
        %v2401 = vsub.f32 %v2229, %v2386
        %v2402 = vsub.f32 %v2234, %v2386
        %v2403 = vsub.f32 %v2239, %v2386
        %v2404 = vsub.f32 %v2244, %v2386
        %v2405 = vsub.f32 %v2249, %v2386
        %v2406 = vsub.f32 %v2254, %v2386
        %v2407 = vsub.f32 %v2259, %v2386
        %v2408 = vsub.f32 %v2264, %v2386
        %v2409 = vsub.f32 %v2269, %v2386
        %v2410 = vsub.f32 %v2274, %v2386
        %v2411 = vsub.f32 %v2279, %v2386
        %v2412 = vsub.f32 %v2284, %v2386
        %v2413 = vsub.f32 %v2289, %v2386
        %v2414 = vsub.f32 %v2294, %v2386
        %v2415 = vsub.f32 %v2299, %v2386
        %v2416 = vsub.f32 %v2304, %v2386
        %v2417 = vsub.f32 %v2309, %v2386
        %v2418 = vsub.f32 %v2314, %v2386
        %v2419 = vmul.f32 %v2387, %v2387
        %v2420 = vmul.f32 %v2388, %v2388
        %v2421 = vmul.f32 %v2389, %v2389
        %v2422 = vmul.f32 %v2390, %v2390
        %v2423 = vmul.f32 %v2391, %v2391
        %v2424 = vmul.f32 %v2392, %v2392
        %v2425 = vmul.f32 %v2393, %v2393
        %v2426 = vmul.f32 %v2394, %v2394
        %v2427 = vmul.f32 %v2395, %v2395
        %v2428 = vmul.f32 %v2396, %v2396
        %v2429 = vmul.f32 %v2397, %v2397
        %v2430 = vmul.f32 %v2398, %v2398
        %v2431 = vmul.f32 %v2399, %v2399
        %v2432 = vmul.f32 %v2400, %v2400
        %v2433 = vmul.f32 %v2401, %v2401
        %v2434 = vmul.f32 %v2402, %v2402
        %v2435 = vmul.f32 %v2403, %v2403
        %v2436 = vmul.f32 %v2404, %v2404
        %v2437 = vmul.f32 %v2405, %v2405
        %v2438 = vmul.f32 %v2406, %v2406
        %v2439 = vmul.f32 %v2407, %v2407
        %v2440 = vmul.f32 %v2408, %v2408
        %v2441 = vmul.f32 %v2409, %v2409
        %v2442 = vmul.f32 %v2410, %v2410
        %v2443 = vmul.f32 %v2411, %v2411
        %v2444 = vmul.f32 %v2412, %v2412
        %v2445 = vmul.f32 %v2413, %v2413
        %v2446 = vmul.f32 %v2414, %v2414
        %v2447 = vmul.f32 %v2415, %v2415
        %v2448 = vmul.f32 %v2416, %v2416
        %v2449 = vmul.f32 %v2417, %v2417
        %v2450 = vmul.f32 %v2418, %v2418
        %v2451 = vsel %vm256, %v2419, 0.0
        %v2452 = vsel %vm256, %v2420, 0.0
        %v2453 = vadd.f32 %v2451, %v2452
        %v2454 = vsel %vm256, %v2421, 0.0
        %v2455 = vadd.f32 %v2453, %v2454
        %v2456 = vsel %vm256, %v2422, 0.0
        %v2457 = vadd.f32 %v2455, %v2456
        %v2458 = vsel %vm256, %v2423, 0.0
        %v2459 = vadd.f32 %v2457, %v2458
        %v2460 = vsel %vm256, %v2424, 0.0
        %v2461 = vadd.f32 %v2459, %v2460
        %v2462 = vsel %vm256, %v2425, 0.0
        %v2463 = vadd.f32 %v2461, %v2462
        %v2464 = vsel %vm256, %v2426, 0.0
        %v2465 = vadd.f32 %v2463, %v2464
        %v2466 = vsel %vm256, %v2427, 0.0
        %v2467 = vadd.f32 %v2465, %v2466
        %v2468 = vsel %vm256, %v2428, 0.0
        %v2469 = vadd.f32 %v2467, %v2468
        %v2470 = vsel %vm256, %v2429, 0.0
        %v2471 = vadd.f32 %v2469, %v2470
        %v2472 = vsel %vm256, %v2430, 0.0
        %v2473 = vadd.f32 %v2471, %v2472
        %v2474 = vsel %vm256, %v2431, 0.0
        %v2475 = vadd.f32 %v2473, %v2474
        %v2476 = vsel %vm256, %v2432, 0.0
        %v2477 = vadd.f32 %v2475, %v2476
        %v2478 = vsel %vm256, %v2433, 0.0
        %v2479 = vadd.f32 %v2477, %v2478
        %v2480 = vsel %vm256, %v2434, 0.0
        %v2481 = vadd.f32 %v2479, %v2480
        %v2482 = vsel %vm256, %v2435, 0.0
        %v2483 = vadd.f32 %v2481, %v2482
        %v2484 = vsel %vm256, %v2436, 0.0
        %v2485 = vadd.f32 %v2483, %v2484
        %v2486 = vsel %vm256, %v2437, 0.0
        %v2487 = vadd.f32 %v2485, %v2486
        %v2488 = vsel %vm256, %v2438, 0.0
        %v2489 = vadd.f32 %v2487, %v2488
        %v2490 = vsel %vm256, %v2439, 0.0
        %v2491 = vadd.f32 %v2489, %v2490
        %v2492 = vsel %vm256, %v2440, 0.0
        %v2493 = vadd.f32 %v2491, %v2492
        %v2494 = vsel %vm256, %v2441, 0.0
        %v2495 = vadd.f32 %v2493, %v2494
        %v2496 = vsel %vm256, %v2442, 0.0
        %v2497 = vadd.f32 %v2495, %v2496
        %v2498 = vsel %vm256, %v2443, 0.0
        %v2499 = vadd.f32 %v2497, %v2498
        %v2500 = vsel %vm256, %v2444, 0.0
        %v2501 = vadd.f32 %v2499, %v2500
        %v2502 = vsel %vm256, %v2445, 0.0
        %v2503 = vadd.f32 %v2501, %v2502
        %v2504 = vsel %vm256, %v2446, 0.0
        %v2505 = vadd.f32 %v2503, %v2504
        %v2506 = vsel %vm256, %v2447, 0.0
        %v2507 = vadd.f32 %v2505, %v2506
        %v2508 = vsel %vm256, %v2448, 0.0
        %v2509 = vadd.f32 %v2507, %v2508
        %v2510 = vsel %vm256, %v2449, 0.0
        %v2511 = vadd.f32 %v2509, %v2510
        %v2512 = vsel %vm256, %v2450, 0.0
        %v2513 = vadd.f32 %v2511, %v2512
        %v2514 = vrot.slane %v2513, 4
        %v2515 = vadd.f32 %v2513, %v2514
        %v2516 = vrot.slane %v2515, 2
        %v2517 = vadd.f32 %v2515, %v2516
        %v2518 = vrot.slane %v2517, 1
        %v2519 = vadd.f32 %v2517, %v2518
        %v2520 = vmul.f32 %v2519, 0.00390625
        %v2521 = vadd.f32 %v2520, 1e-05
        %v2522 = vrsqrt.pop %v2521
        %v2523 = vmul.f32 %v2387, %v2522
        %v2524 = vmul.f32 %v2388, %v2522
        %v2525 = vmul.f32 %v2389, %v2522
        %v2526 = vmul.f32 %v2390, %v2522
        %v2527 = vmul.f32 %v2391, %v2522
        %v2528 = vmul.f32 %v2392, %v2522
        %v2529 = vmul.f32 %v2393, %v2522
        %v2530 = vmul.f32 %v2394, %v2522
        %v2531 = vmul.f32 %v2395, %v2522
        %v2532 = vmul.f32 %v2396, %v2522
        %v2533 = vmul.f32 %v2397, %v2522
        %v2534 = vmul.f32 %v2398, %v2522
        %v2535 = vmul.f32 %v2399, %v2522
        %v2536 = vmul.f32 %v2400, %v2522
        %v2537 = vmul.f32 %v2401, %v2522
        %v2538 = vmul.f32 %v2402, %v2522
        %v2539 = vmul.f32 %v2403, %v2522
        %v2540 = vmul.f32 %v2404, %v2522
        %v2541 = vmul.f32 %v2405, %v2522
        %v2542 = vmul.f32 %v2406, %v2522
        %v2543 = vmul.f32 %v2407, %v2522
        %v2544 = vmul.f32 %v2408, %v2522
        %v2545 = vmul.f32 %v2409, %v2522
        %v2546 = vmul.f32 %v2410, %v2522
        %v2547 = vmul.f32 %v2411, %v2522
        %v2548 = vmul.f32 %v2412, %v2522
        %v2549 = vmul.f32 %v2413, %v2522
        %v2550 = vmul.f32 %v2414, %v2522
        %v2551 = vmul.f32 %v2415, %v2522
        %v2552 = vmul.f32 %v2416, %v2522
        %v2553 = vmul.f32 %v2417, %v2522
        %v2554 = vmul.f32 %v2418, %v2522
        %v2555 = vmax.f32 %v2523, 0.0
        %v2556 = vmax.f32 %v2524, 0.0
        %v2557 = vmax.f32 %v2525, 0.0
        %v2558 = vmax.f32 %v2526, 0.0
        %v2559 = vmax.f32 %v2527, 0.0
        %v2560 = vmax.f32 %v2528, 0.0
        %v2561 = vmax.f32 %v2529, 0.0
        %v2562 = vmax.f32 %v2530, 0.0
        %v2563 = vmax.f32 %v2531, 0.0
        %v2564 = vmax.f32 %v2532, 0.0
        %v2565 = vmax.f32 %v2533, 0.0
        %v2566 = vmax.f32 %v2534, 0.0
        %v2567 = vmax.f32 %v2535, 0.0
        %v2568 = vmax.f32 %v2536, 0.0
        %v2569 = vmax.f32 %v2537, 0.0
        %v2570 = vmax.f32 %v2538, 0.0
        %v2571 = vmax.f32 %v2539, 0.0
        %v2572 = vmax.f32 %v2540, 0.0
        %v2573 = vmax.f32 %v2541, 0.0
        %v2574 = vmax.f32 %v2542, 0.0
        %v2575 = vmax.f32 %v2543, 0.0
        %v2576 = vmax.f32 %v2544, 0.0
        %v2577 = vmax.f32 %v2545, 0.0
        %v2578 = vmax.f32 %v2546, 0.0
        %v2579 = vmax.f32 %v2547, 0.0
        %v2580 = vmax.f32 %v2548, 0.0
        %v2581 = vmax.f32 %v2549, 0.0
        %v2582 = vmax.f32 %v2550, 0.0
        %v2583 = vmax.f32 %v2551, 0.0
        %v2584 = vmax.f32 %v2552, 0.0
        %v2585 = vmax.f32 %v2553, 0.0
        %v2586 = vmax.f32 %v2554, 0.0
        %2587 = vst.msk [vmem:[%s255 + $0x1] sm:$0xff] %vm256, %v2555
        %2588 = vst.msk [vmem:[%s255 + $0x9] sm:$0xff] %vm256, %v2556
        %2589 = vst.msk [vmem:[%s255 + $0x19] sm:$0xff] %vm256, %v2557
        %2590 = vst.msk [vmem:[%s255 + $0x21] sm:$0xff] %vm256, %v2558
        %2591 = vst.msk [vmem:[%s255 + $0x31] sm:$0xff] %vm256, %v2559
        %2592 = vst.msk [vmem:[%s255 + $0x39] sm:$0xff] %vm256, %v2560
        %2593 = vst.msk [vmem:[%s255 + $0x49] sm:$0xff] %vm256, %v2561
        %2594 = vst.msk [vmem:[%s255 + $0x51] sm:$0xff] %vm256, %v2562
        %2595 = vst.msk [vmem:[%s255 + $0x61] sm:$0xff] %vm256, %v2563
        %2596 = vst.msk [vmem:[%s255 + $0x69] sm:$0xff] %vm256, %v2564
        %2597 = vst.msk [vmem:[%s255 + $0x79] sm:$0xff] %vm256, %v2565
        %2598 = vst.msk [vmem:[%s255 + $0x81] sm:$0xff] %vm256, %v2566
        %2599 = vst.msk [vmem:[%s255 + $0x91] sm:$0xff] %vm256, %v2567
        %2600 = vst.msk [vmem:[%s255 + $0x99] sm:$0xff] %vm256, %v2568
        %2601 = vst.msk [vmem:[%s255 + $0xa9] sm:$0xff] %vm256, %v2569
        %2602 = vst.msk [vmem:[%s255 + $0xb1] sm:$0xff] %vm256, %v2570
        %2603 = vst.msk [vmem:[%s255 + $0xc1] sm:$0xff] %vm256, %v2571
        %2604 = vst.msk [vmem:[%s255 + $0xc9] sm:$0xff] %vm256, %v2572
        %2605 = vst.msk [vmem:[%s255 + $0xd9] sm:$0xff] %vm256, %v2573
        %2606 = vst.msk [vmem:[%s255 + $0xe1] sm:$0xff] %vm256, %v2574
        %2607 = vst.msk [vmem:[%s255 + $0xf1] sm:$0xff] %vm256, %v2575
        %2608 = vst.msk [vmem:[%s255 + $0xf9] sm:$0xff] %vm256, %v2576
        %2609 = vst.msk [vmem:[%s255 + $0x109] sm:$0xff] %vm256, %v2577
        %2610 = vst.msk [vmem:[%s255 + $0x111] sm:$0xff] %vm256, %v2578
        %2611 = vst.msk [vmem:[%s255 + $0x121] sm:$0xff] %vm256, %v2579
        %2612 = vst.msk [vmem:[%s255 + $0x129] sm:$0xff] %vm256, %v2580
        %2613 = vst.msk [vmem:[%s255 + $0x139] sm:$0xff] %vm256, %v2581
        %2614 = vst.msk [vmem:[%s255 + $0x141] sm:$0xff] %vm256, %v2582
        %2615 = vst.msk [vmem:[%s255 + $0x151] sm:$0xff] %vm256, %v2583
        %2616 = vst.msk [vmem:[%s255 + $0x159] sm:$0xff] %vm256, %v2584
        %2617 = vst.msk [vmem:[%s255 + $0x169] sm:$0xff] %vm256, %v2585
        %2618 = vst.msk [vmem:[%s255 + $0x171] sm:$0xff] %vm256, %v2586
        %2619 = vst.msk [vmem:[%s255 - $0x1] sm:$0x2] %vm289, %v2555
        %2620 = vst.msk [vmem:[%s255 + $0x17] sm:$0x2] %vm289, %v2557
        %2621 = vst.msk [vmem:[%s255 + $0x2f] sm:$0x2] %vm289, %v2559
        %2622 = vst.msk [vmem:[%s255 + $0x47] sm:$0x2] %vm289, %v2561
        %2623 = vst.msk [vmem:[%s255 + $0x5f] sm:$0x2] %vm289, %v2563
        %2624 = vst.msk [vmem:[%s255 + $0x77] sm:$0x2] %vm289, %v2565
        %2625 = vst.msk [vmem:[%s255 + $0x8f] sm:$0x2] %vm289, %v2567
        %2626 = vst.msk [vmem:[%s255 + $0xa7] sm:$0x2] %vm289, %v2569
        %2627 = vst.msk [vmem:[%s255 + $0xbf] sm:$0x2] %vm289, %v2571
        %2628 = vst.msk [vmem:[%s255 + $0xd7] sm:$0x2] %vm289, %v2573
        %2629 = vst.msk [vmem:[%s255 + $0xef] sm:$0x2] %vm289, %v2575
        %2630 = vst.msk [vmem:[%s255 + $0x107] sm:$0x2] %vm289, %v2577
        %2631 = vst.msk [vmem:[%s255 + $0x11f] sm:$0x2] %vm289, %v2579
        %2632 = vst.msk [vmem:[%s255 + $0x137] sm:$0x2] %vm289, %v2581
        %2633 = vst.msk [vmem:[%s255 + $0x14f] sm:$0x2] %vm289, %v2583
        %2634 = vst.msk [vmem:[%s255 + $0x167] sm:$0x2] %vm289, %v2585
        %2635 = vst.msk [vmem:[%s255 + $0xb] sm:$0x40] %vm306, %v2556
        %2636 = vst.msk [vmem:[%s255 + $0x23] sm:$0x40] %vm306, %v2558
        %2637 = vst.msk [vmem:[%s255 + $0x3b] sm:$0x40] %vm306, %v2560
        %2638 = vst.msk [vmem:[%s255 + $0x53] sm:$0x40] %vm306, %v2562
        %2639 = vst.msk [vmem:[%s255 + $0x6b] sm:$0x40] %vm306, %v2564
        %2640 = vst.msk [vmem:[%s255 + $0x83] sm:$0x40] %vm306, %v2566
        %2641 = vst.msk [vmem:[%s255 + $0x9b] sm:$0x40] %vm306, %v2568
        %2642 = vst.msk [vmem:[%s255 + $0xb3] sm:$0x40] %vm306, %v2570
        %2643 = vst.msk [vmem:[%s255 + $0xcb] sm:$0x40] %vm306, %v2572
        %2644 = vst.msk [vmem:[%s255 + $0xe3] sm:$0x40] %vm306, %v2574
        %2645 = vst.msk [vmem:[%s255 + $0xfb] sm:$0x40] %vm306, %v2576
        %2646 = vst.msk [vmem:[%s255 + $0x113] sm:$0x40] %vm306, %v2578
        %2647 = vst.msk [vmem:[%s255 + $0x12b] sm:$0x40] %vm306, %v2580
        %2648 = vst.msk [vmem:[%s255 + $0x143] sm:$0x40] %vm306, %v2582
        %2649 = vst.msk [vmem:[%s255 + $0x15b] sm:$0x40] %vm306, %v2584
        %2650 = vst.msk [vmem:[%s255 + $0x173] sm:$0x40] %vm306, %v2586
        %v2651 = vld [vmem:[%s323] sm:$0xff]
        %v2652 = vld [vmem:[%s323 + $0x8] sm:$0xff]
        %v2653 = vld [vmem:[%s323 + $0x10] sm:$0x3]
        %2654 = vst.msk [vmem:[#allocation2] sm:$0xff] %vm256, %v2651
        %2655 = vst.msk [vmem:[#allocation2 + $0x8] sm:$0xff] %vm256, %v2652
        %2656 = vst.msk [vmem:[#allocation2 + $0x10] sm:$0x3] %vm329, %v2653
        %v2657 = vld [vmem:[%s331] sm:$0xff]
        %v2658 = vld [vmem:[%s331 + $0x8] sm:$0xff]
        %v2659 = vld [vmem:[%s331 + $0x10] sm:$0x3]
        %2660 = vst.msk [vmem:[%s335] sm:$0xff] %vm256, %v2657
        %2661 = vst.msk [vmem:[%s335 + $0x8] sm:$0xff] %vm256, %v2658
        %2662 = vst.msk [vmem:[%s335 + $0x10] sm:$0x3] %vm329, %v2659
        %v2663 = vld [vmem:[#allocation2] sm:$0xff]
        %v2664 = vld [vmem:[#allocation2 + $0x8] sm:$0xff]
        %v2665 = vld [vmem:[#allocation2 + $0x18] sm:$0xff]
        %v2666 = vld [vmem:[#allocation2 + $0x20] sm:$0xff]
        %v2667 = vld [vmem:[#allocation2 + $0x30] sm:$0xff]
        %v2668 = vld [vmem:[#allocation2 + $0x38] sm:$0xff]
        %v2669 = vld [vmem:[#allocation2 + $0x48] sm:$0xff]
        %v2670 = vld [vmem:[#allocation2 + $0x50] sm:$0xff]
        %v2671 = vld [vmem:[#allocation2 + $0x60] sm:$0xff]
        %v2672 = vld [vmem:[#allocation2 + $0x68] sm:$0xff]
        %v2673 = vld [vmem:[#allocation2 + $0x78] sm:$0xff]
        %v2674 = vld [vmem:[#allocation2 + $0x80] sm:$0xff]
        %v2675 = vld [vmem:[#allocation2 + $0x90] sm:$0xff]
        %v2676 = vld [vmem:[#allocation2 + $0x98] sm:$0xff]
        %v2677 = vld [vmem:[#allocation2 + $0xa8] sm:$0xff]
        %v2678 = vld [vmem:[#allocation2 + $0xb0] sm:$0xff]
        %v2679 = vld [vmem:[#allocation2 + $0xc0] sm:$0xff]
        %v2680 = vld [vmem:[#allocation2 + $0xc8] sm:$0xff]
        %v2681 = vld [vmem:[#allocation2 + $0xd8] sm:$0xff]
        %v2682 = vld [vmem:[#allocation2 + $0xe0] sm:$0xff]
        %v2683 = vld [vmem:[#allocation2 + $0xf0] sm:$0xff]
        %v2684 = vld [vmem:[#allocation2 + $0xf8] sm:$0xff]
        %v2685 = vld [vmem:[#allocation2 + $0x108] sm:$0xff]
        %v2686 = vld [vmem:[#allocation2 + $0x110] sm:$0xff]
        %v2687 = vld [vmem:[#allocation2 + $0x120] sm:$0xff]
        %v2688 = vld [vmem:[#allocation2 + $0x128] sm:$0xff]
        %v2689 = vld [vmem:[#allocation2 + $0x138] sm:$0xff]
        %v2690 = vld [vmem:[#allocation2 + $0x140] sm:$0xff]
        %v2691 = vld [vmem:[#allocation2 + $0x150] sm:$0xff]
        %v2692 = vld [vmem:[#allocation2 + $0x158] sm:$0xff]
        %v2693 = vld [vmem:[#allocation2 + $0x168] sm:$0xff]
        %v2694 = vld [vmem:[#allocation2 + $0x170] sm:$0xff]
        %2695 = vst.msk [vmem:[#allocation3] sm:$0xff] %vm256, %v2663
        %2696 = vst.msk [vmem:[#allocation3 + $0x8] sm:$0xff] %vm256, %v2664
        %2697 = vst.msk [vmem:[#allocation3 + $0x10] sm:$0xff] %vm256, %v2665
        %2698 = vst.msk [vmem:[#allocation3 + $0x18] sm:$0xff] %vm256, %v2666
        %2699 = vst.msk [vmem:[#allocation3 + $0x20] sm:$0xff] %vm256, %v2667
        %2700 = vst.msk [vmem:[#allocation3 + $0x28] sm:$0xff] %vm256, %v2668
        %2701 = vst.msk [vmem:[#allocation3 + $0x30] sm:$0xff] %vm256, %v2669
        %2702 = vst.msk [vmem:[#allocation3 + $0x38] sm:$0xff] %vm256, %v2670
        %2703 = vst.msk [vmem:[#allocation3 + $0x40] sm:$0xff] %vm256, %v2671
        %2704 = vst.msk [vmem:[#allocation3 + $0x48] sm:$0xff] %vm256, %v2672
        %2705 = vst.msk [vmem:[#allocation3 + $0x50] sm:$0xff] %vm256, %v2673
        %2706 = vst.msk [vmem:[#allocation3 + $0x58] sm:$0xff] %vm256, %v2674
        %2707 = vst.msk [vmem:[#allocation3 + $0x60] sm:$0xff] %vm256, %v2675
        %2708 = vst.msk [vmem:[#allocation3 + $0x68] sm:$0xff] %vm256, %v2676
        %2709 = vst.msk [vmem:[#allocation3 + $0x70] sm:$0xff] %vm256, %v2677
        %2710 = vst.msk [vmem:[#allocation3 + $0x78] sm:$0xff] %vm256, %v2678
        %2711 = vst.msk [vmem:[#allocation3 + $0x80] sm:$0xff] %vm256, %v2679
        %2712 = vst.msk [vmem:[#allocation3 + $0x88] sm:$0xff] %vm256, %v2680
        %2713 = vst.msk [vmem:[#allocation3 + $0x90] sm:$0xff] %vm256, %v2681
        %2714 = vst.msk [vmem:[#allocation3 + $0x98] sm:$0xff] %vm256, %v2682
        %2715 = vst.msk [vmem:[#allocation3 + $0xa0] sm:$0xff] %vm256, %v2683
        %2716 = vst.msk [vmem:[#allocation3 + $0xa8] sm:$0xff] %vm256, %v2684
        %2717 = vst.msk [vmem:[#allocation3 + $0xb0] sm:$0xff] %vm256, %v2685
        %2718 = vst.msk [vmem:[#allocation3 + $0xb8] sm:$0xff] %vm256, %v2686
        %2719 = vst.msk [vmem:[#allocation3 + $0xc0] sm:$0xff] %vm256, %v2687
        %2720 = vst.msk [vmem:[#allocation3 + $0xc8] sm:$0xff] %vm256, %v2688
        %2721 = vst.msk [vmem:[#allocation3 + $0xd0] sm:$0xff] %vm256, %v2689
        %2722 = vst.msk [vmem:[#allocation3 + $0xd8] sm:$0xff] %vm256, %v2690
        %2723 = vst.msk [vmem:[#allocation3 + $0xe0] sm:$0xff] %vm256, %v2691
        %2724 = vst.msk [vmem:[#allocation3 + $0xe8] sm:$0xff] %vm256, %v2692
        %2725 = vst.msk [vmem:[#allocation3 + $0xf0] sm:$0xff] %vm256, %v2693
        %2726 = vst.msk [vmem:[#allocation3 + $0xf8] sm:$0xff] %vm256, %v2694
        %v2727 = vld [vmem:[#allocation2 + $0x1] sm:$0xff]
        %v2728 = vld [vmem:[#allocation2 + $0x9] sm:$0xff]
        %v2729 = vld [vmem:[#allocation2 + $0x19] sm:$0xff]
        %v2730 = vld [vmem:[#allocation2 + $0x21] sm:$0xff]
        %v2731 = vld [vmem:[#allocation2 + $0x31] sm:$0xff]
        %v2732 = vld [vmem:[#allocation2 + $0x39] sm:$0xff]
        %v2733 = vld [vmem:[#allocation2 + $0x49] sm:$0xff]
        %v2734 = vld [vmem:[#allocation2 + $0x51] sm:$0xff]
        %v2735 = vld [vmem:[#allocation2 + $0x61] sm:$0xff]
        %v2736 = vld [vmem:[#allocation2 + $0x69] sm:$0xff]
        %v2737 = vld [vmem:[#allocation2 + $0x79] sm:$0xff]
        %v2738 = vld [vmem:[#allocation2 + $0x81] sm:$0xff]
        %v2739 = vld [vmem:[#allocation2 + $0x91] sm:$0xff]
        %v2740 = vld [vmem:[#allocation2 + $0x99] sm:$0xff]
        %v2741 = vld [vmem:[#allocation2 + $0xa9] sm:$0xff]
        %v2742 = vld [vmem:[#allocation2 + $0xb1] sm:$0xff]
        %v2743 = vld [vmem:[#allocation2 + $0xc1] sm:$0xff]
        %v2744 = vld [vmem:[#allocation2 + $0xc9] sm:$0xff]
        %v2745 = vld [vmem:[#allocation2 + $0xd9] sm:$0xff]
        %v2746 = vld [vmem:[#allocation2 + $0xe1] sm:$0xff]
        %v2747 = vld [vmem:[#allocation2 + $0xf1] sm:$0xff]
        %v2748 = vld [vmem:[#allocation2 + $0xf9] sm:$0xff]
        %v2749 = vld [vmem:[#allocation2 + $0x109] sm:$0xff]
        %v2750 = vld [vmem:[#allocation2 + $0x111] sm:$0xff]
        %v2751 = vld [vmem:[#allocation2 + $0x121] sm:$0xff]
        %v2752 = vld [vmem:[#allocation2 + $0x129] sm:$0xff]
        %v2753 = vld [vmem:[#allocation2 + $0x139] sm:$0xff]
        %v2754 = vld [vmem:[#allocation2 + $0x141] sm:$0xff]
        %v2755 = vld [vmem:[#allocation2 + $0x151] sm:$0xff]
        %v2756 = vld [vmem:[#allocation2 + $0x159] sm:$0xff]
        %v2757 = vld [vmem:[#allocation2 + $0x169] sm:$0xff]
        %v2758 = vld [vmem:[#allocation2 + $0x171] sm:$0xff]
        %2791 = vrot.lane.b32.xlu0 %v2727, 4
        %v2792 = vpop.permute.xlu0 %2791
        %2793 = vrot.lane.b32.xlu0 %v2728, 4
        %v2794 = vpop.permute.xlu0 %2793
        %2795 = vrot.lane.b32.xlu0 %v2729, 4
        %v2796 = vpop.permute.xlu0 %2795
        %2797 = vrot.lane.b32.xlu0 %v2730, 4
        %v2798 = vpop.permute.xlu0 %2797
        %2799 = vrot.lane.b32.xlu0 %v2731, 4
        %v2800 = vpop.permute.xlu0 %2799
        %2801 = vrot.lane.b32.xlu0 %v2732, 4
        %v2802 = vpop.permute.xlu0 %2801
        %2803 = vrot.lane.b32.xlu0 %v2733, 4
        %v2804 = vpop.permute.xlu0 %2803
        %2805 = vrot.lane.b32.xlu0 %v2734, 4
        %v2806 = vpop.permute.xlu0 %2805
        %2807 = vrot.lane.b32.xlu0 %v2735, 4
        %v2808 = vpop.permute.xlu0 %2807
        %2809 = vrot.lane.b32.xlu0 %v2736, 4
        %v2810 = vpop.permute.xlu0 %2809
        %2811 = vrot.lane.b32.xlu0 %v2737, 4
        %v2812 = vpop.permute.xlu0 %2811
        %2813 = vrot.lane.b32.xlu0 %v2738, 4
        %v2814 = vpop.permute.xlu0 %2813
        %2815 = vrot.lane.b32.xlu0 %v2739, 4
        %v2816 = vpop.permute.xlu0 %2815
        %2817 = vrot.lane.b32.xlu0 %v2740, 4
        %v2818 = vpop.permute.xlu0 %2817
        %2819 = vrot.lane.b32.xlu0 %v2741, 4
        %v2820 = vpop.permute.xlu0 %2819
        %2821 = vrot.lane.b32.xlu0 %v2742, 4
        %v2822 = vpop.permute.xlu0 %2821
        %2823 = vrot.lane.b32.xlu0 %v2743, 4
        %v2824 = vpop.permute.xlu0 %2823
        %2825 = vrot.lane.b32.xlu0 %v2744, 4
        %v2826 = vpop.permute.xlu0 %2825
        %2827 = vrot.lane.b32.xlu0 %v2745, 4
        %v2828 = vpop.permute.xlu0 %2827
        %2829 = vrot.lane.b32.xlu0 %v2746, 4
        %v2830 = vpop.permute.xlu0 %2829
        %2831 = vrot.lane.b32.xlu0 %v2747, 4
        %v2832 = vpop.permute.xlu0 %2831
        %2833 = vrot.lane.b32.xlu0 %v2748, 4
        %v2834 = vpop.permute.xlu0 %2833
        %2835 = vrot.lane.b32.xlu0 %v2749, 4
        %v2836 = vpop.permute.xlu0 %2835
        %2837 = vrot.lane.b32.xlu0 %v2750, 4
        %v2838 = vpop.permute.xlu0 %2837
        %2839 = vrot.lane.b32.xlu0 %v2751, 4
        %v2840 = vpop.permute.xlu0 %2839
        %2841 = vrot.lane.b32.xlu0 %v2752, 4
        %v2842 = vpop.permute.xlu0 %2841
        %2843 = vrot.lane.b32.xlu0 %v2753, 4
        %v2844 = vpop.permute.xlu0 %2843
        %2845 = vrot.lane.b32.xlu0 %v2754, 4
        %v2846 = vpop.permute.xlu0 %2845
        %2847 = vrot.lane.b32.xlu0 %v2755, 4
        %v2848 = vpop.permute.xlu0 %2847
        %2849 = vrot.lane.b32.xlu0 %v2756, 4
        %v2850 = vpop.permute.xlu0 %2849
        %2851 = vrot.lane.b32.xlu0 %v2757, 4
        %v2852 = vpop.permute.xlu0 %2851
        %2853 = vrot.lane.b32.xlu0 %v2758, 4
        %v2854 = vpop.permute.xlu0 %2853
        %2887 = vst.msk [vmem:[#allocation3] sm:$0xff] %vm563, %v2792
        %2888 = vst.msk [vmem:[#allocation3 + $0x8] sm:$0xff] %vm563, %v2794
        %2889 = vst.msk [vmem:[#allocation3 + $0x10] sm:$0xff] %vm563, %v2796
        %2890 = vst.msk [vmem:[#allocation3 + $0x18] sm:$0xff] %vm563, %v2798
        %2891 = vst.msk [vmem:[#allocation3 + $0x20] sm:$0xff] %vm563, %v2800
        %2892 = vst.msk [vmem:[#allocation3 + $0x28] sm:$0xff] %vm563, %v2802
        %2893 = vst.msk [vmem:[#allocation3 + $0x30] sm:$0xff] %vm563, %v2804
        %2894 = vst.msk [vmem:[#allocation3 + $0x38] sm:$0xff] %vm563, %v2806
        %2895 = vst.msk [vmem:[#allocation3 + $0x40] sm:$0xff] %vm563, %v2808
        %2896 = vst.msk [vmem:[#allocation3 + $0x48] sm:$0xff] %vm563, %v2810
        %2897 = vst.msk [vmem:[#allocation3 + $0x50] sm:$0xff] %vm563, %v2812
        %2898 = vst.msk [vmem:[#allocation3 + $0x58] sm:$0xff] %vm563, %v2814
        %2899 = vst.msk [vmem:[#allocation3 + $0x60] sm:$0xff] %vm563, %v2816
        %2900 = vst.msk [vmem:[#allocation3 + $0x68] sm:$0xff] %vm563, %v2818
        %2901 = vst.msk [vmem:[#allocation3 + $0x70] sm:$0xff] %vm563, %v2820
        %2902 = vst.msk [vmem:[#allocation3 + $0x78] sm:$0xff] %vm563, %v2822
        %2903 = vst.msk [vmem:[#allocation3 + $0x80] sm:$0xff] %vm563, %v2824
        %2904 = vst.msk [vmem:[#allocation3 + $0x88] sm:$0xff] %vm563, %v2826
        %2905 = vst.msk [vmem:[#allocation3 + $0x90] sm:$0xff] %vm563, %v2828
        %2906 = vst.msk [vmem:[#allocation3 + $0x98] sm:$0xff] %vm563, %v2830
        %2907 = vst.msk [vmem:[#allocation3 + $0xa0] sm:$0xff] %vm563, %v2832
        %2908 = vst.msk [vmem:[#allocation3 + $0xa8] sm:$0xff] %vm563, %v2834
        %2909 = vst.msk [vmem:[#allocation3 + $0xb0] sm:$0xff] %vm563, %v2836
        %2910 = vst.msk [vmem:[#allocation3 + $0xb8] sm:$0xff] %vm563, %v2838
        %2911 = vst.msk [vmem:[#allocation3 + $0xc0] sm:$0xff] %vm563, %v2840
        %2912 = vst.msk [vmem:[#allocation3 + $0xc8] sm:$0xff] %vm563, %v2842
        %2913 = vst.msk [vmem:[#allocation3 + $0xd0] sm:$0xff] %vm563, %v2844
        %2914 = vst.msk [vmem:[#allocation3 + $0xd8] sm:$0xff] %vm563, %v2846
        %2915 = vst.msk [vmem:[#allocation3 + $0xe0] sm:$0xff] %vm563, %v2848
        %2916 = vst.msk [vmem:[#allocation3 + $0xe8] sm:$0xff] %vm563, %v2850
        %2917 = vst.msk [vmem:[#allocation3 + $0xf0] sm:$0xff] %vm563, %v2852
        %2918 = vst.msk [vmem:[#allocation3 + $0xf8] sm:$0xff] %vm563, %v2854
        %v2919 = vld [vmem:[#allocation2 + $0x2] sm:$0xff]
        %v2920 = vld [vmem:[#allocation2 + $0xa] sm:$0xff]
        %v2921 = vld [vmem:[#allocation2 + $0x1a] sm:$0xff]
        %v2922 = vld [vmem:[#allocation2 + $0x22] sm:$0xff]
        %v2923 = vld [vmem:[#allocation2 + $0x32] sm:$0xff]
        %v2924 = vld [vmem:[#allocation2 + $0x3a] sm:$0xff]
        %v2925 = vld [vmem:[#allocation2 + $0x4a] sm:$0xff]
        %v2926 = vld [vmem:[#allocation2 + $0x52] sm:$0xff]
        %v2927 = vld [vmem:[#allocation2 + $0x62] sm:$0xff]
        %v2928 = vld [vmem:[#allocation2 + $0x6a] sm:$0xff]
        %v2929 = vld [vmem:[#allocation2 + $0x7a] sm:$0xff]
        %v2930 = vld [vmem:[#allocation2 + $0x82] sm:$0xff]
        %v2931 = vld [vmem:[#allocation2 + $0x92] sm:$0xff]
        %v2932 = vld [vmem:[#allocation2 + $0x9a] sm:$0xff]
        %v2933 = vld [vmem:[#allocation2 + $0xaa] sm:$0xff]
        %v2934 = vld [vmem:[#allocation2 + $0xb2] sm:$0xff]
        %v2935 = vld [vmem:[#allocation2 + $0xc2] sm:$0xff]
        %v2936 = vld [vmem:[#allocation2 + $0xca] sm:$0xff]
        %v2937 = vld [vmem:[#allocation2 + $0xda] sm:$0xff]
        %v2938 = vld [vmem:[#allocation2 + $0xe2] sm:$0xff]
        %v2939 = vld [vmem:[#allocation2 + $0xf2] sm:$0xff]
        %v2940 = vld [vmem:[#allocation2 + $0xfa] sm:$0xff]
        %v2941 = vld [vmem:[#allocation2 + $0x10a] sm:$0xff]
        %v2942 = vld [vmem:[#allocation2 + $0x112] sm:$0xff]
        %v2943 = vld [vmem:[#allocation2 + $0x122] sm:$0xff]
        %v2944 = vld [vmem:[#allocation2 + $0x12a] sm:$0xff]
        %v2945 = vld [vmem:[#allocation2 + $0x13a] sm:$0xff]
        %v2946 = vld [vmem:[#allocation2 + $0x142] sm:$0xff]
        %v2947 = vld [vmem:[#allocation2 + $0x152] sm:$0xff]
        %v2948 = vld [vmem:[#allocation2 + $0x15a] sm:$0xff]
        %v2949 = vld [vmem:[#allocation2 + $0x16a] sm:$0xff]
        %v2950 = vld [vmem:[#allocation2 + $0x172] sm:$0xff]
        %2983 = vrot.lane.b32.xlu0 %v2919, 8
        %v2984 = vpop.permute.xlu0 %2983
        %2985 = vrot.lane.b32.xlu0 %v2920, 8
        %v2986 = vpop.permute.xlu0 %2985
        %2987 = vrot.lane.b32.xlu0 %v2921, 8
        %v2988 = vpop.permute.xlu0 %2987
        %2989 = vrot.lane.b32.xlu0 %v2922, 8
        %v2990 = vpop.permute.xlu0 %2989
        %2991 = vrot.lane.b32.xlu0 %v2923, 8
        %v2992 = vpop.permute.xlu0 %2991
        %2993 = vrot.lane.b32.xlu0 %v2924, 8
        %v2994 = vpop.permute.xlu0 %2993
        %2995 = vrot.lane.b32.xlu0 %v2925, 8
        %v2996 = vpop.permute.xlu0 %2995
        %2997 = vrot.lane.b32.xlu0 %v2926, 8
        %v2998 = vpop.permute.xlu0 %2997
        %2999 = vrot.lane.b32.xlu0 %v2927, 8
        %v3000 = vpop.permute.xlu0 %2999
        %3001 = vrot.lane.b32.xlu0 %v2928, 8
        %v3002 = vpop.permute.xlu0 %3001
        %3003 = vrot.lane.b32.xlu0 %v2929, 8
        %v3004 = vpop.permute.xlu0 %3003
        %3005 = vrot.lane.b32.xlu0 %v2930, 8
        %v3006 = vpop.permute.xlu0 %3005
        %3007 = vrot.lane.b32.xlu0 %v2931, 8
        %v3008 = vpop.permute.xlu0 %3007
        %3009 = vrot.lane.b32.xlu0 %v2932, 8
        %v3010 = vpop.permute.xlu0 %3009
        %3011 = vrot.lane.b32.xlu0 %v2933, 8
        %v3012 = vpop.permute.xlu0 %3011
        %3013 = vrot.lane.b32.xlu0 %v2934, 8
        %v3014 = vpop.permute.xlu0 %3013
        %3015 = vrot.lane.b32.xlu0 %v2935, 8
        %v3016 = vpop.permute.xlu0 %3015
        %3017 = vrot.lane.b32.xlu0 %v2936, 8
        %v3018 = vpop.permute.xlu0 %3017
        %3019 = vrot.lane.b32.xlu0 %v2937, 8
        %v3020 = vpop.permute.xlu0 %3019
        %3021 = vrot.lane.b32.xlu0 %v2938, 8
        %v3022 = vpop.permute.xlu0 %3021
        %3023 = vrot.lane.b32.xlu0 %v2939, 8
        %v3024 = vpop.permute.xlu0 %3023
        %3025 = vrot.lane.b32.xlu0 %v2940, 8
        %v3026 = vpop.permute.xlu0 %3025
        %3027 = vrot.lane.b32.xlu0 %v2941, 8
        %v3028 = vpop.permute.xlu0 %3027
        %3029 = vrot.lane.b32.xlu0 %v2942, 8
        %v3030 = vpop.permute.xlu0 %3029
        %3031 = vrot.lane.b32.xlu0 %v2943, 8
        %v3032 = vpop.permute.xlu0 %3031
        %3033 = vrot.lane.b32.xlu0 %v2944, 8
        %v3034 = vpop.permute.xlu0 %3033
        %3035 = vrot.lane.b32.xlu0 %v2945, 8
        %v3036 = vpop.permute.xlu0 %3035
        %3037 = vrot.lane.b32.xlu0 %v2946, 8
        %v3038 = vpop.permute.xlu0 %3037
        %3039 = vrot.lane.b32.xlu0 %v2947, 8
        %v3040 = vpop.permute.xlu0 %3039
        %3041 = vrot.lane.b32.xlu0 %v2948, 8
        %v3042 = vpop.permute.xlu0 %3041
        %3043 = vrot.lane.b32.xlu0 %v2949, 8
        %v3044 = vpop.permute.xlu0 %3043
        %3045 = vrot.lane.b32.xlu0 %v2950, 8
        %v3046 = vpop.permute.xlu0 %3045
        %3079 = vst.msk [vmem:[#allocation3] sm:$0xff] %vm756, %v2984
        %3080 = vst.msk [vmem:[#allocation3 + $0x8] sm:$0xff] %vm756, %v2986
        %3081 = vst.msk [vmem:[#allocation3 + $0x10] sm:$0xff] %vm756, %v2988
        %3082 = vst.msk [vmem:[#allocation3 + $0x18] sm:$0xff] %vm756, %v2990
        %3083 = vst.msk [vmem:[#allocation3 + $0x20] sm:$0xff] %vm756, %v2992
        %3084 = vst.msk [vmem:[#allocation3 + $0x28] sm:$0xff] %vm756, %v2994
        %3085 = vst.msk [vmem:[#allocation3 + $0x30] sm:$0xff] %vm756, %v2996
        %3086 = vst.msk [vmem:[#allocation3 + $0x38] sm:$0xff] %vm756, %v2998
        %3087 = vst.msk [vmem:[#allocation3 + $0x40] sm:$0xff] %vm756, %v3000
        %3088 = vst.msk [vmem:[#allocation3 + $0x48] sm:$0xff] %vm756, %v3002
        %3089 = vst.msk [vmem:[#allocation3 + $0x50] sm:$0xff] %vm756, %v3004
        %3090 = vst.msk [vmem:[#allocation3 + $0x58] sm:$0xff] %vm756, %v3006
        %3091 = vst.msk [vmem:[#allocation3 + $0x60] sm:$0xff] %vm756, %v3008
        %3092 = vst.msk [vmem:[#allocation3 + $0x68] sm:$0xff] %vm756, %v3010
        %3093 = vst.msk [vmem:[#allocation3 + $0x70] sm:$0xff] %vm756, %v3012
        %3094 = vst.msk [vmem:[#allocation3 + $0x78] sm:$0xff] %vm756, %v3014
        %3095 = vst.msk [vmem:[#allocation3 + $0x80] sm:$0xff] %vm756, %v3016
        %3096 = vst.msk [vmem:[#allocation3 + $0x88] sm:$0xff] %vm756, %v3018
        %3097 = vst.msk [vmem:[#allocation3 + $0x90] sm:$0xff] %vm756, %v3020
        %3098 = vst.msk [vmem:[#allocation3 + $0x98] sm:$0xff] %vm756, %v3022
        %3099 = vst.msk [vmem:[#allocation3 + $0xa0] sm:$0xff] %vm756, %v3024
        %3100 = vst.msk [vmem:[#allocation3 + $0xa8] sm:$0xff] %vm756, %v3026
        %3101 = vst.msk [vmem:[#allocation3 + $0xb0] sm:$0xff] %vm756, %v3028
        %3102 = vst.msk [vmem:[#allocation3 + $0xb8] sm:$0xff] %vm756, %v3030
        %3103 = vst.msk [vmem:[#allocation3 + $0xc0] sm:$0xff] %vm756, %v3032
        %3104 = vst.msk [vmem:[#allocation3 + $0xc8] sm:$0xff] %vm756, %v3034
        %3105 = vst.msk [vmem:[#allocation3 + $0xd0] sm:$0xff] %vm756, %v3036
        %3106 = vst.msk [vmem:[#allocation3 + $0xd8] sm:$0xff] %vm756, %v3038
        %3107 = vst.msk [vmem:[#allocation3 + $0xe0] sm:$0xff] %vm756, %v3040
        %3108 = vst.msk [vmem:[#allocation3 + $0xe8] sm:$0xff] %vm756, %v3042
        %3109 = vst.msk [vmem:[#allocation3 + $0xf0] sm:$0xff] %vm756, %v3044
        %3110 = vst.msk [vmem:[#allocation3 + $0xf8] sm:$0xff] %vm756, %v3046
        %v3111 = vld [vmem:[%s255] sm:$0xff]
        %v3112 = vld [vmem:[%s255 + $0x8] sm:$0xff]
        %v3113 = vld [vmem:[%s255 + $0x18] sm:$0xff]
        %v3114 = vld [vmem:[%s255 + $0x20] sm:$0xff]
        %v3115 = vld [vmem:[%s255 + $0x30] sm:$0xff]
        %v3116 = vld [vmem:[%s255 + $0x38] sm:$0xff]
        %v3117 = vld [vmem:[%s255 + $0x48] sm:$0xff]
        %v3118 = vld [vmem:[%s255 + $0x50] sm:$0xff]
        %v3119 = vld [vmem:[%s255 + $0x60] sm:$0xff]
        %v3120 = vld [vmem:[%s255 + $0x68] sm:$0xff]
        %v3121 = vld [vmem:[%s255 + $0x78] sm:$0xff]
        %v3122 = vld [vmem:[%s255 + $0x80] sm:$0xff]
        %v3123 = vld [vmem:[%s255 + $0x90] sm:$0xff]
        %v3124 = vld [vmem:[%s255 + $0x98] sm:$0xff]
        %v3125 = vld [vmem:[%s255 + $0xa8] sm:$0xff]
        %v3126 = vld [vmem:[%s255 + $0xb0] sm:$0xff]
        %v3127 = vld [vmem:[%s255 + $0xc0] sm:$0xff]
        %v3128 = vld [vmem:[%s255 + $0xc8] sm:$0xff]
        %v3129 = vld [vmem:[%s255 + $0xd8] sm:$0xff]
        %v3130 = vld [vmem:[%s255 + $0xe0] sm:$0xff]
        %v3131 = vld [vmem:[%s255 + $0xf0] sm:$0xff]
        %v3132 = vld [vmem:[%s255 + $0xf8] sm:$0xff]
        %v3133 = vld [vmem:[%s255 + $0x108] sm:$0xff]
        %v3134 = vld [vmem:[%s255 + $0x110] sm:$0xff]
        %v3135 = vld [vmem:[%s255 + $0x120] sm:$0xff]
        %v3136 = vld [vmem:[%s255 + $0x128] sm:$0xff]
        %v3137 = vld [vmem:[%s255 + $0x138] sm:$0xff]
        %v3138 = vld [vmem:[%s255 + $0x140] sm:$0xff]
        %v3139 = vld [vmem:[%s255 + $0x150] sm:$0xff]
        %v3140 = vld [vmem:[%s255 + $0x158] sm:$0xff]
        %v3141 = vld [vmem:[%s255 + $0x168] sm:$0xff]
        %v3142 = vld [vmem:[%s255 + $0x170] sm:$0xff]
        %3175 = vrot.lane.b32.xlu0 %v3111, 12
        %v3176 = vpop.permute.xlu0 %3175
        %3177 = vrot.lane.b32.xlu0 %v3112, 12
        %v3178 = vpop.permute.xlu0 %3177
        %3179 = vrot.lane.b32.xlu0 %v3113, 12
        %v3180 = vpop.permute.xlu0 %3179
        %3181 = vrot.lane.b32.xlu0 %v3114, 12
        %v3182 = vpop.permute.xlu0 %3181
        %3183 = vrot.lane.b32.xlu0 %v3115, 12
        %v3184 = vpop.permute.xlu0 %3183
        %3185 = vrot.lane.b32.xlu0 %v3116, 12
        %v3186 = vpop.permute.xlu0 %3185
        %3187 = vrot.lane.b32.xlu0 %v3117, 12
        %v3188 = vpop.permute.xlu0 %3187
        %3189 = vrot.lane.b32.xlu0 %v3118, 12
        %v3190 = vpop.permute.xlu0 %3189
        %3191 = vrot.lane.b32.xlu0 %v3119, 12
        %v3192 = vpop.permute.xlu0 %3191
        %3193 = vrot.lane.b32.xlu0 %v3120, 12
        %v3194 = vpop.permute.xlu0 %3193
        %3195 = vrot.lane.b32.xlu0 %v3121, 12
        %v3196 = vpop.permute.xlu0 %3195
        %3197 = vrot.lane.b32.xlu0 %v3122, 12
        %v3198 = vpop.permute.xlu0 %3197
        %3199 = vrot.lane.b32.xlu0 %v3123, 12
        %v3200 = vpop.permute.xlu0 %3199
        %3201 = vrot.lane.b32.xlu0 %v3124, 12
        %v3202 = vpop.permute.xlu0 %3201
        %3203 = vrot.lane.b32.xlu0 %v3125, 12
        %v3204 = vpop.permute.xlu0 %3203
        %3205 = vrot.lane.b32.xlu0 %v3126, 12
        %v3206 = vpop.permute.xlu0 %3205
        %3207 = vrot.lane.b32.xlu0 %v3127, 12
        %v3208 = vpop.permute.xlu0 %3207
        %3209 = vrot.lane.b32.xlu0 %v3128, 12
        %v3210 = vpop.permute.xlu0 %3209
        %3211 = vrot.lane.b32.xlu0 %v3129, 12
        %v3212 = vpop.permute.xlu0 %3211
        %3213 = vrot.lane.b32.xlu0 %v3130, 12
        %v3214 = vpop.permute.xlu0 %3213
        %3215 = vrot.lane.b32.xlu0 %v3131, 12
        %v3216 = vpop.permute.xlu0 %3215
        %3217 = vrot.lane.b32.xlu0 %v3132, 12
        %v3218 = vpop.permute.xlu0 %3217
        %3219 = vrot.lane.b32.xlu0 %v3133, 12
        %v3220 = vpop.permute.xlu0 %3219
        %3221 = vrot.lane.b32.xlu0 %v3134, 12
        %v3222 = vpop.permute.xlu0 %3221
        %3223 = vrot.lane.b32.xlu0 %v3135, 12
        %v3224 = vpop.permute.xlu0 %3223
        %3225 = vrot.lane.b32.xlu0 %v3136, 12
        %v3226 = vpop.permute.xlu0 %3225
        %3227 = vrot.lane.b32.xlu0 %v3137, 12
        %v3228 = vpop.permute.xlu0 %3227
        %3229 = vrot.lane.b32.xlu0 %v3138, 12
        %v3230 = vpop.permute.xlu0 %3229
        %3231 = vrot.lane.b32.xlu0 %v3139, 12
        %v3232 = vpop.permute.xlu0 %3231
        %3233 = vrot.lane.b32.xlu0 %v3140, 12
        %v3234 = vpop.permute.xlu0 %3233
        %3235 = vrot.lane.b32.xlu0 %v3141, 12
        %v3236 = vpop.permute.xlu0 %3235
        %3237 = vrot.lane.b32.xlu0 %v3142, 12
        %v3238 = vpop.permute.xlu0 %3237
        %3271 = vst.msk [vmem:[#allocation3] sm:$0xff] %vm949, %v3176
        %3272 = vst.msk [vmem:[#allocation3 + $0x8] sm:$0xff] %vm949, %v3178
        %3273 = vst.msk [vmem:[#allocation3 + $0x10] sm:$0xff] %vm949, %v3180
        %3274 = vst.msk [vmem:[#allocation3 + $0x18] sm:$0xff] %vm949, %v3182
        %3275 = vst.msk [vmem:[#allocation3 + $0x20] sm:$0xff] %vm949, %v3184
        %3276 = vst.msk [vmem:[#allocation3 + $0x28] sm:$0xff] %vm949, %v3186
        %3277 = vst.msk [vmem:[#allocation3 + $0x30] sm:$0xff] %vm949, %v3188
        %3278 = vst.msk [vmem:[#allocation3 + $0x38] sm:$0xff] %vm949, %v3190
        %3279 = vst.msk [vmem:[#allocation3 + $0x40] sm:$0xff] %vm949, %v3192
        %3280 = vst.msk [vmem:[#allocation3 + $0x48] sm:$0xff] %vm949, %v3194
        %3281 = vst.msk [vmem:[#allocation3 + $0x50] sm:$0xff] %vm949, %v3196
        %3282 = vst.msk [vmem:[#allocation3 + $0x58] sm:$0xff] %vm949, %v3198
        %3283 = vst.msk [vmem:[#allocation3 + $0x60] sm:$0xff] %vm949, %v3200
        %3284 = vst.msk [vmem:[#allocation3 + $0x68] sm:$0xff] %vm949, %v3202
        %3285 = vst.msk [vmem:[#allocation3 + $0x70] sm:$0xff] %vm949, %v3204
        %3286 = vst.msk [vmem:[#allocation3 + $0x78] sm:$0xff] %vm949, %v3206
        %3287 = vst.msk [vmem:[#allocation3 + $0x80] sm:$0xff] %vm949, %v3208
        %3288 = vst.msk [vmem:[#allocation3 + $0x88] sm:$0xff] %vm949, %v3210
        %3289 = vst.msk [vmem:[#allocation3 + $0x90] sm:$0xff] %vm949, %v3212
        %3290 = vst.msk [vmem:[#allocation3 + $0x98] sm:$0xff] %vm949, %v3214
        %3291 = vst.msk [vmem:[#allocation3 + $0xa0] sm:$0xff] %vm949, %v3216
        %3292 = vst.msk [vmem:[#allocation3 + $0xa8] sm:$0xff] %vm949, %v3218
        %3293 = vst.msk [vmem:[#allocation3 + $0xb0] sm:$0xff] %vm949, %v3220
        %3294 = vst.msk [vmem:[#allocation3 + $0xb8] sm:$0xff] %vm949, %v3222
        %3295 = vst.msk [vmem:[#allocation3 + $0xc0] sm:$0xff] %vm949, %v3224
        %3296 = vst.msk [vmem:[#allocation3 + $0xc8] sm:$0xff] %vm949, %v3226
        %3297 = vst.msk [vmem:[#allocation3 + $0xd0] sm:$0xff] %vm949, %v3228
        %3298 = vst.msk [vmem:[#allocation3 + $0xd8] sm:$0xff] %vm949, %v3230
        %3299 = vst.msk [vmem:[#allocation3 + $0xe0] sm:$0xff] %vm949, %v3232
        %3300 = vst.msk [vmem:[#allocation3 + $0xe8] sm:$0xff] %vm949, %v3234
        %3301 = vst.msk [vmem:[#allocation3 + $0xf0] sm:$0xff] %vm949, %v3236
        %3302 = vst.msk [vmem:[#allocation3 + $0xf8] sm:$0xff] %vm949, %v3238
        %v3303 = vld [vmem:[%s255 + $0x1] sm:$0xff]
        %v3304 = vld [vmem:[%s255 + $0x9] sm:$0xff]
        %v3305 = vld [vmem:[%s255 + $0x19] sm:$0xff]
        %v3306 = vld [vmem:[%s255 + $0x21] sm:$0xff]
        %v3307 = vld [vmem:[%s255 + $0x31] sm:$0xff]
        %v3308 = vld [vmem:[%s255 + $0x39] sm:$0xff]
        %v3309 = vld [vmem:[%s255 + $0x49] sm:$0xff]
        %v3310 = vld [vmem:[%s255 + $0x51] sm:$0xff]
        %v3311 = vld [vmem:[%s255 + $0x61] sm:$0xff]
        %v3312 = vld [vmem:[%s255 + $0x69] sm:$0xff]
        %v3313 = vld [vmem:[%s255 + $0x79] sm:$0xff]
        %v3314 = vld [vmem:[%s255 + $0x81] sm:$0xff]
        %v3315 = vld [vmem:[%s255 + $0x91] sm:$0xff]
        %v3316 = vld [vmem:[%s255 + $0x99] sm:$0xff]
        %v3317 = vld [vmem:[%s255 + $0xa9] sm:$0xff]
        %v3318 = vld [vmem:[%s255 + $0xb1] sm:$0xff]
        %v3319 = vld [vmem:[%s255 + $0xc1] sm:$0xff]
        %v3320 = vld [vmem:[%s255 + $0xc9] sm:$0xff]
        %v3321 = vld [vmem:[%s255 + $0xd9] sm:$0xff]
        %v3322 = vld [vmem:[%s255 + $0xe1] sm:$0xff]
        %v3323 = vld [vmem:[%s255 + $0xf1] sm:$0xff]
        %v3324 = vld [vmem:[%s255 + $0xf9] sm:$0xff]
        %v3325 = vld [vmem:[%s255 + $0x109] sm:$0xff]
        %v3326 = vld [vmem:[%s255 + $0x111] sm:$0xff]
        %v3327 = vld [vmem:[%s255 + $0x121] sm:$0xff]
        %v3328 = vld [vmem:[%s255 + $0x129] sm:$0xff]
        %v3329 = vld [vmem:[%s255 + $0x139] sm:$0xff]
        %v3330 = vld [vmem:[%s255 + $0x141] sm:$0xff]
        %v3331 = vld [vmem:[%s255 + $0x151] sm:$0xff]
        %v3332 = vld [vmem:[%s255 + $0x159] sm:$0xff]
        %v3333 = vld [vmem:[%s255 + $0x169] sm:$0xff]
        %v3334 = vld [vmem:[%s255 + $0x171] sm:$0xff]
        %3367 = vrot.lane.b32.xlu0 %v3303, 16
        %v3368 = vpop.permute.xlu0 %3367
        %3369 = vrot.lane.b32.xlu0 %v3304, 16
        %v3370 = vpop.permute.xlu0 %3369
        %3371 = vrot.lane.b32.xlu0 %v3305, 16
        %v3372 = vpop.permute.xlu0 %3371
        %3373 = vrot.lane.b32.xlu0 %v3306, 16
        %v3374 = vpop.permute.xlu0 %3373
        %3375 = vrot.lane.b32.xlu0 %v3307, 16
        %v3376 = vpop.permute.xlu0 %3375
        %3377 = vrot.lane.b32.xlu0 %v3308, 16
        %v3378 = vpop.permute.xlu0 %3377
        %3379 = vrot.lane.b32.xlu0 %v3309, 16
        %v3380 = vpop.permute.xlu0 %3379
        %3381 = vrot.lane.b32.xlu0 %v3310, 16
        %v3382 = vpop.permute.xlu0 %3381
        %3383 = vrot.lane.b32.xlu0 %v3311, 16
        %v3384 = vpop.permute.xlu0 %3383
        %3385 = vrot.lane.b32.xlu0 %v3312, 16
        %v3386 = vpop.permute.xlu0 %3385
        %3387 = vrot.lane.b32.xlu0 %v3313, 16
        %v3388 = vpop.permute.xlu0 %3387
        %3389 = vrot.lane.b32.xlu0 %v3314, 16
        %v3390 = vpop.permute.xlu0 %3389
        %3391 = vrot.lane.b32.xlu0 %v3315, 16
        %v3392 = vpop.permute.xlu0 %3391
        %3393 = vrot.lane.b32.xlu0 %v3316, 16
        %v3394 = vpop.permute.xlu0 %3393
        %3395 = vrot.lane.b32.xlu0 %v3317, 16
        %v3396 = vpop.permute.xlu0 %3395
        %3397 = vrot.lane.b32.xlu0 %v3318, 16
        %v3398 = vpop.permute.xlu0 %3397
        %3399 = vrot.lane.b32.xlu0 %v3319, 16
        %v3400 = vpop.permute.xlu0 %3399
        %3401 = vrot.lane.b32.xlu0 %v3320, 16
        %v3402 = vpop.permute.xlu0 %3401
        %3403 = vrot.lane.b32.xlu0 %v3321, 16
        %v3404 = vpop.permute.xlu0 %3403
        %3405 = vrot.lane.b32.xlu0 %v3322, 16
        %v3406 = vpop.permute.xlu0 %3405
        %3407 = vrot.lane.b32.xlu0 %v3323, 16
        %v3408 = vpop.permute.xlu0 %3407
        %3409 = vrot.lane.b32.xlu0 %v3324, 16
        %v3410 = vpop.permute.xlu0 %3409
        %3411 = vrot.lane.b32.xlu0 %v3325, 16
        %v3412 = vpop.permute.xlu0 %3411
        %3413 = vrot.lane.b32.xlu0 %v3326, 16
        %v3414 = vpop.permute.xlu0 %3413
        %3415 = vrot.lane.b32.xlu0 %v3327, 16
        %v3416 = vpop.permute.xlu0 %3415
        %3417 = vrot.lane.b32.xlu0 %v3328, 16
        %v3418 = vpop.permute.xlu0 %3417
        %3419 = vrot.lane.b32.xlu0 %v3329, 16
        %v3420 = vpop.permute.xlu0 %3419
        %3421 = vrot.lane.b32.xlu0 %v3330, 16
        %v3422 = vpop.permute.xlu0 %3421
        %3423 = vrot.lane.b32.xlu0 %v3331, 16
        %v3424 = vpop.permute.xlu0 %3423
        %3425 = vrot.lane.b32.xlu0 %v3332, 16
        %v3426 = vpop.permute.xlu0 %3425
        %3427 = vrot.lane.b32.xlu0 %v3333, 16
        %v3428 = vpop.permute.xlu0 %3427
        %3429 = vrot.lane.b32.xlu0 %v3334, 16
        %v3430 = vpop.permute.xlu0 %3429
        %3463 = vst.msk [vmem:[#allocation3] sm:$0xff] %vm1142, %v3368
        %3464 = vst.msk [vmem:[#allocation3 + $0x8] sm:$0xff] %vm1142, %v3370
        %3465 = vst.msk [vmem:[#allocation3 + $0x10] sm:$0xff] %vm1142, %v3372
        %3466 = vst.msk [vmem:[#allocation3 + $0x18] sm:$0xff] %vm1142, %v3374
        %3467 = vst.msk [vmem:[#allocation3 + $0x20] sm:$0xff] %vm1142, %v3376
        %3468 = vst.msk [vmem:[#allocation3 + $0x28] sm:$0xff] %vm1142, %v3378
        %3469 = vst.msk [vmem:[#allocation3 + $0x30] sm:$0xff] %vm1142, %v3380
        %3470 = vst.msk [vmem:[#allocation3 + $0x38] sm:$0xff] %vm1142, %v3382
        %3471 = vst.msk [vmem:[#allocation3 + $0x40] sm:$0xff] %vm1142, %v3384
        %3472 = vst.msk [vmem:[#allocation3 + $0x48] sm:$0xff] %vm1142, %v3386
        %3473 = vst.msk [vmem:[#allocation3 + $0x50] sm:$0xff] %vm1142, %v3388
        %3474 = vst.msk [vmem:[#allocation3 + $0x58] sm:$0xff] %vm1142, %v3390
        %3475 = vst.msk [vmem:[#allocation3 + $0x60] sm:$0xff] %vm1142, %v3392
        %3476 = vst.msk [vmem:[#allocation3 + $0x68] sm:$0xff] %vm1142, %v3394
        %3477 = vst.msk [vmem:[#allocation3 + $0x70] sm:$0xff] %vm1142, %v3396
        %3478 = vst.msk [vmem:[#allocation3 + $0x78] sm:$0xff] %vm1142, %v3398
        %3479 = vst.msk [vmem:[#allocation3 + $0x80] sm:$0xff] %vm1142, %v3400
        %3480 = vst.msk [vmem:[#allocation3 + $0x88] sm:$0xff] %vm1142, %v3402
        %3481 = vst.msk [vmem:[#allocation3 + $0x90] sm:$0xff] %vm1142, %v3404
        %3482 = vst.msk [vmem:[#allocation3 + $0x98] sm:$0xff] %vm1142, %v3406
        %3483 = vst.msk [vmem:[#allocation3 + $0xa0] sm:$0xff] %vm1142, %v3408
        %3484 = vst.msk [vmem:[#allocation3 + $0xa8] sm:$0xff] %vm1142, %v3410
        %3485 = vst.msk [vmem:[#allocation3 + $0xb0] sm:$0xff] %vm1142, %v3412
        %3486 = vst.msk [vmem:[#allocation3 + $0xb8] sm:$0xff] %vm1142, %v3414
        %3487 = vst.msk [vmem:[#allocation3 + $0xc0] sm:$0xff] %vm1142, %v3416
        %3488 = vst.msk [vmem:[#allocation3 + $0xc8] sm:$0xff] %vm1142, %v3418
        %3489 = vst.msk [vmem:[#allocation3 + $0xd0] sm:$0xff] %vm1142, %v3420
        %3490 = vst.msk [vmem:[#allocation3 + $0xd8] sm:$0xff] %vm1142, %v3422
        %3491 = vst.msk [vmem:[#allocation3 + $0xe0] sm:$0xff] %vm1142, %v3424
        %3492 = vst.msk [vmem:[#allocation3 + $0xe8] sm:$0xff] %vm1142, %v3426
        %3493 = vst.msk [vmem:[#allocation3 + $0xf0] sm:$0xff] %vm1142, %v3428
        %3494 = vst.msk [vmem:[#allocation3 + $0xf8] sm:$0xff] %vm1142, %v3430
        %v3495 = vld [vmem:[%s255 + $0x2] sm:$0xff]
        %v3496 = vld [vmem:[%s255 + $0xa] sm:$0xff]
        %v3497 = vld [vmem:[%s255 + $0x1a] sm:$0xff]
        %v3498 = vld [vmem:[%s255 + $0x22] sm:$0xff]
        %v3499 = vld [vmem:[%s255 + $0x32] sm:$0xff]
        %v3500 = vld [vmem:[%s255 + $0x3a] sm:$0xff]
        %v3501 = vld [vmem:[%s255 + $0x4a] sm:$0xff]
        %v3502 = vld [vmem:[%s255 + $0x52] sm:$0xff]
        %v3503 = vld [vmem:[%s255 + $0x62] sm:$0xff]
        %v3504 = vld [vmem:[%s255 + $0x6a] sm:$0xff]
        %v3505 = vld [vmem:[%s255 + $0x7a] sm:$0xff]
        %v3506 = vld [vmem:[%s255 + $0x82] sm:$0xff]
        %v3507 = vld [vmem:[%s255 + $0x92] sm:$0xff]
        %v3508 = vld [vmem:[%s255 + $0x9a] sm:$0xff]
        %v3509 = vld [vmem:[%s255 + $0xaa] sm:$0xff]
        %v3510 = vld [vmem:[%s255 + $0xb2] sm:$0xff]
        %v3511 = vld [vmem:[%s255 + $0xc2] sm:$0xff]
        %v3512 = vld [vmem:[%s255 + $0xca] sm:$0xff]
        %v3513 = vld [vmem:[%s255 + $0xda] sm:$0xff]
        %v3514 = vld [vmem:[%s255 + $0xe2] sm:$0xff]
        %v3515 = vld [vmem:[%s255 + $0xf2] sm:$0xff]
        %v3516 = vld [vmem:[%s255 + $0xfa] sm:$0xff]
        %v3517 = vld [vmem:[%s255 + $0x10a] sm:$0xff]
        %v3518 = vld [vmem:[%s255 + $0x112] sm:$0xff]
        %v3519 = vld [vmem:[%s255 + $0x122] sm:$0xff]
        %v3520 = vld [vmem:[%s255 + $0x12a] sm:$0xff]
        %v3521 = vld [vmem:[%s255 + $0x13a] sm:$0xff]
        %v3522 = vld [vmem:[%s255 + $0x142] sm:$0xff]
        %v3523 = vld [vmem:[%s255 + $0x152] sm:$0xff]
        %v3524 = vld [vmem:[%s255 + $0x15a] sm:$0xff]
        %v3525 = vld [vmem:[%s255 + $0x16a] sm:$0xff]
        %v3526 = vld [vmem:[%s255 + $0x172] sm:$0xff]
        %3559 = vrot.lane.b32.xlu0 %v3495, 20
        %v3560 = vpop.permute.xlu0 %3559
        %3561 = vrot.lane.b32.xlu0 %v3496, 20
        %v3562 = vpop.permute.xlu0 %3561
        %3563 = vrot.lane.b32.xlu0 %v3497, 20
        %v3564 = vpop.permute.xlu0 %3563
        %3565 = vrot.lane.b32.xlu0 %v3498, 20
        %v3566 = vpop.permute.xlu0 %3565
        %3567 = vrot.lane.b32.xlu0 %v3499, 20
        %v3568 = vpop.permute.xlu0 %3567
        %3569 = vrot.lane.b32.xlu0 %v3500, 20
        %v3570 = vpop.permute.xlu0 %3569
        %3571 = vrot.lane.b32.xlu0 %v3501, 20
        %v3572 = vpop.permute.xlu0 %3571
        %3573 = vrot.lane.b32.xlu0 %v3502, 20
        %v3574 = vpop.permute.xlu0 %3573
        %3575 = vrot.lane.b32.xlu0 %v3503, 20
        %v3576 = vpop.permute.xlu0 %3575
        %3577 = vrot.lane.b32.xlu0 %v3504, 20
        %v3578 = vpop.permute.xlu0 %3577
        %3579 = vrot.lane.b32.xlu0 %v3505, 20
        %v3580 = vpop.permute.xlu0 %3579
        %3581 = vrot.lane.b32.xlu0 %v3506, 20
        %v3582 = vpop.permute.xlu0 %3581
        %3583 = vrot.lane.b32.xlu0 %v3507, 20
        %v3584 = vpop.permute.xlu0 %3583
        %3585 = vrot.lane.b32.xlu0 %v3508, 20
        %v3586 = vpop.permute.xlu0 %3585
        %3587 = vrot.lane.b32.xlu0 %v3509, 20
        %v3588 = vpop.permute.xlu0 %3587
        %3589 = vrot.lane.b32.xlu0 %v3510, 20
        %v3590 = vpop.permute.xlu0 %3589
        %3591 = vrot.lane.b32.xlu0 %v3511, 20
        %v3592 = vpop.permute.xlu0 %3591
        %3593 = vrot.lane.b32.xlu0 %v3512, 20
        %v3594 = vpop.permute.xlu0 %3593
        %3595 = vrot.lane.b32.xlu0 %v3513, 20
        %v3596 = vpop.permute.xlu0 %3595
        %3597 = vrot.lane.b32.xlu0 %v3514, 20
        %v3598 = vpop.permute.xlu0 %3597
        %3599 = vrot.lane.b32.xlu0 %v3515, 20
        %v3600 = vpop.permute.xlu0 %3599
        %3601 = vrot.lane.b32.xlu0 %v3516, 20
        %v3602 = vpop.permute.xlu0 %3601
        %3603 = vrot.lane.b32.xlu0 %v3517, 20
        %v3604 = vpop.permute.xlu0 %3603
        %3605 = vrot.lane.b32.xlu0 %v3518, 20
        %v3606 = vpop.permute.xlu0 %3605
        %3607 = vrot.lane.b32.xlu0 %v3519, 20
        %v3608 = vpop.permute.xlu0 %3607
        %3609 = vrot.lane.b32.xlu0 %v3520, 20
        %v3610 = vpop.permute.xlu0 %3609
        %3611 = vrot.lane.b32.xlu0 %v3521, 20
        %v3612 = vpop.permute.xlu0 %3611
        %3613 = vrot.lane.b32.xlu0 %v3522, 20
        %v3614 = vpop.permute.xlu0 %3613
        %3615 = vrot.lane.b32.xlu0 %v3523, 20
        %v3616 = vpop.permute.xlu0 %3615
        %3617 = vrot.lane.b32.xlu0 %v3524, 20
        %v3618 = vpop.permute.xlu0 %3617
        %3619 = vrot.lane.b32.xlu0 %v3525, 20
        %v3620 = vpop.permute.xlu0 %3619
        %3621 = vrot.lane.b32.xlu0 %v3526, 20
        %v3622 = vpop.permute.xlu0 %3621
        %3655 = vst.msk [vmem:[#allocation3] sm:$0xff] %vm1335, %v3560
        %3656 = vst.msk [vmem:[#allocation3 + $0x8] sm:$0xff] %vm1335, %v3562
        %3657 = vst.msk [vmem:[#allocation3 + $0x10] sm:$0xff] %vm1335, %v3564
        %3658 = vst.msk [vmem:[#allocation3 + $0x18] sm:$0xff] %vm1335, %v3566
        %3659 = vst.msk [vmem:[#allocation3 + $0x20] sm:$0xff] %vm1335, %v3568
        %3660 = vst.msk [vmem:[#allocation3 + $0x28] sm:$0xff] %vm1335, %v3570
        %3661 = vst.msk [vmem:[#allocation3 + $0x30] sm:$0xff] %vm1335, %v3572
        %3662 = vst.msk [vmem:[#allocation3 + $0x38] sm:$0xff] %vm1335, %v3574
        %3663 = vst.msk [vmem:[#allocation3 + $0x40] sm:$0xff] %vm1335, %v3576
        %3664 = vst.msk [vmem:[#allocation3 + $0x48] sm:$0xff] %vm1335, %v3578
        %3665 = vst.msk [vmem:[#allocation3 + $0x50] sm:$0xff] %vm1335, %v3580
        %3666 = vst.msk [vmem:[#allocation3 + $0x58] sm:$0xff] %vm1335, %v3582
        %3667 = vst.msk [vmem:[#allocation3 + $0x60] sm:$0xff] %vm1335, %v3584
        %3668 = vst.msk [vmem:[#allocation3 + $0x68] sm:$0xff] %vm1335, %v3586
        %3669 = vst.msk [vmem:[#allocation3 + $0x70] sm:$0xff] %vm1335, %v3588
        %3670 = vst.msk [vmem:[#allocation3 + $0x78] sm:$0xff] %vm1335, %v3590
        %3671 = vst.msk [vmem:[#allocation3 + $0x80] sm:$0xff] %vm1335, %v3592
        %3672 = vst.msk [vmem:[#allocation3 + $0x88] sm:$0xff] %vm1335, %v3594
        %3673 = vst.msk [vmem:[#allocation3 + $0x90] sm:$0xff] %vm1335, %v3596
        %3674 = vst.msk [vmem:[#allocation3 + $0x98] sm:$0xff] %vm1335, %v3598
        %3675 = vst.msk [vmem:[#allocation3 + $0xa0] sm:$0xff] %vm1335, %v3600
        %3676 = vst.msk [vmem:[#allocation3 + $0xa8] sm:$0xff] %vm1335, %v3602
        %3677 = vst.msk [vmem:[#allocation3 + $0xb0] sm:$0xff] %vm1335, %v3604
        %3678 = vst.msk [vmem:[#allocation3 + $0xb8] sm:$0xff] %vm1335, %v3606
        %3679 = vst.msk [vmem:[#allocation3 + $0xc0] sm:$0xff] %vm1335, %v3608
        %3680 = vst.msk [vmem:[#allocation3 + $0xc8] sm:$0xff] %vm1335, %v3610
        %3681 = vst.msk [vmem:[#allocation3 + $0xd0] sm:$0xff] %vm1335, %v3612
        %3682 = vst.msk [vmem:[#allocation3 + $0xd8] sm:$0xff] %vm1335, %v3614
        %3683 = vst.msk [vmem:[#allocation3 + $0xe0] sm:$0xff] %vm1335, %v3616
        %3684 = vst.msk [vmem:[#allocation3 + $0xe8] sm:$0xff] %vm1335, %v3618
        %3685 = vst.msk [vmem:[#allocation3 + $0xf0] sm:$0xff] %vm1335, %v3620
        %3686 = vst.msk [vmem:[#allocation3 + $0xf8] sm:$0xff] %vm1335, %v3622
        %v3687 = vld [vmem:[%s323] sm:$0xff]
        %v3688 = vld [vmem:[%s323 + $0x8] sm:$0xff]
        %v3689 = vld [vmem:[%s323 + $0x18] sm:$0xff]
        %v3690 = vld [vmem:[%s323 + $0x20] sm:$0xff]
        %v3691 = vld [vmem:[%s323 + $0x30] sm:$0xff]
        %v3692 = vld [vmem:[%s323 + $0x38] sm:$0xff]
        %v3693 = vld [vmem:[%s323 + $0x48] sm:$0xff]
        %v3694 = vld [vmem:[%s323 + $0x50] sm:$0xff]
        %v3695 = vld [vmem:[%s323 + $0x60] sm:$0xff]
        %v3696 = vld [vmem:[%s323 + $0x68] sm:$0xff]
        %v3697 = vld [vmem:[%s323 + $0x78] sm:$0xff]
        %v3698 = vld [vmem:[%s323 + $0x80] sm:$0xff]
        %v3699 = vld [vmem:[%s323 + $0x90] sm:$0xff]
        %v3700 = vld [vmem:[%s323 + $0x98] sm:$0xff]
        %v3701 = vld [vmem:[%s323 + $0xa8] sm:$0xff]
        %v3702 = vld [vmem:[%s323 + $0xb0] sm:$0xff]
        %v3703 = vld [vmem:[%s323 + $0xc0] sm:$0xff]
        %v3704 = vld [vmem:[%s323 + $0xc8] sm:$0xff]
        %v3705 = vld [vmem:[%s323 + $0xd8] sm:$0xff]
        %v3706 = vld [vmem:[%s323 + $0xe0] sm:$0xff]
        %v3707 = vld [vmem:[%s323 + $0xf0] sm:$0xff]
        %v3708 = vld [vmem:[%s323 + $0xf8] sm:$0xff]
        %v3709 = vld [vmem:[%s323 + $0x108] sm:$0xff]
        %v3710 = vld [vmem:[%s323 + $0x110] sm:$0xff]
        %v3711 = vld [vmem:[%s323 + $0x120] sm:$0xff]
        %v3712 = vld [vmem:[%s323 + $0x128] sm:$0xff]
        %v3713 = vld [vmem:[%s323 + $0x138] sm:$0xff]
        %v3714 = vld [vmem:[%s323 + $0x140] sm:$0xff]
        %v3715 = vld [vmem:[%s323 + $0x150] sm:$0xff]
        %v3716 = vld [vmem:[%s323 + $0x158] sm:$0xff]
        %v3717 = vld [vmem:[%s323 + $0x168] sm:$0xff]
        %v3718 = vld [vmem:[%s323 + $0x170] sm:$0xff]
        %3751 = vrot.lane.b32.xlu0 %v3687, 24
        %v3752 = vpop.permute.xlu0 %3751
        %3753 = vrot.lane.b32.xlu0 %v3688, 24
        %v3754 = vpop.permute.xlu0 %3753
        %3755 = vrot.lane.b32.xlu0 %v3689, 24
        %v3756 = vpop.permute.xlu0 %3755
        %3757 = vrot.lane.b32.xlu0 %v3690, 24
        %v3758 = vpop.permute.xlu0 %3757
        %3759 = vrot.lane.b32.xlu0 %v3691, 24
        %v3760 = vpop.permute.xlu0 %3759
        %3761 = vrot.lane.b32.xlu0 %v3692, 24
        %v3762 = vpop.permute.xlu0 %3761
        %3763 = vrot.lane.b32.xlu0 %v3693, 24
        %v3764 = vpop.permute.xlu0 %3763
        %3765 = vrot.lane.b32.xlu0 %v3694, 24
        %v3766 = vpop.permute.xlu0 %3765
        %3767 = vrot.lane.b32.xlu0 %v3695, 24
        %v3768 = vpop.permute.xlu0 %3767
        %3769 = vrot.lane.b32.xlu0 %v3696, 24
        %v3770 = vpop.permute.xlu0 %3769
        %3771 = vrot.lane.b32.xlu0 %v3697, 24
        %v3772 = vpop.permute.xlu0 %3771
        %3773 = vrot.lane.b32.xlu0 %v3698, 24
        %v3774 = vpop.permute.xlu0 %3773
        %3775 = vrot.lane.b32.xlu0 %v3699, 24
        %v3776 = vpop.permute.xlu0 %3775
        %3777 = vrot.lane.b32.xlu0 %v3700, 24
        %v3778 = vpop.permute.xlu0 %3777
        %3779 = vrot.lane.b32.xlu0 %v3701, 24
        %v3780 = vpop.permute.xlu0 %3779
        %3781 = vrot.lane.b32.xlu0 %v3702, 24
        %v3782 = vpop.permute.xlu0 %3781
        %3783 = vrot.lane.b32.xlu0 %v3703, 24
        %v3784 = vpop.permute.xlu0 %3783
        %3785 = vrot.lane.b32.xlu0 %v3704, 24
        %v3786 = vpop.permute.xlu0 %3785
        %3787 = vrot.lane.b32.xlu0 %v3705, 24
        %v3788 = vpop.permute.xlu0 %3787
        %3789 = vrot.lane.b32.xlu0 %v3706, 24
        %v3790 = vpop.permute.xlu0 %3789
        %3791 = vrot.lane.b32.xlu0 %v3707, 24
        %v3792 = vpop.permute.xlu0 %3791
        %3793 = vrot.lane.b32.xlu0 %v3708, 24
        %v3794 = vpop.permute.xlu0 %3793
        %3795 = vrot.lane.b32.xlu0 %v3709, 24
        %v3796 = vpop.permute.xlu0 %3795
        %3797 = vrot.lane.b32.xlu0 %v3710, 24
        %v3798 = vpop.permute.xlu0 %3797
        %3799 = vrot.lane.b32.xlu0 %v3711, 24
        %v3800 = vpop.permute.xlu0 %3799
        %3801 = vrot.lane.b32.xlu0 %v3712, 24
        %v3802 = vpop.permute.xlu0 %3801
        %3803 = vrot.lane.b32.xlu0 %v3713, 24
        %v3804 = vpop.permute.xlu0 %3803
        %3805 = vrot.lane.b32.xlu0 %v3714, 24
        %v3806 = vpop.permute.xlu0 %3805
        %3807 = vrot.lane.b32.xlu0 %v3715, 24
        %v3808 = vpop.permute.xlu0 %3807
        %3809 = vrot.lane.b32.xlu0 %v3716, 24
        %v3810 = vpop.permute.xlu0 %3809
        %3811 = vrot.lane.b32.xlu0 %v3717, 24
        %v3812 = vpop.permute.xlu0 %3811
        %3813 = vrot.lane.b32.xlu0 %v3718, 24
        %v3814 = vpop.permute.xlu0 %3813
        %3847 = vst.msk [vmem:[#allocation3] sm:$0xff] %vm1528, %v3752
        %3848 = vst.msk [vmem:[#allocation3 + $0x8] sm:$0xff] %vm1528, %v3754
        %3849 = vst.msk [vmem:[#allocation3 + $0x10] sm:$0xff] %vm1528, %v3756
        %3850 = vst.msk [vmem:[#allocation3 + $0x18] sm:$0xff] %vm1528, %v3758
        %3851 = vst.msk [vmem:[#allocation3 + $0x20] sm:$0xff] %vm1528, %v3760
        %3852 = vst.msk [vmem:[#allocation3 + $0x28] sm:$0xff] %vm1528, %v3762
        %3853 = vst.msk [vmem:[#allocation3 + $0x30] sm:$0xff] %vm1528, %v3764
        %3854 = vst.msk [vmem:[#allocation3 + $0x38] sm:$0xff] %vm1528, %v3766
        %3855 = vst.msk [vmem:[#allocation3 + $0x40] sm:$0xff] %vm1528, %v3768
        %3856 = vst.msk [vmem:[#allocation3 + $0x48] sm:$0xff] %vm1528, %v3770
        %3857 = vst.msk [vmem:[#allocation3 + $0x50] sm:$0xff] %vm1528, %v3772
        %3858 = vst.msk [vmem:[#allocation3 + $0x58] sm:$0xff] %vm1528, %v3774
        %3859 = vst.msk [vmem:[#allocation3 + $0x60] sm:$0xff] %vm1528, %v3776
        %3860 = vst.msk [vmem:[#allocation3 + $0x68] sm:$0xff] %vm1528, %v3778
        %3861 = vst.msk [vmem:[#allocation3 + $0x70] sm:$0xff] %vm1528, %v3780
        %3862 = vst.msk [vmem:[#allocation3 + $0x78] sm:$0xff] %vm1528, %v3782
        %3863 = vst.msk [vmem:[#allocation3 + $0x80] sm:$0xff] %vm1528, %v3784
        %3864 = vst.msk [vmem:[#allocation3 + $0x88] sm:$0xff] %vm1528, %v3786
        %3865 = vst.msk [vmem:[#allocation3 + $0x90] sm:$0xff] %vm1528, %v3788
        %3866 = vst.msk [vmem:[#allocation3 + $0x98] sm:$0xff] %vm1528, %v3790
        %3867 = vst.msk [vmem:[#allocation3 + $0xa0] sm:$0xff] %vm1528, %v3792
        %3868 = vst.msk [vmem:[#allocation3 + $0xa8] sm:$0xff] %vm1528, %v3794
        %3869 = vst.msk [vmem:[#allocation3 + $0xb0] sm:$0xff] %vm1528, %v3796
        %3870 = vst.msk [vmem:[#allocation3 + $0xb8] sm:$0xff] %vm1528, %v3798
        %3871 = vst.msk [vmem:[#allocation3 + $0xc0] sm:$0xff] %vm1528, %v3800
        %3872 = vst.msk [vmem:[#allocation3 + $0xc8] sm:$0xff] %vm1528, %v3802
        %3873 = vst.msk [vmem:[#allocation3 + $0xd0] sm:$0xff] %vm1528, %v3804
        %3874 = vst.msk [vmem:[#allocation3 + $0xd8] sm:$0xff] %vm1528, %v3806
        %3875 = vst.msk [vmem:[#allocation3 + $0xe0] sm:$0xff] %vm1528, %v3808
        %3876 = vst.msk [vmem:[#allocation3 + $0xe8] sm:$0xff] %vm1528, %v3810
        %3877 = vst.msk [vmem:[#allocation3 + $0xf0] sm:$0xff] %vm1528, %v3812
        %3878 = vst.msk [vmem:[#allocation3 + $0xf8] sm:$0xff] %vm1528, %v3814
        %v3879 = vld [vmem:[%s323 + $0x1] sm:$0xff]
        %v3880 = vld [vmem:[%s323 + $0x9] sm:$0xff]
        %v3881 = vld [vmem:[%s323 + $0x19] sm:$0xff]
        %v3882 = vld [vmem:[%s323 + $0x21] sm:$0xff]
        %v3883 = vld [vmem:[%s323 + $0x31] sm:$0xff]
        %v3884 = vld [vmem:[%s323 + $0x39] sm:$0xff]
        %v3885 = vld [vmem:[%s323 + $0x49] sm:$0xff]
        %v3886 = vld [vmem:[%s323 + $0x51] sm:$0xff]
        %v3887 = vld [vmem:[%s323 + $0x61] sm:$0xff]
        %v3888 = vld [vmem:[%s323 + $0x69] sm:$0xff]
        %v3889 = vld [vmem:[%s323 + $0x79] sm:$0xff]
        %v3890 = vld [vmem:[%s323 + $0x81] sm:$0xff]
        %v3891 = vld [vmem:[%s323 + $0x91] sm:$0xff]
        %v3892 = vld [vmem:[%s323 + $0x99] sm:$0xff]
        %v3893 = vld [vmem:[%s323 + $0xa9] sm:$0xff]
        %v3894 = vld [vmem:[%s323 + $0xb1] sm:$0xff]
        %v3895 = vld [vmem:[%s323 + $0xc1] sm:$0xff]
        %v3896 = vld [vmem:[%s323 + $0xc9] sm:$0xff]
        %v3897 = vld [vmem:[%s323 + $0xd9] sm:$0xff]
        %v3898 = vld [vmem:[%s323 + $0xe1] sm:$0xff]
        %v3899 = vld [vmem:[%s323 + $0xf1] sm:$0xff]
        %v3900 = vld [vmem:[%s323 + $0xf9] sm:$0xff]
        %v3901 = vld [vmem:[%s323 + $0x109] sm:$0xff]
        %v3902 = vld [vmem:[%s323 + $0x111] sm:$0xff]
        %v3903 = vld [vmem:[%s323 + $0x121] sm:$0xff]
        %v3904 = vld [vmem:[%s323 + $0x129] sm:$0xff]
        %v3905 = vld [vmem:[%s323 + $0x139] sm:$0xff]
        %v3906 = vld [vmem:[%s323 + $0x141] sm:$0xff]
        %v3907 = vld [vmem:[%s323 + $0x151] sm:$0xff]
        %v3908 = vld [vmem:[%s323 + $0x159] sm:$0xff]
        %v3909 = vld [vmem:[%s323 + $0x169] sm:$0xff]
        %v3910 = vld [vmem:[%s323 + $0x171] sm:$0xff]
        %3943 = vrot.lane.b32.xlu0 %v3879, 28
        %v3944 = vpop.permute.xlu0 %3943
        %3945 = vrot.lane.b32.xlu0 %v3880, 28
        %v3946 = vpop.permute.xlu0 %3945
        %3947 = vrot.lane.b32.xlu0 %v3881, 28
        %v3948 = vpop.permute.xlu0 %3947
        %3949 = vrot.lane.b32.xlu0 %v3882, 28
        %v3950 = vpop.permute.xlu0 %3949
        %3951 = vrot.lane.b32.xlu0 %v3883, 28
        %v3952 = vpop.permute.xlu0 %3951
        %3953 = vrot.lane.b32.xlu0 %v3884, 28
        %v3954 = vpop.permute.xlu0 %3953
        %3955 = vrot.lane.b32.xlu0 %v3885, 28
        %v3956 = vpop.permute.xlu0 %3955
        %3957 = vrot.lane.b32.xlu0 %v3886, 28
        %v3958 = vpop.permute.xlu0 %3957
        %3959 = vrot.lane.b32.xlu0 %v3887, 28
        %v3960 = vpop.permute.xlu0 %3959
        %3961 = vrot.lane.b32.xlu0 %v3888, 28
        %v3962 = vpop.permute.xlu0 %3961
        %3963 = vrot.lane.b32.xlu0 %v3889, 28
        %v3964 = vpop.permute.xlu0 %3963
        %3965 = vrot.lane.b32.xlu0 %v3890, 28
        %v3966 = vpop.permute.xlu0 %3965
        %3967 = vrot.lane.b32.xlu0 %v3891, 28
        %v3968 = vpop.permute.xlu0 %3967
        %3969 = vrot.lane.b32.xlu0 %v3892, 28
        %v3970 = vpop.permute.xlu0 %3969
        %3971 = vrot.lane.b32.xlu0 %v3893, 28
        %v3972 = vpop.permute.xlu0 %3971
        %3973 = vrot.lane.b32.xlu0 %v3894, 28
        %v3974 = vpop.permute.xlu0 %3973
        %3975 = vrot.lane.b32.xlu0 %v3895, 28
        %v3976 = vpop.permute.xlu0 %3975
        %3977 = vrot.lane.b32.xlu0 %v3896, 28
        %v3978 = vpop.permute.xlu0 %3977
        %3979 = vrot.lane.b32.xlu0 %v3897, 28
        %v3980 = vpop.permute.xlu0 %3979
        %3981 = vrot.lane.b32.xlu0 %v3898, 28
        %v3982 = vpop.permute.xlu0 %3981
        %3983 = vrot.lane.b32.xlu0 %v3899, 28
        %v3984 = vpop.permute.xlu0 %3983
        %3985 = vrot.lane.b32.xlu0 %v3900, 28
        %v3986 = vpop.permute.xlu0 %3985
        %3987 = vrot.lane.b32.xlu0 %v3901, 28
        %v3988 = vpop.permute.xlu0 %3987
        %3989 = vrot.lane.b32.xlu0 %v3902, 28
        %v3990 = vpop.permute.xlu0 %3989
        %3991 = vrot.lane.b32.xlu0 %v3903, 28
        %v3992 = vpop.permute.xlu0 %3991
        %3993 = vrot.lane.b32.xlu0 %v3904, 28
        %v3994 = vpop.permute.xlu0 %3993
        %3995 = vrot.lane.b32.xlu0 %v3905, 28
        %v3996 = vpop.permute.xlu0 %3995
        %3997 = vrot.lane.b32.xlu0 %v3906, 28
        %v3998 = vpop.permute.xlu0 %3997
        %3999 = vrot.lane.b32.xlu0 %v3907, 28
        %v4000 = vpop.permute.xlu0 %3999
        %4001 = vrot.lane.b32.xlu0 %v3908, 28
        %v4002 = vpop.permute.xlu0 %4001
        %4003 = vrot.lane.b32.xlu0 %v3909, 28
        %v4004 = vpop.permute.xlu0 %4003
        %4005 = vrot.lane.b32.xlu0 %v3910, 28
        %v4006 = vpop.permute.xlu0 %4005
        %4039 = vst.msk [vmem:[#allocation3] sm:$0xff] %vm1721, %v3944
        %4040 = vst.msk [vmem:[#allocation3 + $0x8] sm:$0xff] %vm1721, %v3946
        %4041 = vst.msk [vmem:[#allocation3 + $0x10] sm:$0xff] %vm1721, %v3948
        %4042 = vst.msk [vmem:[#allocation3 + $0x18] sm:$0xff] %vm1721, %v3950
        %4043 = vst.msk [vmem:[#allocation3 + $0x20] sm:$0xff] %vm1721, %v3952
        %4044 = vst.msk [vmem:[#allocation3 + $0x28] sm:$0xff] %vm1721, %v3954
        %4045 = vst.msk [vmem:[#allocation3 + $0x30] sm:$0xff] %vm1721, %v3956
        %4046 = vst.msk [vmem:[#allocation3 + $0x38] sm:$0xff] %vm1721, %v3958
        %4047 = vst.msk [vmem:[#allocation3 + $0x40] sm:$0xff] %vm1721, %v3960
        %4048 = vst.msk [vmem:[#allocation3 + $0x48] sm:$0xff] %vm1721, %v3962
        %4049 = vst.msk [vmem:[#allocation3 + $0x50] sm:$0xff] %vm1721, %v3964
        %4050 = vst.msk [vmem:[#allocation3 + $0x58] sm:$0xff] %vm1721, %v3966
        %4051 = vst.msk [vmem:[#allocation3 + $0x60] sm:$0xff] %vm1721, %v3968
        %4052 = vst.msk [vmem:[#allocation3 + $0x68] sm:$0xff] %vm1721, %v3970
        %4053 = vst.msk [vmem:[#allocation3 + $0x70] sm:$0xff] %vm1721, %v3972
        %4054 = vst.msk [vmem:[#allocation3 + $0x78] sm:$0xff] %vm1721, %v3974
        %4055 = vst.msk [vmem:[#allocation3 + $0x80] sm:$0xff] %vm1721, %v3976
        %4056 = vst.msk [vmem:[#allocation3 + $0x88] sm:$0xff] %vm1721, %v3978
        %4057 = vst.msk [vmem:[#allocation3 + $0x90] sm:$0xff] %vm1721, %v3980
        %4058 = vst.msk [vmem:[#allocation3 + $0x98] sm:$0xff] %vm1721, %v3982
        %4059 = vst.msk [vmem:[#allocation3 + $0xa0] sm:$0xff] %vm1721, %v3984
        %4060 = vst.msk [vmem:[#allocation3 + $0xa8] sm:$0xff] %vm1721, %v3986
        %4061 = vst.msk [vmem:[#allocation3 + $0xb0] sm:$0xff] %vm1721, %v3988
        %4062 = vst.msk [vmem:[#allocation3 + $0xb8] sm:$0xff] %vm1721, %v3990
        %4063 = vst.msk [vmem:[#allocation3 + $0xc0] sm:$0xff] %vm1721, %v3992
        %4064 = vst.msk [vmem:[#allocation3 + $0xc8] sm:$0xff] %vm1721, %v3994
        %4065 = vst.msk [vmem:[#allocation3 + $0xd0] sm:$0xff] %vm1721, %v3996
        %4066 = vst.msk [vmem:[#allocation3 + $0xd8] sm:$0xff] %vm1721, %v3998
        %4067 = vst.msk [vmem:[#allocation3 + $0xe0] sm:$0xff] %vm1721, %v4000
        %4068 = vst.msk [vmem:[#allocation3 + $0xe8] sm:$0xff] %vm1721, %v4002
        %4069 = vst.msk [vmem:[#allocation3 + $0xf0] sm:$0xff] %vm1721, %v4004
        %4070 = vst.msk [vmem:[#allocation3 + $0xf8] sm:$0xff] %vm1721, %v4006
        %v4071 = vld [vmem:[%s323 + $0x2] sm:$0xff]
        %v4072 = vld [vmem:[%s323 + $0xa] sm:$0xff]
        %v4073 = vld [vmem:[%s323 + $0x1a] sm:$0xff]
        %v4074 = vld [vmem:[%s323 + $0x22] sm:$0xff]
        %v4075 = vld [vmem:[%s323 + $0x32] sm:$0xff]
        %v4076 = vld [vmem:[%s323 + $0x3a] sm:$0xff]
        %v4077 = vld [vmem:[%s323 + $0x4a] sm:$0xff]
        %v4078 = vld [vmem:[%s323 + $0x52] sm:$0xff]
        %v4079 = vld [vmem:[%s323 + $0x62] sm:$0xff]
        %v4080 = vld [vmem:[%s323 + $0x6a] sm:$0xff]
        %v4081 = vld [vmem:[%s323 + $0x7a] sm:$0xff]
        %v4082 = vld [vmem:[%s323 + $0x82] sm:$0xff]
        %v4083 = vld [vmem:[%s323 + $0x92] sm:$0xff]
        %v4084 = vld [vmem:[%s323 + $0x9a] sm:$0xff]
        %v4085 = vld [vmem:[%s323 + $0xaa] sm:$0xff]
        %v4086 = vld [vmem:[%s323 + $0xb2] sm:$0xff]
        %v4087 = vld [vmem:[%s323 + $0xc2] sm:$0xff]
        %v4088 = vld [vmem:[%s323 + $0xca] sm:$0xff]
        %v4089 = vld [vmem:[%s323 + $0xda] sm:$0xff]
        %v4090 = vld [vmem:[%s323 + $0xe2] sm:$0xff]
        %v4091 = vld [vmem:[%s323 + $0xf2] sm:$0xff]
        %v4092 = vld [vmem:[%s323 + $0xfa] sm:$0xff]
        %v4093 = vld [vmem:[%s323 + $0x10a] sm:$0xff]
        %v4094 = vld [vmem:[%s323 + $0x112] sm:$0xff]
        %v4095 = vld [vmem:[%s323 + $0x122] sm:$0xff]
        %v4096 = vld [vmem:[%s323 + $0x12a] sm:$0xff]
        %v4097 = vld [vmem:[%s323 + $0x13a] sm:$0xff]
        %v4098 = vld [vmem:[%s323 + $0x142] sm:$0xff]
        %v4099 = vld [vmem:[%s323 + $0x152] sm:$0xff]
        %v4100 = vld [vmem:[%s323 + $0x15a] sm:$0xff]
        %v4101 = vld [vmem:[%s323 + $0x16a] sm:$0xff]
        %v4102 = vld [vmem:[%s323 + $0x172] sm:$0xff]
        %4135 = vrot.lane.b32.xlu0 %v4071, 32
        %v4136 = vpop.permute.xlu0 %4135
        %4137 = vrot.lane.b32.xlu0 %v4072, 32
        %v4138 = vpop.permute.xlu0 %4137
        %4139 = vrot.lane.b32.xlu0 %v4073, 32
        %v4140 = vpop.permute.xlu0 %4139
        %4141 = vrot.lane.b32.xlu0 %v4074, 32
        %v4142 = vpop.permute.xlu0 %4141
        %4143 = vrot.lane.b32.xlu0 %v4075, 32
        %v4144 = vpop.permute.xlu0 %4143
        %4145 = vrot.lane.b32.xlu0 %v4076, 32
        %v4146 = vpop.permute.xlu0 %4145
        %4147 = vrot.lane.b32.xlu0 %v4077, 32
        %v4148 = vpop.permute.xlu0 %4147
        %4149 = vrot.lane.b32.xlu0 %v4078, 32
        %v4150 = vpop.permute.xlu0 %4149
        %4151 = vrot.lane.b32.xlu0 %v4079, 32
        %v4152 = vpop.permute.xlu0 %4151
        %4153 = vrot.lane.b32.xlu0 %v4080, 32
        %v4154 = vpop.permute.xlu0 %4153
        %4155 = vrot.lane.b32.xlu0 %v4081, 32
        %v4156 = vpop.permute.xlu0 %4155
        %4157 = vrot.lane.b32.xlu0 %v4082, 32
        %v4158 = vpop.permute.xlu0 %4157
        %4159 = vrot.lane.b32.xlu0 %v4083, 32
        %v4160 = vpop.permute.xlu0 %4159
        %4161 = vrot.lane.b32.xlu0 %v4084, 32
        %v4162 = vpop.permute.xlu0 %4161
        %4163 = vrot.lane.b32.xlu0 %v4085, 32
        %v4164 = vpop.permute.xlu0 %4163
        %4165 = vrot.lane.b32.xlu0 %v4086, 32
        %v4166 = vpop.permute.xlu0 %4165
        %4167 = vrot.lane.b32.xlu0 %v4087, 32
        %v4168 = vpop.permute.xlu0 %4167
        %4169 = vrot.lane.b32.xlu0 %v4088, 32
        %v4170 = vpop.permute.xlu0 %4169
        %4171 = vrot.lane.b32.xlu0 %v4089, 32
        %v4172 = vpop.permute.xlu0 %4171
        %4173 = vrot.lane.b32.xlu0 %v4090, 32
        %v4174 = vpop.permute.xlu0 %4173
        %4175 = vrot.lane.b32.xlu0 %v4091, 32
        %v4176 = vpop.permute.xlu0 %4175
        %4177 = vrot.lane.b32.xlu0 %v4092, 32
        %v4178 = vpop.permute.xlu0 %4177
        %4179 = vrot.lane.b32.xlu0 %v4093, 32
        %v4180 = vpop.permute.xlu0 %4179
        %4181 = vrot.lane.b32.xlu0 %v4094, 32
        %v4182 = vpop.permute.xlu0 %4181
        %4183 = vrot.lane.b32.xlu0 %v4095, 32
        %v4184 = vpop.permute.xlu0 %4183
        %4185 = vrot.lane.b32.xlu0 %v4096, 32
        %v4186 = vpop.permute.xlu0 %4185
        %4187 = vrot.lane.b32.xlu0 %v4097, 32
        %v4188 = vpop.permute.xlu0 %4187
        %4189 = vrot.lane.b32.xlu0 %v4098, 32
        %v4190 = vpop.permute.xlu0 %4189
        %4191 = vrot.lane.b32.xlu0 %v4099, 32
        %v4192 = vpop.permute.xlu0 %4191
        %4193 = vrot.lane.b32.xlu0 %v4100, 32
        %v4194 = vpop.permute.xlu0 %4193
        %4195 = vrot.lane.b32.xlu0 %v4101, 32
        %v4196 = vpop.permute.xlu0 %4195
        %4197 = vrot.lane.b32.xlu0 %v4102, 32
        %v4198 = vpop.permute.xlu0 %4197
        %4231 = vst.msk [vmem:[#allocation3] sm:$0xff] %vm1914, %v4136
        %4232 = vst.msk [vmem:[#allocation3 + $0x8] sm:$0xff] %vm1914, %v4138
        %4233 = vst.msk [vmem:[#allocation3 + $0x10] sm:$0xff] %vm1914, %v4140
        %4234 = vst.msk [vmem:[#allocation3 + $0x18] sm:$0xff] %vm1914, %v4142
        %4235 = vst.msk [vmem:[#allocation3 + $0x20] sm:$0xff] %vm1914, %v4144
        %4236 = vst.msk [vmem:[#allocation3 + $0x28] sm:$0xff] %vm1914, %v4146
        %4237 = vst.msk [vmem:[#allocation3 + $0x30] sm:$0xff] %vm1914, %v4148
        %4238 = vst.msk [vmem:[#allocation3 + $0x38] sm:$0xff] %vm1914, %v4150
        %4239 = vst.msk [vmem:[#allocation3 + $0x40] sm:$0xff] %vm1914, %v4152
        %4240 = vst.msk [vmem:[#allocation3 + $0x48] sm:$0xff] %vm1914, %v4154
        %4241 = vst.msk [vmem:[#allocation3 + $0x50] sm:$0xff] %vm1914, %v4156
        %4242 = vst.msk [vmem:[#allocation3 + $0x58] sm:$0xff] %vm1914, %v4158
        %4243 = vst.msk [vmem:[#allocation3 + $0x60] sm:$0xff] %vm1914, %v4160
        %4244 = vst.msk [vmem:[#allocation3 + $0x68] sm:$0xff] %vm1914, %v4162
        %4245 = vst.msk [vmem:[#allocation3 + $0x70] sm:$0xff] %vm1914, %v4164
        %4246 = vst.msk [vmem:[#allocation3 + $0x78] sm:$0xff] %vm1914, %v4166
        %4247 = vst.msk [vmem:[#allocation3 + $0x80] sm:$0xff] %vm1914, %v4168
        %4248 = vst.msk [vmem:[#allocation3 + $0x88] sm:$0xff] %vm1914, %v4170
        %4249 = vst.msk [vmem:[#allocation3 + $0x90] sm:$0xff] %vm1914, %v4172
        %4250 = vst.msk [vmem:[#allocation3 + $0x98] sm:$0xff] %vm1914, %v4174
        %4251 = vst.msk [vmem:[#allocation3 + $0xa0] sm:$0xff] %vm1914, %v4176
        %4252 = vst.msk [vmem:[#allocation3 + $0xa8] sm:$0xff] %vm1914, %v4178
        %4253 = vst.msk [vmem:[#allocation3 + $0xb0] sm:$0xff] %vm1914, %v4180
        %4254 = vst.msk [vmem:[#allocation3 + $0xb8] sm:$0xff] %vm1914, %v4182
        %4255 = vst.msk [vmem:[#allocation3 + $0xc0] sm:$0xff] %vm1914, %v4184
        %4256 = vst.msk [vmem:[#allocation3 + $0xc8] sm:$0xff] %vm1914, %v4186
        %4257 = vst.msk [vmem:[#allocation3 + $0xd0] sm:$0xff] %vm1914, %v4188
        %4258 = vst.msk [vmem:[#allocation3 + $0xd8] sm:$0xff] %vm1914, %v4190
        %4259 = vst.msk [vmem:[#allocation3 + $0xe0] sm:$0xff] %vm1914, %v4192
        %4260 = vst.msk [vmem:[#allocation3 + $0xe8] sm:$0xff] %vm1914, %v4194
        %4261 = vst.msk [vmem:[#allocation3 + $0xf0] sm:$0xff] %vm1914, %v4196
        %4262 = vst.msk [vmem:[#allocation3 + $0xf8] sm:$0xff] %vm1914, %v4198
        %v4263 = vld [vmem:[#allocation3] sm:$0xff]
        %v4264 = vld [vmem:[#allocation3 + $0x8] sm:$0xff]
        %v4265 = vld [vmem:[#allocation3 + $0x10] sm:$0xff]
        %v4266 = vld [vmem:[#allocation3 + $0x18] sm:$0xff]
        %v4267 = vld [vmem:[#allocation3 + $0x20] sm:$0xff]
        %v4268 = vld [vmem:[#allocation3 + $0x28] sm:$0xff]
        %v4269 = vld [vmem:[#allocation3 + $0x30] sm:$0xff]
        %v4270 = vld [vmem:[#allocation3 + $0x38] sm:$0xff]
        %v4271 = vld [vmem:[#allocation3 + $0x40] sm:$0xff]
        %v4272 = vld [vmem:[#allocation3 + $0x48] sm:$0xff]
        %v4273 = vld [vmem:[#allocation3 + $0x50] sm:$0xff]
        %v4274 = vld [vmem:[#allocation3 + $0x58] sm:$0xff]
        %v4275 = vld [vmem:[#allocation3 + $0x60] sm:$0xff]
        %v4276 = vld [vmem:[#allocation3 + $0x68] sm:$0xff]
        %v4277 = vld [vmem:[#allocation3 + $0x70] sm:$0xff]
        %v4278 = vld [vmem:[#allocation3 + $0x78] sm:$0xff]
        %v4279 = vld [vmem:[#allocation3 + $0x80] sm:$0xff]
        %v4280 = vld [vmem:[#allocation3 + $0x88] sm:$0xff]
        %v4281 = vld [vmem:[#allocation3 + $0x90] sm:$0xff]
        %v4282 = vld [vmem:[#allocation3 + $0x98] sm:$0xff]
        %v4283 = vld [vmem:[#allocation3 + $0xa0] sm:$0xff]
        %v4284 = vld [vmem:[#allocation3 + $0xa8] sm:$0xff]
        %v4285 = vld [vmem:[#allocation3 + $0xb0] sm:$0xff]
        %v4286 = vld [vmem:[#allocation3 + $0xb8] sm:$0xff]
        %v4287 = vld [vmem:[#allocation3 + $0xc0] sm:$0xff]
        %v4288 = vld [vmem:[#allocation3 + $0xc8] sm:$0xff]
        %v4289 = vld [vmem:[#allocation3 + $0xd0] sm:$0xff]
        %v4290 = vld [vmem:[#allocation3 + $0xd8] sm:$0xff]
        %v4291 = vld [vmem:[#allocation3 + $0xe0] sm:$0xff]
        %v4292 = vld [vmem:[#allocation3 + $0xe8] sm:$0xff]
        %v4293 = vld [vmem:[#allocation3 + $0xf0] sm:$0xff]
        %v4294 = vld [vmem:[#allocation3 + $0xf8] sm:$0xff]
        %v4295 = vld [vmem:[%s3] sm:$0xff]
        %v4296 = vld [vmem:[%s3 + $0x8] sm:$0xff]
        %v4297 = vld [vmem:[%s3 + $0x10] sm:$0xff]
        %v4298 = vld [vmem:[%s3 + $0x18] sm:$0xff]
        %v4299 = vld [vmem:[%s3 + $0x20] sm:$0xf]
        %v4300 = vld [vmem:[%s4] sm:$0x1]
        %v4302 = vlaneseq
        %v4303 = vshrl.u32 %v4302, 7
        %v4304 = vsub.s32 0, %v4303
        %v4305 = vrot.slane %v4300, %v4304
        %v4308 = vsel %vm1991, %v4263, 0
        %v4311 = vsel %vm1991, %v4264, 0
        %v4314 = vsel %vm1991, %v4265, 0
        %v4317 = vsel %vm1991, %v4266, 0
        %v4320 = vsel %vm1991, %v4267, 0
        %v4323 = vsel %vm1991, %v4268, 0
        %v4326 = vsel %vm1991, %v4269, 0
        %v4329 = vsel %vm1991, %v4270, 0
        %v4332 = vsel %vm1991, %v4271, 0
        %v4335 = vsel %vm1991, %v4272, 0
        %v4338 = vsel %vm1991, %v4273, 0
        %v4341 = vsel %vm1991, %v4274, 0
        %v4344 = vsel %vm1991, %v4275, 0
        %v4347 = vsel %vm1991, %v4276, 0
        %v4350 = vsel %vm1991, %v4277, 0
        %v4353 = vsel %vm1991, %v4278, 0
        %v4356 = vsel %vm1991, %v4279, 0
        %v4359 = vsel %vm1991, %v4280, 0
        %v4362 = vsel %vm1991, %v4281, 0
        %v4365 = vsel %vm1991, %v4282, 0
        %v4368 = vsel %vm1991, %v4283, 0
        %v4371 = vsel %vm1991, %v4284, 0
        %v4374 = vsel %vm1991, %v4285, 0
        %v4377 = vsel %vm1991, %v4286, 0
        %v4380 = vsel %vm1991, %v4287, 0
        %v4383 = vsel %vm1991, %v4288, 0
        %v4386 = vsel %vm1991, %v4289, 0
        %v4389 = vsel %vm1991, %v4290, 0
        %v4392 = vsel %vm1991, %v4291, 0
        %v4395 = vsel %vm1991, %v4292, 0
        %v4398 = vsel %vm1991, %v4293, 0
        %v4401 = vsel %vm1991, %v4294, 0
        %v4404 = vsel %vm2088, %v4299, 0
        %4406 = vmatprep.subr.mxu0 0.0
        %4407 = vmatpush1.msra.mxu0 %v4295
        %4408 = vmatprep.subr.mxu0 0.0
        %4409 = vmatpush1.msra.mxu0 %v4296
        %4410 = vmatprep.subr.mxu0 0.0
        %4411 = vmatpush1.msra.mxu0 %v4297
        %4412 = vmatprep.subr.mxu0 0.0
        %4413 = vmatpush1.msra.mxu0 %v4298
        %4414 = vmatprep.subr.mxu0 0.0
        %4415 = vmatpush1.msra.mxu0 %v4404
        %4416 = vmatprep.subr.mxu0 0.0
        %4417 = vmatpush1.msra.mxu0 0.0
        %4418 = vmatprep.subr.mxu0 0.0
        %4419 = vmatpush1.msra.mxu0 0.0
        %4420 = vmatprep.subr.mxu0 0.0
        %4421 = vmatpush1.msra.mxu0 0.0
        %4422 = vmatprep.subr.mxu0 0.0
        %4423 = vmatpush1.msra.mxu0 0.0
        %4424 = vmatprep.subr.mxu0 0.0
        %4425 = vmatpush1.msra.mxu0 0.0
        %4426 = vmatprep.subr.mxu0 0.0
        %4427 = vmatpush1.msra.mxu0 0.0
        %4428 = vmatprep.subr.mxu0 0.0
        %4429 = vmatpush1.msra.mxu0 0.0
        %4430 = vmatprep.subr.mxu0 0.0
        %4431 = vmatpush1.msra.mxu0 0.0
        %4432 = vmatprep.subr.mxu0 0.0
        %4433 = vmatpush1.msra.mxu0 0.0
        %4434 = vmatprep.subr.mxu0 0.0
        %4435 = vmatpush1.msra.mxu0 0.0
        %4436 = vmatprep.subr.mxu0 0.0
        %4437 = vmatpush1.msra.mxu0 0.0
        %4438 = vmatprep.subr.mxu0 0.0
        %4439 = vmatpush1.msra.mxu0 0.0
        %4440 = vmatprep.subr.mxu0 0.0
        %4441 = vmatpush1.msra.mxu0 0.0
        %4442 = vmatprep.subr.mxu0 0.0
        %4443 = vmatpush1.msra.mxu0 0.0
        %4444 = vmatprep.subr.mxu0 0.0
        %4445 = vmatpush1.msra.mxu0 0.0
        %4446 = vmatprep.subr.mxu0 0.0
        %4447 = vmatpush1.msra.mxu0 0.0
        %4448 = vmatprep.subr.mxu0 0.0
        %4449 = vmatpush1.msra.mxu0 0.0
        %4450 = vmatprep.subr.mxu0 0.0
        %4451 = vmatpush1.msra.mxu0 0.0
        %4452 = vmatprep.subr.mxu0 0.0
        %4453 = vmatpush1.msra.mxu0 0.0
        %4454 = vmatprep.subr.mxu0 0.0
        %4455 = vmatpush1.msra.mxu0 0.0
        %4456 = vmatprep.subr.mxu0 0.0
        %4457 = vmatpush1.msra.mxu0 0.0
        %4458 = vmatprep.subr.mxu0 0.0
        %4459 = vmatpush1.msra.mxu0 0.0
        %4460 = vmatprep.subr.mxu0 0.0
        %4461 = vmatpush1.msra.mxu0 0.0
        %4462 = vmatprep.subr.mxu0 0.0
        %4463 = vmatpush1.msra.mxu0 0.0
        %4464 = vmatprep.subr.mxu0 0.0
        %4465 = vmatpush1.msra.mxu0 0.0
        %4466 = vmatprep.subr.mxu0 0.0
        %4467 = vmatpush1.msra.mxu0 0.0
        %4468 = vmatprep.subr.mxu0 0.0
        %4469 = vmatpush1.msra.mxu0 0.0
        %4470 = vmatprep.mubr.f32.mxu0 0.0
        %4471 = vmatmul.mubr.f32.gmra.mrb[0].mxu0 %v4308
        %v4472 = vpop.f32.mrb[0].mxu0
        %v4473 = vadd.f32 %v4305, %v4472
        %v4474 = vpop.f32.mrb[0].mxu0
        %4475 = vmatprep.mubr.f32.mxu0 0.0
        %4476 = vmatmul.mubr.f32.gmra.mrb[0].mxu0 %v4311
        %v4477 = vpop.f32.mrb[0].mxu0
        %v4478 = vadd.f32 %v4305, %v4477
        %v4479 = vpop.f32.mrb[0].mxu0
        %4480 = vmatprep.mubr.f32.mxu0 0.0
        %4481 = vmatmul.mubr.f32.gmra.mrb[0].mxu0 %v4314
        %v4482 = vpop.f32.mrb[0].mxu0
        %v4483 = vadd.f32 %v4305, %v4482
        %v4484 = vpop.f32.mrb[0].mxu0
        %4485 = vmatprep.mubr.f32.mxu0 0.0
        %4486 = vmatmul.mubr.f32.gmra.mrb[0].mxu0 %v4317
        %v4487 = vpop.f32.mrb[0].mxu0
        %v4488 = vadd.f32 %v4305, %v4487
        %v4489 = vpop.f32.mrb[0].mxu0
        %4490 = vmatprep.mubr.f32.mxu0 0.0
        %4491 = vmatmul.mubr.f32.gmra.mrb[0].mxu0 %v4320
        %v4492 = vpop.f32.mrb[0].mxu0
        %v4493 = vadd.f32 %v4305, %v4492
        %v4494 = vpop.f32.mrb[0].mxu0
        %4495 = vmatprep.mubr.f32.mxu0 0.0
        %4496 = vmatmul.mubr.f32.gmra.mrb[0].mxu0 %v4323
        %v4497 = vpop.f32.mrb[0].mxu0
        %v4498 = vadd.f32 %v4305, %v4497
        %v4499 = vpop.f32.mrb[0].mxu0
        %4500 = vmatprep.mubr.f32.mxu0 0.0
        %4501 = vmatmul.mubr.f32.gmra.mrb[0].mxu0 %v4326
        %v4502 = vpop.f32.mrb[0].mxu0
        %v4503 = vadd.f32 %v4305, %v4502
        %v4504 = vpop.f32.mrb[0].mxu0
        %4505 = vmatprep.mubr.f32.mxu0 0.0
        %4506 = vmatmul.mubr.f32.gmra.mrb[0].mxu0 %v4329
        %v4507 = vpop.f32.mrb[0].mxu0
        %v4508 = vadd.f32 %v4305, %v4507
        %v4509 = vpop.f32.mrb[0].mxu0
        %4510 = vmatprep.mubr.f32.mxu0 0.0
        %4511 = vmatmul.mubr.f32.gmra.mrb[0].mxu0 %v4332
        %v4512 = vpop.f32.mrb[0].mxu0
        %v4513 = vadd.f32 %v4305, %v4512
        %v4514 = vpop.f32.mrb[0].mxu0
        %4515 = vmatprep.mubr.f32.mxu0 0.0
        %4516 = vmatmul.mubr.f32.gmra.mrb[0].mxu0 %v4335
        %v4517 = vpop.f32.mrb[0].mxu0
        %v4518 = vadd.f32 %v4305, %v4517
        %v4519 = vpop.f32.mrb[0].mxu0
        %4520 = vmatprep.mubr.f32.mxu0 0.0
        %4521 = vmatmul.mubr.f32.gmra.mrb[0].mxu0 %v4338
        %v4522 = vpop.f32.mrb[0].mxu0
        %v4523 = vadd.f32 %v4305, %v4522
        %v4524 = vpop.f32.mrb[0].mxu0
        %4525 = vmatprep.mubr.f32.mxu0 0.0
        %4526 = vmatmul.mubr.f32.gmra.mrb[0].mxu0 %v4341
        %v4527 = vpop.f32.mrb[0].mxu0
        %v4528 = vadd.f32 %v4305, %v4527
        %v4529 = vpop.f32.mrb[0].mxu0
        %4530 = vmatprep.mubr.f32.mxu0 0.0
        %4531 = vmatmul.mubr.f32.gmra.mrb[0].mxu0 %v4344
        %v4532 = vpop.f32.mrb[0].mxu0
        %v4533 = vadd.f32 %v4305, %v4532
        %v4534 = vpop.f32.mrb[0].mxu0
        %4535 = vmatprep.mubr.f32.mxu0 0.0
        %4536 = vmatmul.mubr.f32.gmra.mrb[0].mxu0 %v4347
        %v4537 = vpop.f32.mrb[0].mxu0
        %v4538 = vadd.f32 %v4305, %v4537
        %v4539 = vpop.f32.mrb[0].mxu0
        %4540 = vmatprep.mubr.f32.mxu0 0.0
        %4541 = vmatmul.mubr.f32.gmra.mrb[0].mxu0 %v4350
        %v4542 = vpop.f32.mrb[0].mxu0
        %v4543 = vadd.f32 %v4305, %v4542
        %v4544 = vpop.f32.mrb[0].mxu0
        %4545 = vmatprep.mubr.f32.mxu0 0.0
        %4546 = vmatmul.mubr.f32.gmra.mrb[0].mxu0 %v4353
        %v4547 = vpop.f32.mrb[0].mxu0
        %v4548 = vadd.f32 %v4305, %v4547
        %v4549 = vpop.f32.mrb[0].mxu0
        %4550 = vmatprep.mubr.f32.mxu0 0.0
        %4551 = vmatmul.mubr.f32.gmra.mrb[0].mxu0 %v4356
        %v4552 = vpop.f32.mrb[0].mxu0
        %v4553 = vadd.f32 %v4305, %v4552
        %v4554 = vpop.f32.mrb[0].mxu0
        %4555 = vmatprep.mubr.f32.mxu0 0.0
        %4556 = vmatmul.mubr.f32.gmra.mrb[0].mxu0 %v4359
        %v4557 = vpop.f32.mrb[0].mxu0
        %v4558 = vadd.f32 %v4305, %v4557
        %v4559 = vpop.f32.mrb[0].mxu0
        %4560 = vmatprep.mubr.f32.mxu0 0.0
        %4561 = vmatmul.mubr.f32.gmra.mrb[0].mxu0 %v4362
        %v4562 = vpop.f32.mrb[0].mxu0
        %v4563 = vadd.f32 %v4305, %v4562
        %v4564 = vpop.f32.mrb[0].mxu0
        %4565 = vmatprep.mubr.f32.mxu0 0.0
        %4566 = vmatmul.mubr.f32.gmra.mrb[0].mxu0 %v4365
        %v4567 = vpop.f32.mrb[0].mxu0
        %v4568 = vadd.f32 %v4305, %v4567
        %v4569 = vpop.f32.mrb[0].mxu0
        %4570 = vmatprep.mubr.f32.mxu0 0.0
        %4571 = vmatmul.mubr.f32.gmra.mrb[0].mxu0 %v4368
        %v4572 = vpop.f32.mrb[0].mxu0
        %v4573 = vadd.f32 %v4305, %v4572
        %v4574 = vpop.f32.mrb[0].mxu0
        %4575 = vmatprep.mubr.f32.mxu0 0.0
        %4576 = vmatmul.mubr.f32.gmra.mrb[0].mxu0 %v4371
        %v4577 = vpop.f32.mrb[0].mxu0
        %v4578 = vadd.f32 %v4305, %v4577
        %v4579 = vpop.f32.mrb[0].mxu0
        %4580 = vmatprep.mubr.f32.mxu0 0.0
        %4581 = vmatmul.mubr.f32.gmra.mrb[0].mxu0 %v4374
        %v4582 = vpop.f32.mrb[0].mxu0
        %v4583 = vadd.f32 %v4305, %v4582
        %v4584 = vpop.f32.mrb[0].mxu0
        %4585 = vmatprep.mubr.f32.mxu0 0.0
        %4586 = vmatmul.mubr.f32.gmra.mrb[0].mxu0 %v4377
        %v4587 = vpop.f32.mrb[0].mxu0
        %v4588 = vadd.f32 %v4305, %v4587
        %v4589 = vpop.f32.mrb[0].mxu0
        %4590 = vmatprep.mubr.f32.mxu0 0.0
        %4591 = vmatmul.mubr.f32.gmra.mrb[0].mxu0 %v4380
        %v4592 = vpop.f32.mrb[0].mxu0
        %v4593 = vadd.f32 %v4305, %v4592
        %v4594 = vpop.f32.mrb[0].mxu0
        %4595 = vmatprep.mubr.f32.mxu0 0.0
        %4596 = vmatmul.mubr.f32.gmra.mrb[0].mxu0 %v4383
        %v4597 = vpop.f32.mrb[0].mxu0
        %v4598 = vadd.f32 %v4305, %v4597
        %v4599 = vpop.f32.mrb[0].mxu0
        %4600 = vmatprep.mubr.f32.mxu0 0.0
        %4601 = vmatmul.mubr.f32.gmra.mrb[0].mxu0 %v4386
        %v4602 = vpop.f32.mrb[0].mxu0
        %v4603 = vadd.f32 %v4305, %v4602
        %v4604 = vpop.f32.mrb[0].mxu0
        %4605 = vmatprep.mubr.f32.mxu0 0.0
        %4606 = vmatmul.mubr.f32.gmra.mrb[0].mxu0 %v4389
        %v4607 = vpop.f32.mrb[0].mxu0
        %v4608 = vadd.f32 %v4305, %v4607
        %v4609 = vpop.f32.mrb[0].mxu0
        %4610 = vmatprep.mubr.f32.mxu0 0.0
        %4611 = vmatmul.mubr.f32.gmra.mrb[0].mxu0 %v4392
        %v4612 = vpop.f32.mrb[0].mxu0
        %v4613 = vadd.f32 %v4305, %v4612
        %v4614 = vpop.f32.mrb[0].mxu0
        %4615 = vmatprep.mubr.f32.mxu0 0.0
        %4616 = vmatmul.mubr.f32.gmra.mrb[0].mxu0 %v4395
        %v4617 = vpop.f32.mrb[0].mxu0
        %v4618 = vadd.f32 %v4305, %v4617
        %v4619 = vpop.f32.mrb[0].mxu0
        %4620 = vmatprep.mubr.f32.mxu0 0.0
        %4621 = vmatmul.mubr.f32.gmra.mrb[0].mxu0 %v4398
        %v4622 = vpop.f32.mrb[0].mxu0
        %v4623 = vadd.f32 %v4305, %v4622
        %v4624 = vpop.f32.mrb[0].mxu0
        %4625 = vmatprep.mubr.f32.mxu0 0.0
        %4626 = vmatmul.mubr.f32.gmra.mrb[0].mxu0 %v4401
        %v4627 = vpop.f32.mrb[0].mxu0
        %v4628 = vadd.f32 %v4305, %v4627
        %v4629 = vpop.f32.mrb[0].mxu0
        %4630 = vdwg.mxu0
        %v4631 = vadd.f32 %v4473, %v4478
        %v4632 = vadd.f32 %v4631, %v4483
        %v4633 = vadd.f32 %v4632, %v4488
        %v4634 = vadd.f32 %v4633, %v4493
        %v4635 = vadd.f32 %v4634, %v4498
        %v4636 = vadd.f32 %v4635, %v4503
        %v4637 = vadd.f32 %v4636, %v4508
        %v4638 = vadd.f32 %v4637, %v4513
        %v4639 = vadd.f32 %v4638, %v4518
        %v4640 = vadd.f32 %v4639, %v4523
        %v4641 = vadd.f32 %v4640, %v4528
        %v4642 = vadd.f32 %v4641, %v4533
        %v4643 = vadd.f32 %v4642, %v4538
        %v4644 = vadd.f32 %v4643, %v4543
        %v4645 = vadd.f32 %v4644, %v4548
        %v4646 = vadd.f32 %v4645, %v4553
        %v4647 = vadd.f32 %v4646, %v4558
        %v4648 = vadd.f32 %v4647, %v4563
        %v4649 = vadd.f32 %v4648, %v4568
        %v4650 = vadd.f32 %v4649, %v4573
        %v4651 = vadd.f32 %v4650, %v4578
        %v4652 = vadd.f32 %v4651, %v4583
        %v4653 = vadd.f32 %v4652, %v4588
        %v4654 = vadd.f32 %v4653, %v4593
        %v4655 = vadd.f32 %v4654, %v4598
        %v4656 = vadd.f32 %v4655, %v4603
        %v4657 = vadd.f32 %v4656, %v4608
        %v4658 = vadd.f32 %v4657, %v4613
        %v4659 = vadd.f32 %v4658, %v4618
        %v4660 = vadd.f32 %v4659, %v4623
        %v4661 = vadd.f32 %v4660, %v4628
        %v4662 = vrot.slane %v4661, 4
        %v4663 = vadd.f32 %v4661, %v4662
        %v4664 = vrot.slane %v4663, 2
        %v4665 = vadd.f32 %v4663, %v4664
        %v4666 = vrot.slane %v4665, 1
        %v4667 = vadd.f32 %v4665, %v4666
        %v4668 = vmul.f32 %v4667, 0.00390625
        %v4669 = vsub.f32 %v4473, %v4668
        %v4670 = vsub.f32 %v4478, %v4668
        %v4671 = vsub.f32 %v4483, %v4668
        %v4672 = vsub.f32 %v4488, %v4668
        %v4673 = vsub.f32 %v4493, %v4668
        %v4674 = vsub.f32 %v4498, %v4668
        %v4675 = vsub.f32 %v4503, %v4668
        %v4676 = vsub.f32 %v4508, %v4668
        %v4677 = vsub.f32 %v4513, %v4668
        %v4678 = vsub.f32 %v4518, %v4668
        %v4679 = vsub.f32 %v4523, %v4668
        %v4680 = vsub.f32 %v4528, %v4668
        %v4681 = vsub.f32 %v4533, %v4668
        %v4682 = vsub.f32 %v4538, %v4668
        %v4683 = vsub.f32 %v4543, %v4668
        %v4684 = vsub.f32 %v4548, %v4668
        %v4685 = vsub.f32 %v4553, %v4668
        %v4686 = vsub.f32 %v4558, %v4668
        %v4687 = vsub.f32 %v4563, %v4668
        %v4688 = vsub.f32 %v4568, %v4668
        %v4689 = vsub.f32 %v4573, %v4668
        %v4690 = vsub.f32 %v4578, %v4668
        %v4691 = vsub.f32 %v4583, %v4668
        %v4692 = vsub.f32 %v4588, %v4668
        %v4693 = vsub.f32 %v4593, %v4668
        %v4694 = vsub.f32 %v4598, %v4668
        %v4695 = vsub.f32 %v4603, %v4668
        %v4696 = vsub.f32 %v4608, %v4668
        %v4697 = vsub.f32 %v4613, %v4668
        %v4698 = vsub.f32 %v4618, %v4668
        %v4699 = vsub.f32 %v4623, %v4668
        %v4700 = vsub.f32 %v4628, %v4668
        %v4701 = vmul.f32 %v4669, %v4669
        %v4702 = vmul.f32 %v4670, %v4670
        %v4703 = vmul.f32 %v4671, %v4671
        %v4704 = vmul.f32 %v4672, %v4672
        %v4705 = vmul.f32 %v4673, %v4673
        %v4706 = vmul.f32 %v4674, %v4674
        %v4707 = vmul.f32 %v4675, %v4675
        %v4708 = vmul.f32 %v4676, %v4676
        %v4709 = vmul.f32 %v4677, %v4677
        %v4710 = vmul.f32 %v4678, %v4678
        %v4711 = vmul.f32 %v4679, %v4679
        %v4712 = vmul.f32 %v4680, %v4680
        %v4713 = vmul.f32 %v4681, %v4681
        %v4714 = vmul.f32 %v4682, %v4682
        %v4715 = vmul.f32 %v4683, %v4683
        %v4716 = vmul.f32 %v4684, %v4684
        %v4717 = vmul.f32 %v4685, %v4685
        %v4718 = vmul.f32 %v4686, %v4686
        %v4719 = vmul.f32 %v4687, %v4687
        %v4720 = vmul.f32 %v4688, %v4688
        %v4721 = vmul.f32 %v4689, %v4689
        %v4722 = vmul.f32 %v4690, %v4690
        %v4723 = vmul.f32 %v4691, %v4691
        %v4724 = vmul.f32 %v4692, %v4692
        %v4725 = vmul.f32 %v4693, %v4693
        %v4726 = vmul.f32 %v4694, %v4694
        %v4727 = vmul.f32 %v4695, %v4695
        %v4728 = vmul.f32 %v4696, %v4696
        %v4729 = vmul.f32 %v4697, %v4697
        %v4730 = vmul.f32 %v4698, %v4698
        %v4731 = vmul.f32 %v4699, %v4699
        %v4732 = vmul.f32 %v4700, %v4700
        %v4733 = vadd.f32 %v4701, %v4702
        %v4734 = vadd.f32 %v4733, %v4703
        %v4735 = vadd.f32 %v4734, %v4704
        %v4736 = vadd.f32 %v4735, %v4705
        %v4737 = vadd.f32 %v4736, %v4706
        %v4738 = vadd.f32 %v4737, %v4707
        %v4739 = vadd.f32 %v4738, %v4708
        %v4740 = vadd.f32 %v4739, %v4709
        %v4741 = vadd.f32 %v4740, %v4710
        %v4742 = vadd.f32 %v4741, %v4711
        %v4743 = vadd.f32 %v4742, %v4712
        %v4744 = vadd.f32 %v4743, %v4713
        %v4745 = vadd.f32 %v4744, %v4714
        %v4746 = vadd.f32 %v4745, %v4715
        %v4747 = vadd.f32 %v4746, %v4716
        %v4748 = vadd.f32 %v4747, %v4717
        %v4749 = vadd.f32 %v4748, %v4718
        %v4750 = vadd.f32 %v4749, %v4719
        %v4751 = vadd.f32 %v4750, %v4720
        %v4752 = vadd.f32 %v4751, %v4721
        %v4753 = vadd.f32 %v4752, %v4722
        %v4754 = vadd.f32 %v4753, %v4723
        %v4755 = vadd.f32 %v4754, %v4724
        %v4756 = vadd.f32 %v4755, %v4725
        %v4757 = vadd.f32 %v4756, %v4726
        %v4758 = vadd.f32 %v4757, %v4727
        %v4759 = vadd.f32 %v4758, %v4728
        %v4760 = vadd.f32 %v4759, %v4729
        %v4761 = vadd.f32 %v4760, %v4730
        %v4762 = vadd.f32 %v4761, %v4731
        %v4763 = vadd.f32 %v4762, %v4732
        %v4764 = vrot.slane %v4763, 4
        %v4765 = vadd.f32 %v4763, %v4764
        %v4766 = vrot.slane %v4765, 2
        %v4767 = vadd.f32 %v4765, %v4766
        %v4768 = vrot.slane %v4767, 1
        %v4769 = vadd.f32 %v4767, %v4768
        %v4770 = vmul.f32 %v4769, 0.00390625
        %v4771 = vadd.f32 %v4770, 1e-05
        %v4772 = vrsqrt.pop %v4771
        %v4773 = vmul.f32 %v4669, %v4772
        %v4774 = vmul.f32 %v4670, %v4772
        %v4775 = vmul.f32 %v4671, %v4772
        %v4776 = vmul.f32 %v4672, %v4772
        %v4777 = vmul.f32 %v4673, %v4772
        %v4778 = vmul.f32 %v4674, %v4772
        %v4779 = vmul.f32 %v4675, %v4772
        %v4780 = vmul.f32 %v4676, %v4772
        %v4781 = vmul.f32 %v4677, %v4772
        %v4782 = vmul.f32 %v4678, %v4772
        %v4783 = vmul.f32 %v4679, %v4772
        %v4784 = vmul.f32 %v4680, %v4772
        %v4785 = vmul.f32 %v4681, %v4772
        %v4786 = vmul.f32 %v4682, %v4772
        %v4787 = vmul.f32 %v4683, %v4772
        %v4788 = vmul.f32 %v4684, %v4772
        %v4789 = vmul.f32 %v4685, %v4772
        %v4790 = vmul.f32 %v4686, %v4772
        %v4791 = vmul.f32 %v4687, %v4772
        %v4792 = vmul.f32 %v4688, %v4772
        %v4793 = vmul.f32 %v4689, %v4772
        %v4794 = vmul.f32 %v4690, %v4772
        %v4795 = vmul.f32 %v4691, %v4772
        %v4796 = vmul.f32 %v4692, %v4772
        %v4797 = vmul.f32 %v4693, %v4772
        %v4798 = vmul.f32 %v4694, %v4772
        %v4799 = vmul.f32 %v4695, %v4772
        %v4800 = vmul.f32 %v4696, %v4772
        %v4801 = vmul.f32 %v4697, %v4772
        %v4802 = vmul.f32 %v4698, %v4772
        %v4803 = vmul.f32 %v4699, %v4772
        %v4804 = vmul.f32 %v4700, %v4772
        %v4805 = vsel %vm256, %v223, 0.0
        %v4806 = vsel %vm256, %v224, 0.0
        %v4807 = vsel %vm256, %v225, 0.0
        %v4808 = vsel %vm256, %v226, 0.0
        %v4809 = vsel %vm256, %v227, 0.0
        %v4810 = vsel %vm256, %v228, 0.0
        %v4811 = vsel %vm256, %v229, 0.0
        %v4812 = vsel %vm256, %v230, 0.0
        %v4813 = vsel %vm256, %v231, 0.0
        %v4814 = vsel %vm256, %v232, 0.0
        %v4815 = vsel %vm256, %v233, 0.0
        %v4816 = vsel %vm256, %v234, 0.0
        %v4817 = vsel %vm256, %v235, 0.0
        %v4818 = vsel %vm256, %v236, 0.0
        %v4819 = vsel %vm256, %v237, 0.0
        %v4820 = vsel %vm256, %v238, 0.0
        %v4821 = vsel %vm256, %v239, 0.0
        %v4822 = vsel %vm256, %v240, 0.0
        %v4823 = vsel %vm256, %v241, 0.0
        %v4824 = vsel %vm256, %v242, 0.0
        %v4825 = vsel %vm256, %v243, 0.0
        %v4826 = vsel %vm256, %v244, 0.0
        %v4827 = vsel %vm256, %v245, 0.0
        %v4828 = vsel %vm256, %v246, 0.0
        %v4829 = vsel %vm256, %v247, 0.0
        %v4830 = vsel %vm256, %v248, 0.0
        %v4831 = vsel %vm256, %v249, 0.0
        %v4832 = vsel %vm256, %v250, 0.0
        %v4833 = vsel %vm256, %v251, 0.0
        %v4834 = vsel %vm256, %v252, 0.0
        %v4835 = vsel %vm256, %v253, 0.0
        %v4836 = vsel %vm256, %v254, 0.0
        %v4837 = vadd.f32 %v4773, %v4805
        %v4838 = vadd.f32 %v4774, %v4806
        %v4839 = vadd.f32 %v4775, %v4807
        %v4840 = vadd.f32 %v4776, %v4808
        %v4841 = vadd.f32 %v4777, %v4809
        %v4842 = vadd.f32 %v4778, %v4810
        %v4843 = vadd.f32 %v4779, %v4811
        %v4844 = vadd.f32 %v4780, %v4812
        %v4845 = vadd.f32 %v4781, %v4813
        %v4846 = vadd.f32 %v4782, %v4814
        %v4847 = vadd.f32 %v4783, %v4815
        %v4848 = vadd.f32 %v4784, %v4816
        %v4849 = vadd.f32 %v4785, %v4817
        %v4850 = vadd.f32 %v4786, %v4818
        %v4851 = vadd.f32 %v4787, %v4819
        %v4852 = vadd.f32 %v4788, %v4820
        %v4853 = vadd.f32 %v4789, %v4821
        %v4854 = vadd.f32 %v4790, %v4822
        %v4855 = vadd.f32 %v4791, %v4823
        %v4856 = vadd.f32 %v4792, %v4824
        %v4857 = vadd.f32 %v4793, %v4825
        %v4858 = vadd.f32 %v4794, %v4826
        %v4859 = vadd.f32 %v4795, %v4827
        %v4860 = vadd.f32 %v4796, %v4828
        %v4861 = vadd.f32 %v4797, %v4829
        %v4862 = vadd.f32 %v4798, %v4830
        %v4863 = vadd.f32 %v4799, %v4831
        %v4864 = vadd.f32 %v4800, %v4832
        %v4865 = vadd.f32 %v4801, %v4833
        %v4866 = vadd.f32 %v4802, %v4834
        %v4867 = vadd.f32 %v4803, %v4835
        %v4868 = vadd.f32 %v4804, %v4836
        %4869 = vst [vmem:[%s217] sm:$0xff] %v4837
        %4870 = vst [vmem:[%s217 + $0x8] sm:$0xff] %v4838
        %4871 = vst [vmem:[%s217 + $0x10] sm:$0xff] %v4839
        %4872 = vst [vmem:[%s217 + $0x18] sm:$0xff] %v4840
        %4873 = vst [vmem:[%s217 + $0x20] sm:$0xff] %v4841
        %4874 = vst [vmem:[%s217 + $0x28] sm:$0xff] %v4842
        %4875 = vst [vmem:[%s217 + $0x30] sm:$0xff] %v4843
        %4876 = vst [vmem:[%s217 + $0x38] sm:$0xff] %v4844
        %4877 = vst [vmem:[%s217 + $0x40] sm:$0xff] %v4845
        %4878 = vst [vmem:[%s217 + $0x48] sm:$0xff] %v4846
        %4879 = vst [vmem:[%s217 + $0x50] sm:$0xff] %v4847
        %4880 = vst [vmem:[%s217 + $0x58] sm:$0xff] %v4848
        %4881 = vst [vmem:[%s217 + $0x60] sm:$0xff] %v4849
        %4882 = vst [vmem:[%s217 + $0x68] sm:$0xff] %v4850
        %4883 = vst [vmem:[%s217 + $0x70] sm:$0xff] %v4851
        %4884 = vst [vmem:[%s217 + $0x78] sm:$0xff] %v4852
        %4885 = vst [vmem:[%s217 + $0x80] sm:$0xff] %v4853
        %4886 = vst [vmem:[%s217 + $0x88] sm:$0xff] %v4854
        %4887 = vst [vmem:[%s217 + $0x90] sm:$0xff] %v4855
        %4888 = vst [vmem:[%s217 + $0x98] sm:$0xff] %v4856
        %4889 = vst [vmem:[%s217 + $0xa0] sm:$0xff] %v4857
        %4890 = vst [vmem:[%s217 + $0xa8] sm:$0xff] %v4858
        %4891 = vst [vmem:[%s217 + $0xb0] sm:$0xff] %v4859
        %4892 = vst [vmem:[%s217 + $0xb8] sm:$0xff] %v4860
        %4893 = vst [vmem:[%s217 + $0xc0] sm:$0xff] %v4861
        %4894 = vst [vmem:[%s217 + $0xc8] sm:$0xff] %v4862
        %4895 = vst [vmem:[%s217 + $0xd0] sm:$0xff] %v4863
        %4896 = vst [vmem:[%s217 + $0xd8] sm:$0xff] %v4864
        %4897 = vst [vmem:[%s217 + $0xe0] sm:$0xff] %v4865
        %4898 = vst [vmem:[%s217 + $0xe8] sm:$0xff] %v4866
        %4899 = vst [vmem:[%s217 + $0xf0] sm:$0xff] %v4867
        %4900 = vst [vmem:[%s217 + $0xf8] sm:$0xff] %v4868
        %s4901 = sand.u32 %s137, 1
        %s4902 = scalar_lea.sflag [#allocation5], %s4901
        %s4903 = sand.u32 %s137, 1
        %s4904 = smul.addr %s4903, 256
        %s4905 = scalar_lea.vmem [#allocation4], %s4904
        // Predicated region
        $region41: #{tpu_custom_call.1} parent=39 // pred_check
          %p4906 = pneg %p147
        $region42: #{tpu_custom_call.1} parent=39 // pred_check_branch
          %4908 = sbr.rel (%p4906) target = $region44
        $region43: #{tpu_custom_call.1} parent=39 // pred_region
          %s4910 = ssub.s32 4096, 4096
          %4911 = vsyncadd %s4902, %s4910
          %s4912 = smul.addr %s19, 32
          %s4913 = smul.addr %s4912, 128
          %s4914 = scalar_lea.hbm %s5, %s4913
          %s4915 = sshll.u32 %s4905, 4
          %s4916 = int_to_ptr.vmem [resolvable:$true] %s4915
          %4921 = dma.vmem_to_hbm [thread:$0]  %s4916, 4096, %s4914, %s4902, 128, 128, 8
        $region44: #{tpu_custom_call.1} parent=39 // pred_fallthru
          _
      $region40: #{tpu_custom_call.1} parent=5 // pred_fallthru
        _
      %p4922 = scmp.le.s32.totalorder 2, %s14
      // Predicated region
      $region45: #{tpu_custom_call.1} parent=5 // pred_check
        %p4923 = pneg %p4922
      $region46: #{tpu_custom_call.1} parent=5 // pred_check_branch
        %4925 = sbr.rel (%p4923) target = $region48
      $region47: #{tpu_custom_call.1} parent=5 // pred_region
        %s4926 = ssub.s32 %s14, 2
        // Predicated region
        $region49: #{tpu_custom_call.1} parent=47 // pred_check
          %p4927 = pneg %p153
        $region50: #{tpu_custom_call.1} parent=47 // pred_check_branch
          %4929 = sbr.rel (%p4927) target = $region52
        $region51: #{tpu_custom_call.1} parent=47 // pred_region
          %s4930 = sand.u32 %s138, 1
          %s4931 = scalar_lea.sflag [#allocation5], %s4930
          %s4932 = sand.u32 %s138, 1
          %s4933 = smul.addr %s4932, 256
          %s4934 = scalar_lea.vmem [#allocation4], %s4933
          %4935 = dma.done %s4931, 4096
        $region52: #{tpu_custom_call.1} parent=47 // pred_fallthru
          _
      $region48: #{tpu_custom_call.1} parent=5 // pred_fallthru
        _
    $region6: #{tpu_custom_call.1} parent=1 // loop_footer
      %s18 = sadd.s32 1, %s14
    $region7: #{tpu_custom_call.1} parent=1 // loop_footer_branch
      %13 = sbr.rel target = $region3
    $region8: #{tpu_custom_call.1} parent=1 // loop_exit
      _
    %4936 = vsyncpa [#allocation5], 1
    %s4937 = scalar_lea.sflag [#allocation5], 1
    %4938 = vsyncpa %s4937, 1

</llo_original>
